<compile_context>
chip_gen: v6e
topology: v6e:2x2x1
jax: 0.10.0
libtpu: 0.0.40
codegen_flags: <defaults>
</compile_context>

<pallas_src>
import math

import jax
import jax.numpy as jnp
from jax.experimental import pallas as pl
from jax.experimental.pallas import tpu as pltpu

# JEPA factories use LayerNorm eps=1e-6 (PyTorch nn.LayerNorm default is 1e-5);
# keep consistent with the target checkpoint.
EPS = 1e-6


def _layernorm(x, gamma, beta):
    mu = jnp.mean(x, axis=-1, keepdims=True)
    var = jnp.mean((x - mu) ** 2, axis=-1, keepdims=True)
    return (x - mu) * jax.lax.rsqrt(var + EPS) * gamma + beta


def _attentive_pooler_kernel(
    seqs_ref, qtok_ref, wkq_ref, bkq_ref, hmask_ref,
    ln1_g_ref, ln1_b_ref,
    wv_ref, bv_ref, wo_ref, bo_ref,
    ln2_g_ref, ln2_b_ref,
    w1_ref, b1_ref, w2_ref, b2_ref,
    out_ref,
):
    TB, S, D = seqs_ref.shape
    Q = qtok_ref.shape[0]
    H = hmask_ref.shape[0]
    QH = Q * H
    cd = wv_ref.dtype                       # MXU operand dtype (bf16 by default)

    # ---- cross_attn_layer_norm on the encoder rows (f32 stats), flattened to
    #      TB*S rows so every projection is a wide-M MXU matmul ----
    enc = seqs_ref[...].astype(jnp.float32).reshape(TB * S, D)
    enc_ln = _layernorm(enc, ln1_g_ref[...], ln1_b_ref[...])
    enc_cd = enc_ln.astype(cd)

    # ---- attention scores: Wk and the pre-scaled query projection are fused
    #      (block-diagonally per head) into one (D, Q*H) weight in the wrapper,
    #      so K is never materialized and there is no per-head lane slicing ----
    scores = jnp.dot(enc_cd, wkq_ref[...],
                     preferred_element_type=jnp.float32) + bkq_ref[...]   # (TB*S, QH)
    scores = jnp.swapaxes(scores.reshape(TB, S, QH), 1, 2)                # (TB, QH, S)

    # softmax over the key axis S (f32, lane reduction)
    m = jnp.max(scores, axis=-1, keepdims=True)
    p = jnp.exp(scores - m)
    p = p / jnp.sum(p, axis=-1, keepdims=True)                            # (TB, QH, S)

    # ---- V projection: one (TB*S, D) x (D, D) MXU call; cast to the compute
    #      dtype once (no duplicate f32 copy kept) ----
    v = (jnp.dot(enc_cd, wv_ref[...], preferred_element_type=jnp.float32)
         + bv_ref[...]).astype(cd)
    v3 = v.reshape(TB, S, D)

    # ---- P @ V: all (q, h) rows in one batched matmul (Q*H rows fit a single
    #      MXU push); the head structure is applied afterwards with the (H, D)
    #      head mask (VPU multiply + small sublane reduce) ----
    full = jnp.einsum("bks,bsd->bkd", p.astype(cd), v3,
                      preferred_element_type=jnp.float32)                 # (TB, QH, D)
    o = jnp.sum(full.reshape(TB, Q, H, D) * hmask_ref[...], axis=2)       # (TB, Q, D)

    # ---- output projection (single MXU call with K=D) + residual with the
    #      raw (broadcast) query tokens ----
    attn = jnp.dot(o.reshape(TB * Q, D).astype(cd), wo_ref[...],
                   preferred_element_type=jnp.float32) + bo_ref[...]
    x = attn.reshape(TB, Q, D) + qtok_ref[...][None]                      # (TB, Q, D) f32

    # ---- FFN block: LN -> Linear -> GELU -> Linear, + residual ----
    x2 = x.reshape(TB * Q, D)
    y = _layernorm(x2, ln2_g_ref[...], ln2_b_ref[...])
    h1 = jnp.dot(y.astype(cd), w1_ref[...],
                 preferred_element_type=jnp.float32) + b1_ref[...]
    # TODO(synk): PyTorch nn.GELU defaults to exact (erf) GELU; tanh approx is
    # used here (and in the in-script reference) for a guaranteed Mosaic lowering.
    h1 = jax.nn.gelu(h1, approximate=True)
    h2 = jnp.dot(h1.astype(cd), w2_ref[...],
                 preferred_element_type=jnp.float32) + b2_ref[...]

    out_ref[...] = (h2.reshape(TB, Q, D) + x).astype(out_ref.dtype)


def _vmem_capacity_bytes():
    try:
        return int(pltpu.get_tpu_info().vmem_capacity_bytes)
    except Exception:
        return 64 << 20          # conservative: v7x per-TensorCore VMEM


def _pick_tb(B, S, D, F, Q, H, cd_size, seq_isize, out_isize,
             batch_block, vmem_cap, target_rows=512):
    """Batch elements per grid step: aim for >= target_rows projection rows per
    step, keep the grid >= 2 (two v7x TensorCores), and fit resident weights +
    per-step activations inside the per-core VMEM budget."""
    qh = Q * H
    # Resident constants (single-buffered weights in compute dtype + small f32 bits).
    wbytes = cd_size * (D * qh + 2 * D * D + 2 * D * F) \
        + 4 * (H * D + Q * D + qh + 8 * D + F)

    def act_bytes(tb):
        rows = tb * S
        return (2 * rows * D * seq_isize            # double-buffered input block
                + 2 * tb * Q * D * out_isize        # double-buffered output block
                + rows * D * (4 + 2 * cd_size)      # enc (f32) + enc_cd + v
                + 2 * rows * max(qh, 128) * 4       # scores + probs (lane padded)
                + tb * max(qh, 8) * D * 4           # P@V partial (f32)
                + tb * Q * (4 * D + 2 * F) * 4)     # attn / x / FFN activations

    if batch_block is not None:
        want = min(max(int(batch_block), 1), B)
    else:
        want = max(1, min(B, -(-target_rows // S)))
        if B >= 2:
            want = max(1, min(want, B // 2))        # keep grid >= 2 for megacore

    tb = 1
    for cand in range(want, 0, -1):
        if B % cand:                                # NOTE: no ragged-batch handling
            continue
        tb = cand
        if wbytes + int(1.25 * act_bytes(cand)) <= vmem_cap - (4 << 20):
            break

    vmem_limit = int(min(vmem_cap - (2 << 20),
                         max(32 << 20,
                             wbytes + int(1.5 * act_bytes(tb)) + (16 << 20))))
    return tb, vmem_limit


def attentive_pooler(seqs, params, *, num_heads, batch_block=None,
                     compute_dtype=jnp.bfloat16):
    B, S, D = seqs.shape
    Q = params["query_tokens"].shape[1]
    F = params["w1"].shape[1]
    H = num_heads
    assert D % H == 0, "model_dim must be divisible by num_heads"
    Dh = D // H
    cd = jnp.dtype(seqs.dtype) if compute_dtype is None else jnp.dtype(compute_dtype)

    f32 = jnp.float32
    hi = jax.lax.Precision.HIGHEST

    # Hoisted, batch-invariant query projection with the 1/sqrt(Dh) scale folded in.
    qtok = params["query_tokens"][0].astype(f32)                              # (Q, D)
    qscaled = (jnp.dot(qtok, params["wq"].astype(f32), precision=hi)
               + params["bq"].astype(f32)) / math.sqrt(Dh)                    # (Q, D)

    # Fold it block-diagonally (per head) into Wk so the kernel computes
    # scores = LN(seqs) @ Wkq + bkq directly (column c = q*H + h).
    head_of_d = jnp.arange(D) // Dh
    col_h = jnp.arange(Q * H) % H
    col_q = jnp.arange(Q * H) // H
    qblk = qscaled.T[:, col_q] * (head_of_d[:, None] == col_h[None, :]).astype(f32)
    wkq = jnp.dot(params["wk"].astype(f32), qblk, precision=hi)               # (D, Q*H)
    bkq = jnp.dot(params["bk"].astype(f32), qblk, precision=hi)               # (1, Q*H)

    # (H, D) head-ownership mask used to pick each head's Dh lanes after P@V.
    hmask = (jnp.arange(H)[:, None] == head_of_d[None, :]).astype(f32)

    cast = lambda w: w.astype(cd)
    seqs_in = seqs.astype(cd)            # stream the only per-step tensor narrow

    vmem_cap = _vmem_capacity_bytes()
    TB, vmem_limit = _pick_tb(B, S, D, F, Q, H, cd.itemsize,
                              seqs_in.dtype.itemsize, seqs.dtype.itemsize,
                              batch_block, vmem_cap)
    grid = (B // TB,)

    operands = (
        seqs_in, qtok, cast(wkq), bkq, hmask,
        params["ln1_g"].astype(f32), params["ln1_b"].astype(f32),
        cast(params["wv"]), params["bv"].astype(f32),
        cast(params["wo"]), params["bo"].astype(f32),
        params["ln2_g"].astype(f32), params["ln2_b"].astype(f32),
        cast(params["w1"]), params["b1"].astype(f32),
        cast(params["w2"]), params["b2"].astype(f32),
    )

    def call(single_buffer_consts):
        def const(shape):
            imap = lambda b, _nd=len(shape): (0,) * _nd
            if single_buffer_consts:
                # Constant index_map never re-DMAs; one buffer (not the default
                # two) halves resident-weight VMEM.
                return pl.BlockSpec(shape, imap, pipeline_mode=pl.Buffered(1))
            return pl.BlockSpec(shape, imap)

        in_specs = [
            pl.BlockSpec((TB, S, D), lambda b: (b, 0, 0)),   # seqs (per-step block)
            const((Q, D)),                                   # query tokens (residual)
            const((D, Q * H)), const((1, Q * H)),            # fused Wk@Qblk, bk@Qblk
            const((H, D)),                                   # head mask
            const((1, D)), const((1, D)),                    # ln1 gamma/beta
            const((D, D)), const((1, D)),                    # Wv, bv
            const((D, D)), const((1, D)),                    # Wo, bo
            const((1, D)), const((1, D)),                    # ln2 gamma/beta
            const((D, F)), const((1, F)),                    # W1, b1
            const((F, D)), const((1, D)),                    # W2, b2
        ]
        return pl.pallas_call(
            _attentive_pooler_kernel,
            out_shape=jax.ShapeDtypeStruct((B, Q, D), seqs.dtype),
            grid=grid,
            in_specs=in_specs,
            out_specs=pl.BlockSpec((TB, Q, D), lambda b: (b, 0, 0)),
            compiler_params=pltpu.CompilerParams(
                dimension_semantics=("parallel",),
                vmem_limit_bytes=vmem_limit,
            ),
        )(*operands)

    try:
        return call(True)
    except Exception:
        # Fallback if this JAX version rejects pl.Buffered(1) on pallas_call
        # BlockSpecs: default double buffering of the constants.
        return call(False)


def attentive_pooler_reference(seqs, p, *, num_heads):
    """Pure-JAX reference for correctness checking."""
    B, S, D = seqs.shape
    Q = p["query_tokens"].shape[1]
    Dh = D // num_heads
    qtok = jnp.broadcast_to(p["query_tokens"], (B, Q, D))

    enc_ln = _layernorm(seqs, p["ln1_g"], p["ln1_b"])
    q = qtok @ p["wq"] + p["bq"]
    k = enc_ln @ p["wk"] + p["bk"]
    v = enc_ln @ p["wv"] + p["bv"]

    qh = q.reshape(B, Q, num_heads, Dh).transpose(0, 2, 1, 3)
    kh = k.reshape(B, S, num_heads, Dh).transpose(0, 2, 1, 3)
    vh = v.reshape(B, S, num_heads, Dh).transpose(0, 2, 1, 3)
    scores = jnp.einsum("bhqd,bhkd->bhqk", qh, kh) / math.sqrt(Dh)
    probs = jax.nn.softmax(scores, axis=-1)
    o = jnp.einsum("bhqk,bhkd->bhqd", probs, vh).transpose(0, 2, 1, 3).reshape(B, Q, D)

    attn = o @ p["wo"] + p["bo"]
    x = attn + qtok
    y = _layernorm(x, p["ln2_g"], p["ln2_b"])
    ffn = jax.nn.gelu(y @ p["w1"] + p["b1"], approximate=True) @ p["w2"] + p["b2"]
    return ffn + x


def init_params(key, model_dim, num_queries, ffn_inner_dim, init_std=0.02):
    D, Q, F = model_dim, num_queries, ffn_inner_dim
    ks = jax.random.split(key, 8)

    def tn(k, shape, std):
        return jax.random.truncated_normal(k, -2.0, 2.0, shape, jnp.float32) * std

    return {
        "query_tokens": tn(ks[0], (1, Q, D), init_std),
        "ln1_g": jnp.ones((1, D), jnp.float32),
        "ln1_b": jnp.zeros((1, D), jnp.float32),
        "wq": tn(ks[1], (D, D), init_std), "bq": jnp.zeros((1, D), jnp.float32),
        "wk": tn(ks[2], (D, D), init_std), "bk": jnp.zeros((1, D), jnp.float32),
        "wv": tn(ks[3], (D, D), init_std), "bv": jnp.zeros((1, D), jnp.float32),
        "wo": tn(ks[4], (D, D), init_std), "bo": jnp.zeros((1, D), jnp.float32),
        "ln2_g": jnp.ones((1, D), jnp.float32),
        "ln2_b": jnp.zeros((1, D), jnp.float32),
        "w1": tn(ks[5], (D, F), init_std), "b1": jnp.zeros((1, F), jnp.float32),
        "w2": tn(ks[6], (F, D), init_std), "b2": jnp.zeros((1, D), jnp.float32),
    }


if __name__ == "__main__":
    # Small but MXU/lane-friendly shapes: B=8, S=64 -> TB=4 batch elements per
    # grid step (TB*S = 256 projection rows per step), grid=(2,) so both v7x
    # TensorCores get work. D=128 (one lane tile), H=4, Q=1, F=4*D.
    B, S, D = 8, 64, 128
    Q, H, F = 1, 4, 512

    key = jax.random.PRNGKey(0)
    k_x, k_p = jax.random.split(key)
    seqs = jax.random.normal(k_x, (B, S, D), jnp.float32)
    params = init_params(k_p, model_dim=D, num_queries=Q, ffn_inner_dim=F)

    ref = attentive_pooler_reference(seqs, params, num_heads=H)

    # f32 MXU-operand path: tight check of the fused-weight formulation.
    out_f32 = jax.block_until_ready(
        attentive_pooler(seqs, params, num_heads=H, compute_dtype=jnp.float32))
    assert out_f32.shape == (B, Q, D)
    assert jnp.allclose(out_f32, ref, rtol=5e-3, atol=5e-3), "f32 path mismatch"

    # Default bf16 MXU-operand path (the performance configuration).
    out_bf16 = jax.block_until_ready(
        attentive_pooler(seqs, params, num_heads=H))
    assert out_bf16.shape == (B, Q, D)
    assert jnp.allclose(out_bf16, ref, rtol=3e-2, atol=3e-2), "bf16 path mismatch"

    print("KERNEL_OK")
</pallas_src>

<mosaic_0001>
module attributes {stable_mosaic.version = 11 : i64} {
  func.func @_attentive_pooler_kernel(%arg0: i32, %arg1: memref<4x64x128xf32, #tpu.memory_space<vmem>>, %arg2: memref<1x128xf32, #tpu.memory_space<vmem>>, %arg3: memref<128x4xf32, #tpu.memory_space<vmem>>, %arg4: memref<1x4xf32, #tpu.memory_space<vmem>>, %arg5: memref<4x128xf32, #tpu.memory_space<vmem>>, %arg6: memref<1x128xf32, #tpu.memory_space<vmem>>, %arg7: memref<1x128xf32, #tpu.memory_space<vmem>>, %arg8: memref<128x128xf32, #tpu.memory_space<vmem>>, %arg9: memref<1x128xf32, #tpu.memory_space<vmem>>, %arg10: memref<128x128xf32, #tpu.memory_space<vmem>>, %arg11: memref<1x128xf32, #tpu.memory_space<vmem>>, %arg12: memref<1x128xf32, #tpu.memory_space<vmem>>, %arg13: memref<1x128xf32, #tpu.memory_space<vmem>>, %arg14: memref<128x512xf32, #tpu.memory_space<vmem>>, %arg15: memref<1x512xf32, #tpu.memory_space<vmem>>, %arg16: memref<512x128xf32, #tpu.memory_space<vmem>>, %arg17: memref<1x128xf32, #tpu.memory_space<vmem>>, %arg18: memref<4x1x128xf32, #tpu.memory_space<vmem>>) attributes {dimension_semantics = [#tpu.dimension_semantics<parallel>], iteration_bounds = array<i64: 2>, scalar_prefetch = 0 : i64, scratch_operands = 0 : i64, tpu.core_type = #tpu.core_type<tc>, window_params = [{transform_indices = @transform_0, window_bounds = array<i64: 4, 64, 128>}, {pipeline_mode = #tpu.pipeline_mode<synchronous>, transform_indices = @transform_1, window_bounds = array<i64: 1, 128>}, {pipeline_mode = #tpu.pipeline_mode<synchronous>, transform_indices = @transform_2, window_bounds = array<i64: 128, 4>}, {pipeline_mode = #tpu.pipeline_mode<synchronous>, transform_indices = @transform_3, window_bounds = array<i64: 1, 4>}, {pipeline_mode = #tpu.pipeline_mode<synchronous>, transform_indices = @transform_4, window_bounds = array<i64: 4, 128>}, {pipeline_mode = #tpu.pipeline_mode<synchronous>, transform_indices = @transform_5, window_bounds = array<i64: 1, 128>}, {pipeline_mode = #tpu.pipeline_mode<synchronous>, transform_indices = @transform_6, window_bounds = array<i64: 1, 128>}, {pipeline_mode = #tpu.pipeline_mode<synchronous>, transform_indices = @transform_7, window_bounds = array<i64: 128, 128>}, {pipeline_mode = #tpu.pipeline_mode<synchronous>, transform_indices = @transform_8, window_bounds = array<i64: 1, 128>}, {pipeline_mode = #tpu.pipeline_mode<synchronous>, transform_indices = @transform_9, window_bounds = array<i64: 128, 128>}, {pipeline_mode = #tpu.pipeline_mode<synchronous>, transform_indices = @transform_10, window_bounds = array<i64: 1, 128>}, {pipeline_mode = #tpu.pipeline_mode<synchronous>, transform_indices = @transform_11, window_bounds = array<i64: 1, 128>}, {pipeline_mode = #tpu.pipeline_mode<synchronous>, transform_indices = @transform_12, window_bounds = array<i64: 1, 128>}, {pipeline_mode = #tpu.pipeline_mode<synchronous>, transform_indices = @transform_13, window_bounds = array<i64: 128, 512>}, {pipeline_mode = #tpu.pipeline_mode<synchronous>, transform_indices = @transform_14, window_bounds = array<i64: 1, 512>}, {pipeline_mode = #tpu.pipeline_mode<synchronous>, transform_indices = @transform_15, window_bounds = array<i64: 512, 128>}, {pipeline_mode = #tpu.pipeline_mode<synchronous>, transform_indices = @transform_16, window_bounds = array<i64: 1, 128>}, {transform_indices = @transform_17, window_bounds = array<i64: 4, 1, 128>}]} {
    %c0 = arith.constant 0 : index
    %c0_0 = arith.constant 0 : index
    %c0_1 = arith.constant 0 : index
    %0 = vector.load %arg1[%c0, %c0_0, %c0_1] : memref<4x64x128xf32, #tpu.memory_space<vmem>>, vector<4x64x128xf32>
    %1 = vector.shape_cast %0 : vector<4x64x128xf32> to vector<256x128xf32>
    %c0_2 = arith.constant 0 : index
    %c0_3 = arith.constant 0 : index
    %2 = vector.load %arg6[%c0_2, %c0_3] : memref<1x128xf32, #tpu.memory_space<vmem>>, vector<1x128xf32>
    %c0_4 = arith.constant 0 : index
    %c0_5 = arith.constant 0 : index
    %3 = vector.load %arg7[%c0_4, %c0_5] : memref<1x128xf32, #tpu.memory_space<vmem>>, vector<1x128xf32>
    %cst = arith.constant dense<0.000000e+00> : vector<256xf32>
    %4 = vector.multi_reduction <add>, %1, %cst [1] : vector<256x128xf32> to vector<256xf32>
    %5 = vector.shape_cast %4 : vector<256xf32> to vector<256x1xf32>
    %cst_6 = arith.constant 1.280000e+02 : f32
    %6 = vector.broadcast %cst_6 : f32 to vector<256x1xf32>
    %7 = arith.divf %5, %6 : vector<256x1xf32>
    %8 = vector.broadcast %7 : vector<256x1xf32> to vector<256x128xf32>
    %9 = arith.subf %1, %8 : vector<256x128xf32>
    %10 = arith.mulf %9, %9 : vector<256x128xf32>
    %cst_7 = arith.constant dense<0.000000e+00> : vector<256xf32>
    %11 = vector.multi_reduction <add>, %10, %cst_7 [1] : vector<256x128xf32> to vector<256xf32>
    %12 = vector.shape_cast %11 : vector<256xf32> to vector<256x1xf32>
    %cst_8 = arith.constant 1.280000e+02 : f32
    %13 = vector.broadcast %cst_8 : f32 to vector<256x1xf32>
    %14 = arith.divf %12, %13 : vector<256x1xf32>
    %15 = vector.broadcast %7 : vector<256x1xf32> to vector<256x128xf32>
    %16 = arith.subf %1, %15 : vector<256x128xf32>
    %cst_9 = arith.constant 9.99999997E-7 : f32
    %17 = vector.broadcast %cst_9 : f32 to vector<256x1xf32>
    %18 = arith.addf %14, %17 : vector<256x1xf32>
    %19 = math.rsqrt %18 : vector<256x1xf32>
    %20 = vector.broadcast %19 : vector<256x1xf32> to vector<256x128xf32>
    %21 = arith.mulf %16, %20 : vector<256x128xf32>
    %22 = vector.broadcast %2 : vector<1x128xf32> to vector<256x128xf32>
    %23 = arith.mulf %21, %22 : vector<256x128xf32>
    %24 = vector.broadcast %3 : vector<1x128xf32> to vector<256x128xf32>
    %25 = arith.addf %23, %24 : vector<256x128xf32>
    %c0_10 = arith.constant 0 : index
    %c0_11 = arith.constant 0 : index
    %26 = vector.load %arg3[%c0_10, %c0_11] : memref<128x4xf32, #tpu.memory_space<vmem>>, vector<128x4xf32>
    %cst_12 = arith.constant dense<0.000000e+00> : vector<256x4xf32>
    %27 = tpu.matmul %25, %26, %cst_12 {dimension_numbers = #tpu.dot_dimension_numbers<[1], [0], [0], [1], [0, 0, 1, 1], [], []>} : vector<256x128xf32>, vector<128x4xf32>, vector<256x4xf32> -> vector<256x4xf32>
    %c0_13 = arith.constant 0 : index
    %c0_14 = arith.constant 0 : index
    %28 = vector.load %arg4[%c0_13, %c0_14] : memref<1x4xf32, #tpu.memory_space<vmem>>, vector<1x4xf32>
    %29 = vector.broadcast %28 : vector<1x4xf32> to vector<256x4xf32>
    %30 = arith.addf %27, %29 : vector<256x4xf32>
    %31 = vector.shape_cast %30 : vector<256x4xf32> to vector<4x64x4xf32>
    %32 = tpu.transpose %31, [0, 2, 1] : vector<4x64x4xf32> -> vector<4x4x64xf32>
    %cst_15 = arith.constant dense<0xFF800000> : vector<4x4xf32>
    %33 = vector.multi_reduction <maximumf>, %32, %cst_15 [2] : vector<4x4x64xf32> to vector<4x4xf32>
    %34 = vector.shape_cast %33 : vector<4x4xf32> to vector<4x4x1xf32>
    %35 = vector.broadcast %34 : vector<4x4x1xf32> to vector<4x4x64xf32>
    %36 = arith.subf %32, %35 : vector<4x4x64xf32>
    %37 = math.exp %36 : vector<4x4x64xf32>
    %cst_16 = arith.constant dense<0.000000e+00> : vector<4x4xf32>
    %38 = vector.multi_reduction <add>, %37, %cst_16 [2] : vector<4x4x64xf32> to vector<4x4xf32>
    %39 = vector.shape_cast %38 : vector<4x4xf32> to vector<4x4x1xf32>
    %40 = vector.broadcast %39 : vector<4x4x1xf32> to vector<4x4x64xf32>
    %41 = arith.divf %37, %40 : vector<4x4x64xf32>
    %c0_17 = arith.constant 0 : index
    %c0_18 = arith.constant 0 : index
    %42 = vector.load %arg8[%c0_17, %c0_18] : memref<128x128xf32, #tpu.memory_space<vmem>>, vector<128x128xf32>
    %cst_19 = arith.constant dense<0.000000e+00> : vector<256x128xf32>
    %43 = tpu.matmul %25, %42, %cst_19 {dimension_numbers = #tpu.dot_dimension_numbers<[1], [0], [0], [1], [0, 0, 1, 1], [], []>} : vector<256x128xf32>, vector<128x128xf32>, vector<256x128xf32> -> vector<256x128xf32>
    %c0_20 = arith.constant 0 : index
    %c0_21 = arith.constant 0 : index
    %44 = vector.load %arg9[%c0_20, %c0_21] : memref<1x128xf32, #tpu.memory_space<vmem>>, vector<1x128xf32>
    %45 = vector.broadcast %44 : vector<1x128xf32> to vector<256x128xf32>
    %46 = arith.addf %43, %45 : vector<256x128xf32>
    %47 = vector.shape_cast %46 : vector<256x128xf32> to vector<4x64x128xf32>
    "tpu.trace_start"() <{level = 10 : i32, message = "bks,bsd->bkd"}> : () -> ()
    %cst_22 = arith.constant dense<0.000000e+00> : vector<4x4x128xf32>
    %48 = tpu.matmul %41, %47, %cst_22 {dimension_numbers = #tpu.dot_dimension_numbers<[2], [1], [1], [2], [0, 0, 0, 1, 1, 2], [0], [0]>} : vector<4x4x64xf32>, vector<4x64x128xf32>, vector<4x4x128xf32> -> vector<4x4x128xf32>
    "tpu.trace_stop"() : () -> ()
    %49 = vector.shape_cast %48 : vector<4x4x128xf32> to vector<4x1x4x128xf32>
    %c0_23 = arith.constant 0 : index
    %c0_24 = arith.constant 0 : index
    %50 = vector.load %arg5[%c0_23, %c0_24] : memref<4x128xf32, #tpu.memory_space<vmem>>, vector<4x128xf32>
    %51 = vector.shape_cast %50 : vector<4x128xf32> to vector<1x1x4x128xf32>
    %52 = vector.broadcast %51 : vector<1x1x4x128xf32> to vector<4x1x4x128xf32>
    %53 = arith.mulf %49, %52 : vector<4x1x4x128xf32>
    %cst_25 = arith.constant dense<0.000000e+00> : vector<4x1x128xf32>
    %54 = vector.multi_reduction <add>, %53, %cst_25 [2] : vector<4x1x4x128xf32> to vector<4x1x128xf32>
    %55 = vector.shape_cast %54 : vector<4x1x128xf32> to vector<4x128xf32>
    %c0_26 = arith.constant 0 : index
    %c0_27 = arith.constant 0 : index
    %56 = vector.load %arg10[%c0_26, %c0_27] : memref<128x128xf32, #tpu.memory_space<vmem>>, vector<128x128xf32>
    %cst_28 = arith.constant dense<0.000000e+00> : vector<4x128xf32>
    %57 = tpu.matmul %55, %56, %cst_28 {dimension_numbers = #tpu.dot_dimension_numbers<[1], [0], [0], [1], [0, 0, 1, 1], [], []>} : vector<4x128xf32>, vector<128x128xf32>, vector<4x128xf32> -> vector<4x128xf32>
    %c0_29 = arith.constant 0 : index
    %c0_30 = arith.constant 0 : index
    %58 = vector.load %arg11[%c0_29, %c0_30] : memref<1x128xf32, #tpu.memory_space<vmem>>, vector<1x128xf32>
    %59 = vector.broadcast %58 : vector<1x128xf32> to vector<4x128xf32>
    %60 = arith.addf %57, %59 : vector<4x128xf32>
    %61 = vector.shape_cast %60 : vector<4x128xf32> to vector<4x1x128xf32>
    %c0_31 = arith.constant 0 : index
    %c0_32 = arith.constant 0 : index
    %62 = vector.load %arg2[%c0_31, %c0_32] : memref<1x128xf32, #tpu.memory_space<vmem>>, vector<1x128xf32>
    %63 = vector.shape_cast %62 : vector<1x128xf32> to vector<1x1x128xf32>
    %64 = vector.broadcast %63 : vector<1x1x128xf32> to vector<4x1x128xf32>
    %65 = arith.addf %61, %64 : vector<4x1x128xf32>
    %66 = vector.shape_cast %65 : vector<4x1x128xf32> to vector<4x128xf32>
    %c0_33 = arith.constant 0 : index
    %c0_34 = arith.constant 0 : index
    %67 = vector.load %arg12[%c0_33, %c0_34] : memref<1x128xf32, #tpu.memory_space<vmem>>, vector<1x128xf32>
    %c0_35 = arith.constant 0 : index
    %c0_36 = arith.constant 0 : index
    %68 = vector.load %arg13[%c0_35, %c0_36] : memref<1x128xf32, #tpu.memory_space<vmem>>, vector<1x128xf32>
    %cst_37 = arith.constant dense<0.000000e+00> : vector<4xf32>
    %69 = vector.multi_reduction <add>, %66, %cst_37 [1] : vector<4x128xf32> to vector<4xf32>
    %70 = vector.shape_cast %69 : vector<4xf32> to vector<4x1xf32>
    %cst_38 = arith.constant 1.280000e+02 : f32
    %71 = vector.broadcast %cst_38 : f32 to vector<4x1xf32>
    %72 = arith.divf %70, %71 : vector<4x1xf32>
    %73 = vector.broadcast %72 : vector<4x1xf32> to vector<4x128xf32>
    %74 = arith.subf %66, %73 : vector<4x128xf32>
    %75 = arith.mulf %74, %74 : vector<4x128xf32>
    %cst_39 = arith.constant dense<0.000000e+00> : vector<4xf32>
    %76 = vector.multi_reduction <add>, %75, %cst_39 [1] : vector<4x128xf32> to vector<4xf32>
    %77 = vector.shape_cast %76 : vector<4xf32> to vector<4x1xf32>
    %cst_40 = arith.constant 1.280000e+02 : f32
    %78 = vector.broadcast %cst_40 : f32 to vector<4x1xf32>
    %79 = arith.divf %77, %78 : vector<4x1xf32>
    %80 = vector.broadcast %72 : vector<4x1xf32> to vector<4x128xf32>
    %81 = arith.subf %66, %80 : vector<4x128xf32>
    %cst_41 = arith.constant 9.99999997E-7 : f32
    %82 = vector.broadcast %cst_41 : f32 to vector<4x1xf32>
    %83 = arith.addf %79, %82 : vector<4x1xf32>
    %84 = math.rsqrt %83 : vector<4x1xf32>
    %85 = vector.broadcast %84 : vector<4x1xf32> to vector<4x128xf32>
    %86 = arith.mulf %81, %85 : vector<4x128xf32>
    %87 = vector.broadcast %67 : vector<1x128xf32> to vector<4x128xf32>
    %88 = arith.mulf %86, %87 : vector<4x128xf32>
    %89 = vector.broadcast %68 : vector<1x128xf32> to vector<4x128xf32>
    %90 = arith.addf %88, %89 : vector<4x128xf32>
    %c0_42 = arith.constant 0 : index
    %c0_43 = arith.constant 0 : index
    %91 = vector.load %arg14[%c0_42, %c0_43] : memref<128x512xf32, #tpu.memory_space<vmem>>, vector<128x512xf32>
    %cst_44 = arith.constant dense<0.000000e+00> : vector<4x512xf32>
    %92 = tpu.matmul %90, %91, %cst_44 {dimension_numbers = #tpu.dot_dimension_numbers<[1], [0], [0], [1], [0, 0, 1, 1], [], []>} : vector<4x128xf32>, vector<128x512xf32>, vector<4x512xf32> -> vector<4x512xf32>
    %c0_45 = arith.constant 0 : index
    %c0_46 = arith.constant 0 : index
    %93 = vector.load %arg15[%c0_45, %c0_46] : memref<1x512xf32, #tpu.memory_space<vmem>>, vector<1x512xf32>
    %94 = vector.broadcast %93 : vector<1x512xf32> to vector<4x512xf32>
    %95 = arith.addf %92, %94 : vector<4x512xf32>
    %96 = arith.mulf %95, %95 : vector<4x512xf32>
    %97 = arith.mulf %95, %96 : vector<4x512xf32>
    %cst_47 = arith.constant 4.471500e-02 : f32
    %98 = vector.broadcast %cst_47 : f32 to vector<4x512xf32>
    %99 = arith.mulf %98, %97 : vector<4x512xf32>
    %100 = arith.addf %95, %99 : vector<4x512xf32>
    %cst_48 = arith.constant 0.797884583 : f32
    %101 = vector.broadcast %cst_48 : f32 to vector<4x512xf32>
    %102 = arith.mulf %101, %100 : vector<4x512xf32>
    %103 = math.tanh %102 : vector<4x512xf32>
    %cst_49 = arith.constant 1.000000e+00 : f32
    %104 = vector.broadcast %cst_49 : f32 to vector<4x512xf32>
    %105 = arith.addf %104, %103 : vector<4x512xf32>
    %cst_50 = arith.constant 5.000000e-01 : f32
    %106 = vector.broadcast %cst_50 : f32 to vector<4x512xf32>
    %107 = arith.mulf %106, %105 : vector<4x512xf32>
    %108 = arith.mulf %95, %107 : vector<4x512xf32>
    %c0_51 = arith.constant 0 : index
    %c0_52 = arith.constant 0 : index
    %109 = vector.load %arg16[%c0_51, %c0_52] : memref<512x128xf32, #tpu.memory_space<vmem>>, vector<512x128xf32>
    %cst_53 = arith.constant dense<0.000000e+00> : vector<4x128xf32>
    %110 = tpu.matmul %108, %109, %cst_53 {dimension_numbers = #tpu.dot_dimension_numbers<[1], [0], [0], [1], [0, 0, 1, 1], [], []>} : vector<4x512xf32>, vector<512x128xf32>, vector<4x128xf32> -> vector<4x128xf32>
    %c0_54 = arith.constant 0 : index
    %c0_55 = arith.constant 0 : index
    %111 = vector.load %arg17[%c0_54, %c0_55] : memref<1x128xf32, #tpu.memory_space<vmem>>, vector<1x128xf32>
    %112 = vector.broadcast %111 : vector<1x128xf32> to vector<4x128xf32>
    %113 = arith.addf %110, %112 : vector<4x128xf32>
    %114 = vector.shape_cast %113 : vector<4x128xf32> to vector<4x1x128xf32>
    %115 = arith.addf %114, %65 : vector<4x1x128xf32>
    %c0_56 = arith.constant 0 : index
    %c0_57 = arith.constant 0 : index
    %c0_58 = arith.constant 0 : index
    %116 = vector.load %arg18[%c0_56, %c0_57, %c0_58] : memref<4x1x128xf32, #tpu.memory_space<vmem>>, vector<4x1x128xf32>
    tpu.vector_store %arg18[%c0_56, %c0_57, %c0_58], %115 {strides = array<i32>} : memref<4x1x128xf32, #tpu.memory_space<vmem>>, vector<4x1x128xf32>,
    return
  }
  func.func @transform_0(%arg0: i32) -> (i32, i32, i32) {
    %c0_i32 = arith.constant 0 : i32
    %c0_i32_0 = arith.constant 0 : i32
    %c0_i32_1 = arith.constant 0 : i32
    return %arg0, %c0_i32, %c0_i32_0 : i32, i32, i32
  }
  func.func @transform_1(%arg0: i32) -> (i32, i32) {
    %c0_i32 = arith.constant 0 : i32
    %c0_i32_0 = arith.constant 0 : i32
    %c0_i32_1 = arith.constant 0 : i32
    return %c0_i32, %c0_i32_0 : i32, i32
  }
  func.func @transform_2(%arg0: i32) -> (i32, i32) {
    %c0_i32 = arith.constant 0 : i32
    %c0_i32_0 = arith.constant 0 : i32
    %c0_i32_1 = arith.constant 0 : i32
    return %c0_i32, %c0_i32_0 : i32, i32
  }
  func.func @transform_3(%arg0: i32) -> (i32, i32) {
    %c0_i32 = arith.constant 0 : i32
    %c0_i32_0 = arith.constant 0 : i32
    %c0_i32_1 = arith.constant 0 : i32
    return %c0_i32, %c0_i32_0 : i32, i32
  }
  func.func @transform_4(%arg0: i32) -> (i32, i32) {
    %c0_i32 = arith.constant 0 : i32
    %c0_i32_0 = arith.constant 0 : i32
    %c0_i32_1 = arith.constant 0 : i32
    return %c0_i32, %c0_i32_0 : i32, i32
  }
  func.func @transform_5(%arg0: i32) -> (i32, i32) {
    %c0_i32 = arith.constant 0 : i32
    %c0_i32_0 = arith.constant 0 : i32
    %c0_i32_1 = arith.constant 0 : i32
    return %c0_i32, %c0_i32_0 : i32, i32
  }
  func.func @transform_6(%arg0: i32) -> (i32, i32) {
    %c0_i32 = arith.constant 0 : i32
    %c0_i32_0 = arith.constant 0 : i32
    %c0_i32_1 = arith.constant 0 : i32
    return %c0_i32, %c0_i32_0 : i32, i32
  }
  func.func @transform_7(%arg0: i32) -> (i32, i32) {
    %c0_i32 = arith.constant 0 : i32
    %c0_i32_0 = arith.constant 0 : i32
    %c0_i32_1 = arith.constant 0 : i32
    return %c0_i32, %c0_i32_0 : i32, i32
  }
  func.func @transform_8(%arg0: i32) -> (i32, i32) {
    %c0_i32 = arith.constant 0 : i32
    %c0_i32_0 = arith.constant 0 : i32
    %c0_i32_1 = arith.constant 0 : i32
    return %c0_i32, %c0_i32_0 : i32, i32
  }
  func.func @transform_9(%arg0: i32) -> (i32, i32) {
    %c0_i32 = arith.constant 0 : i32
    %c0_i32_0 = arith.constant 0 : i32
    %c0_i32_1 = arith.constant 0 : i32
    return %c0_i32, %c0_i32_0 : i32, i32
  }
  func.func @transform_10(%arg0: i32) -> (i32, i32) {
    %c0_i32 = arith.constant 0 : i32
    %c0_i32_0 = arith.constant 0 : i32
    %c0_i32_1 = arith.constant 0 : i32
    return %c0_i32, %c0_i32_0 : i32, i32
  }
  func.func @transform_11(%arg0: i32) -> (i32, i32) {
    %c0_i32 = arith.constant 0 : i32
    %c0_i32_0 = arith.constant 0 : i32
    %c0_i32_1 = arith.constant 0 : i32
    return %c0_i32, %c0_i32_0 : i32, i32
  }
  func.func @transform_12(%arg0: i32) -> (i32, i32) {
    %c0_i32 = arith.constant 0 : i32
    %c0_i32_0 = arith.constant 0 : i32
    %c0_i32_1 = arith.constant 0 : i32
    return %c0_i32, %c0_i32_0 : i32, i32
  }
  func.func @transform_13(%arg0: i32) -> (i32, i32) {
    %c0_i32 = arith.constant 0 : i32
    %c0_i32_0 = arith.constant 0 : i32
    %c0_i32_1 = arith.constant 0 : i32
    return %c0_i32, %c0_i32_0 : i32, i32
  }
  func.func @transform_14(%arg0: i32) -> (i32, i32) {
    %c0_i32 = arith.constant 0 : i32
    %c0_i32_0 = arith.constant 0 : i32
    %c0_i32_1 = arith.constant 0 : i32
    return %c0_i32, %c0_i32_0 : i32, i32
  }
  func.func @transform_15(%arg0: i32) -> (i32, i32) {
    %c0_i32 = arith.constant 0 : i32
    %c0_i32_0 = arith.constant 0 : i32
    %c0_i32_1 = arith.constant 0 : i32
    return %c0_i32, %c0_i32_0 : i32, i32
  }
  func.func @transform_16(%arg0: i32) -> (i32, i32) {
    %c0_i32 = arith.constant 0 : i32
    %c0_i32_0 = arith.constant 0 : i32
    %c0_i32_1 = arith.constant 0 : i32
    return %c0_i32, %c0_i32_0 : i32, i32
  }
  func.func @transform_17(%arg0: i32) -> (i32, i32, i32) {
    %c0_i32 = arith.constant 0 : i32
    %c0_i32_0 = arith.constant 0 : i32
    %c0_i32_1 = arith.constant 0 : i32
    return %arg0, %c0_i32, %c0_i32_0 : i32, i32, i32
  }
}

module attributes {stable_mosaic.version = 11 : i64} {
  func.func @_attentive_pooler_kernel(%arg0: i32, %arg1: memref<4x64x128xf32, #tpu.memory_space<vmem>>, %arg2: memref<1x128xf32, #tpu.memory_space<vmem>>, %arg3: memref<128x4xf32, #tpu.memory_space<vmem>>, %arg4: memref<1x4xf32, #tpu.memory_space<vmem>>, %arg5: memref<4x128xf32, #tpu.memory_space<vmem>>, %arg6: memref<1x128xf32, #tpu.memory_space<vmem>>, %arg7: memref<1x128xf32, #tpu.memory_space<vmem>>, %arg8: memref<128x128xf32, #tpu.memory_space<vmem>>, %arg9: memref<1x128xf32, #tpu.memory_space<vmem>>, %arg10: memref<128x128xf32, #tpu.memory_space<vmem>>, %arg11: memref<1x128xf32, #tpu.memory_space<vmem>>, %arg12: memref<1x128xf32, #tpu.memory_space<vmem>>, %arg13: memref<1x128xf32, #tpu.memory_space<vmem>>, %arg14: memref<128x512xf32, #tpu.memory_space<vmem>>, %arg15: memref<1x512xf32, #tpu.memory_space<vmem>>, %arg16: memref<512x128xf32, #tpu.memory_space<vmem>>, %arg17: memref<1x128xf32, #tpu.memory_space<vmem>>, %arg18: memref<4x1x128xf32, #tpu.memory_space<vmem>>) attributes {dimension_semantics = [#tpu.dimension_semantics<parallel>], iteration_bounds = array<i64: 2>, scalar_prefetch = 0 : i64, scratch_operands = 0 : i64, tpu.core_type = #tpu.core_type<tc>, window_params = [{transform_indices = @transform_0, window_bounds = array<i64: 4, 64, 128>}, {pipeline_mode = #tpu.pipeline_mode<synchronous>, transform_indices = @transform_1, window_bounds = array<i64: 1, 128>}, {pipeline_mode = #tpu.pipeline_mode<synchronous>, transform_indices = @transform_2, window_bounds = array<i64: 128, 4>}, {pipeline_mode = #tpu.pipeline_mode<synchronous>, transform_indices = @transform_3, window_bounds = array<i64: 1, 4>}, {pipeline_mode = #tpu.pipeline_mode<synchronous>, transform_indices = @transform_4, window_bounds = array<i64: 4, 128>}, {pipeline_mode = #tpu.pipeline_mode<synchronous>, transform_indices = @transform_5, window_bounds = array<i64: 1, 128>}, {pipeline_mode = #tpu.pipeline_mode<synchronous>, transform_indices = @transform_6, window_bounds = array<i64: 1, 128>}, {pipeline_mode = #tpu.pipeline_mode<synchronous>, transform_indices = @transform_7, window_bounds = array<i64: 128, 128>}, {pipeline_mode = #tpu.pipeline_mode<synchronous>, transform_indices = @transform_8, window_bounds = array<i64: 1, 128>}, {pipeline_mode = #tpu.pipeline_mode<synchronous>, transform_indices = @transform_9, window_bounds = array<i64: 128, 128>}, {pipeline_mode = #tpu.pipeline_mode<synchronous>, transform_indices = @transform_10, window_bounds = array<i64: 1, 128>}, {pipeline_mode = #tpu.pipeline_mode<synchronous>, transform_indices = @transform_11, window_bounds = array<i64: 1, 128>}, {pipeline_mode = #tpu.pipeline_mode<synchronous>, transform_indices = @transform_12, window_bounds = array<i64: 1, 128>}, {pipeline_mode = #tpu.pipeline_mode<synchronous>, transform_indices = @transform_13, window_bounds = array<i64: 128, 512>}, {pipeline_mode = #tpu.pipeline_mode<synchronous>, transform_indices = @transform_14, window_bounds = array<i64: 1, 512>}, {pipeline_mode = #tpu.pipeline_mode<synchronous>, transform_indices = @transform_15, window_bounds = array<i64: 512, 128>}, {pipeline_mode = #tpu.pipeline_mode<synchronous>, transform_indices = @transform_16, window_bounds = array<i64: 1, 128>}, {transform_indices = @transform_17, window_bounds = array<i64: 4, 1, 128>}]} {
    %c0 = arith.constant 0 : index
    %c0_0 = arith.constant 0 : index
    %c0_1 = arith.constant 0 : index
    %0 = vector.load %arg1[%c0, %c0_0, %c0_1] : memref<4x64x128xf32, #tpu.memory_space<vmem>>, vector<4x64x128xf32>
    %1 = vector.shape_cast %0 : vector<4x64x128xf32> to vector<256x128xf32>
    %c0_2 = arith.constant 0 : index
    %c0_3 = arith.constant 0 : index
    %2 = vector.load %arg6[%c0_2, %c0_3] : memref<1x128xf32, #tpu.memory_space<vmem>>, vector<1x128xf32>
    %c0_4 = arith.constant 0 : index
    %c0_5 = arith.constant 0 : index
    %3 = vector.load %arg7[%c0_4, %c0_5] : memref<1x128xf32, #tpu.memory_space<vmem>>, vector<1x128xf32>
    %cst = arith.constant dense<0.000000e+00> : vector<256xf32>
    %4 = vector.multi_reduction <add>, %1, %cst [1] : vector<256x128xf32> to vector<256xf32>
    %5 = vector.shape_cast %4 : vector<256xf32> to vector<256x1xf32>
    %cst_6 = arith.constant 1.280000e+02 : f32
    %6 = vector.broadcast %cst_6 : f32 to vector<256x1xf32>
    %7 = arith.divf %5, %6 : vector<256x1xf32>
    %8 = vector.broadcast %7 : vector<256x1xf32> to vector<256x128xf32>
    %9 = arith.subf %1, %8 : vector<256x128xf32>
    %10 = arith.mulf %9, %9 : vector<256x128xf32>
    %cst_7 = arith.constant dense<0.000000e+00> : vector<256xf32>
    %11 = vector.multi_reduction <add>, %10, %cst_7 [1] : vector<256x128xf32> to vector<256xf32>
    %12 = vector.shape_cast %11 : vector<256xf32> to vector<256x1xf32>
    %cst_8 = arith.constant 1.280000e+02 : f32
    %13 = vector.broadcast %cst_8 : f32 to vector<256x1xf32>
    %14 = arith.divf %12, %13 : vector<256x1xf32>
    %15 = vector.broadcast %7 : vector<256x1xf32> to vector<256x128xf32>
    %16 = arith.subf %1, %15 : vector<256x128xf32>
    %cst_9 = arith.constant 9.99999997E-7 : f32
    %17 = vector.broadcast %cst_9 : f32 to vector<256x1xf32>
    %18 = arith.addf %14, %17 : vector<256x1xf32>
    %19 = math.rsqrt %18 : vector<256x1xf32>
    %20 = vector.broadcast %19 : vector<256x1xf32> to vector<256x128xf32>
    %21 = arith.mulf %16, %20 : vector<256x128xf32>
    %22 = vector.broadcast %2 : vector<1x128xf32> to vector<256x128xf32>
    %23 = arith.mulf %21, %22 : vector<256x128xf32>
    %24 = vector.broadcast %3 : vector<1x128xf32> to vector<256x128xf32>
    %25 = arith.addf %23, %24 : vector<256x128xf32>
    %c0_10 = arith.constant 0 : index
    %c0_11 = arith.constant 0 : index
    %26 = vector.load %arg3[%c0_10, %c0_11] : memref<128x4xf32, #tpu.memory_space<vmem>>, vector<128x4xf32>
    %cst_12 = arith.constant dense<0.000000e+00> : vector<256x4xf32>
    %27 = tpu.matmul %25, %26, %cst_12 {dimension_numbers = #tpu.dot_dimension_numbers<[1], [0], [0], [1], [0, 0, 1, 1], [], []>} : vector<256x128xf32>, vector<128x4xf32>, vector<256x4xf32> -> vector<256x4xf32>
    %c0_13 = arith.constant 0 : index
    %c0_14 = arith.constant 0 : index
    %28 = vector.load %arg4[%c0_13, %c0_14] : memref<1x4xf32, #tpu.memory_space<vmem>>, vector<1x4xf32>
    %29 = vector.broadcast %28 : vector<1x4xf32> to vector<256x4xf32>
    %30 = arith.addf %27, %29 : vector<256x4xf32>
    %31 = vector.shape_cast %30 : vector<256x4xf32> to vector<4x64x4xf32>
    %32 = tpu.transpose %31, [0, 2, 1] : vector<4x64x4xf32> -> vector<4x4x64xf32>
    %cst_15 = arith.constant dense<0xFF800000> : vector<4x4xf32>
    %33 = vector.multi_reduction <maximumf>, %32, %cst_15 [2] : vector<4x4x64xf32> to vector<4x4xf32>
    %34 = vector.shape_cast %33 : vector<4x4xf32> to vector<4x4x1xf32>
    %35 = vector.broadcast %34 : vector<4x4x1xf32> to vector<4x4x64xf32>
    %36 = arith.subf %32, %35 : vector<4x4x64xf32>
    %37 = math.exp %36 : vector<4x4x64xf32>
    %cst_16 = arith.constant dense<0.000000e+00> : vector<4x4xf32>
    %38 = vector.multi_reduction <add>, %37, %cst_16 [2] : vector<4x4x64xf32> to vector<4x4xf32>
    %39 = vector.shape_cast %38 : vector<4x4xf32> to vector<4x4x1xf32>
    %40 = vector.broadcast %39 : vector<4x4x1xf32> to vector<4x4x64xf32>
    %41 = arith.divf %37, %40 : vector<4x4x64xf32>
    %c0_17 = arith.constant 0 : index
    %c0_18 = arith.constant 0 : index
    %42 = vector.load %arg8[%c0_17, %c0_18] : memref<128x128xf32, #tpu.memory_space<vmem>>, vector<128x128xf32>
    %cst_19 = arith.constant dense<0.000000e+00> : vector<256x128xf32>
    %43 = tpu.matmul %25, %42, %cst_19 {dimension_numbers = #tpu.dot_dimension_numbers<[1], [0], [0], [1], [0, 0, 1, 1], [], []>} : vector<256x128xf32>, vector<128x128xf32>, vector<256x128xf32> -> vector<256x128xf32>
    %c0_20 = arith.constant 0 : index
    %c0_21 = arith.constant 0 : index
    %44 = vector.load %arg9[%c0_20, %c0_21] : memref<1x128xf32, #tpu.memory_space<vmem>>, vector<1x128xf32>
    %45 = vector.broadcast %44 : vector<1x128xf32> to vector<256x128xf32>
    %46 = arith.addf %43, %45 : vector<256x128xf32>
    %47 = vector.shape_cast %46 : vector<256x128xf32> to vector<4x64x128xf32>
    "tpu.trace_start"() <{level = 10 : i32, message = "bks,bsd->bkd"}> : () -> ()
    %cst_22 = arith.constant dense<0.000000e+00> : vector<4x4x128xf32>
    %48 = tpu.matmul %41, %47, %cst_22 {dimension_numbers = #tpu.dot_dimension_numbers<[2], [1], [1], [2], [0, 0, 0, 1, 1, 2], [0], [0]>} : vector<4x4x64xf32>, vector<4x64x128xf32>, vector<4x4x128xf32> -> vector<4x4x128xf32>
    "tpu.trace_stop"() : () -> ()
    %49 = vector.shape_cast %48 : vector<4x4x128xf32> to vector<4x1x4x128xf32>
    %c0_23 = arith.constant 0 : index
    %c0_24 = arith.constant 0 : index
    %50 = vector.load %arg5[%c0_23, %c0_24] : memref<4x128xf32, #tpu.memory_space<vmem>>, vector<4x128xf32>
    %51 = vector.shape_cast %50 : vector<4x128xf32> to vector<1x1x4x128xf32>
    %52 = vector.broadcast %51 : vector<1x1x4x128xf32> to vector<4x1x4x128xf32>
    %53 = arith.mulf %49, %52 : vector<4x1x4x128xf32>
    %cst_25 = arith.constant dense<0.000000e+00> : vector<4x1x128xf32>
    %54 = vector.multi_reduction <add>, %53, %cst_25 [2] : vector<4x1x4x128xf32> to vector<4x1x128xf32>
    %55 = vector.shape_cast %54 : vector<4x1x128xf32> to vector<4x128xf32>
    %c0_26 = arith.constant 0 : index
    %c0_27 = arith.constant 0 : index
    %56 = vector.load %arg10[%c0_26, %c0_27] : memref<128x128xf32, #tpu.memory_space<vmem>>, vector<128x128xf32>
    %cst_28 = arith.constant dense<0.000000e+00> : vector<4x128xf32>
    %57 = tpu.matmul %55, %56, %cst_28 {dimension_numbers = #tpu.dot_dimension_numbers<[1], [0], [0], [1], [0, 0, 1, 1], [], []>} : vector<4x128xf32>, vector<128x128xf32>, vector<4x128xf32> -> vector<4x128xf32>
    %c0_29 = arith.constant 0 : index
    %c0_30 = arith.constant 0 : index
    %58 = vector.load %arg11[%c0_29, %c0_30] : memref<1x128xf32, #tpu.memory_space<vmem>>, vector<1x128xf32>
    %59 = vector.broadcast %58 : vector<1x128xf32> to vector<4x128xf32>
    %60 = arith.addf %57, %59 : vector<4x128xf32>
    %61 = vector.shape_cast %60 : vector<4x128xf32> to vector<4x1x128xf32>
    %c0_31 = arith.constant 0 : index
    %c0_32 = arith.constant 0 : index
    %62 = vector.load %arg2[%c0_31, %c0_32] : memref<1x128xf32, #tpu.memory_space<vmem>>, vector<1x128xf32>
    %63 = vector.shape_cast %62 : vector<1x128xf32> to vector<1x1x128xf32>
    %64 = vector.broadcast %63 : vector<1x1x128xf32> to vector<4x1x128xf32>
    %65 = arith.addf %61, %64 : vector<4x1x128xf32>
    %66 = vector.shape_cast %65 : vector<4x1x128xf32> to vector<4x128xf32>
    %c0_33 = arith.constant 0 : index
    %c0_34 = arith.constant 0 : index
    %67 = vector.load %arg12[%c0_33, %c0_34] : memref<1x128xf32, #tpu.memory_space<vmem>>, vector<1x128xf32>
    %c0_35 = arith.constant 0 : index
    %c0_36 = arith.constant 0 : index
    %68 = vector.load %arg13[%c0_35, %c0_36] : memref<1x128xf32, #tpu.memory_space<vmem>>, vector<1x128xf32>
    %cst_37 = arith.constant dense<0.000000e+00> : vector<4xf32>
    %69 = vector.multi_reduction <add>, %66, %cst_37 [1] : vector<4x128xf32> to vector<4xf32>
    %70 = vector.shape_cast %69 : vector<4xf32> to vector<4x1xf32>
    %cst_38 = arith.constant 1.280000e+02 : f32
    %71 = vector.broadcast %cst_38 : f32 to vector<4x1xf32>
    %72 = arith.divf %70, %71 : vector<4x1xf32>
    %73 = vector.broadcast %72 : vector<4x1xf32> to vector<4x128xf32>
    %74 = arith.subf %66, %73 : vector<4x128xf32>
    %75 = arith.mulf %74, %74 : vector<4x128xf32>
    %cst_39 = arith.constant dense<0.000000e+00> : vector<4xf32>
    %76 = vector.multi_reduction <add>, %75, %cst_39 [1] : vector<4x128xf32> to vector<4xf32>
    %77 = vector.shape_cast %76 : vector<4xf32> to vector<4x1xf32>
    %cst_40 = arith.constant 1.280000e+02 : f32
    %78 = vector.broadcast %cst_40 : f32 to vector<4x1xf32>
    %79 = arith.divf %77, %78 : vector<4x1xf32>
    %80 = vector.broadcast %72 : vector<4x1xf32> to vector<4x128xf32>
    %81 = arith.subf %66, %80 : vector<4x128xf32>
    %cst_41 = arith.constant 9.99999997E-7 : f32
    %82 = vector.broadcast %cst_41 : f32 to vector<4x1xf32>
    %83 = arith.addf %79, %82 : vector<4x1xf32>
    %84 = math.rsqrt %83 : vector<4x1xf32>
    %85 = vector.broadcast %84 : vector<4x1xf32> to vector<4x128xf32>
    %86 = arith.mulf %81, %85 : vector<4x128xf32>
    %87 = vector.broadcast %67 : vector<1x128xf32> to vector<4x128xf32>
    %88 = arith.mulf %86, %87 : vector<4x128xf32>
    %89 = vector.broadcast %68 : vector<1x128xf32> to vector<4x128xf32>
    %90 = arith.addf %88, %89 : vector<4x128xf32>
    %c0_42 = arith.constant 0 : index
    %c0_43 = arith.constant 0 : index
    %91 = vector.load %arg14[%c0_42, %c0_43] : memref<128x512xf32, #tpu.memory_space<vmem>>, vector<128x512xf32>
    %cst_44 = arith.constant dense<0.000000e+00> : vector<4x512xf32>
    %92 = tpu.matmul %90, %91, %cst_44 {dimension_numbers = #tpu.dot_dimension_numbers<[1], [0], [0], [1], [0, 0, 1, 1], [], []>} : vector<4x128xf32>, vector<128x512xf32>, vector<4x512xf32> -> vector<4x512xf32>
    %c0_45 = arith.constant 0 : index
    %c0_46 = arith.constant 0 : index
    %93 = vector.load %arg15[%c0_45, %c0_46] : memref<1x512xf32, #tpu.memory_space<vmem>>, vector<1x512xf32>
    %94 = vector.broadcast %93 : vector<1x512xf32> to vector<4x512xf32>
    %95 = arith.addf %92, %94 : vector<4x512xf32>
    %96 = arith.mulf %95, %95 : vector<4x512xf32>
    %97 = arith.mulf %95, %96 : vector<4x512xf32>
    %cst_47 = arith.constant 4.471500e-02 : f32
    %98 = vector.broadcast %cst_47 : f32 to vector<4x512xf32>
    %99 = arith.mulf %98, %97 : vector<4x512xf32>
    %100 = arith.addf %95, %99 : vector<4x512xf32>
    %cst_48 = arith.constant 0.797884583 : f32
    %101 = vector.broadcast %cst_48 : f32 to vector<4x512xf32>
    %102 = arith.mulf %101, %100 : vector<4x512xf32>
    %103 = math.tanh %102 : vector<4x512xf32>
    %cst_49 = arith.constant 1.000000e+00 : f32
    %104 = vector.broadcast %cst_49 : f32 to vector<4x512xf32>
    %105 = arith.addf %104, %103 : vector<4x512xf32>
    %cst_50 = arith.constant 5.000000e-01 : f32
    %106 = vector.broadcast %cst_50 : f32 to vector<4x512xf32>
    %107 = arith.mulf %106, %105 : vector<4x512xf32>
    %108 = arith.mulf %95, %107 : vector<4x512xf32>
    %c0_51 = arith.constant 0 : index
    %c0_52 = arith.constant 0 : index
    %109 = vector.load %arg16[%c0_51, %c0_52] : memref<512x128xf32, #tpu.memory_space<vmem>>, vector<512x128xf32>
    %cst_53 = arith.constant dense<0.000000e+00> : vector<4x128xf32>
    %110 = tpu.matmul %108, %109, %cst_53 {dimension_numbers = #tpu.dot_dimension_numbers<[1], [0], [0], [1], [0, 0, 1, 1], [], []>} : vector<4x512xf32>, vector<512x128xf32>, vector<4x128xf32> -> vector<4x128xf32>
    %c0_54 = arith.constant 0 : index
    %c0_55 = arith.constant 0 : index
    %111 = vector.load %arg17[%c0_54, %c0_55] : memref<1x128xf32, #tpu.memory_space<vmem>>, vector<1x128xf32>
    %112 = vector.broadcast %111 : vector<1x128xf32> to vector<4x128xf32>
    %113 = arith.addf %110, %112 : vector<4x128xf32>
    %114 = vector.shape_cast %113 : vector<4x128xf32> to vector<4x1x128xf32>
    %115 = arith.addf %114, %65 : vector<4x1x128xf32>
    %c0_56 = arith.constant 0 : index
    %c0_57 = arith.constant 0 : index
    %c0_58 = arith.constant 0 : index
    %116 = vector.load %arg18[%c0_56, %c0_57, %c0_58] : memref<4x1x128xf32, #tpu.memory_space<vmem>>, vector<4x1x128xf32>
    tpu.vector_store %arg18[%c0_56, %c0_57, %c0_58], %115 {strides = array<i32>} : memref<4x1x128xf32, #tpu.memory_space<vmem>>, vector<4x1x128xf32>,
    return
  }
  func.func @transform_0(%arg0: i32) -> (i32, i32, i32) {
    %c0_i32 = arith.constant 0 : i32
    %c0_i32_0 = arith.constant 0 : i32
    %c0_i32_1 = arith.constant 0 : i32
    return %arg0, %c0_i32, %c0_i32_0 : i32, i32, i32
  }
  func.func @transform_1(%arg0: i32) -> (i32, i32) {
    %c0_i32 = arith.constant 0 : i32
    %c0_i32_0 = arith.constant 0 : i32
    %c0_i32_1 = arith.constant 0 : i32
    return %c0_i32, %c0_i32_0 : i32, i32
  }
  func.func @transform_2(%arg0: i32) -> (i32, i32) {
    %c0_i32 = arith.constant 0 : i32
    %c0_i32_0 = arith.constant 0 : i32
    %c0_i32_1 = arith.constant 0 : i32
    return %c0_i32, %c0_i32_0 : i32, i32
  }
  func.func @transform_3(%arg0: i32) -> (i32, i32) {
    %c0_i32 = arith.constant 0 : i32
    %c0_i32_0 = arith.constant 0 : i32
    %c0_i32_1 = arith.constant 0 : i32
    return %c0_i32, %c0_i32_0 : i32, i32
  }
  func.func @transform_4(%arg0: i32) -> (i32, i32) {
    %c0_i32 = arith.constant 0 : i32
    %c0_i32_0 = arith.constant 0 : i32
    %c0_i32_1 = arith.constant 0 : i32
    return %c0_i32, %c0_i32_0 : i32, i32
  }
  func.func @transform_5(%arg0: i32) -> (i32, i32) {
    %c0_i32 = arith.constant 0 : i32
    %c0_i32_0 = arith.constant 0 : i32
    %c0_i32_1 = arith.constant 0 : i32
    return %c0_i32, %c0_i32_0 : i32, i32
  }
  func.func @transform_6(%arg0: i32) -> (i32, i32) {
    %c0_i32 = arith.constant 0 : i32
    %c0_i32_0 = arith.constant 0 : i32
    %c0_i32_1 = arith.constant 0 : i32
    return %c0_i32, %c0_i32_0 : i32, i32
  }
  func.func @transform_7(%arg0: i32) -> (i32, i32) {
    %c0_i32 = arith.constant 0 : i32
    %c0_i32_0 = arith.constant 0 : i32
    %c0_i32_1 = arith.constant 0 : i32
    return %c0_i32, %c0_i32_0 : i32, i32
  }
  func.func @transform_8(%arg0: i32) -> (i32, i32) {
    %c0_i32 = arith.constant 0 : i32
    %c0_i32_0 = arith.constant 0 : i32
    %c0_i32_1 = arith.constant 0 : i32
    return %c0_i32, %c0_i32_0 : i32, i32
  }
  func.func @transform_9(%arg0: i32) -> (i32, i32) {
    %c0_i32 = arith.constant 0 : i32
    %c0_i32_0 = arith.constant 0 : i32
    %c0_i32_1 = arith.constant 0 : i32
    return %c0_i32, %c0_i32_0 : i32, i32
  }
  func.func @transform_10(%arg0: i32) -> (i32, i32) {
    %c0_i32 = arith.constant 0 : i32
    %c0_i32_0 = arith.constant 0 : i32
    %c0_i32_1 = arith.constant 0 : i32
    return %c0_i32, %c0_i32_0 : i32, i32
  }
  func.func @transform_11(%arg0: i32) -> (i32, i32) {
    %c0_i32 = arith.constant 0 : i32
    %c0_i32_0 = arith.constant 0 : i32
    %c0_i32_1 = arith.constant 0 : i32
    return %c0_i32, %c0_i32_0 : i32, i32
  }
  func.func @transform_12(%arg0: i32) -> (i32, i32) {
    %c0_i32 = arith.constant 0 : i32
    %c0_i32_0 = arith.constant 0 : i32
    %c0_i32_1 = arith.constant 0 : i32
    return %c0_i32, %c0_i32_0 : i32, i32
  }
  func.func @transform_13(%arg0: i32) -> (i32, i32) {
    %c0_i32 = arith.constant 0 : i32
    %c0_i32_0 = arith.constant 0 : i32
    %c0_i32_1 = arith.constant 0 : i32
    return %c0_i32, %c0_i32_0 : i32, i32
  }
  func.func @transform_14(%arg0: i32) -> (i32, i32) {
    %c0_i32 = arith.constant 0 : i32
    %c0_i32_0 = arith.constant 0 : i32
    %c0_i32_1 = arith.constant 0 : i32
    return %c0_i32, %c0_i32_0 : i32, i32
  }
  func.func @transform_15(%arg0: i32) -> (i32, i32) {
    %c0_i32 = arith.constant 0 : i32
    %c0_i32_0 = arith.constant 0 : i32
    %c0_i32_1 = arith.constant 0 : i32
    return %c0_i32, %c0_i32_0 : i32, i32
  }
  func.func @transform_16(%arg0: i32) -> (i32, i32) {
    %c0_i32 = arith.constant 0 : i32
    %c0_i32_0 = arith.constant 0 : i32
    %c0_i32_1 = arith.constant 0 : i32
    return %c0_i32, %c0_i32_0 : i32, i32
  }
  func.func @transform_17(%arg0: i32) -> (i32, i32, i32) {
    %c0_i32 = arith.constant 0 : i32
    %c0_i32_0 = arith.constant 0 : i32
    %c0_i32_1 = arith.constant 0 : i32
    return %arg0, %c0_i32, %c0_i32_0 : i32, i32, i32
  }
}

</mosaic_0001>

<llo_original>
// kernel: tpu_custom_call.1
$region0: #{tpu_custom_call.1}
  #allocation0 [shape = 'u32[]', space=smem, size = 0x4, offset = 0x4, fixed_abs, tag = 'smem constant byte address 0x4 - core index']
  #allocation1 [shape = 'u32[144,128]{1,0:T(1,128)}', space=vmem, size = 0x12000, scoped, tag = 'internal scratch']
  %s0 = inlined_call_operand.hbm [shape: f32[8,64,128], index: 0, kind: input, shape index: {}]
  %s1 = inlined_call_operand.vmem [shape: f32[1,128], index: 1, kind: input, shape index: {}]
  %s2 = inlined_call_operand.vmem [shape: f32[128,4], index: 2, kind: input, shape index: {}]
  %s3 = inlined_call_operand.vmem [shape: f32[1,4], index: 3, kind: input, shape index: {}]
  %s4 = inlined_call_operand.vmem [shape: f32[4,128], index: 4, kind: input, shape index: {}]
  %s5 = inlined_call_operand.vmem [shape: f32[1,128], index: 5, kind: input, shape index: {}]
  %s6 = inlined_call_operand.vmem [shape: f32[1,128], index: 6, kind: input, shape index: {}]
  %s7 = inlined_call_operand.vmem [shape: f32[128,128], index: 7, kind: input, shape index: {}]
  %s8 = inlined_call_operand.vmem [shape: f32[1,128], index: 8, kind: input, shape index: {}]
  %s9 = inlined_call_operand.hbm [shape: f32[128,128], index: 9, kind: input, shape index: {}]
  %s10 = inlined_call_operand.vmem [shape: f32[1,128], index: 10, kind: input, shape index: {}]
  %s11 = inlined_call_operand.vmem [shape: f32[1,128], index: 11, kind: input, shape index: {}]
  %s12 = inlined_call_operand.vmem [shape: f32[1,128], index: 12, kind: input, shape index: {}]
  %s13 = inlined_call_operand.hbm [shape: f32[128,512], index: 13, kind: input, shape index: {}]
  %s14 = inlined_call_operand.vmem [shape: f32[1,512], index: 14, kind: input, shape index: {}]
  %s15 = inlined_call_operand.hbm [shape: f32[512,128], index: 15, kind: input, shape index: {}]
  %s16 = inlined_call_operand.vmem [shape: f32[1,128], index: 16, kind: input, shape index: {}]
  %s17 = inlined_call_operand.hbm [shape: f32[8,1,128], index: 17, kind: output, shape index: {}]
  %s18 = sld [smem:[#allocation0]]
  $region117: #{tpu_custom_call.1} parent=0
    _
  %s20 = ssub.s32 1, %s18
  %s21 = scalar_select 0, %s20, %s18
  $region1: #{tpu_custom_call.1} parent=0
    #allocation2 [shape = 'u8[262144]{0}', space=vmem, size = 0x40000, scoped, tag = 'input window, operand 0']
    #allocation3 [shape = 's32[2]{0}', space=sflag, size = 0x8, scoped, tag = 'scoped memory for tpu_custom_call.1']
    #allocation4 [shape = 's32[2]{0}', space=sflag, size = 0x8, scoped, tag = 'scoped memory for tpu_custom_call.1']
    #allocation5 [shape = 'u8[65536]{0}', space=vmem, size = 0x10000, scoped, tag = 'input window, operand 9, single buffered']
    #allocation6 [shape = 's32[1]{0}', space=sflag, size = 0x4, scoped, tag = 'scoped memory for tpu_custom_call.1']
    #allocation7 [shape = 'u8[262144]{0}', space=vmem, size = 0x40000, scoped, tag = 'input window, operand 13, single buffered']
    #allocation8 [shape = 'u8[262144]{0}', space=vmem, size = 0x40000, scoped, tag = 'input window, operand 15, single buffered']
    #allocation9 [shape = 's32[1]{0}', space=sflag, size = 0x4, scoped, tag = 'scoped memory for tpu_custom_call.1']
    #allocation10 [shape = 'u8[4096]{0}', space=vmem, size = 0x1000, scoped, tag = 'output window, operand 0']
    %22 = vsyncpa [#allocation3], 0
    %s23 = scalar_lea.sflag [#allocation3], 1
    %24 = vsyncpa %s23, 0
    %25 = vsyncpa [#allocation6], 0
    %26 = vsyncpa [#allocation9], 0
    %27 = vsyncpa [#allocation4], 0
    %s28 = scalar_lea.sflag [#allocation4], 1
    %29 = vsyncpa %s28, 0
    loop: start=0, step=1, limit=4
    $region2: #{tpu_custom_call.1} parent=1 // loop_pre_header
      _
    $region3: #{tpu_custom_call.1} parent=1 // loop_header
      %s31 = sphi 0, %s35
      %p32 = scmp.ge.s32.totalorder %s31, 4
      %s41 = sphi 0, %s43
      %s44 = sphi 0, %s41
      %s45 = sphi 0, %s44
      %s61 = sphi 0, %s45
      %s65 = sphi 0, %s65
      %s67 = sphi 0, %s65
      %s68 = sphi 0, %s67
      %s82 = sphi 0, %s68
      %s86 = sphi 0, %s86
      %s88 = sphi 0, %s86
      %s89 = sphi 0, %s88
      %s103 = sphi 0, %s89
      %s107 = sphi 0, %s107
      %s109 = sphi 0, %s107
      %s110 = sphi 0, %s109
      %s124 = sphi 0, %s110
      %s128 = sphi 0, %s128
      %s130 = sphi 0, %s128
      %s131 = sphi 0, %s130
      %s145 = sphi 0, %s131
      %s149 = sphi 0, %s149
      %s151 = sphi 0, %s149
      %s152 = sphi 0, %s151
      %s166 = sphi 0, %s152
      %s170 = sphi 0, %s170
      %s172 = sphi 0, %s170
      %s173 = sphi 0, %s172
      %s187 = sphi 0, %s173
      %s191 = sphi 0, %s191
      %s193 = sphi 0, %s191
      %s194 = sphi 0, %s193
      %s208 = sphi 0, %s194
      %s212 = sphi 0, %s212
      %s214 = sphi 0, %s212
      %s215 = sphi 0, %s214
      %s229 = sphi 0, %s215
      %s233 = sphi 0, %s233
      %s235 = sphi 0, %s233
      %s236 = sphi 0, %s235
      %s250 = sphi 0, %s236
      %s254 = sphi 0, %s254
      %s256 = sphi 0, %s254
      %s257 = sphi 0, %s256
      %s271 = sphi 0, %s257
      %s275 = sphi 0, %s275
      %s277 = sphi 0, %s275
      %s278 = sphi 0, %s277
      %s292 = sphi 0, %s278
      %s296 = sphi 0, %s296
      %s298 = sphi 0, %s296
      %s299 = sphi 0, %s298
      %s313 = sphi 0, %s299
      %s317 = sphi 0, %s317
      %s319 = sphi 0, %s317
      %s320 = sphi 0, %s319
      %s334 = sphi 0, %s320
      %s338 = sphi 0, %s338
      %s340 = sphi 0, %s338
      %s341 = sphi 0, %s340
      %s355 = sphi 0, %s341
      %s359 = sphi 0, %s359
      %s361 = sphi 0, %s359
      %s362 = sphi 0, %s361
      %s376 = sphi 0, %s362
      %s380 = sphi 0, %s380
      %s382 = sphi 0, %s380
      %s383 = sphi 0, %s382
      %s397 = sphi 0, %s383
      %s403 = sphi 0, %s405
      %s406 = sphi 0, %s403
      %s407 = sphi 0, %s406
      %s423 = sphi 0, %s407
    $region4: #{tpu_custom_call.1} parent=1 // loop_header_branch
      %34 = sbr.rel (%p32) target = $region8
    $region5: #{tpu_custom_call.1} parent=1 // loop_body
      %s36 = ssub.s32 %s31, 1
      %s37 = ssub.s32 %s31, 2
      %s38 = sadd.s32 %s31, 1
      %s39 = ssub.s32 %s31, %s38
      %p40 = scmp.eq.s32.totalorder %s39, 0
      %s42 = sadd.s32 %s41, 1
      %s43 = scalar_select %p40, %s41, %s42
      %p46 = pneg %p40
      %p47 = scmp.eq.s32.totalorder %s31, 1
      %p48 = por %p46, %p47
      %p49 = scmp.ne.s32.totalorder %s41, %s44
      %p50 = scmp.eq.s32.totalorder %s31, 0
      %p51 = por %p49, %p50
      %p52 = scmp.ne.s32.totalorder %s41, %s44
      %p53 = scmp.eq.s32.totalorder %s36, 1
      %p54 = por %p52, %p53
      %p55 = scmp.ne.s32.totalorder %s44, %s45
      %p56 = scmp.eq.s32.totalorder %s36, 0
      %p57 = por %p55, %p56
      %p58 = scmp.ne.s32.totalorder %s44, %s45
      %p59 = scmp.eq.s32.totalorder %s37, 1
      %p60 = por %p58, %p59
      %p62 = scmp.ne.s32.totalorder %s45, %s61
      %p63 = scmp.eq.s32.totalorder %s37, 0
      %p64 = por %p62, %p63
      %s66 = sadd.s32 %s65, 1
      %p69 = scmp.eq.s32.totalorder %s31, 1
      %p70 = scmp.ne.s32.totalorder %s65, %s67
      %p71 = scmp.eq.s32.totalorder %s31, 0
      %p72 = por %p70, %p71
      %p73 = scmp.ne.s32.totalorder %s65, %s67
      %p74 = scmp.eq.s32.totalorder %s36, 1
      %p75 = por %p73, %p74
      %p76 = scmp.ne.s32.totalorder %s67, %s68
      %p77 = scmp.eq.s32.totalorder %s36, 0
      %p78 = por %p76, %p77
      %p79 = scmp.ne.s32.totalorder %s67, %s68
      %p80 = scmp.eq.s32.totalorder %s37, 1
      %p81 = por %p79, %p80
      %p83 = scmp.ne.s32.totalorder %s68, %s82
      %p84 = scmp.eq.s32.totalorder %s37, 0
      %p85 = por %p83, %p84
      %s87 = sadd.s32 %s86, 1
      %p90 = scmp.eq.s32.totalorder %s31, 1
      %p91 = scmp.ne.s32.totalorder %s86, %s88
      %p92 = scmp.eq.s32.totalorder %s31, 0
      %p93 = por %p91, %p92
      %p94 = scmp.ne.s32.totalorder %s86, %s88
      %p95 = scmp.eq.s32.totalorder %s36, 1
      %p96 = por %p94, %p95
      %p97 = scmp.ne.s32.totalorder %s88, %s89
      %p98 = scmp.eq.s32.totalorder %s36, 0
      %p99 = por %p97, %p98
      %p100 = scmp.ne.s32.totalorder %s88, %s89
      %p101 = scmp.eq.s32.totalorder %s37, 1
      %p102 = por %p100, %p101
      %p104 = scmp.ne.s32.totalorder %s89, %s103
      %p105 = scmp.eq.s32.totalorder %s37, 0
      %p106 = por %p104, %p105
      %s108 = sadd.s32 %s107, 1
      %p111 = scmp.eq.s32.totalorder %s31, 1
      %p112 = scmp.ne.s32.totalorder %s107, %s109
      %p113 = scmp.eq.s32.totalorder %s31, 0
      %p114 = por %p112, %p113
      %p115 = scmp.ne.s32.totalorder %s107, %s109
      %p116 = scmp.eq.s32.totalorder %s36, 1
      %p117 = por %p115, %p116
      %p118 = scmp.ne.s32.totalorder %s109, %s110
      %p119 = scmp.eq.s32.totalorder %s36, 0
      %p120 = por %p118, %p119
      %p121 = scmp.ne.s32.totalorder %s109, %s110
      %p122 = scmp.eq.s32.totalorder %s37, 1
      %p123 = por %p121, %p122
      %p125 = scmp.ne.s32.totalorder %s110, %s124
      %p126 = scmp.eq.s32.totalorder %s37, 0
      %p127 = por %p125, %p126
      %s129 = sadd.s32 %s128, 1
      %p132 = scmp.eq.s32.totalorder %s31, 1
      %p133 = scmp.ne.s32.totalorder %s128, %s130
      %p134 = scmp.eq.s32.totalorder %s31, 0
      %p135 = por %p133, %p134
      %p136 = scmp.ne.s32.totalorder %s128, %s130
      %p137 = scmp.eq.s32.totalorder %s36, 1
      %p138 = por %p136, %p137
      %p139 = scmp.ne.s32.totalorder %s130, %s131
      %p140 = scmp.eq.s32.totalorder %s36, 0
      %p141 = por %p139, %p140
      %p142 = scmp.ne.s32.totalorder %s130, %s131
      %p143 = scmp.eq.s32.totalorder %s37, 1
      %p144 = por %p142, %p143
      %p146 = scmp.ne.s32.totalorder %s131, %s145
      %p147 = scmp.eq.s32.totalorder %s37, 0
      %p148 = por %p146, %p147
      %s150 = sadd.s32 %s149, 1
      %p153 = scmp.eq.s32.totalorder %s31, 1
      %p154 = scmp.ne.s32.totalorder %s149, %s151
      %p155 = scmp.eq.s32.totalorder %s31, 0
      %p156 = por %p154, %p155
      %p157 = scmp.ne.s32.totalorder %s149, %s151
      %p158 = scmp.eq.s32.totalorder %s36, 1
      %p159 = por %p157, %p158
      %p160 = scmp.ne.s32.totalorder %s151, %s152
      %p161 = scmp.eq.s32.totalorder %s36, 0
      %p162 = por %p160, %p161
      %p163 = scmp.ne.s32.totalorder %s151, %s152
      %p164 = scmp.eq.s32.totalorder %s37, 1
      %p165 = por %p163, %p164
      %p167 = scmp.ne.s32.totalorder %s152, %s166
      %p168 = scmp.eq.s32.totalorder %s37, 0
      %p169 = por %p167, %p168
      %s171 = sadd.s32 %s170, 1
      %p174 = scmp.eq.s32.totalorder %s31, 1
      %p175 = scmp.ne.s32.totalorder %s170, %s172
      %p176 = scmp.eq.s32.totalorder %s31, 0
      %p177 = por %p175, %p176
      %p178 = scmp.ne.s32.totalorder %s170, %s172
      %p179 = scmp.eq.s32.totalorder %s36, 1
      %p180 = por %p178, %p179
      %p181 = scmp.ne.s32.totalorder %s172, %s173
      %p182 = scmp.eq.s32.totalorder %s36, 0
      %p183 = por %p181, %p182
      %p184 = scmp.ne.s32.totalorder %s172, %s173
      %p185 = scmp.eq.s32.totalorder %s37, 1
      %p186 = por %p184, %p185
      %p188 = scmp.ne.s32.totalorder %s173, %s187
      %p189 = scmp.eq.s32.totalorder %s37, 0
      %p190 = por %p188, %p189
      %s192 = sadd.s32 %s191, 1
      %p195 = scmp.eq.s32.totalorder %s31, 1
      %p196 = scmp.ne.s32.totalorder %s191, %s193
      %p197 = scmp.eq.s32.totalorder %s31, 0
      %p198 = por %p196, %p197
      %p199 = scmp.ne.s32.totalorder %s191, %s193
      %p200 = scmp.eq.s32.totalorder %s36, 1
      %p201 = por %p199, %p200
      %p202 = scmp.ne.s32.totalorder %s193, %s194
      %p203 = scmp.eq.s32.totalorder %s36, 0
      %p204 = por %p202, %p203
      %p205 = scmp.ne.s32.totalorder %s193, %s194
      %p206 = scmp.eq.s32.totalorder %s37, 1
      %p207 = por %p205, %p206
      %p209 = scmp.ne.s32.totalorder %s194, %s208
      %p210 = scmp.eq.s32.totalorder %s37, 0
      %p211 = por %p209, %p210
      %s213 = sadd.s32 %s212, 1
      %p216 = scmp.eq.s32.totalorder %s31, 1
      %p217 = scmp.ne.s32.totalorder %s212, %s214
      %p218 = scmp.eq.s32.totalorder %s31, 0
      %p219 = por %p217, %p218
      %p220 = scmp.ne.s32.totalorder %s212, %s214
      %p221 = scmp.eq.s32.totalorder %s36, 1
      %p222 = por %p220, %p221
      %p223 = scmp.ne.s32.totalorder %s214, %s215
      %p224 = scmp.eq.s32.totalorder %s36, 0
      %p225 = por %p223, %p224
      %p226 = scmp.ne.s32.totalorder %s214, %s215
      %p227 = scmp.eq.s32.totalorder %s37, 1
      %p228 = por %p226, %p227
      %p230 = scmp.ne.s32.totalorder %s215, %s229
      %p231 = scmp.eq.s32.totalorder %s37, 0
      %p232 = por %p230, %p231
      %s234 = sadd.s32 %s233, 1
      %p237 = scmp.eq.s32.totalorder %s31, 1
      %p238 = scmp.ne.s32.totalorder %s233, %s235
      %p239 = scmp.eq.s32.totalorder %s31, 0
      %p240 = por %p238, %p239
      %p241 = scmp.ne.s32.totalorder %s233, %s235
      %p242 = scmp.eq.s32.totalorder %s36, 1
      %p243 = por %p241, %p242
      %p244 = scmp.ne.s32.totalorder %s235, %s236
      %p245 = scmp.eq.s32.totalorder %s36, 0
      %p246 = por %p244, %p245
      %p247 = scmp.ne.s32.totalorder %s235, %s236
      %p248 = scmp.eq.s32.totalorder %s37, 1
      %p249 = por %p247, %p248
      %p251 = scmp.ne.s32.totalorder %s236, %s250
      %p252 = scmp.eq.s32.totalorder %s37, 0
      %p253 = por %p251, %p252
      %s255 = sadd.s32 %s254, 1
      %p258 = scmp.eq.s32.totalorder %s31, 1
      %p259 = scmp.ne.s32.totalorder %s254, %s256
      %p260 = scmp.eq.s32.totalorder %s31, 0
      %p261 = por %p259, %p260
      %p262 = scmp.ne.s32.totalorder %s254, %s256
      %p263 = scmp.eq.s32.totalorder %s36, 1
      %p264 = por %p262, %p263
      %p265 = scmp.ne.s32.totalorder %s256, %s257
      %p266 = scmp.eq.s32.totalorder %s36, 0
      %p267 = por %p265, %p266
      %p268 = scmp.ne.s32.totalorder %s256, %s257
      %p269 = scmp.eq.s32.totalorder %s37, 1
      %p270 = por %p268, %p269
      %p272 = scmp.ne.s32.totalorder %s257, %s271
      %p273 = scmp.eq.s32.totalorder %s37, 0
      %p274 = por %p272, %p273
      %s276 = sadd.s32 %s275, 1
      %p279 = scmp.eq.s32.totalorder %s31, 1
      %p280 = scmp.ne.s32.totalorder %s275, %s277
      %p281 = scmp.eq.s32.totalorder %s31, 0
      %p282 = por %p280, %p281
      %p283 = scmp.ne.s32.totalorder %s275, %s277
      %p284 = scmp.eq.s32.totalorder %s36, 1
      %p285 = por %p283, %p284
      %p286 = scmp.ne.s32.totalorder %s277, %s278
      %p287 = scmp.eq.s32.totalorder %s36, 0
      %p288 = por %p286, %p287
      %p289 = scmp.ne.s32.totalorder %s277, %s278
      %p290 = scmp.eq.s32.totalorder %s37, 1
      %p291 = por %p289, %p290
      %p293 = scmp.ne.s32.totalorder %s278, %s292
      %p294 = scmp.eq.s32.totalorder %s37, 0
      %p295 = por %p293, %p294
      %s297 = sadd.s32 %s296, 1
      %p300 = scmp.eq.s32.totalorder %s31, 1
      %p301 = scmp.ne.s32.totalorder %s296, %s298
      %p302 = scmp.eq.s32.totalorder %s31, 0
      %p303 = por %p301, %p302
      %p304 = scmp.ne.s32.totalorder %s296, %s298
      %p305 = scmp.eq.s32.totalorder %s36, 1
      %p306 = por %p304, %p305
      %p307 = scmp.ne.s32.totalorder %s298, %s299
      %p308 = scmp.eq.s32.totalorder %s36, 0
      %p309 = por %p307, %p308
      %p310 = scmp.ne.s32.totalorder %s298, %s299
      %p311 = scmp.eq.s32.totalorder %s37, 1
      %p312 = por %p310, %p311
      %p314 = scmp.ne.s32.totalorder %s299, %s313
      %p315 = scmp.eq.s32.totalorder %s37, 0
      %p316 = por %p314, %p315
      %s318 = sadd.s32 %s317, 1
      %p321 = scmp.eq.s32.totalorder %s31, 1
      %p322 = scmp.ne.s32.totalorder %s317, %s319
      %p323 = scmp.eq.s32.totalorder %s31, 0
      %p324 = por %p322, %p323
      %p325 = scmp.ne.s32.totalorder %s317, %s319
      %p326 = scmp.eq.s32.totalorder %s36, 1
      %p327 = por %p325, %p326
      %p328 = scmp.ne.s32.totalorder %s319, %s320
      %p329 = scmp.eq.s32.totalorder %s36, 0
      %p330 = por %p328, %p329
      %p331 = scmp.ne.s32.totalorder %s319, %s320
      %p332 = scmp.eq.s32.totalorder %s37, 1
      %p333 = por %p331, %p332
      %p335 = scmp.ne.s32.totalorder %s320, %s334
      %p336 = scmp.eq.s32.totalorder %s37, 0
      %p337 = por %p335, %p336
      %s339 = sadd.s32 %s338, 1
      %p342 = scmp.eq.s32.totalorder %s31, 1
      %p343 = scmp.ne.s32.totalorder %s338, %s340
      %p344 = scmp.eq.s32.totalorder %s31, 0
      %p345 = por %p343, %p344
      %p346 = scmp.ne.s32.totalorder %s338, %s340
      %p347 = scmp.eq.s32.totalorder %s36, 1
      %p348 = por %p346, %p347
      %p349 = scmp.ne.s32.totalorder %s340, %s341
      %p350 = scmp.eq.s32.totalorder %s36, 0
      %p351 = por %p349, %p350
      %p352 = scmp.ne.s32.totalorder %s340, %s341
      %p353 = scmp.eq.s32.totalorder %s37, 1
      %p354 = por %p352, %p353
      %p356 = scmp.ne.s32.totalorder %s341, %s355
      %p357 = scmp.eq.s32.totalorder %s37, 0
      %p358 = por %p356, %p357
      %s360 = sadd.s32 %s359, 1
      %p363 = scmp.eq.s32.totalorder %s31, 1
      %p364 = scmp.ne.s32.totalorder %s359, %s361
      %p365 = scmp.eq.s32.totalorder %s31, 0
      %p366 = por %p364, %p365
      %p367 = scmp.ne.s32.totalorder %s359, %s361
      %p368 = scmp.eq.s32.totalorder %s36, 1
      %p369 = por %p367, %p368
      %p370 = scmp.ne.s32.totalorder %s361, %s362
      %p371 = scmp.eq.s32.totalorder %s36, 0
      %p372 = por %p370, %p371
      %p373 = scmp.ne.s32.totalorder %s361, %s362
      %p374 = scmp.eq.s32.totalorder %s37, 1
      %p375 = por %p373, %p374
      %p377 = scmp.ne.s32.totalorder %s362, %s376
      %p378 = scmp.eq.s32.totalorder %s37, 0
      %p379 = por %p377, %p378
      %s381 = sadd.s32 %s380, 1
      %p384 = scmp.eq.s32.totalorder %s31, 1
      %p385 = scmp.ne.s32.totalorder %s380, %s382
      %p386 = scmp.eq.s32.totalorder %s31, 0
      %p387 = por %p385, %p386
      %p388 = scmp.ne.s32.totalorder %s380, %s382
      %p389 = scmp.eq.s32.totalorder %s36, 1
      %p390 = por %p388, %p389
      %p391 = scmp.ne.s32.totalorder %s382, %s383
      %p392 = scmp.eq.s32.totalorder %s36, 0
      %p393 = por %p391, %p392
      %p394 = scmp.ne.s32.totalorder %s382, %s383
      %p395 = scmp.eq.s32.totalorder %s37, 1
      %p396 = por %p394, %p395
      %p398 = scmp.ne.s32.totalorder %s383, %s397
      %p399 = scmp.eq.s32.totalorder %s37, 0
      %p400 = por %p398, %p399
      %s401 = ssub.s32 %s31, %s38
      %p402 = scmp.eq.s32.totalorder %s401, 0
      %s404 = sadd.s32 %s403, 1
      %s405 = scalar_select %p402, %s403, %s404
      %p408 = pneg %p402
      %p409 = scmp.eq.s32.totalorder %s31, 1
      %p410 = por %p408, %p409
      %p411 = scmp.ne.s32.totalorder %s403, %s406
      %p412 = scmp.eq.s32.totalorder %s31, 0
      %p413 = por %p411, %p412
      %p414 = scmp.ne.s32.totalorder %s403, %s406
      %p415 = scmp.eq.s32.totalorder %s36, 1
      %p416 = por %p414, %p415
      %p417 = scmp.ne.s32.totalorder %s406, %s407
      %p418 = scmp.eq.s32.totalorder %s36, 0
      %p419 = por %p417, %p418
      %p420 = scmp.ne.s32.totalorder %s406, %s407
      %p421 = scmp.eq.s32.totalorder %s37, 1
      %p422 = por %p420, %p421
      %p424 = scmp.ne.s32.totalorder %s407, %s423
      %p425 = scmp.eq.s32.totalorder %s37, 0
      %p426 = por %p424, %p425
      %p427 = scmp.le.s32.totalorder 1, %s31
      %p428 = scmp.lt.s32.totalorder %s31, 3
      %p429 = pnand %p427, %p428
      %p430 = pneg %p429
      // Predicated region
      $region9: #{tpu_custom_call.1} parent=5 // pred_check
        _
      $region10: #{tpu_custom_call.1} parent=5 // pred_check_branch
        %432 = sbr.rel (%p429) target = $region12
      $region11: #{tpu_custom_call.1} parent=5 // pred_region
        %s433 = ssub.s32 %s31, 1
        // Predicated region
        $region13: #{tpu_custom_call.1} parent=11 // pred_check
          %p434 = pneg %p78
        $region14: #{tpu_custom_call.1} parent=11 // pred_check_branch
          %436 = sbr.rel (%p434) target = $region16
        $region15: #{tpu_custom_call.1} parent=11 // pred_region
          _
        $region16: #{tpu_custom_call.1} parent=11 // pred_fallthru
          _
        // Predicated region
        $region17: #{tpu_custom_call.1} parent=11 // pred_check
          %p437 = pneg %p99
        $region18: #{tpu_custom_call.1} parent=11 // pred_check_branch
          %439 = sbr.rel (%p437) target = $region20
        $region19: #{tpu_custom_call.1} parent=11 // pred_region
          _
        $region20: #{tpu_custom_call.1} parent=11 // pred_fallthru
          _
        // Predicated region
        $region21: #{tpu_custom_call.1} parent=11 // pred_check
          %p440 = pneg %p120
        $region22: #{tpu_custom_call.1} parent=11 // pred_check_branch
          %442 = sbr.rel (%p440) target = $region24
        $region23: #{tpu_custom_call.1} parent=11 // pred_region
          _
        $region24: #{tpu_custom_call.1} parent=11 // pred_fallthru
          _
        // Predicated region
        $region25: #{tpu_custom_call.1} parent=11 // pred_check
          %p443 = pneg %p141
        $region26: #{tpu_custom_call.1} parent=11 // pred_check_branch
          %445 = sbr.rel (%p443) target = $region28
        $region27: #{tpu_custom_call.1} parent=11 // pred_region
          _
        $region28: #{tpu_custom_call.1} parent=11 // pred_fallthru
          _
        // Predicated region
        $region29: #{tpu_custom_call.1} parent=11 // pred_check
          %p446 = pneg %p162
        $region30: #{tpu_custom_call.1} parent=11 // pred_check_branch
          %448 = sbr.rel (%p446) target = $region32
        $region31: #{tpu_custom_call.1} parent=11 // pred_region
          _
        $region32: #{tpu_custom_call.1} parent=11 // pred_fallthru
          _
        // Predicated region
        $region33: #{tpu_custom_call.1} parent=11 // pred_check
          %p449 = pneg %p183
        $region34: #{tpu_custom_call.1} parent=11 // pred_check_branch
          %451 = sbr.rel (%p449) target = $region36
        $region35: #{tpu_custom_call.1} parent=11 // pred_region
          _
        $region36: #{tpu_custom_call.1} parent=11 // pred_fallthru
          _
        // Predicated region
        $region37: #{tpu_custom_call.1} parent=11 // pred_check
          %p452 = pneg %p204
        $region38: #{tpu_custom_call.1} parent=11 // pred_check_branch
          %454 = sbr.rel (%p452) target = $region40
        $region39: #{tpu_custom_call.1} parent=11 // pred_region
          _
        $region40: #{tpu_custom_call.1} parent=11 // pred_fallthru
          _
        // Predicated region
        $region41: #{tpu_custom_call.1} parent=11 // pred_check
          %p455 = pneg %p225
        $region42: #{tpu_custom_call.1} parent=11 // pred_check_branch
          %457 = sbr.rel (%p455) target = $region44
        $region43: #{tpu_custom_call.1} parent=11 // pred_region
          _
        $region44: #{tpu_custom_call.1} parent=11 // pred_fallthru
          _
        // Predicated region
        $region45: #{tpu_custom_call.1} parent=11 // pred_check
          %p458 = pneg %p246
        $region46: #{tpu_custom_call.1} parent=11 // pred_check_branch
          %460 = sbr.rel (%p458) target = $region48
        $region47: #{tpu_custom_call.1} parent=11 // pred_region
          %s462 = ssub.s32 2048, 2048
          %463 = vsyncadd [#allocation6], %s462
          %s464 = sshll.u32 [#allocation5], 4
          %s465 = int_to_ptr.vmem [resolvable:$true] %s464
          %470 = dma.hbm_to_vmem [thread:$0]  %s9, 2048, %s465, [#allocation6], 128, 128, 8
        $region48: #{tpu_custom_call.1} parent=11 // pred_fallthru
          _
        // Predicated region
        $region49: #{tpu_custom_call.1} parent=11 // pred_check
          %p471 = pneg %p267
        $region50: #{tpu_custom_call.1} parent=11 // pred_check_branch
          %473 = sbr.rel (%p471) target = $region52
        $region51: #{tpu_custom_call.1} parent=11 // pred_region
          _
        $region52: #{tpu_custom_call.1} parent=11 // pred_fallthru
          _
        // Predicated region
        $region53: #{tpu_custom_call.1} parent=11 // pred_check
          %p474 = pneg %p288
        $region54: #{tpu_custom_call.1} parent=11 // pred_check_branch
          %476 = sbr.rel (%p474) target = $region56
        $region55: #{tpu_custom_call.1} parent=11 // pred_region
          _
        $region56: #{tpu_custom_call.1} parent=11 // pred_fallthru
          _
        // Predicated region
        $region57: #{tpu_custom_call.1} parent=11 // pred_check
          %p477 = pneg %p309
        $region58: #{tpu_custom_call.1} parent=11 // pred_check_branch
          %479 = sbr.rel (%p477) target = $region60
        $region59: #{tpu_custom_call.1} parent=11 // pred_region
          _
        $region60: #{tpu_custom_call.1} parent=11 // pred_fallthru
          _
        // Predicated region
        $region61: #{tpu_custom_call.1} parent=11 // pred_check
          %p480 = pneg %p330
        $region62: #{tpu_custom_call.1} parent=11 // pred_check_branch
          %482 = sbr.rel (%p480) target = $region64
        $region63: #{tpu_custom_call.1} parent=11 // pred_region
          %s484 = ssub.s32 8192, 8192
          %485 = vsyncadd [#allocation6], %s484
          %s486 = sshll.u32 [#allocation7], 4
          %s487 = int_to_ptr.vmem [resolvable:$true] %s486
          %492 = dma.hbm_to_vmem [thread:$0]  %s13, 8192, %s487, [#allocation6], 512, 512, 32
        $region64: #{tpu_custom_call.1} parent=11 // pred_fallthru
          _
        // Predicated region
        $region65: #{tpu_custom_call.1} parent=11 // pred_check
          %p493 = pneg %p351
        $region66: #{tpu_custom_call.1} parent=11 // pred_check_branch
          %495 = sbr.rel (%p493) target = $region68
        $region67: #{tpu_custom_call.1} parent=11 // pred_region
          _
        $region68: #{tpu_custom_call.1} parent=11 // pred_fallthru
          _
        // Predicated region
        $region69: #{tpu_custom_call.1} parent=11 // pred_check
          %p496 = pneg %p372
        $region70: #{tpu_custom_call.1} parent=11 // pred_check_branch
          %498 = sbr.rel (%p496) target = $region72
        $region71: #{tpu_custom_call.1} parent=11 // pred_region
          %s500 = ssub.s32 8192, 8192
          %501 = vsyncadd [#allocation9], %s500
          %s502 = sshll.u32 [#allocation8], 4
          %s503 = int_to_ptr.vmem [resolvable:$true] %s502
          %508 = dma.hbm_to_vmem [thread:$0]  %s15, 8192, %s503, [#allocation9], 128, 128, 8
        $region72: #{tpu_custom_call.1} parent=11 // pred_fallthru
          _
        // Predicated region
        $region73: #{tpu_custom_call.1} parent=11 // pred_check
          %p509 = pneg %p393
        $region74: #{tpu_custom_call.1} parent=11 // pred_check_branch
          %511 = sbr.rel (%p509) target = $region76
        $region75: #{tpu_custom_call.1} parent=11 // pred_region
          _
        $region76: #{tpu_custom_call.1} parent=11 // pred_fallthru
          _
      $region12: #{tpu_custom_call.1} parent=5 // pred_fallthru
        _
      %p512 = scmp.lt.s32.totalorder %s31, 2
      // Predicated region
      $region77: #{tpu_custom_call.1} parent=5 // pred_check
        %p513 = pneg %p512
      $region78: #{tpu_custom_call.1} parent=5 // pred_check_branch
        %515 = sbr.rel (%p513) target = $region80
      $region79: #{tpu_custom_call.1} parent=5 // pred_region
        // Predicated region
        $region81: #{tpu_custom_call.1} parent=79 // pred_check
          %p516 = pneg %p51
        $region82: #{tpu_custom_call.1} parent=79 // pred_check_branch
          %518 = sbr.rel (%p516) target = $region84
        $region83: #{tpu_custom_call.1} parent=79 // pred_region
          %s519 = sand.u32 %s41, 1
          %s520 = scalar_lea.sflag [#allocation3], %s519
          %s521 = sand.u32 %s41, 1
          %s522 = smul.addr %s521, 256
          %s523 = scalar_lea.vmem [#allocation2], %s522
          %s524 = smul.u32 4, %s31
          %s526 = ssub.s32 4096, 4096
          %527 = vsyncadd %s520, %s526
          %s528 = smul.addr %s524, 8
          %s529 = smul.addr %s528, 128
          %s530 = scalar_lea.hbm %s0, %s529
          %s531 = sshll.u32 %s523, 4
          %s532 = int_to_ptr.vmem [resolvable:$true] %s531
          %537 = dma.hbm_to_vmem [thread:$0]  %s530, 4096, %s532, %s520, 128, 128, 8
        $region84: #{tpu_custom_call.1} parent=79 // pred_fallthru
          _
      $region80: #{tpu_custom_call.1} parent=5 // pred_fallthru
        _
      %p538 = scmp.le.s32.totalorder 1, %s31
      %p539 = scmp.lt.s32.totalorder %s31, 3
      %p540 = pnand %p538, %p539
      %p541 = pneg %p540
      // Predicated region
      $region85: #{tpu_custom_call.1} parent=5 // pred_check
        _
      $region86: #{tpu_custom_call.1} parent=5 // pred_check_branch
        %543 = sbr.rel (%p540) target = $region88
      $region87: #{tpu_custom_call.1} parent=5 // pred_region
        %s544 = ssub.s32 %s31, 1
        %s545 = sand.u32 %s44, 1
        %s546 = scalar_lea.sflag [#allocation3], %s545
        %s547 = sand.u32 %s44, 1
        %s548 = smul.addr %s547, 256
        %s549 = scalar_lea.vmem [#allocation2], %s548
        // Predicated region
        $region89: #{tpu_custom_call.1} parent=87 // pred_check
          %p550 = pneg %p57
        $region90: #{tpu_custom_call.1} parent=87 // pred_check_branch
          %552 = sbr.rel (%p550) target = $region92
        $region91: #{tpu_custom_call.1} parent=87 // pred_region
          %553 = dma.done %s546, 4096
        $region92: #{tpu_custom_call.1} parent=87 // pred_fallthru
          _
        // Predicated region
        $region93: #{tpu_custom_call.1} parent=87 // pred_check
          %p554 = pneg %p246
        $region94: #{tpu_custom_call.1} parent=87 // pred_check_branch
          %556 = sbr.rel (%p554) target = $region96
        $region95: #{tpu_custom_call.1} parent=87 // pred_region
          %557 = dma.done [#allocation6], 2048
        $region96: #{tpu_custom_call.1} parent=87 // pred_fallthru
          _
        // Predicated region
        $region97: #{tpu_custom_call.1} parent=87 // pred_check
          %p558 = pneg %p330
        $region98: #{tpu_custom_call.1} parent=87 // pred_check_branch
          %560 = sbr.rel (%p558) target = $region100
        $region99: #{tpu_custom_call.1} parent=87 // pred_region
          %561 = dma.done [#allocation6], 8192
        $region100: #{tpu_custom_call.1} parent=87 // pred_fallthru
          _
        // Predicated region
        $region101: #{tpu_custom_call.1} parent=87 // pred_check
          %p562 = pneg %p372
        $region102: #{tpu_custom_call.1} parent=87 // pred_check_branch
          %564 = sbr.rel (%p562) target = $region104
        $region103: #{tpu_custom_call.1} parent=87 // pred_region
          %565 = dma.done [#allocation9], 8192
        $region104: #{tpu_custom_call.1} parent=87 // pred_fallthru
          _
        %s566 = sand.u32 %s44, 1
        %s567 = scalar_lea.sflag [#allocation3], %s566
        %s568 = sand.u32 %s44, 1
        %s569 = smul.addr %s568, 256
        %s570 = scalar_lea.vmem [#allocation2], %s569
        %p571 = pneg %p57
        %p572 = pneg %p54
        %p573 = pneg %p78
        %p574 = pneg %p75
        %p575 = pneg %p99
        %p576 = pneg %p96
        %p577 = pneg %p120
        %p578 = pneg %p117
        %p579 = pneg %p141
        %p580 = pneg %p138
        %p581 = pneg %p162
        %p582 = pneg %p159
        %p583 = pneg %p183
        %p584 = pneg %p180
        %p585 = pneg %p204
        %p586 = pneg %p201
        %p587 = pneg %p225
        %p588 = pneg %p222
        %p589 = pneg %p246
        %p590 = pneg %p243
        %p591 = pneg %p267
        %p592 = pneg %p264
        %p593 = pneg %p288
        %p594 = pneg %p285
        %p595 = pneg %p309
        %p596 = pneg %p306
        %p597 = pneg %p330
        %p598 = pneg %p327
        %p599 = pneg %p351
        %p600 = pneg %p348
        %p601 = pneg %p372
        %p602 = pneg %p369
        %p603 = pneg %p393
        %p604 = pneg %p390
        %p605 = pneg %p419
        %p606 = pneg %p416
        %s607 = sand.u32 %s406, 1
        %s608 = scalar_lea.sflag [#allocation4], %s607
        %s609 = sand.u32 %s406, 1
        %s610 = smul.addr %s609, 4
        %s611 = scalar_lea.vmem [#allocation10], %s610
        %s612 = smul.u32 4, %s36
        %s613 = smul.u32 4, %s36
        %v614 = vld [vmem:[%s549] sm:$0xff]
        %v615 = vld [vmem:[%s549 + $0x8] sm:$0xff]
        %v616 = vld [vmem:[%s549 + $0x10] sm:$0xff]
        %v617 = vld [vmem:[%s549 + $0x18] sm:$0xff]
        %v618 = vld [vmem:[%s549 + $0x20] sm:$0xff]
        %v619 = vld [vmem:[%s549 + $0x28] sm:$0xff]
        %v620 = vld [vmem:[%s549 + $0x30] sm:$0xff]
        %v621 = vld [vmem:[%s549 + $0x38] sm:$0xff]
        %v622 = vld [vmem:[%s549 + $0x40] sm:$0xff]
        %v623 = vld [vmem:[%s549 + $0x48] sm:$0xff]
        %v624 = vld [vmem:[%s549 + $0x50] sm:$0xff]
        %v625 = vld [vmem:[%s549 + $0x58] sm:$0xff]
        %v626 = vld [vmem:[%s549 + $0x60] sm:$0xff]
        %v627 = vld [vmem:[%s549 + $0x68] sm:$0xff]
        %v628 = vld [vmem:[%s549 + $0x70] sm:$0xff]
        %v629 = vld [vmem:[%s549 + $0x78] sm:$0xff]
        %v630 = vld [vmem:[%s549 + $0x80] sm:$0xff]
        %v631 = vld [vmem:[%s549 + $0x88] sm:$0xff]
        %v632 = vld [vmem:[%s549 + $0x90] sm:$0xff]
        %v633 = vld [vmem:[%s549 + $0x98] sm:$0xff]
        %v634 = vld [vmem:[%s549 + $0xa0] sm:$0xff]
        %v635 = vld [vmem:[%s549 + $0xa8] sm:$0xff]
        %v636 = vld [vmem:[%s549 + $0xb0] sm:$0xff]
        %v637 = vld [vmem:[%s549 + $0xb8] sm:$0xff]
        %v638 = vld [vmem:[%s549 + $0xc0] sm:$0xff]
        %v639 = vld [vmem:[%s549 + $0xc8] sm:$0xff]
        %v640 = vld [vmem:[%s549 + $0xd0] sm:$0xff]
        %v641 = vld [vmem:[%s549 + $0xd8] sm:$0xff]
        %v642 = vld [vmem:[%s549 + $0xe0] sm:$0xff]
        %v643 = vld [vmem:[%s549 + $0xe8] sm:$0xff]
        %v644 = vld [vmem:[%s549 + $0xf0] sm:$0xff]
        %v645 = vld [vmem:[%s549 + $0xf8] sm:$0xff]
        %v646 = vld [vmem:[%s5] sm:$0x1]
        %v647 = vld [vmem:[%s6] sm:$0x1]
        %648 = vadd.xlane.f32.xlu0 %v614
        %v649 = vpop.xlane.xlu0 %648
        %650 = vadd.xlane.f32.xlu0 %v615
        %v651 = vpop.xlane.xlu0 %650
        %652 = vadd.xlane.f32.xlu0 %v616
        %v653 = vpop.xlane.xlu0 %652
        %654 = vadd.xlane.f32.xlu0 %v617
        %v655 = vpop.xlane.xlu0 %654
        %656 = vadd.xlane.f32.xlu0 %v618
        %v657 = vpop.xlane.xlu0 %656
        %658 = vadd.xlane.f32.xlu0 %v619
        %v659 = vpop.xlane.xlu0 %658
        %660 = vadd.xlane.f32.xlu0 %v620
        %v661 = vpop.xlane.xlu0 %660
        %662 = vadd.xlane.f32.xlu0 %v621
        %v663 = vpop.xlane.xlu0 %662
        %664 = vadd.xlane.f32.xlu0 %v622
        %v665 = vpop.xlane.xlu0 %664
        %666 = vadd.xlane.f32.xlu0 %v623
        %v667 = vpop.xlane.xlu0 %666
        %668 = vadd.xlane.f32.xlu0 %v624
        %v669 = vpop.xlane.xlu0 %668
        %670 = vadd.xlane.f32.xlu0 %v625
        %v671 = vpop.xlane.xlu0 %670
        %672 = vadd.xlane.f32.xlu0 %v626
        %v673 = vpop.xlane.xlu0 %672
        %674 = vadd.xlane.f32.xlu0 %v627
        %v675 = vpop.xlane.xlu0 %674
        %676 = vadd.xlane.f32.xlu0 %v628
        %v677 = vpop.xlane.xlu0 %676
        %678 = vadd.xlane.f32.xlu0 %v629
        %v679 = vpop.xlane.xlu0 %678
        %680 = vadd.xlane.f32.xlu0 %v630
        %v681 = vpop.xlane.xlu0 %680
        %682 = vadd.xlane.f32.xlu0 %v631
        %v683 = vpop.xlane.xlu0 %682
        %684 = vadd.xlane.f32.xlu0 %v632
        %v685 = vpop.xlane.xlu0 %684
        %686 = vadd.xlane.f32.xlu0 %v633
        %v687 = vpop.xlane.xlu0 %686
        %688 = vadd.xlane.f32.xlu0 %v634
        %v689 = vpop.xlane.xlu0 %688
        %690 = vadd.xlane.f32.xlu0 %v635
        %v691 = vpop.xlane.xlu0 %690
        %692 = vadd.xlane.f32.xlu0 %v636
        %v693 = vpop.xlane.xlu0 %692
        %694 = vadd.xlane.f32.xlu0 %v637
        %v695 = vpop.xlane.xlu0 %694
        %696 = vadd.xlane.f32.xlu0 %v638
        %v697 = vpop.xlane.xlu0 %696
        %698 = vadd.xlane.f32.xlu0 %v639
        %v699 = vpop.xlane.xlu0 %698
        %700 = vadd.xlane.f32.xlu0 %v640
        %v701 = vpop.xlane.xlu0 %700
        %702 = vadd.xlane.f32.xlu0 %v641
        %v703 = vpop.xlane.xlu0 %702
        %704 = vadd.xlane.f32.xlu0 %v642
        %v705 = vpop.xlane.xlu0 %704
        %706 = vadd.xlane.f32.xlu0 %v643
        %v707 = vpop.xlane.xlu0 %706
        %708 = vadd.xlane.f32.xlu0 %v644
        %v709 = vpop.xlane.xlu0 %708
        %710 = vadd.xlane.f32.xlu0 %v645
        %v711 = vpop.xlane.xlu0 %710
        %v712 = vrcp.pop 128.0
        %v713 = vmul.f32 %v649, %v712
        %v714 = vmul.f32 %v651, %v712
        %v715 = vmul.f32 %v653, %v712
        %v716 = vmul.f32 %v655, %v712
        %v717 = vmul.f32 %v657, %v712
        %v718 = vmul.f32 %v659, %v712
        %v719 = vmul.f32 %v661, %v712
        %v720 = vmul.f32 %v663, %v712
        %v721 = vmul.f32 %v665, %v712
        %v722 = vmul.f32 %v667, %v712
        %v723 = vmul.f32 %v669, %v712
        %v724 = vmul.f32 %v671, %v712
        %v725 = vmul.f32 %v673, %v712
        %v726 = vmul.f32 %v675, %v712
        %v727 = vmul.f32 %v677, %v712
        %v728 = vmul.f32 %v679, %v712
        %v729 = vmul.f32 %v681, %v712
        %v730 = vmul.f32 %v683, %v712
        %v731 = vmul.f32 %v685, %v712
        %v732 = vmul.f32 %v687, %v712
        %v733 = vmul.f32 %v689, %v712
        %v734 = vmul.f32 %v691, %v712
        %v735 = vmul.f32 %v693, %v712
        %v736 = vmul.f32 %v695, %v712
        %v737 = vmul.f32 %v697, %v712
        %v738 = vmul.f32 %v699, %v712
        %v739 = vmul.f32 %v701, %v712
        %v740 = vmul.f32 %v703, %v712
        %v741 = vmul.f32 %v705, %v712
        %v742 = vmul.f32 %v707, %v712
        %v743 = vmul.f32 %v709, %v712
        %v744 = vmul.f32 %v711, %v712
        %v745 = vsub.f32 %v614, %v713
        %v746 = vsub.f32 %v615, %v714
        %v747 = vsub.f32 %v616, %v715
        %v748 = vsub.f32 %v617, %v716
        %v749 = vsub.f32 %v618, %v717
        %v750 = vsub.f32 %v619, %v718
        %v751 = vsub.f32 %v620, %v719
        %v752 = vsub.f32 %v621, %v720
        %v753 = vsub.f32 %v622, %v721
        %v754 = vsub.f32 %v623, %v722
        %v755 = vsub.f32 %v624, %v723
        %v756 = vsub.f32 %v625, %v724
        %v757 = vsub.f32 %v626, %v725
        %v758 = vsub.f32 %v627, %v726
        %v759 = vsub.f32 %v628, %v727
        %v760 = vsub.f32 %v629, %v728
        %v761 = vsub.f32 %v630, %v729
        %v762 = vsub.f32 %v631, %v730
        %v763 = vsub.f32 %v632, %v731
        %v764 = vsub.f32 %v633, %v732
        %v765 = vsub.f32 %v634, %v733
        %v766 = vsub.f32 %v635, %v734
        %v767 = vsub.f32 %v636, %v735
        %v768 = vsub.f32 %v637, %v736
        %v769 = vsub.f32 %v638, %v737
        %v770 = vsub.f32 %v639, %v738
        %v771 = vsub.f32 %v640, %v739
        %v772 = vsub.f32 %v641, %v740
        %v773 = vsub.f32 %v642, %v741
        %v774 = vsub.f32 %v643, %v742
        %v775 = vsub.f32 %v644, %v743
        %v776 = vsub.f32 %v645, %v744
        %v777 = vmul.f32 %v745, %v745
        %v778 = vmul.f32 %v746, %v746
        %v779 = vmul.f32 %v747, %v747
        %v780 = vmul.f32 %v748, %v748
        %v781 = vmul.f32 %v749, %v749
        %v782 = vmul.f32 %v750, %v750
        %v783 = vmul.f32 %v751, %v751
        %v784 = vmul.f32 %v752, %v752
        %v785 = vmul.f32 %v753, %v753
        %v786 = vmul.f32 %v754, %v754
        %v787 = vmul.f32 %v755, %v755
        %v788 = vmul.f32 %v756, %v756
        %v789 = vmul.f32 %v757, %v757
        %v790 = vmul.f32 %v758, %v758
        %v791 = vmul.f32 %v759, %v759
        %v792 = vmul.f32 %v760, %v760
        %v793 = vmul.f32 %v761, %v761
        %v794 = vmul.f32 %v762, %v762
        %v795 = vmul.f32 %v763, %v763
        %v796 = vmul.f32 %v764, %v764
        %v797 = vmul.f32 %v765, %v765
        %v798 = vmul.f32 %v766, %v766
        %v799 = vmul.f32 %v767, %v767
        %v800 = vmul.f32 %v768, %v768
        %v801 = vmul.f32 %v769, %v769
        %v802 = vmul.f32 %v770, %v770
        %v803 = vmul.f32 %v771, %v771
        %v804 = vmul.f32 %v772, %v772
        %v805 = vmul.f32 %v773, %v773
        %v806 = vmul.f32 %v774, %v774
        %v807 = vmul.f32 %v775, %v775
        %v808 = vmul.f32 %v776, %v776
        %809 = vadd.xlane.f32.xlu0 %v777
        %v810 = vpop.xlane.xlu0 %809
        %811 = vadd.xlane.f32.xlu0 %v778
        %v812 = vpop.xlane.xlu0 %811
        %813 = vadd.xlane.f32.xlu0 %v779
        %v814 = vpop.xlane.xlu0 %813
        %815 = vadd.xlane.f32.xlu0 %v780
        %v816 = vpop.xlane.xlu0 %815
        %817 = vadd.xlane.f32.xlu0 %v781
        %v818 = vpop.xlane.xlu0 %817
        %819 = vadd.xlane.f32.xlu0 %v782
        %v820 = vpop.xlane.xlu0 %819
        %821 = vadd.xlane.f32.xlu0 %v783
        %v822 = vpop.xlane.xlu0 %821
        %823 = vadd.xlane.f32.xlu0 %v784
        %v824 = vpop.xlane.xlu0 %823
        %825 = vadd.xlane.f32.xlu0 %v785
        %v826 = vpop.xlane.xlu0 %825
        %827 = vadd.xlane.f32.xlu0 %v786
        %v828 = vpop.xlane.xlu0 %827
        %829 = vadd.xlane.f32.xlu0 %v787
        %v830 = vpop.xlane.xlu0 %829
        %831 = vadd.xlane.f32.xlu0 %v788
        %v832 = vpop.xlane.xlu0 %831
        %833 = vadd.xlane.f32.xlu0 %v789
        %v834 = vpop.xlane.xlu0 %833
        %835 = vadd.xlane.f32.xlu0 %v790
        %v836 = vpop.xlane.xlu0 %835
        %837 = vadd.xlane.f32.xlu0 %v791
        %v838 = vpop.xlane.xlu0 %837
        %839 = vadd.xlane.f32.xlu0 %v792
        %v840 = vpop.xlane.xlu0 %839
        %841 = vadd.xlane.f32.xlu0 %v793
        %v842 = vpop.xlane.xlu0 %841
        %843 = vadd.xlane.f32.xlu0 %v794
        %v844 = vpop.xlane.xlu0 %843
        %845 = vadd.xlane.f32.xlu0 %v795
        %v846 = vpop.xlane.xlu0 %845
        %847 = vadd.xlane.f32.xlu0 %v796
        %v848 = vpop.xlane.xlu0 %847
        %849 = vadd.xlane.f32.xlu0 %v797
        %v850 = vpop.xlane.xlu0 %849
        %851 = vadd.xlane.f32.xlu0 %v798
        %v852 = vpop.xlane.xlu0 %851
        %853 = vadd.xlane.f32.xlu0 %v799
        %v854 = vpop.xlane.xlu0 %853
        %855 = vadd.xlane.f32.xlu0 %v800
        %v856 = vpop.xlane.xlu0 %855
        %857 = vadd.xlane.f32.xlu0 %v801
        %v858 = vpop.xlane.xlu0 %857
        %859 = vadd.xlane.f32.xlu0 %v802
        %v860 = vpop.xlane.xlu0 %859
        %861 = vadd.xlane.f32.xlu0 %v803
        %v862 = vpop.xlane.xlu0 %861
        %863 = vadd.xlane.f32.xlu0 %v804
        %v864 = vpop.xlane.xlu0 %863
        %865 = vadd.xlane.f32.xlu0 %v805
        %v866 = vpop.xlane.xlu0 %865
        %867 = vadd.xlane.f32.xlu0 %v806
        %v868 = vpop.xlane.xlu0 %867
        %869 = vadd.xlane.f32.xlu0 %v807
        %v870 = vpop.xlane.xlu0 %869
        %871 = vadd.xlane.f32.xlu0 %v808
        %v872 = vpop.xlane.xlu0 %871
        %v873 = vmul.f32 %v810, %v712
        %v874 = vmul.f32 %v812, %v712
        %v875 = vmul.f32 %v814, %v712
        %v876 = vmul.f32 %v816, %v712
        %v877 = vmul.f32 %v818, %v712
        %v878 = vmul.f32 %v820, %v712
        %v879 = vmul.f32 %v822, %v712
        %v880 = vmul.f32 %v824, %v712
        %v881 = vmul.f32 %v826, %v712
        %v882 = vmul.f32 %v828, %v712
        %v883 = vmul.f32 %v830, %v712
        %v884 = vmul.f32 %v832, %v712
        %v885 = vmul.f32 %v834, %v712
        %v886 = vmul.f32 %v836, %v712
        %v887 = vmul.f32 %v838, %v712
        %v888 = vmul.f32 %v840, %v712
        %v889 = vmul.f32 %v842, %v712
        %v890 = vmul.f32 %v844, %v712
        %v891 = vmul.f32 %v846, %v712
        %v892 = vmul.f32 %v848, %v712
        %v893 = vmul.f32 %v850, %v712
        %v894 = vmul.f32 %v852, %v712
        %v895 = vmul.f32 %v854, %v712
        %v896 = vmul.f32 %v856, %v712
        %v897 = vmul.f32 %v858, %v712
        %v898 = vmul.f32 %v860, %v712
        %v899 = vmul.f32 %v862, %v712
        %v900 = vmul.f32 %v864, %v712
        %v901 = vmul.f32 %v866, %v712
        %v902 = vmul.f32 %v868, %v712
        %v903 = vmul.f32 %v870, %v712
        %v904 = vmul.f32 %v872, %v712
        %v905 = vadd.f32 %v873, 1e-06
        %v906 = vadd.f32 %v874, 1e-06
        %v907 = vadd.f32 %v875, 1e-06
        %v908 = vadd.f32 %v876, 1e-06
        %v909 = vadd.f32 %v877, 1e-06
        %v910 = vadd.f32 %v878, 1e-06
        %v911 = vadd.f32 %v879, 1e-06
        %v912 = vadd.f32 %v880, 1e-06
        %v913 = vadd.f32 %v881, 1e-06
        %v914 = vadd.f32 %v882, 1e-06
        %v915 = vadd.f32 %v883, 1e-06
        %v916 = vadd.f32 %v884, 1e-06
        %v917 = vadd.f32 %v885, 1e-06
        %v918 = vadd.f32 %v886, 1e-06
        %v919 = vadd.f32 %v887, 1e-06
        %v920 = vadd.f32 %v888, 1e-06
        %v921 = vadd.f32 %v889, 1e-06
        %v922 = vadd.f32 %v890, 1e-06
        %v923 = vadd.f32 %v891, 1e-06
        %v924 = vadd.f32 %v892, 1e-06
        %v925 = vadd.f32 %v893, 1e-06
        %v926 = vadd.f32 %v894, 1e-06
        %v927 = vadd.f32 %v895, 1e-06
        %v928 = vadd.f32 %v896, 1e-06
        %v929 = vadd.f32 %v897, 1e-06
        %v930 = vadd.f32 %v898, 1e-06
        %v931 = vadd.f32 %v899, 1e-06
        %v932 = vadd.f32 %v900, 1e-06
        %v933 = vadd.f32 %v901, 1e-06
        %v934 = vadd.f32 %v902, 1e-06
        %v935 = vadd.f32 %v903, 1e-06
        %v936 = vadd.f32 %v904, 1e-06
        %v937 = vrsqrt.pop %v905
        %v938 = vrsqrt.pop %v906
        %v939 = vrsqrt.pop %v907
        %v940 = vrsqrt.pop %v908
        %v941 = vrsqrt.pop %v909
        %v942 = vrsqrt.pop %v910
        %v943 = vrsqrt.pop %v911
        %v944 = vrsqrt.pop %v912
        %v945 = vrsqrt.pop %v913
        %v946 = vrsqrt.pop %v914
        %v947 = vrsqrt.pop %v915
        %v948 = vrsqrt.pop %v916
        %v949 = vrsqrt.pop %v917
        %v950 = vrsqrt.pop %v918
        %v951 = vrsqrt.pop %v919
        %v952 = vrsqrt.pop %v920
        %v953 = vrsqrt.pop %v921
        %v954 = vrsqrt.pop %v922
        %v955 = vrsqrt.pop %v923
        %v956 = vrsqrt.pop %v924
        %v957 = vrsqrt.pop %v925
        %v958 = vrsqrt.pop %v926
        %v959 = vrsqrt.pop %v927
        %v960 = vrsqrt.pop %v928
        %v961 = vrsqrt.pop %v929
        %v962 = vrsqrt.pop %v930
        %v963 = vrsqrt.pop %v931
        %v964 = vrsqrt.pop %v932
        %v965 = vrsqrt.pop %v933
        %v966 = vrsqrt.pop %v934
        %v967 = vrsqrt.pop %v935
        %v968 = vrsqrt.pop %v936
        %v969 = vmul.f32 %v745, %v937
        %v970 = vmul.f32 %v746, %v938
        %v971 = vmul.f32 %v747, %v939
        %v972 = vmul.f32 %v748, %v940
        %v973 = vmul.f32 %v749, %v941
        %v974 = vmul.f32 %v750, %v942
        %v975 = vmul.f32 %v751, %v943
        %v976 = vmul.f32 %v752, %v944
        %v977 = vmul.f32 %v753, %v945
        %v978 = vmul.f32 %v754, %v946
        %v979 = vmul.f32 %v755, %v947
        %v980 = vmul.f32 %v756, %v948
        %v981 = vmul.f32 %v757, %v949
        %v982 = vmul.f32 %v758, %v950
        %v983 = vmul.f32 %v759, %v951
        %v984 = vmul.f32 %v760, %v952
        %v985 = vmul.f32 %v761, %v953
        %v986 = vmul.f32 %v762, %v954
        %v987 = vmul.f32 %v763, %v955
        %v988 = vmul.f32 %v764, %v956
        %v989 = vmul.f32 %v765, %v957
        %v990 = vmul.f32 %v766, %v958
        %v991 = vmul.f32 %v767, %v959
        %v992 = vmul.f32 %v768, %v960
        %v993 = vmul.f32 %v769, %v961
        %v994 = vmul.f32 %v770, %v962
        %v995 = vmul.f32 %v771, %v963
        %v996 = vmul.f32 %v772, %v964
        %v997 = vmul.f32 %v773, %v965
        %v998 = vmul.f32 %v774, %v966
        %v999 = vmul.f32 %v775, %v967
        %v1000 = vmul.f32 %v776, %v968
        %v1002 = vlaneseq
        %v1003 = vshrl.u32 %v1002, 7
        %v1004 = vsub.s32 0, %v1003
        %v1005 = vrot.slane %v646, %v1004
        %v1007 = vmul.f32 %v969, %v1005
        %v1008 = vmul.f32 %v970, %v1005
        %v1009 = vmul.f32 %v971, %v1005
        %v1010 = vmul.f32 %v972, %v1005
        %v1011 = vmul.f32 %v973, %v1005
        %v1012 = vmul.f32 %v974, %v1005
        %v1013 = vmul.f32 %v975, %v1005
        %v1014 = vmul.f32 %v976, %v1005
        %v1015 = vmul.f32 %v977, %v1005
        %v1016 = vmul.f32 %v978, %v1005
        %v1017 = vmul.f32 %v979, %v1005
        %v1018 = vmul.f32 %v980, %v1005
        %v1019 = vmul.f32 %v981, %v1005
        %v1020 = vmul.f32 %v982, %v1005
        %v1021 = vmul.f32 %v983, %v1005
        %v1022 = vmul.f32 %v984, %v1005
        %v1023 = vmul.f32 %v985, %v1005
        %v1024 = vmul.f32 %v986, %v1005
        %v1025 = vmul.f32 %v987, %v1005
        %v1026 = vmul.f32 %v988, %v1005
        %v1027 = vmul.f32 %v989, %v1005
        %v1028 = vmul.f32 %v990, %v1005
        %v1029 = vmul.f32 %v991, %v1005
        %v1030 = vmul.f32 %v992, %v1005
        %v1031 = vmul.f32 %v993, %v1005
        %v1032 = vmul.f32 %v994, %v1005
        %v1033 = vmul.f32 %v995, %v1005
        %v1034 = vmul.f32 %v996, %v1005
        %v1035 = vmul.f32 %v997, %v1005
        %v1036 = vmul.f32 %v998, %v1005
        %v1037 = vmul.f32 %v999, %v1005
        %v1038 = vmul.f32 %v1000, %v1005
        %v1040 = vlaneseq
        %v1041 = vshrl.u32 %v1040, 7
        %v1042 = vsub.s32 0, %v1041
        %v1043 = vrot.slane %v647, %v1042
        %v1045 = vadd.f32 %v1007, %v1043
        %v1046 = vadd.f32 %v1008, %v1043
        %v1047 = vadd.f32 %v1009, %v1043
        %v1048 = vadd.f32 %v1010, %v1043
        %v1049 = vadd.f32 %v1011, %v1043
        %v1050 = vadd.f32 %v1012, %v1043
        %v1051 = vadd.f32 %v1013, %v1043
        %v1052 = vadd.f32 %v1014, %v1043
        %v1053 = vadd.f32 %v1015, %v1043
        %v1054 = vadd.f32 %v1016, %v1043
        %v1055 = vadd.f32 %v1017, %v1043
        %v1056 = vadd.f32 %v1018, %v1043
        %v1057 = vadd.f32 %v1019, %v1043
        %v1058 = vadd.f32 %v1020, %v1043
        %v1059 = vadd.f32 %v1021, %v1043
        %v1060 = vadd.f32 %v1022, %v1043
        %v1061 = vadd.f32 %v1023, %v1043
        %v1062 = vadd.f32 %v1024, %v1043
        %v1063 = vadd.f32 %v1025, %v1043
        %v1064 = vadd.f32 %v1026, %v1043
        %v1065 = vadd.f32 %v1027, %v1043
        %v1066 = vadd.f32 %v1028, %v1043
        %v1067 = vadd.f32 %v1029, %v1043
        %v1068 = vadd.f32 %v1030, %v1043
        %v1069 = vadd.f32 %v1031, %v1043
        %v1070 = vadd.f32 %v1032, %v1043
        %v1071 = vadd.f32 %v1033, %v1043
        %v1072 = vadd.f32 %v1034, %v1043
        %v1073 = vadd.f32 %v1035, %v1043
        %v1074 = vadd.f32 %v1036, %v1043
        %v1075 = vadd.f32 %v1037, %v1043
        %v1076 = vadd.f32 %v1038, %v1043
        %v1077 = vld [vmem:[%s2] sm:$0xff]
        %v1078 = vld [vmem:[%s2 + $0x8] sm:$0xff]
        %v1079 = vld [vmem:[%s2 + $0x10] sm:$0xff]
        %v1080 = vld [vmem:[%s2 + $0x18] sm:$0xff]
        %v1081 = vld [vmem:[%s2 + $0x20] sm:$0xff]
        %v1082 = vld [vmem:[%s2 + $0x28] sm:$0xff]
        %v1083 = vld [vmem:[%s2 + $0x30] sm:$0xff]
        %v1084 = vld [vmem:[%s2 + $0x38] sm:$0xff]
        %v1085 = vld [vmem:[%s2 + $0x40] sm:$0xff]
        %v1086 = vld [vmem:[%s2 + $0x48] sm:$0xff]
        %v1087 = vld [vmem:[%s2 + $0x50] sm:$0xff]
        %v1088 = vld [vmem:[%s2 + $0x58] sm:$0xff]
        %v1089 = vld [vmem:[%s2 + $0x60] sm:$0xff]
        %v1090 = vld [vmem:[%s2 + $0x68] sm:$0xff]
        %v1091 = vld [vmem:[%s2 + $0x70] sm:$0xff]
        %v1092 = vld [vmem:[%s2 + $0x78] sm:$0xff]
        %v1093 = vld [vmem:[%s3] sm:$0x1]
        %v1095 = vlaneseq
        %v1096 = vshrl.u32 %v1095, 7
        %v1097 = vsub.s32 0, %v1096
        %v1098 = vrot.slane %v1093, %v1097
        %1100 = vmatprep.subr.mxu0 0.0
        %1101 = vmatpush1.msra.mxu0 %v1092
        %1102 = vmatprep.subr.mxu0 0.0
        %1103 = vmatpush1.msra.mxu0 %v1091
        %1104 = vmatprep.subr.mxu0 0.0
        %1105 = vmatpush1.msra.mxu0 %v1090
        %1106 = vmatprep.subr.mxu0 0.0
        %1107 = vmatpush1.msra.mxu0 %v1089
        %1108 = vmatprep.subr.mxu0 0.0
        %1109 = vmatpush1.msra.mxu0 %v1088
        %1110 = vmatprep.subr.mxu0 0.0
        %1111 = vmatpush1.msra.mxu0 %v1087
        %1112 = vmatprep.subr.mxu0 0.0
        %1113 = vmatpush1.msra.mxu0 %v1086
        %1114 = vmatprep.subr.mxu0 0.0
        %1115 = vmatpush1.msra.mxu0 %v1085
        %1116 = vmatprep.subr.mxu0 0.0
        %1117 = vmatpush1.msra.mxu0 %v1084
        %1118 = vmatprep.subr.mxu0 0.0
        %1119 = vmatpush1.msra.mxu0 %v1083
        %1120 = vmatprep.subr.mxu0 0.0
        %1121 = vmatpush1.msra.mxu0 %v1082
        %1122 = vmatprep.subr.mxu0 0.0
        %1123 = vmatpush1.msra.mxu0 %v1081
        %1124 = vmatprep.subr.mxu0 0.0
        %1125 = vmatpush1.msra.mxu0 %v1080
        %1126 = vmatprep.subr.mxu0 0.0
        %1127 = vmatpush1.msra.mxu0 %v1079
        %1128 = vmatprep.subr.mxu0 0.0
        %1129 = vmatpush1.msra.mxu0 %v1078
        %1130 = vmatprep.subr.mxu0 0.0
        %1131 = vmatpush1.msra.mxu0 %v1077
        %1132 = vmatprep.subr.mxu0 0.0
        %1133 = vmatpush2.msra.mxu0 0.0
        %1134 = vmatprep.subr.mxu0 0.0
        %1135 = vmatpush2.msra.mxu0 0.0
        %1136 = vmatprep.subr.mxu0 0.0
        %1137 = vmatpush2.msra.mxu0 0.0
        %1138 = vmatprep.subr.mxu0 0.0
        %1139 = vmatpush2.msra.mxu0 0.0
        %1140 = vmatprep.subr.mxu0 0.0
        %1141 = vmatpush2.msra.mxu0 0.0
        %1142 = vmatprep.subr.mxu0 0.0
        %1143 = vmatpush2.msra.mxu0 0.0
        %1144 = vmatprep.subr.mxu0 0.0
        %1145 = vmatpush2.msra.mxu0 0.0
        %1146 = vmatprep.subr.mxu0 0.0
        %1147 = vmatpush2.msra.mxu0 0.0
        %1148 = vmatprep.subr.mxu0 0.0
        %1149 = vmatpush2.msra.mxu0 0.0
        %1150 = vmatprep.subr.mxu0 0.0
        %1151 = vmatpush2.msra.mxu0 0.0
        %1152 = vmatprep.subr.mxu0 0.0
        %1153 = vmatpush2.msra.mxu0 0.0
        %1154 = vmatprep.subr.mxu0 0.0
        %1155 = vmatpush2.msra.mxu0 0.0
        %1156 = vmatprep.subr.mxu0 0.0
        %1157 = vmatpush2.msra.mxu0 0.0
        %1158 = vmatprep.subr.mxu0 0.0
        %1159 = vmatpush2.msra.mxu0 0.0
        %1160 = vmatprep.subr.mxu0 0.0
        %1161 = vmatpush2.msra.mxu0 0.0
        %1162 = vmatprep.subr.mxu0 0.0
        %1163 = vmatpush2.msra.mxu0 0.0
        %1164 = vmatprep.mubr.f32.mxu0 0.0
        %1165 = vmatmul.mubr.f32.gmra.mxu0 %v1045
        %v1166 = vpop.f32.mrf.mxu0
        %v1167 = vadd.f32 %v1098, %v1166
        %v1168 = vpop.f32.mrf.mxu0
        %1169 = vmatprep.mubr.f32.mxu0 0.0
        %1170 = vmatmul.mubr.f32.gmra.mxu0 %v1046
        %v1171 = vpop.f32.mrf.mxu0
        %v1172 = vadd.f32 %v1098, %v1171
        %v1173 = vpop.f32.mrf.mxu0
        %1174 = vmatprep.mubr.f32.mxu0 0.0
        %1175 = vmatmul.mubr.f32.gmra.mxu0 %v1047
        %v1176 = vpop.f32.mrf.mxu0
        %v1177 = vadd.f32 %v1098, %v1176
        %v1178 = vpop.f32.mrf.mxu0
        %1179 = vmatprep.mubr.f32.mxu0 0.0
        %1180 = vmatmul.mubr.f32.gmra.mxu0 %v1048
        %v1181 = vpop.f32.mrf.mxu0
        %v1182 = vadd.f32 %v1098, %v1181
        %v1183 = vpop.f32.mrf.mxu0
        %1184 = vmatprep.mubr.f32.mxu0 0.0
        %1185 = vmatmul.mubr.f32.gmra.mxu0 %v1049
        %v1186 = vpop.f32.mrf.mxu0
        %v1187 = vadd.f32 %v1098, %v1186
        %v1188 = vpop.f32.mrf.mxu0
        %1189 = vmatprep.mubr.f32.mxu0 0.0
        %1190 = vmatmul.mubr.f32.gmra.mxu0 %v1050
        %v1191 = vpop.f32.mrf.mxu0
        %v1192 = vadd.f32 %v1098, %v1191
        %v1193 = vpop.f32.mrf.mxu0
        %1194 = vmatprep.mubr.f32.mxu0 0.0
        %1195 = vmatmul.mubr.f32.gmra.mxu0 %v1051
        %v1196 = vpop.f32.mrf.mxu0
        %v1197 = vadd.f32 %v1098, %v1196
        %v1198 = vpop.f32.mrf.mxu0
        %1199 = vmatprep.mubr.f32.mxu0 0.0
        %1200 = vmatmul.mubr.f32.gmra.mxu0 %v1052
        %v1201 = vpop.f32.mrf.mxu0
        %v1202 = vadd.f32 %v1098, %v1201
        %v1203 = vpop.f32.mrf.mxu0
        %1204 = vmatprep.mubr.f32.mxu0 0.0
        %1205 = vmatmul.mubr.f32.gmra.mxu0 %v1053
        %v1206 = vpop.f32.mrf.mxu0
        %v1207 = vadd.f32 %v1098, %v1206
        %v1208 = vpop.f32.mrf.mxu0
        %1209 = vmatprep.mubr.f32.mxu0 0.0
        %1210 = vmatmul.mubr.f32.gmra.mxu0 %v1054
        %v1211 = vpop.f32.mrf.mxu0
        %v1212 = vadd.f32 %v1098, %v1211
        %v1213 = vpop.f32.mrf.mxu0
        %1214 = vmatprep.mubr.f32.mxu0 0.0
        %1215 = vmatmul.mubr.f32.gmra.mxu0 %v1055
        %v1216 = vpop.f32.mrf.mxu0
        %v1217 = vadd.f32 %v1098, %v1216
        %v1218 = vpop.f32.mrf.mxu0
        %1219 = vmatprep.mubr.f32.mxu0 0.0
        %1220 = vmatmul.mubr.f32.gmra.mxu0 %v1056
        %v1221 = vpop.f32.mrf.mxu0
        %v1222 = vadd.f32 %v1098, %v1221
        %v1223 = vpop.f32.mrf.mxu0
        %1224 = vmatprep.mubr.f32.mxu0 0.0
        %1225 = vmatmul.mubr.f32.gmra.mxu0 %v1057
        %v1226 = vpop.f32.mrf.mxu0
        %v1227 = vadd.f32 %v1098, %v1226
        %v1228 = vpop.f32.mrf.mxu0
        %1229 = vmatprep.mubr.f32.mxu0 0.0
        %1230 = vmatmul.mubr.f32.gmra.mxu0 %v1058
        %v1231 = vpop.f32.mrf.mxu0
        %v1232 = vadd.f32 %v1098, %v1231
        %v1233 = vpop.f32.mrf.mxu0
        %1234 = vmatprep.mubr.f32.mxu0 0.0
        %1235 = vmatmul.mubr.f32.gmra.mxu0 %v1059
        %v1236 = vpop.f32.mrf.mxu0
        %v1237 = vadd.f32 %v1098, %v1236
        %v1238 = vpop.f32.mrf.mxu0
        %1239 = vmatprep.mubr.f32.mxu0 0.0
        %1240 = vmatmul.mubr.f32.gmra.mxu0 %v1060
        %v1241 = vpop.f32.mrf.mxu0
        %v1242 = vadd.f32 %v1098, %v1241
        %v1243 = vpop.f32.mrf.mxu0
        %1244 = vmatprep.mubr.f32.mxu0 0.0
        %1245 = vmatmul.mubr.f32.gmra.mxu0 %v1061
        %v1246 = vpop.f32.mrf.mxu0
        %v1247 = vadd.f32 %v1098, %v1246
        %v1248 = vpop.f32.mrf.mxu0
        %1249 = vmatprep.mubr.f32.mxu0 0.0
        %1250 = vmatmul.mubr.f32.gmra.mxu0 %v1062
        %v1251 = vpop.f32.mrf.mxu0
        %v1252 = vadd.f32 %v1098, %v1251
        %v1253 = vpop.f32.mrf.mxu0
        %1254 = vmatprep.mubr.f32.mxu0 0.0
        %1255 = vmatmul.mubr.f32.gmra.mxu0 %v1063
        %v1256 = vpop.f32.mrf.mxu0
        %v1257 = vadd.f32 %v1098, %v1256
        %v1258 = vpop.f32.mrf.mxu0
        %1259 = vmatprep.mubr.f32.mxu0 0.0
        %1260 = vmatmul.mubr.f32.gmra.mxu0 %v1064
        %v1261 = vpop.f32.mrf.mxu0
        %v1262 = vadd.f32 %v1098, %v1261
        %v1263 = vpop.f32.mrf.mxu0
        %1264 = vmatprep.mubr.f32.mxu0 0.0
        %1265 = vmatmul.mubr.f32.gmra.mxu0 %v1065
        %v1266 = vpop.f32.mrf.mxu0
        %v1267 = vadd.f32 %v1098, %v1266
        %v1268 = vpop.f32.mrf.mxu0
        %1269 = vmatprep.mubr.f32.mxu0 0.0
        %1270 = vmatmul.mubr.f32.gmra.mxu0 %v1066
        %v1271 = vpop.f32.mrf.mxu0
        %v1272 = vadd.f32 %v1098, %v1271
        %v1273 = vpop.f32.mrf.mxu0
        %1274 = vmatprep.mubr.f32.mxu0 0.0
        %1275 = vmatmul.mubr.f32.gmra.mxu0 %v1067
        %v1276 = vpop.f32.mrf.mxu0
        %v1277 = vadd.f32 %v1098, %v1276
        %v1278 = vpop.f32.mrf.mxu0
        %1279 = vmatprep.mubr.f32.mxu0 0.0
        %1280 = vmatmul.mubr.f32.gmra.mxu0 %v1068
        %v1281 = vpop.f32.mrf.mxu0
        %v1282 = vadd.f32 %v1098, %v1281
        %v1283 = vpop.f32.mrf.mxu0
        %1284 = vmatprep.mubr.f32.mxu0 0.0
        %1285 = vmatmul.mubr.f32.gmra.mxu0 %v1069
        %v1286 = vpop.f32.mrf.mxu0
        %v1287 = vadd.f32 %v1098, %v1286
        %v1288 = vpop.f32.mrf.mxu0
        %1289 = vmatprep.mubr.f32.mxu0 0.0
        %1290 = vmatmul.mubr.f32.gmra.mxu0 %v1070
        %v1291 = vpop.f32.mrf.mxu0
        %v1292 = vadd.f32 %v1098, %v1291
        %v1293 = vpop.f32.mrf.mxu0
        %1294 = vmatprep.mubr.f32.mxu0 0.0
        %1295 = vmatmul.mubr.f32.gmra.mxu0 %v1071
        %v1296 = vpop.f32.mrf.mxu0
        %v1297 = vadd.f32 %v1098, %v1296
        %v1298 = vpop.f32.mrf.mxu0
        %1299 = vmatprep.mubr.f32.mxu0 0.0
        %1300 = vmatmul.mubr.f32.gmra.mxu0 %v1072
        %v1301 = vpop.f32.mrf.mxu0
        %v1302 = vadd.f32 %v1098, %v1301
        %v1303 = vpop.f32.mrf.mxu0
        %1304 = vmatprep.mubr.f32.mxu0 0.0
        %1305 = vmatmul.mubr.f32.gmra.mxu0 %v1073
        %v1306 = vpop.f32.mrf.mxu0
        %v1307 = vadd.f32 %v1098, %v1306
        %v1308 = vpop.f32.mrf.mxu0
        %1309 = vmatprep.mubr.f32.mxu0 0.0
        %1310 = vmatmul.mubr.f32.gmra.mxu0 %v1074
        %v1311 = vpop.f32.mrf.mxu0
        %v1312 = vadd.f32 %v1098, %v1311
        %v1313 = vpop.f32.mrf.mxu0
        %1314 = vmatprep.mubr.f32.mxu0 0.0
        %1315 = vmatmul.mubr.f32.gmra.mxu0 %v1075
        %v1316 = vpop.f32.mrf.mxu0
        %v1317 = vadd.f32 %v1098, %v1316
        %v1318 = vpop.f32.mrf.mxu0
        %1319 = vmatprep.mubr.f32.mxu0 0.0
        %1320 = vmatmul.mubr.f32.gmra.mxu0 %v1076
        %v1321 = vpop.f32.mrf.mxu0
        %v1322 = vadd.f32 %v1098, %v1321
        %v1323 = vpop.f32.mrf.mxu0
        %1324 = vdwg.mxu0
        %1325 = vxpose.xlu0.b32.start [1/16] %v1167, 128
        %1326 = vxpose.xlu0.b32.cont [2/16] %v1172, 128
        %1327 = vxpose.xlu0.b32.cont [3/16] %v1177, 128
        %1328 = vxpose.xlu0.b32.cont [4/16] %v1182, 128
        %1329 = vxpose.xlu0.b32.cont [5/16] %v1187, 128
        %1330 = vxpose.xlu0.b32.cont [6/16] %v1192, 128
        %1331 = vxpose.xlu0.b32.cont [7/16] %v1197, 128
        %1332 = vxpose.xlu0.b32.cont [8/16] %v1202, 128
        %1333 = vxpose.xlu0.b32.cont [9/16] 0.0, 128
        %1334 = vxpose.xlu0.b32.cont [10/16] 0.0, 128
        %1335 = vxpose.xlu0.b32.cont [11/16] 0.0, 128
        %1336 = vxpose.xlu0.b32.cont [12/16] 0.0, 128
        %1337 = vxpose.xlu0.b32.cont [13/16] 0.0, 128
        %1338 = vxpose.xlu0.b32.cont [14/16] 0.0, 128
        %1339 = vxpose.xlu0.b32.cont [15/16] 0.0, 128
        %1340 = vxpose.xlu0.b32.end [16/16] 0.0, 128
        %v1341 = vpop.trf.xlu0
        %v1342 = vpop.trf.xlu0
        %v1343 = vpop.trf.xlu0
        %v1344 = vpop.trf.xlu0
        %v1345 = vpop.trf.xlu0
        %v1346 = vpop.trf.xlu0
        %v1347 = vpop.trf.xlu0
        %v1348 = vpop.trf.xlu0
        %v1349 = vpop.trf.xlu0
        %v1350 = vpop.trf.xlu0
        %v1351 = vpop.trf.xlu0
        %v1352 = vpop.trf.xlu0
        %v1353 = vpop.trf.xlu0
        %v1354 = vpop.trf.xlu0
        %v1355 = vpop.trf.xlu0
        %v1356 = vpop.trf.xlu0
        %1357 = vxpose.xlu0.b32.start [1/16] %v1207, 128
        %1358 = vxpose.xlu0.b32.cont [2/16] %v1212, 128
        %1359 = vxpose.xlu0.b32.cont [3/16] %v1217, 128
        %1360 = vxpose.xlu0.b32.cont [4/16] %v1222, 128
        %1361 = vxpose.xlu0.b32.cont [5/16] %v1227, 128
        %1362 = vxpose.xlu0.b32.cont [6/16] %v1232, 128
        %1363 = vxpose.xlu0.b32.cont [7/16] %v1237, 128
        %1364 = vxpose.xlu0.b32.cont [8/16] %v1242, 128
        %1365 = vxpose.xlu0.b32.cont [9/16] 0.0, 128
        %1366 = vxpose.xlu0.b32.cont [10/16] 0.0, 128
        %1367 = vxpose.xlu0.b32.cont [11/16] 0.0, 128
        %1368 = vxpose.xlu0.b32.cont [12/16] 0.0, 128
        %1369 = vxpose.xlu0.b32.cont [13/16] 0.0, 128
        %1370 = vxpose.xlu0.b32.cont [14/16] 0.0, 128
        %1371 = vxpose.xlu0.b32.cont [15/16] 0.0, 128
        %1372 = vxpose.xlu0.b32.end [16/16] 0.0, 128
        %v1373 = vpop.trf.xlu0
        %v1374 = vpop.trf.xlu0
        %v1375 = vpop.trf.xlu0
        %v1376 = vpop.trf.xlu0
        %v1377 = vpop.trf.xlu0
        %v1378 = vpop.trf.xlu0
        %v1379 = vpop.trf.xlu0
        %v1380 = vpop.trf.xlu0
        %v1381 = vpop.trf.xlu0
        %v1382 = vpop.trf.xlu0
        %v1383 = vpop.trf.xlu0
        %v1384 = vpop.trf.xlu0
        %v1385 = vpop.trf.xlu0
        %v1386 = vpop.trf.xlu0
        %v1387 = vpop.trf.xlu0
        %v1388 = vpop.trf.xlu0
        %1389 = vxpose.xlu0.b32.start [1/16] %v1247, 128
        %1390 = vxpose.xlu0.b32.cont [2/16] %v1252, 128
        %1391 = vxpose.xlu0.b32.cont [3/16] %v1257, 128
        %1392 = vxpose.xlu0.b32.cont [4/16] %v1262, 128
        %1393 = vxpose.xlu0.b32.cont [5/16] %v1267, 128
        %1394 = vxpose.xlu0.b32.cont [6/16] %v1272, 128
        %1395 = vxpose.xlu0.b32.cont [7/16] %v1277, 128
        %1396 = vxpose.xlu0.b32.cont [8/16] %v1282, 128
        %1397 = vxpose.xlu0.b32.cont [9/16] 0.0, 128
        %1398 = vxpose.xlu0.b32.cont [10/16] 0.0, 128
        %1399 = vxpose.xlu0.b32.cont [11/16] 0.0, 128
        %1400 = vxpose.xlu0.b32.cont [12/16] 0.0, 128
        %1401 = vxpose.xlu0.b32.cont [13/16] 0.0, 128
        %1402 = vxpose.xlu0.b32.cont [14/16] 0.0, 128
        %1403 = vxpose.xlu0.b32.cont [15/16] 0.0, 128
        %1404 = vxpose.xlu0.b32.end [16/16] 0.0, 128
        %v1405 = vpop.trf.xlu0
        %v1406 = vpop.trf.xlu0
        %v1407 = vpop.trf.xlu0
        %v1408 = vpop.trf.xlu0
        %v1409 = vpop.trf.xlu0
        %v1410 = vpop.trf.xlu0
        %v1411 = vpop.trf.xlu0
        %v1412 = vpop.trf.xlu0
        %v1413 = vpop.trf.xlu0
        %v1414 = vpop.trf.xlu0
        %v1415 = vpop.trf.xlu0
        %v1416 = vpop.trf.xlu0
        %v1417 = vpop.trf.xlu0
        %v1418 = vpop.trf.xlu0
        %v1419 = vpop.trf.xlu0
        %v1420 = vpop.trf.xlu0
        %1421 = vxpose.xlu0.b32.start [1/16] %v1287, 128
        %1422 = vxpose.xlu0.b32.cont [2/16] %v1292, 128
        %1423 = vxpose.xlu0.b32.cont [3/16] %v1297, 128
        %1424 = vxpose.xlu0.b32.cont [4/16] %v1302, 128
        %1425 = vxpose.xlu0.b32.cont [5/16] %v1307, 128
        %1426 = vxpose.xlu0.b32.cont [6/16] %v1312, 128
        %1427 = vxpose.xlu0.b32.cont [7/16] %v1317, 128
        %1428 = vxpose.xlu0.b32.cont [8/16] %v1322, 128
        %1429 = vxpose.xlu0.b32.cont [9/16] 0.0, 128
        %1430 = vxpose.xlu0.b32.cont [10/16] 0.0, 128
        %1431 = vxpose.xlu0.b32.cont [11/16] 0.0, 128
        %1432 = vxpose.xlu0.b32.cont [12/16] 0.0, 128
        %1433 = vxpose.xlu0.b32.cont [13/16] 0.0, 128
        %1434 = vxpose.xlu0.b32.cont [14/16] 0.0, 128
        %1435 = vxpose.xlu0.b32.cont [15/16] 0.0, 128
        %1436 = vxpose.xlu0.b32.end [16/16] 0.0, 128
        %v1437 = vpop.trf.xlu0
        %v1438 = vpop.trf.xlu0
        %v1439 = vpop.trf.xlu0
        %v1440 = vpop.trf.xlu0
        %v1441 = vpop.trf.xlu0
        %v1442 = vpop.trf.xlu0
        %v1443 = vpop.trf.xlu0
        %v1444 = vpop.trf.xlu0
        %v1445 = vpop.trf.xlu0
        %v1446 = vpop.trf.xlu0
        %v1447 = vpop.trf.xlu0
        %v1448 = vpop.trf.xlu0
        %v1449 = vpop.trf.xlu0
        %v1450 = vpop.trf.xlu0
        %v1451 = vpop.trf.xlu0
        %v1452 = vpop.trf.xlu0
        %vm1453 = vcmask 519168
        %v1454 = vsel %vm1453, %v1341, -inf
        %1455 = vmax.xlane.f32.xlu0 %v1454
        %v1456 = vpop.xlane.xlu0 %1455
        %v1457 = vsel %vm1453, %v1373, -inf
        %1458 = vmax.xlane.f32.xlu0 %v1457
        %v1459 = vpop.xlane.xlu0 %1458
        %v1460 = vsel %vm1453, %v1405, -inf
        %1461 = vmax.xlane.f32.xlu0 %v1460
        %v1462 = vpop.xlane.xlu0 %1461
        %v1463 = vsel %vm1453, %v1437, -inf
        %1464 = vmax.xlane.f32.xlu0 %v1463
        %v1465 = vpop.xlane.xlu0 %1464
        %v1466 = vsub.f32 %v1341, %v1456
        %v1467 = vsub.f32 %v1373, %v1459
        %v1468 = vsub.f32 %v1405, %v1462
        %v1469 = vsub.f32 %v1437, %v1465
        %v1470 = vmul.f32 %v1466, 1.442695
        %v1471 = vpow.pop %v1470
        %v1472 = vmul.f32 %v1467, 1.442695
        %v1473 = vpow.pop %v1472
        %v1474 = vmul.f32 %v1468, 1.442695
        %v1475 = vpow.pop %v1474
        %v1476 = vmul.f32 %v1469, 1.442695
        %v1477 = vpow.pop %v1476
        %v1478 = vsel %vm1453, %v1471, 0.0
        %1479 = vadd.xlane.f32.xlu0 %v1478
        %v1480 = vpop.xlane.xlu0 %1479
        %v1481 = vsel %vm1453, %v1473, 0.0
        %1482 = vadd.xlane.f32.xlu0 %v1481
        %v1483 = vpop.xlane.xlu0 %1482
        %v1484 = vsel %vm1453, %v1475, 0.0
        %1485 = vadd.xlane.f32.xlu0 %v1484
        %v1486 = vpop.xlane.xlu0 %1485
        %v1487 = vsel %vm1453, %v1477, 0.0
        %1488 = vadd.xlane.f32.xlu0 %v1487
        %v1489 = vpop.xlane.xlu0 %1488
        %v1490 = vrcp.pop %v1480
        %v1491 = vmul.f32 %v1471, %v1490
        %v1492 = vrcp.pop %v1483
        %v1493 = vmul.f32 %v1473, %v1492
        %v1494 = vrcp.pop %v1486
        %v1495 = vmul.f32 %v1475, %v1494
        %v1496 = vrcp.pop %v1489
        %v1497 = vmul.f32 %v1477, %v1496
        %v1498 = vld [vmem:[%s7] sm:$0xff]
        %v1499 = vld [vmem:[%s7 + $0x8] sm:$0xff]
        %v1500 = vld [vmem:[%s7 + $0x10] sm:$0xff]
        %v1501 = vld [vmem:[%s7 + $0x18] sm:$0xff]
        %v1502 = vld [vmem:[%s7 + $0x20] sm:$0xff]
        %v1503 = vld [vmem:[%s7 + $0x28] sm:$0xff]
        %v1504 = vld [vmem:[%s7 + $0x30] sm:$0xff]
        %v1505 = vld [vmem:[%s7 + $0x38] sm:$0xff]
        %v1506 = vld [vmem:[%s7 + $0x40] sm:$0xff]
        %v1507 = vld [vmem:[%s7 + $0x48] sm:$0xff]
        %v1508 = vld [vmem:[%s7 + $0x50] sm:$0xff]
        %v1509 = vld [vmem:[%s7 + $0x58] sm:$0xff]
        %v1510 = vld [vmem:[%s7 + $0x60] sm:$0xff]
        %v1511 = vld [vmem:[%s7 + $0x68] sm:$0xff]
        %v1512 = vld [vmem:[%s7 + $0x70] sm:$0xff]
        %v1513 = vld [vmem:[%s7 + $0x78] sm:$0xff]
        %v1514 = vld [vmem:[%s8] sm:$0x1]
        %v1516 = vlaneseq
        %v1517 = vshrl.u32 %v1516, 7
        %v1518 = vsub.s32 0, %v1517
        %v1519 = vrot.slane %v1514, %v1518
        %1521 = vmatprep.subr.mxu0 0.0
        %1522 = vmatpush1.msra.mxu0 %v1513
        %1523 = vmatprep.subr.mxu0 0.0
        %1524 = vmatpush1.msra.mxu0 %v1512
        %1525 = vmatprep.subr.mxu0 0.0
        %1526 = vmatpush1.msra.mxu0 %v1511
        %1527 = vmatprep.subr.mxu0 0.0
        %1528 = vmatpush1.msra.mxu0 %v1510
        %1529 = vmatprep.subr.mxu0 0.0
        %1530 = vmatpush1.msra.mxu0 %v1509
        %1531 = vmatprep.subr.mxu0 0.0
        %1532 = vmatpush1.msra.mxu0 %v1508
        %1533 = vmatprep.subr.mxu0 0.0
        %1534 = vmatpush1.msra.mxu0 %v1507
        %1535 = vmatprep.subr.mxu0 0.0
        %1536 = vmatpush1.msra.mxu0 %v1506
        %1537 = vmatprep.subr.mxu0 0.0
        %1538 = vmatpush1.msra.mxu0 %v1505
        %1539 = vmatprep.subr.mxu0 0.0
        %1540 = vmatpush1.msra.mxu0 %v1504
        %1541 = vmatprep.subr.mxu0 0.0
        %1542 = vmatpush1.msra.mxu0 %v1503
        %1543 = vmatprep.subr.mxu0 0.0
        %1544 = vmatpush1.msra.mxu0 %v1502
        %1545 = vmatprep.subr.mxu0 0.0
        %1546 = vmatpush1.msra.mxu0 %v1501
        %1547 = vmatprep.subr.mxu0 0.0
        %1548 = vmatpush1.msra.mxu0 %v1500
        %1549 = vmatprep.subr.mxu0 0.0
        %1550 = vmatpush1.msra.mxu0 %v1499
        %1551 = vmatprep.subr.mxu0 0.0
        %1552 = vmatpush1.msra.mxu0 %v1498
        %1553 = vmatprep.subr.mxu0 0.0
        %1554 = vmatpush2.msra.mxu0 0.0
        %1555 = vmatprep.subr.mxu0 0.0
        %1556 = vmatpush2.msra.mxu0 0.0
        %1557 = vmatprep.subr.mxu0 0.0
        %1558 = vmatpush2.msra.mxu0 0.0
        %1559 = vmatprep.subr.mxu0 0.0
        %1560 = vmatpush2.msra.mxu0 0.0
        %1561 = vmatprep.subr.mxu0 0.0
        %1562 = vmatpush2.msra.mxu0 0.0
        %1563 = vmatprep.subr.mxu0 0.0
        %1564 = vmatpush2.msra.mxu0 0.0
        %1565 = vmatprep.subr.mxu0 0.0
        %1566 = vmatpush2.msra.mxu0 0.0
        %1567 = vmatprep.subr.mxu0 0.0
        %1568 = vmatpush2.msra.mxu0 0.0
        %1569 = vmatprep.subr.mxu0 0.0
        %1570 = vmatpush2.msra.mxu0 0.0
        %1571 = vmatprep.subr.mxu0 0.0
        %1572 = vmatpush2.msra.mxu0 0.0
        %1573 = vmatprep.subr.mxu0 0.0
        %1574 = vmatpush2.msra.mxu0 0.0
        %1575 = vmatprep.subr.mxu0 0.0
        %1576 = vmatpush2.msra.mxu0 0.0
        %1577 = vmatprep.subr.mxu0 0.0
        %1578 = vmatpush2.msra.mxu0 0.0
        %1579 = vmatprep.subr.mxu0 0.0
        %1580 = vmatpush2.msra.mxu0 0.0
        %1581 = vmatprep.subr.mxu0 0.0
        %1582 = vmatpush2.msra.mxu0 0.0
        %1583 = vmatprep.subr.mxu0 0.0
        %1584 = vmatpush2.msra.mxu0 0.0
        %1585 = vmatprep.mubr.f32.mxu0 0.0
        %1586 = vmatmul.mubr.f32.gmra.mxu0 %v1045
        %v1587 = vpop.f32.mrf.mxu0
        %v1588 = vadd.f32 %v1519, %v1587
        %v1589 = vpop.f32.mrf.mxu0
        %1590 = vmatprep.mubr.f32.mxu0 0.0
        %1591 = vmatmul.mubr.f32.gmra.mxu0 %v1046
        %v1592 = vpop.f32.mrf.mxu0
        %v1593 = vadd.f32 %v1519, %v1592
        %v1594 = vpop.f32.mrf.mxu0
        %1595 = vmatprep.mubr.f32.mxu0 0.0
        %1596 = vmatmul.mubr.f32.gmra.mxu0 %v1047
        %v1597 = vpop.f32.mrf.mxu0
        %v1598 = vadd.f32 %v1519, %v1597
        %v1599 = vpop.f32.mrf.mxu0
        %1600 = vmatprep.mubr.f32.mxu0 0.0
        %1601 = vmatmul.mubr.f32.gmra.mxu0 %v1048
        %v1602 = vpop.f32.mrf.mxu0
        %v1603 = vadd.f32 %v1519, %v1602
        %v1604 = vpop.f32.mrf.mxu0
        %1605 = vmatprep.mubr.f32.mxu0 0.0
        %1606 = vmatmul.mubr.f32.gmra.mxu0 %v1049
        %v1607 = vpop.f32.mrf.mxu0
        %v1608 = vadd.f32 %v1519, %v1607
        %v1609 = vpop.f32.mrf.mxu0
        %1610 = vmatprep.mubr.f32.mxu0 0.0
        %1611 = vmatmul.mubr.f32.gmra.mxu0 %v1050
        %v1612 = vpop.f32.mrf.mxu0
        %v1613 = vadd.f32 %v1519, %v1612
        %v1614 = vpop.f32.mrf.mxu0
        %1615 = vmatprep.mubr.f32.mxu0 0.0
        %1616 = vmatmul.mubr.f32.gmra.mxu0 %v1051
        %v1617 = vpop.f32.mrf.mxu0
        %v1618 = vadd.f32 %v1519, %v1617
        %v1619 = vpop.f32.mrf.mxu0
        %1620 = vmatprep.mubr.f32.mxu0 0.0
        %1621 = vmatmul.mubr.f32.gmra.mxu0 %v1052
        %v1622 = vpop.f32.mrf.mxu0
        %v1623 = vadd.f32 %v1519, %v1622
        %v1624 = vpop.f32.mrf.mxu0
        %1625 = vmatprep.mubr.f32.mxu0 0.0
        %1626 = vmatmul.mubr.f32.gmra.mxu0 %v1053
        %v1627 = vpop.f32.mrf.mxu0
        %v1628 = vadd.f32 %v1519, %v1627
        %v1629 = vpop.f32.mrf.mxu0
        %1630 = vmatprep.mubr.f32.mxu0 0.0
        %1631 = vmatmul.mubr.f32.gmra.mxu0 %v1054
        %v1632 = vpop.f32.mrf.mxu0
        %v1633 = vadd.f32 %v1519, %v1632
        %v1634 = vpop.f32.mrf.mxu0
        %1635 = vmatprep.mubr.f32.mxu0 0.0
        %1636 = vmatmul.mubr.f32.gmra.mxu0 %v1055
        %v1637 = vpop.f32.mrf.mxu0
        %v1638 = vadd.f32 %v1519, %v1637
        %v1639 = vpop.f32.mrf.mxu0
        %1640 = vmatprep.mubr.f32.mxu0 0.0
        %1641 = vmatmul.mubr.f32.gmra.mxu0 %v1056
        %v1642 = vpop.f32.mrf.mxu0
        %v1643 = vadd.f32 %v1519, %v1642
        %v1644 = vpop.f32.mrf.mxu0
        %1645 = vmatprep.mubr.f32.mxu0 0.0
        %1646 = vmatmul.mubr.f32.gmra.mxu0 %v1057
        %v1647 = vpop.f32.mrf.mxu0
        %v1648 = vadd.f32 %v1519, %v1647
        %v1649 = vpop.f32.mrf.mxu0
        %1650 = vmatprep.mubr.f32.mxu0 0.0
        %1651 = vmatmul.mubr.f32.gmra.mxu0 %v1058
        %v1652 = vpop.f32.mrf.mxu0
        %v1653 = vadd.f32 %v1519, %v1652
        %v1654 = vpop.f32.mrf.mxu0
        %1655 = vmatprep.mubr.f32.mxu0 0.0
        %1656 = vmatmul.mubr.f32.gmra.mxu0 %v1059
        %v1657 = vpop.f32.mrf.mxu0
        %v1658 = vadd.f32 %v1519, %v1657
        %v1659 = vpop.f32.mrf.mxu0
        %1660 = vmatprep.mubr.f32.mxu0 0.0
        %1661 = vmatmul.mubr.f32.gmra.mxu0 %v1060
        %v1662 = vpop.f32.mrf.mxu0
        %v1663 = vadd.f32 %v1519, %v1662
        %v1664 = vpop.f32.mrf.mxu0
        %1665 = vmatprep.mubr.f32.mxu0 0.0
        %1666 = vmatmul.mubr.f32.gmra.mxu0 %v1061
        %v1667 = vpop.f32.mrf.mxu0
        %v1668 = vadd.f32 %v1519, %v1667
        %v1669 = vpop.f32.mrf.mxu0
        %1670 = vmatprep.mubr.f32.mxu0 0.0
        %1671 = vmatmul.mubr.f32.gmra.mxu0 %v1062
        %v1672 = vpop.f32.mrf.mxu0
        %v1673 = vadd.f32 %v1519, %v1672
        %v1674 = vpop.f32.mrf.mxu0
        %1675 = vmatprep.mubr.f32.mxu0 0.0
        %1676 = vmatmul.mubr.f32.gmra.mxu0 %v1063
        %v1677 = vpop.f32.mrf.mxu0
        %v1678 = vadd.f32 %v1519, %v1677
        %v1679 = vpop.f32.mrf.mxu0
        %1680 = vmatprep.mubr.f32.mxu0 0.0
        %1681 = vmatmul.mubr.f32.gmra.mxu0 %v1064
        %v1682 = vpop.f32.mrf.mxu0
        %v1683 = vadd.f32 %v1519, %v1682
        %v1684 = vpop.f32.mrf.mxu0
        %1685 = vmatprep.mubr.f32.mxu0 0.0
        %1686 = vmatmul.mubr.f32.gmra.mxu0 %v1065
        %v1687 = vpop.f32.mrf.mxu0
        %v1688 = vadd.f32 %v1519, %v1687
        %v1689 = vpop.f32.mrf.mxu0
        %1690 = vmatprep.mubr.f32.mxu0 0.0
        %1691 = vmatmul.mubr.f32.gmra.mxu0 %v1066
        %v1692 = vpop.f32.mrf.mxu0
        %v1693 = vadd.f32 %v1519, %v1692
        %v1694 = vpop.f32.mrf.mxu0
        %1695 = vmatprep.mubr.f32.mxu0 0.0
        %1696 = vmatmul.mubr.f32.gmra.mxu0 %v1067
        %v1697 = vpop.f32.mrf.mxu0
        %v1698 = vadd.f32 %v1519, %v1697
        %v1699 = vpop.f32.mrf.mxu0
        %1700 = vmatprep.mubr.f32.mxu0 0.0
        %1701 = vmatmul.mubr.f32.gmra.mxu0 %v1068
        %v1702 = vpop.f32.mrf.mxu0
        %v1703 = vadd.f32 %v1519, %v1702
        %v1704 = vpop.f32.mrf.mxu0
        %1705 = vmatprep.mubr.f32.mxu0 0.0
        %1706 = vmatmul.mubr.f32.gmra.mxu0 %v1069
        %v1707 = vpop.f32.mrf.mxu0
        %v1708 = vadd.f32 %v1519, %v1707
        %v1709 = vpop.f32.mrf.mxu0
        %1710 = vmatprep.mubr.f32.mxu0 0.0
        %1711 = vmatmul.mubr.f32.gmra.mxu0 %v1070
        %v1712 = vpop.f32.mrf.mxu0
        %v1713 = vadd.f32 %v1519, %v1712
        %v1714 = vpop.f32.mrf.mxu0
        %1715 = vmatprep.mubr.f32.mxu0 0.0
        %1716 = vmatmul.mubr.f32.gmra.mxu0 %v1071
        %v1717 = vpop.f32.mrf.mxu0
        %v1718 = vadd.f32 %v1519, %v1717
        %v1719 = vpop.f32.mrf.mxu0
        %1720 = vmatprep.mubr.f32.mxu0 0.0
        %1721 = vmatmul.mubr.f32.gmra.mxu0 %v1072
        %v1722 = vpop.f32.mrf.mxu0
        %v1723 = vadd.f32 %v1519, %v1722
        %v1724 = vpop.f32.mrf.mxu0
        %1725 = vmatprep.mubr.f32.mxu0 0.0
        %1726 = vmatmul.mubr.f32.gmra.mxu0 %v1073
        %v1727 = vpop.f32.mrf.mxu0
        %v1728 = vadd.f32 %v1519, %v1727
        %v1729 = vpop.f32.mrf.mxu0
        %1730 = vmatprep.mubr.f32.mxu0 0.0
        %1731 = vmatmul.mubr.f32.gmra.mxu0 %v1074
        %v1732 = vpop.f32.mrf.mxu0
        %v1733 = vadd.f32 %v1519, %v1732
        %v1734 = vpop.f32.mrf.mxu0
        %1735 = vmatprep.mubr.f32.mxu0 0.0
        %1736 = vmatmul.mubr.f32.gmra.mxu0 %v1075
        %v1737 = vpop.f32.mrf.mxu0
        %v1738 = vadd.f32 %v1519, %v1737
        %v1739 = vpop.f32.mrf.mxu0
        %1740 = vmatprep.mubr.f32.mxu0 0.0
        %1741 = vmatmul.mubr.f32.gmra.mxu0 %v1076
        %v1742 = vpop.f32.mrf.mxu0
        %v1743 = vadd.f32 %v1519, %v1742
        %v1744 = vpop.f32.mrf.mxu0
        %1745 = vdwg.mxu0
        %vm1746 = vcmask 523264
        %v1748 = vsel %vm1746, %v1491, 0
        %1750 = vmatprep.subr.mxu0 0.0
        %1751 = vmatpush1.msra.mxu0 0.0
        %1752 = vmatprep.subr.mxu0 0.0
        %1753 = vmatpush1.msra.mxu0 0.0
        %1754 = vmatprep.subr.mxu0 0.0
        %1755 = vmatpush1.msra.mxu0 0.0
        %1756 = vmatprep.subr.mxu0 0.0
        %1757 = vmatpush1.msra.mxu0 0.0
        %1758 = vmatprep.subr.mxu0 0.0
        %1759 = vmatpush1.msra.mxu0 0.0
        %1760 = vmatprep.subr.mxu0 0.0
        %1761 = vmatpush1.msra.mxu0 0.0
        %1762 = vmatprep.subr.mxu0 0.0
        %1763 = vmatpush1.msra.mxu0 0.0
        %1764 = vmatprep.subr.mxu0 0.0
        %1765 = vmatpush1.msra.mxu0 0.0
        %1766 = vmatprep.subr.mxu0 0.0
        %1767 = vmatpush1.msra.mxu0 %v1623
        %1768 = vmatprep.subr.mxu0 0.0
        %1769 = vmatpush1.msra.mxu0 %v1618
        %1770 = vmatprep.subr.mxu0 0.0
        %1771 = vmatpush1.msra.mxu0 %v1613
        %1772 = vmatprep.subr.mxu0 0.0
        %1773 = vmatpush1.msra.mxu0 %v1608
        %1774 = vmatprep.subr.mxu0 0.0
        %1775 = vmatpush1.msra.mxu0 %v1603
        %1776 = vmatprep.subr.mxu0 0.0
        %1777 = vmatpush1.msra.mxu0 %v1598
        %1778 = vmatprep.subr.mxu0 0.0
        %1779 = vmatpush1.msra.mxu0 %v1593
        %1780 = vmatprep.subr.mxu0 0.0
        %1781 = vmatpush1.msra.mxu0 %v1588
        %1782 = vmatprep.subr.mxu0 0.0
        %1783 = vmatpush2.msra.mxu0 0.0
        %1784 = vmatprep.subr.mxu0 0.0
        %1785 = vmatpush2.msra.mxu0 0.0
        %1786 = vmatprep.subr.mxu0 0.0
        %1787 = vmatpush2.msra.mxu0 0.0
        %1788 = vmatprep.subr.mxu0 0.0
        %1789 = vmatpush2.msra.mxu0 0.0
        %1790 = vmatprep.subr.mxu0 0.0
        %1791 = vmatpush2.msra.mxu0 0.0
        %1792 = vmatprep.subr.mxu0 0.0
        %1793 = vmatpush2.msra.mxu0 0.0
        %1794 = vmatprep.subr.mxu0 0.0
        %1795 = vmatpush2.msra.mxu0 0.0
        %1796 = vmatprep.subr.mxu0 0.0
        %1797 = vmatpush2.msra.mxu0 0.0
        %1798 = vmatprep.subr.mxu0 0.0
        %1799 = vmatpush2.msra.mxu0 0.0
        %1800 = vmatprep.subr.mxu0 0.0
        %1801 = vmatpush2.msra.mxu0 0.0
        %1802 = vmatprep.subr.mxu0 0.0
        %1803 = vmatpush2.msra.mxu0 0.0
        %1804 = vmatprep.subr.mxu0 0.0
        %1805 = vmatpush2.msra.mxu0 0.0
        %1806 = vmatprep.subr.mxu0 0.0
        %1807 = vmatpush2.msra.mxu0 0.0
        %1808 = vmatprep.subr.mxu0 0.0
        %1809 = vmatpush2.msra.mxu0 0.0
        %1810 = vmatprep.subr.mxu0 0.0
        %1811 = vmatpush2.msra.mxu0 0.0
        %1812 = vmatprep.subr.mxu0 0.0
        %1813 = vmatpush2.msra.mxu0 0.0
        %1814 = vmatprep.mubr.f32.mxu0 0.0
        %1815 = vmatmul.mubr.f32.gmra.mxu0 %v1748
        %v1816 = vpop.f32.mrf.mxu0
        %v1817 = vadd.f32 0.0, %v1816
        %v1818 = vpop.f32.mrf.mxu0
        %1819 = vdwg.mxu0
        %v1821 = vsel %vm1746, %v1493, 0
        %1823 = vmatprep.subr.mxu0 0.0
        %1824 = vmatpush1.msra.mxu0 0.0
        %1825 = vmatprep.subr.mxu0 0.0
        %1826 = vmatpush1.msra.mxu0 0.0
        %1827 = vmatprep.subr.mxu0 0.0
        %1828 = vmatpush1.msra.mxu0 0.0
        %1829 = vmatprep.subr.mxu0 0.0
        %1830 = vmatpush1.msra.mxu0 0.0
        %1831 = vmatprep.subr.mxu0 0.0
        %1832 = vmatpush1.msra.mxu0 0.0
        %1833 = vmatprep.subr.mxu0 0.0
        %1834 = vmatpush1.msra.mxu0 0.0
        %1835 = vmatprep.subr.mxu0 0.0
        %1836 = vmatpush1.msra.mxu0 0.0
        %1837 = vmatprep.subr.mxu0 0.0
        %1838 = vmatpush1.msra.mxu0 0.0
        %1839 = vmatprep.subr.mxu0 0.0
        %1840 = vmatpush1.msra.mxu0 %v1663
        %1841 = vmatprep.subr.mxu0 0.0
        %1842 = vmatpush1.msra.mxu0 %v1658
        %1843 = vmatprep.subr.mxu0 0.0
        %1844 = vmatpush1.msra.mxu0 %v1653
        %1845 = vmatprep.subr.mxu0 0.0
        %1846 = vmatpush1.msra.mxu0 %v1648
        %1847 = vmatprep.subr.mxu0 0.0
        %1848 = vmatpush1.msra.mxu0 %v1643
        %1849 = vmatprep.subr.mxu0 0.0
        %1850 = vmatpush1.msra.mxu0 %v1638
        %1851 = vmatprep.subr.mxu0 0.0
        %1852 = vmatpush1.msra.mxu0 %v1633
        %1853 = vmatprep.subr.mxu0 0.0
        %1854 = vmatpush1.msra.mxu0 %v1628
        %1855 = vmatprep.subr.mxu0 0.0
        %1856 = vmatpush2.msra.mxu0 0.0
        %1857 = vmatprep.subr.mxu0 0.0
        %1858 = vmatpush2.msra.mxu0 0.0
        %1859 = vmatprep.subr.mxu0 0.0
        %1860 = vmatpush2.msra.mxu0 0.0
        %1861 = vmatprep.subr.mxu0 0.0
        %1862 = vmatpush2.msra.mxu0 0.0
        %1863 = vmatprep.subr.mxu0 0.0
        %1864 = vmatpush2.msra.mxu0 0.0
        %1865 = vmatprep.subr.mxu0 0.0
        %1866 = vmatpush2.msra.mxu0 0.0
        %1867 = vmatprep.subr.mxu0 0.0
        %1868 = vmatpush2.msra.mxu0 0.0
        %1869 = vmatprep.subr.mxu0 0.0
        %1870 = vmatpush2.msra.mxu0 0.0
        %1871 = vmatprep.subr.mxu0 0.0
        %1872 = vmatpush2.msra.mxu0 0.0
        %1873 = vmatprep.subr.mxu0 0.0
        %1874 = vmatpush2.msra.mxu0 0.0
        %1875 = vmatprep.subr.mxu0 0.0
        %1876 = vmatpush2.msra.mxu0 0.0
        %1877 = vmatprep.subr.mxu0 0.0
        %1878 = vmatpush2.msra.mxu0 0.0
        %1879 = vmatprep.subr.mxu0 0.0
        %1880 = vmatpush2.msra.mxu0 0.0
        %1881 = vmatprep.subr.mxu0 0.0
        %1882 = vmatpush2.msra.mxu0 0.0
        %1883 = vmatprep.subr.mxu0 0.0
        %1884 = vmatpush2.msra.mxu0 0.0
        %1885 = vmatprep.subr.mxu0 0.0
        %1886 = vmatpush2.msra.mxu0 0.0
        %1887 = vmatprep.mubr.f32.mxu0 0.0
        %1888 = vmatmul.mubr.f32.gmra.mxu0 %v1821
        %v1889 = vpop.f32.mrf.mxu0
        %v1890 = vadd.f32 0.0, %v1889
        %v1891 = vpop.f32.mrf.mxu0
        %1892 = vdwg.mxu0
        %v1894 = vsel %vm1746, %v1495, 0
        %1896 = vmatprep.subr.mxu0 0.0
        %1897 = vmatpush1.msra.mxu0 0.0
        %1898 = vmatprep.subr.mxu0 0.0
        %1899 = vmatpush1.msra.mxu0 0.0
        %1900 = vmatprep.subr.mxu0 0.0
        %1901 = vmatpush1.msra.mxu0 0.0
        %1902 = vmatprep.subr.mxu0 0.0
        %1903 = vmatpush1.msra.mxu0 0.0
        %1904 = vmatprep.subr.mxu0 0.0
        %1905 = vmatpush1.msra.mxu0 0.0
        %1906 = vmatprep.subr.mxu0 0.0
        %1907 = vmatpush1.msra.mxu0 0.0
        %1908 = vmatprep.subr.mxu0 0.0
        %1909 = vmatpush1.msra.mxu0 0.0
        %1910 = vmatprep.subr.mxu0 0.0
        %1911 = vmatpush1.msra.mxu0 0.0
        %1912 = vmatprep.subr.mxu0 0.0
        %1913 = vmatpush1.msra.mxu0 %v1703
        %1914 = vmatprep.subr.mxu0 0.0
        %1915 = vmatpush1.msra.mxu0 %v1698
        %1916 = vmatprep.subr.mxu0 0.0
        %1917 = vmatpush1.msra.mxu0 %v1693
        %1918 = vmatprep.subr.mxu0 0.0
        %1919 = vmatpush1.msra.mxu0 %v1688
        %1920 = vmatprep.subr.mxu0 0.0
        %1921 = vmatpush1.msra.mxu0 %v1683
        %1922 = vmatprep.subr.mxu0 0.0
        %1923 = vmatpush1.msra.mxu0 %v1678
        %1924 = vmatprep.subr.mxu0 0.0
        %1925 = vmatpush1.msra.mxu0 %v1673
        %1926 = vmatprep.subr.mxu0 0.0
        %1927 = vmatpush1.msra.mxu0 %v1668
        %1928 = vmatprep.subr.mxu0 0.0
        %1929 = vmatpush2.msra.mxu0 0.0
        %1930 = vmatprep.subr.mxu0 0.0
        %1931 = vmatpush2.msra.mxu0 0.0
        %1932 = vmatprep.subr.mxu0 0.0
        %1933 = vmatpush2.msra.mxu0 0.0
        %1934 = vmatprep.subr.mxu0 0.0
        %1935 = vmatpush2.msra.mxu0 0.0
        %1936 = vmatprep.subr.mxu0 0.0
        %1937 = vmatpush2.msra.mxu0 0.0
        %1938 = vmatprep.subr.mxu0 0.0
        %1939 = vmatpush2.msra.mxu0 0.0
        %1940 = vmatprep.subr.mxu0 0.0
        %1941 = vmatpush2.msra.mxu0 0.0
        %1942 = vmatprep.subr.mxu0 0.0
        %1943 = vmatpush2.msra.mxu0 0.0
        %1944 = vmatprep.subr.mxu0 0.0
        %1945 = vmatpush2.msra.mxu0 0.0
        %1946 = vmatprep.subr.mxu0 0.0
        %1947 = vmatpush2.msra.mxu0 0.0
        %1948 = vmatprep.subr.mxu0 0.0
        %1949 = vmatpush2.msra.mxu0 0.0
        %1950 = vmatprep.subr.mxu0 0.0
        %1951 = vmatpush2.msra.mxu0 0.0
        %1952 = vmatprep.subr.mxu0 0.0
        %1953 = vmatpush2.msra.mxu0 0.0
        %1954 = vmatprep.subr.mxu0 0.0
        %1955 = vmatpush2.msra.mxu0 0.0
        %1956 = vmatprep.subr.mxu0 0.0
        %1957 = vmatpush2.msra.mxu0 0.0
        %1958 = vmatprep.subr.mxu0 0.0
        %1959 = vmatpush2.msra.mxu0 0.0
        %1960 = vmatprep.mubr.f32.mxu0 0.0
        %1961 = vmatmul.mubr.f32.gmra.mxu0 %v1894
        %v1962 = vpop.f32.mrf.mxu0
        %v1963 = vadd.f32 0.0, %v1962
        %v1964 = vpop.f32.mrf.mxu0
        %1965 = vdwg.mxu0
        %v1967 = vsel %vm1746, %v1497, 0
        %1969 = vmatprep.subr.mxu0 0.0
        %1970 = vmatpush1.msra.mxu0 0.0
        %1971 = vmatprep.subr.mxu0 0.0
        %1972 = vmatpush1.msra.mxu0 0.0
        %1973 = vmatprep.subr.mxu0 0.0
        %1974 = vmatpush1.msra.mxu0 0.0
        %1975 = vmatprep.subr.mxu0 0.0
        %1976 = vmatpush1.msra.mxu0 0.0
        %1977 = vmatprep.subr.mxu0 0.0
        %1978 = vmatpush1.msra.mxu0 0.0
        %1979 = vmatprep.subr.mxu0 0.0
        %1980 = vmatpush1.msra.mxu0 0.0
        %1981 = vmatprep.subr.mxu0 0.0
        %1982 = vmatpush1.msra.mxu0 0.0
        %1983 = vmatprep.subr.mxu0 0.0
        %1984 = vmatpush1.msra.mxu0 0.0
        %1985 = vmatprep.subr.mxu0 0.0
        %1986 = vmatpush1.msra.mxu0 %v1743
        %1987 = vmatprep.subr.mxu0 0.0
        %1988 = vmatpush1.msra.mxu0 %v1738
        %1989 = vmatprep.subr.mxu0 0.0
        %1990 = vmatpush1.msra.mxu0 %v1733
        %1991 = vmatprep.subr.mxu0 0.0
        %1992 = vmatpush1.msra.mxu0 %v1728
        %1993 = vmatprep.subr.mxu0 0.0
        %1994 = vmatpush1.msra.mxu0 %v1723
        %1995 = vmatprep.subr.mxu0 0.0
        %1996 = vmatpush1.msra.mxu0 %v1718
        %1997 = vmatprep.subr.mxu0 0.0
        %1998 = vmatpush1.msra.mxu0 %v1713
        %1999 = vmatprep.subr.mxu0 0.0
        %2000 = vmatpush1.msra.mxu0 %v1708
        %2001 = vmatprep.subr.mxu0 0.0
        %2002 = vmatpush2.msra.mxu0 0.0
        %2003 = vmatprep.subr.mxu0 0.0
        %2004 = vmatpush2.msra.mxu0 0.0
        %2005 = vmatprep.subr.mxu0 0.0
        %2006 = vmatpush2.msra.mxu0 0.0
        %2007 = vmatprep.subr.mxu0 0.0
        %2008 = vmatpush2.msra.mxu0 0.0
        %2009 = vmatprep.subr.mxu0 0.0
        %2010 = vmatpush2.msra.mxu0 0.0
        %2011 = vmatprep.subr.mxu0 0.0
        %2012 = vmatpush2.msra.mxu0 0.0
        %2013 = vmatprep.subr.mxu0 0.0
        %2014 = vmatpush2.msra.mxu0 0.0
        %2015 = vmatprep.subr.mxu0 0.0
        %2016 = vmatpush2.msra.mxu0 0.0
        %2017 = vmatprep.subr.mxu0 0.0
        %2018 = vmatpush2.msra.mxu0 0.0
        %2019 = vmatprep.subr.mxu0 0.0
        %2020 = vmatpush2.msra.mxu0 0.0
        %2021 = vmatprep.subr.mxu0 0.0
        %2022 = vmatpush2.msra.mxu0 0.0
        %2023 = vmatprep.subr.mxu0 0.0
        %2024 = vmatpush2.msra.mxu0 0.0
        %2025 = vmatprep.subr.mxu0 0.0
        %2026 = vmatpush2.msra.mxu0 0.0
        %2027 = vmatprep.subr.mxu0 0.0
        %2028 = vmatpush2.msra.mxu0 0.0
        %2029 = vmatprep.subr.mxu0 0.0
        %2030 = vmatpush2.msra.mxu0 0.0
        %2031 = vmatprep.subr.mxu0 0.0
        %2032 = vmatpush2.msra.mxu0 0.0
        %2033 = vmatprep.mubr.f32.mxu0 0.0
        %2034 = vmatmul.mubr.f32.gmra.mxu0 %v1967
        %v2035 = vpop.f32.mrf.mxu0
        %v2036 = vadd.f32 0.0, %v2035
        %v2037 = vpop.f32.mrf.mxu0
        %2038 = vdwg.mxu0
        %v2039 = vld [vmem:[%s4] sm:$0xf]
        %v2040 = vmul.f32 %v1817, %v2039
        %v2041 = vmul.f32 %v1890, %v2039
        %v2042 = vmul.f32 %v1963, %v2039
        %v2043 = vmul.f32 %v2036, %v2039
        %vm2044 = vcmask 1043456
        %v2045 = vsel %vm2044, %v2040, 0.0
        %v2046 = vrot.slane %v2045, 4
        %v2047 = vadd.f32 %v2045, %v2046
        %v2048 = vrot.slane %v2047, 2
        %v2049 = vadd.f32 %v2047, %v2048
        %v2050 = vrot.slane %v2049, 1
        %v2051 = vadd.f32 %v2049, %v2050
        %v2052 = vsel %vm2044, %v2041, 0.0
        %v2053 = vrot.slane %v2052, 4
        %v2054 = vadd.f32 %v2052, %v2053
        %v2055 = vrot.slane %v2054, 2
        %v2056 = vadd.f32 %v2054, %v2055
        %v2057 = vrot.slane %v2056, 1
        %v2058 = vadd.f32 %v2056, %v2057
        %v2059 = vsel %vm2044, %v2042, 0.0
        %v2060 = vrot.slane %v2059, 4
        %v2061 = vadd.f32 %v2059, %v2060
        %v2062 = vrot.slane %v2061, 2
        %v2063 = vadd.f32 %v2061, %v2062
        %v2064 = vrot.slane %v2063, 1
        %v2065 = vadd.f32 %v2063, %v2064
        %v2066 = vsel %vm2044, %v2043, 0.0
        %v2067 = vrot.slane %v2066, 4
        %v2068 = vadd.f32 %v2066, %v2067
        %v2069 = vrot.slane %v2068, 2
        %v2070 = vadd.f32 %v2068, %v2069
        %v2071 = vrot.slane %v2070, 1
        %v2072 = vadd.f32 %v2070, %v2071
        %v2073 = vld [vmem:[#allocation5] sm:$0xff]
        %v2074 = vld [vmem:[#allocation5 + $0x8] sm:$0xff]
        %v2075 = vld [vmem:[#allocation5 + $0x10] sm:$0xff]
        %v2076 = vld [vmem:[#allocation5 + $0x18] sm:$0xff]
        %v2077 = vld [vmem:[#allocation5 + $0x20] sm:$0xff]
        %v2078 = vld [vmem:[#allocation5 + $0x28] sm:$0xff]
        %v2079 = vld [vmem:[#allocation5 + $0x30] sm:$0xff]
        %v2080 = vld [vmem:[#allocation5 + $0x38] sm:$0xff]
        %v2081 = vld [vmem:[#allocation5 + $0x40] sm:$0xff]
        %v2082 = vld [vmem:[#allocation5 + $0x48] sm:$0xff]
        %v2083 = vld [vmem:[#allocation5 + $0x50] sm:$0xff]
        %v2084 = vld [vmem:[#allocation5 + $0x58] sm:$0xff]
        %v2085 = vld [vmem:[#allocation5 + $0x60] sm:$0xff]
        %v2086 = vld [vmem:[#allocation5 + $0x68] sm:$0xff]
        %v2087 = vld [vmem:[#allocation5 + $0x70] sm:$0xff]
        %v2088 = vld [vmem:[#allocation5 + $0x78] sm:$0xff]
        %v2089 = vld [vmem:[%s10] sm:$0x1]
        %v2091 = vlaneseq
        %v2092 = vshrl.u32 %v2091, 7
        %v2093 = vsub.s32 0, %v2092
        %v2094 = vrot.slane %v2089, %v2093
        %vm2100 = vcmask 1041409
        %v2101 = vsel %vm2100, %v2058, %v2051
        %vm2102 = vcmask 1042434
        %v2103 = vsel %vm2102, %v2065, %v2101
        %vm2104 = vcmask 1043459
        %v2105 = vsel %vm2104, %v2072, %v2103
        %2107 = vmatprep.subr.mxu0 0.0
        %2108 = vmatpush1.msra.mxu0 %v2088
        %2109 = vmatprep.subr.mxu0 0.0
        %2110 = vmatpush1.msra.mxu0 %v2087
        %2111 = vmatprep.subr.mxu0 0.0
        %2112 = vmatpush1.msra.mxu0 %v2086
        %2113 = vmatprep.subr.mxu0 0.0
        %2114 = vmatpush1.msra.mxu0 %v2085
        %2115 = vmatprep.subr.mxu0 0.0
        %2116 = vmatpush1.msra.mxu0 %v2084
        %2117 = vmatprep.subr.mxu0 0.0
        %2118 = vmatpush1.msra.mxu0 %v2083
        %2119 = vmatprep.subr.mxu0 0.0
        %2120 = vmatpush1.msra.mxu0 %v2082
        %2121 = vmatprep.subr.mxu0 0.0
        %2122 = vmatpush1.msra.mxu0 %v2081
        %2123 = vmatprep.subr.mxu0 0.0
        %2124 = vmatpush1.msra.mxu0 %v2080
        %2125 = vmatprep.subr.mxu0 0.0
        %2126 = vmatpush1.msra.mxu0 %v2079
        %2127 = vmatprep.subr.mxu0 0.0
        %2128 = vmatpush1.msra.mxu0 %v2078
        %2129 = vmatprep.subr.mxu0 0.0
        %2130 = vmatpush1.msra.mxu0 %v2077
        %2131 = vmatprep.subr.mxu0 0.0
        %2132 = vmatpush1.msra.mxu0 %v2076
        %2133 = vmatprep.subr.mxu0 0.0
        %2134 = vmatpush1.msra.mxu0 %v2075
        %2135 = vmatprep.subr.mxu0 0.0
        %2136 = vmatpush1.msra.mxu0 %v2074
        %2137 = vmatprep.subr.mxu0 0.0
        %2138 = vmatpush1.msra.mxu0 %v2073
        %2139 = vmatprep.subr.mxu0 0.0
        %2140 = vmatpush2.msra.mxu0 0.0
        %2141 = vmatprep.subr.mxu0 0.0
        %2142 = vmatpush2.msra.mxu0 0.0
        %2143 = vmatprep.subr.mxu0 0.0
        %2144 = vmatpush2.msra.mxu0 0.0
        %2145 = vmatprep.subr.mxu0 0.0
        %2146 = vmatpush2.msra.mxu0 0.0
        %2147 = vmatprep.subr.mxu0 0.0
        %2148 = vmatpush2.msra.mxu0 0.0
        %2149 = vmatprep.subr.mxu0 0.0
        %2150 = vmatpush2.msra.mxu0 0.0
        %2151 = vmatprep.subr.mxu0 0.0
        %2152 = vmatpush2.msra.mxu0 0.0
        %2153 = vmatprep.subr.mxu0 0.0
        %2154 = vmatpush2.msra.mxu0 0.0
        %2155 = vmatprep.subr.mxu0 0.0
        %2156 = vmatpush2.msra.mxu0 0.0
        %2157 = vmatprep.subr.mxu0 0.0
        %2158 = vmatpush2.msra.mxu0 0.0
        %2159 = vmatprep.subr.mxu0 0.0
        %2160 = vmatpush2.msra.mxu0 0.0
        %2161 = vmatprep.subr.mxu0 0.0
        %2162 = vmatpush2.msra.mxu0 0.0
        %2163 = vmatprep.subr.mxu0 0.0
        %2164 = vmatpush2.msra.mxu0 0.0
        %2165 = vmatprep.subr.mxu0 0.0
        %2166 = vmatpush2.msra.mxu0 0.0
        %2167 = vmatprep.subr.mxu0 0.0
        %2168 = vmatpush2.msra.mxu0 0.0
        %2169 = vmatprep.subr.mxu0 0.0
        %2170 = vmatpush2.msra.mxu0 0.0
        %2171 = vmatprep.mubr.f32.mxu0 0.0
        %2172 = vmatmul.mubr.f32.gmra.mxu0 %v2105
        %v2173 = vpop.f32.mrf.mxu0
        %v2174 = vadd.f32 %v2094, %v2173
        %v2175 = vpop.f32.mrf.mxu0
        %2176 = vdwg.mxu0
        %v2179 = vunpack.c.l.s4 1966171168
        %v2180 = vunpack.c.0.s8 %v2179
        %v2181 = vlaneseq
        %v2182 = vshrl.u32 %v2181, 7
        %v2183 = vsub.s32 %v2180, %v2182
        %v2184 = vrot.slane %v2174, %v2183
        %v2185 = vcombine.high %v2184, %v2184
        %v2187 = vunpack.c.l.s4 1966171168
        %v2188 = vunpack.c.0.s8 %v2187
        %v2189 = vlaneseq
        %v2190 = vshrl.u32 %v2189, 7
        %v2191 = vsub.s32 %v2188, %v2190
        %v2192 = vrot.slane %v2184, %v2191
        %v2194 = vunpack.c.l.s4 1966171168
        %v2195 = vunpack.c.0.s8 %v2194
        %v2196 = vlaneseq
        %v2197 = vshrl.u32 %v2196, 7
        %v2198 = vsub.s32 %v2195, %v2197
        %v2199 = vrot.slane %v2185, %v2198
        %v2200 = vcombine.high %v2192, %v2192
        %v2201 = vcombine.high %v2199, %v2199
        %v2206 = vld [vmem:[%s1] sm:$0x1]
        %v2207 = vadd.f32 %v2192, %v2206
        %v2208 = vadd.f32 %v2199, %v2206
        %v2209 = vadd.f32 %v2200, %v2206
        %v2210 = vadd.f32 %v2201, %v2206
        %v2211 = vld [vmem:[%s11] sm:$0x1]
        %v2212 = vld [vmem:[%s12] sm:$0x1]
        %v2217 = vcombine.low %v2207, %v2208
        %v2218 = vcombine.low %v2209, %v2210
        %v2220 = vunpack.c.l.s4 1966171168
        %v2221 = vunpack.c.0.s8 %v2220
        %v2222 = vlaneseq
        %v2223 = vshrl.u32 %v2222, 7
        %v2224 = vsub.s32 %v2221, %v2223
        %v2225 = vrot.slane %v2217, %v2224
        %v2227 = vunpack.c.l.s4 1966171168
        %v2228 = vunpack.c.0.s8 %v2227
        %v2229 = vlaneseq
        %v2230 = vshrl.u32 %v2229, 7
        %v2231 = vsub.s32 %v2228, %v2230
        %v2232 = vrot.slane %v2218, %v2231
        %v2233 = vcombine.low %v2225, %v2232
        %v2235 = vunpack.c.l.s4 1966171168
        %v2236 = vunpack.c.0.s8 %v2235
        %v2237 = vlaneseq
        %v2238 = vshrl.u32 %v2237, 7
        %v2239 = vsub.s32 %v2236, %v2238
        %v2240 = vrot.slane %v2233, %v2239
        %v2242 = vsel %vm2044, %v2240, 0.0
        %2243 = vadd.xlane.f32.xlu0 %v2242
        %v2244 = vpop.xlane.xlu0 %2243
        %v2245 = vmul.f32 %v2244, %v712
        %v2247 = vlaneseq
        %v2248 = vshrl.u32 %v2247, 7
        %v2249 = vsub.s32 0, %v2248
        %v2250 = vrot.slane %v2245, %v2249
        %v2251 = vlaneseq
        %v2252 = vshrl.u32 %v2251, 7
        %v2253 = vsub.s32 1, %v2252
        %v2254 = vrot.slane %v2245, %v2253
        %v2255 = vlaneseq
        %v2256 = vshrl.u32 %v2255, 7
        %v2257 = vsub.s32 2, %v2256
        %v2258 = vrot.slane %v2245, %v2257
        %v2259 = vlaneseq
        %v2260 = vshrl.u32 %v2259, 7
        %v2261 = vsub.s32 3, %v2260
        %v2262 = vrot.slane %v2245, %v2261
        %v2267 = vsub.f32 %v2207, %v2250
        %v2268 = vsub.f32 %v2208, %v2254
        %v2269 = vsub.f32 %v2209, %v2258
        %v2270 = vsub.f32 %v2210, %v2262
        %v2271 = vmul.f32 %v2267, %v2267
        %v2272 = vmul.f32 %v2268, %v2268
        %v2273 = vmul.f32 %v2269, %v2269
        %v2274 = vmul.f32 %v2270, %v2270
        %v2279 = vcombine.low %v2271, %v2272
        %v2280 = vcombine.low %v2273, %v2274
        %v2282 = vunpack.c.l.s4 1966171168
        %v2283 = vunpack.c.0.s8 %v2282
        %v2284 = vlaneseq
        %v2285 = vshrl.u32 %v2284, 7
        %v2286 = vsub.s32 %v2283, %v2285
        %v2287 = vrot.slane %v2279, %v2286
        %v2289 = vunpack.c.l.s4 1966171168
        %v2290 = vunpack.c.0.s8 %v2289
        %v2291 = vlaneseq
        %v2292 = vshrl.u32 %v2291, 7
        %v2293 = vsub.s32 %v2290, %v2292
        %v2294 = vrot.slane %v2280, %v2293
        %v2295 = vcombine.low %v2287, %v2294
        %v2297 = vunpack.c.l.s4 1966171168
        %v2298 = vunpack.c.0.s8 %v2297
        %v2299 = vlaneseq
        %v2300 = vshrl.u32 %v2299, 7
        %v2301 = vsub.s32 %v2298, %v2300
        %v2302 = vrot.slane %v2295, %v2301
        %v2304 = vsel %vm2044, %v2302, 0.0
        %2305 = vadd.xlane.f32.xlu0 %v2304
        %v2306 = vpop.xlane.xlu0 %2305
        %v2307 = vmul.f32 %v2306, %v712
        %v2308 = vadd.f32 %v2307, 1e-06
        %v2309 = vrsqrt.pop %v2308
        %v2311 = vlaneseq
        %v2312 = vshrl.u32 %v2311, 7
        %v2313 = vsub.s32 0, %v2312
        %v2314 = vrot.slane %v2309, %v2313
        %v2315 = vlaneseq
        %v2316 = vshrl.u32 %v2315, 7
        %v2317 = vsub.s32 1, %v2316
        %v2318 = vrot.slane %v2309, %v2317
        %v2319 = vlaneseq
        %v2320 = vshrl.u32 %v2319, 7
        %v2321 = vsub.s32 2, %v2320
        %v2322 = vrot.slane %v2309, %v2321
        %v2323 = vlaneseq
        %v2324 = vshrl.u32 %v2323, 7
        %v2325 = vsub.s32 3, %v2324
        %v2326 = vrot.slane %v2309, %v2325
        %v2331 = vmul.f32 %v2267, %v2314
        %v2332 = vmul.f32 %v2268, %v2318
        %v2333 = vmul.f32 %v2269, %v2322
        %v2334 = vmul.f32 %v2270, %v2326
        %v2336 = vlaneseq
        %v2337 = vshrl.u32 %v2336, 7
        %v2338 = vsub.s32 0, %v2337
        %v2339 = vrot.slane %v2211, %v2338
        %v2341 = vunpack.c.l.s4 1966171168
        %v2342 = vunpack.c.0.s8 %v2341
        %v2343 = vlaneseq
        %v2344 = vshrl.u32 %v2343, 7
        %v2345 = vsub.s32 %v2342, %v2344
        %v2346 = vrot.slane %v2339, %v2345
        %v2347 = vcombine.high %v2346, %v2346
        %v2349 = vunpack.c.l.s4 1966171168
        %v2350 = vunpack.c.0.s8 %v2349
        %v2351 = vlaneseq
        %v2352 = vshrl.u32 %v2351, 7
        %v2353 = vsub.s32 %v2350, %v2352
        %v2354 = vrot.slane %v2346, %v2353
        %v2356 = vunpack.c.l.s4 1966171168
        %v2357 = vunpack.c.0.s8 %v2356
        %v2358 = vlaneseq
        %v2359 = vshrl.u32 %v2358, 7
        %v2360 = vsub.s32 %v2357, %v2359
        %v2361 = vrot.slane %v2347, %v2360
        %v2362 = vcombine.high %v2354, %v2354
        %v2363 = vcombine.high %v2361, %v2361
        %v2368 = vmul.f32 %v2331, %v2354
        %v2369 = vmul.f32 %v2332, %v2361
        %v2370 = vmul.f32 %v2333, %v2362
        %v2371 = vmul.f32 %v2334, %v2363
        %v2373 = vlaneseq
        %v2374 = vshrl.u32 %v2373, 7
        %v2375 = vsub.s32 0, %v2374
        %v2376 = vrot.slane %v2212, %v2375
        %v2378 = vunpack.c.l.s4 1966171168
        %v2379 = vunpack.c.0.s8 %v2378
        %v2380 = vlaneseq
        %v2381 = vshrl.u32 %v2380, 7
        %v2382 = vsub.s32 %v2379, %v2381
        %v2383 = vrot.slane %v2376, %v2382
        %v2384 = vcombine.high %v2383, %v2383
        %v2386 = vunpack.c.l.s4 1966171168
        %v2387 = vunpack.c.0.s8 %v2386
        %v2388 = vlaneseq
        %v2389 = vshrl.u32 %v2388, 7
        %v2390 = vsub.s32 %v2387, %v2389
        %v2391 = vrot.slane %v2383, %v2390
        %v2393 = vunpack.c.l.s4 1966171168
        %v2394 = vunpack.c.0.s8 %v2393
        %v2395 = vlaneseq
        %v2396 = vshrl.u32 %v2395, 7
        %v2397 = vsub.s32 %v2394, %v2396
        %v2398 = vrot.slane %v2384, %v2397
        %v2399 = vcombine.high %v2391, %v2391
        %v2400 = vcombine.high %v2398, %v2398
        %v2405 = vadd.f32 %v2368, %v2391
        %v2406 = vadd.f32 %v2369, %v2398
        %v2407 = vadd.f32 %v2370, %v2399
        %v2408 = vadd.f32 %v2371, %v2400
        %v2409 = vld [vmem:[#allocation7] sm:$0xff]
        %v2410 = vld [vmem:[#allocation7 + $0x8] sm:$0xff]
        %v2411 = vld [vmem:[#allocation7 + $0x10] sm:$0xff]
        %v2412 = vld [vmem:[#allocation7 + $0x18] sm:$0xff]
        %v2413 = vld [vmem:[#allocation7 + $0x20] sm:$0xff]
        %v2414 = vld [vmem:[#allocation7 + $0x28] sm:$0xff]
        %v2415 = vld [vmem:[#allocation7 + $0x30] sm:$0xff]
        %v2416 = vld [vmem:[#allocation7 + $0x38] sm:$0xff]
        %v2417 = vld [vmem:[#allocation7 + $0x40] sm:$0xff]
        %v2418 = vld [vmem:[#allocation7 + $0x48] sm:$0xff]
        %v2419 = vld [vmem:[#allocation7 + $0x50] sm:$0xff]
        %v2420 = vld [vmem:[#allocation7 + $0x58] sm:$0xff]
        %v2421 = vld [vmem:[#allocation7 + $0x60] sm:$0xff]
        %v2422 = vld [vmem:[#allocation7 + $0x68] sm:$0xff]
        %v2423 = vld [vmem:[#allocation7 + $0x70] sm:$0xff]
        %v2424 = vld [vmem:[#allocation7 + $0x78] sm:$0xff]
        %v2425 = vld [vmem:[#allocation7 + $0x80] sm:$0xff]
        %v2426 = vld [vmem:[#allocation7 + $0x88] sm:$0xff]
        %v2427 = vld [vmem:[#allocation7 + $0x90] sm:$0xff]
        %v2428 = vld [vmem:[#allocation7 + $0x98] sm:$0xff]
        %v2429 = vld [vmem:[#allocation7 + $0xa0] sm:$0xff]
        %v2430 = vld [vmem:[#allocation7 + $0xa8] sm:$0xff]
        %v2431 = vld [vmem:[#allocation7 + $0xb0] sm:$0xff]
        %v2432 = vld [vmem:[#allocation7 + $0xb8] sm:$0xff]
        %v2433 = vld [vmem:[#allocation7 + $0xc0] sm:$0xff]
        %v2434 = vld [vmem:[#allocation7 + $0xc8] sm:$0xff]
        %v2435 = vld [vmem:[#allocation7 + $0xd0] sm:$0xff]
        %v2436 = vld [vmem:[#allocation7 + $0xd8] sm:$0xff]
        %v2437 = vld [vmem:[#allocation7 + $0xe0] sm:$0xff]
        %v2438 = vld [vmem:[#allocation7 + $0xe8] sm:$0xff]
        %v2439 = vld [vmem:[#allocation7 + $0xf0] sm:$0xff]
        %v2440 = vld [vmem:[#allocation7 + $0xf8] sm:$0xff]
        %v2441 = vld [vmem:[#allocation7 + $0x100] sm:$0xff]
        %v2442 = vld [vmem:[#allocation7 + $0x108] sm:$0xff]
        %v2443 = vld [vmem:[#allocation7 + $0x110] sm:$0xff]
        %v2444 = vld [vmem:[#allocation7 + $0x118] sm:$0xff]
        %v2445 = vld [vmem:[#allocation7 + $0x120] sm:$0xff]
        %v2446 = vld [vmem:[#allocation7 + $0x128] sm:$0xff]
        %v2447 = vld [vmem:[#allocation7 + $0x130] sm:$0xff]
        %v2448 = vld [vmem:[#allocation7 + $0x138] sm:$0xff]
        %v2449 = vld [vmem:[#allocation7 + $0x140] sm:$0xff]
        %v2450 = vld [vmem:[#allocation7 + $0x148] sm:$0xff]
        %v2451 = vld [vmem:[#allocation7 + $0x150] sm:$0xff]
        %v2452 = vld [vmem:[#allocation7 + $0x158] sm:$0xff]
        %v2453 = vld [vmem:[#allocation7 + $0x160] sm:$0xff]
        %v2454 = vld [vmem:[#allocation7 + $0x168] sm:$0xff]
        %v2455 = vld [vmem:[#allocation7 + $0x170] sm:$0xff]
        %v2456 = vld [vmem:[#allocation7 + $0x178] sm:$0xff]
        %v2457 = vld [vmem:[#allocation7 + $0x180] sm:$0xff]
        %v2458 = vld [vmem:[#allocation7 + $0x188] sm:$0xff]
        %v2459 = vld [vmem:[#allocation7 + $0x190] sm:$0xff]
        %v2460 = vld [vmem:[#allocation7 + $0x198] sm:$0xff]
        %v2461 = vld [vmem:[#allocation7 + $0x1a0] sm:$0xff]
        %v2462 = vld [vmem:[#allocation7 + $0x1a8] sm:$0xff]
        %v2463 = vld [vmem:[#allocation7 + $0x1b0] sm:$0xff]
        %v2464 = vld [vmem:[#allocation7 + $0x1b8] sm:$0xff]
        %v2465 = vld [vmem:[#allocation7 + $0x1c0] sm:$0xff]
        %v2466 = vld [vmem:[#allocation7 + $0x1c8] sm:$0xff]
        %v2467 = vld [vmem:[#allocation7 + $0x1d0] sm:$0xff]
        %v2468 = vld [vmem:[#allocation7 + $0x1d8] sm:$0xff]
        %v2469 = vld [vmem:[#allocation7 + $0x1e0] sm:$0xff]
        %v2470 = vld [vmem:[#allocation7 + $0x1e8] sm:$0xff]
        %v2471 = vld [vmem:[#allocation7 + $0x1f0] sm:$0xff]
        %v2472 = vld [vmem:[#allocation7 + $0x1f8] sm:$0xff]
        %v2473 = vld [vmem:[%s14] sm:$0xf]
        %v2475 = vlaneseq
        %v2476 = vshrl.u32 %v2475, 7
        %v2477 = vsub.s32 0, %v2476
        %v2478 = vrot.slane %v2473, %v2477
        %v2479 = vlaneseq
        %v2480 = vshrl.u32 %v2479, 7
        %v2481 = vsub.s32 1, %v2480
        %v2482 = vrot.slane %v2473, %v2481
        %v2483 = vlaneseq
        %v2484 = vshrl.u32 %v2483, 7
        %v2485 = vsub.s32 2, %v2484
        %v2486 = vrot.slane %v2473, %v2485
        %v2487 = vlaneseq
        %v2488 = vshrl.u32 %v2487, 7
        %v2489 = vsub.s32 3, %v2488
        %v2490 = vrot.slane %v2473, %v2489
        %v2499 = vcombine.low %v2405, %v2406
        %v2500 = vcombine.low %v2407, %v2408
        %v2502 = vunpack.c.l.s4 1966171168
        %v2503 = vunpack.c.0.s8 %v2502
        %v2504 = vlaneseq
        %v2505 = vshrl.u32 %v2504, 7
        %v2506 = vsub.s32 %v2503, %v2505
        %v2507 = vrot.slane %v2499, %v2506
        %v2509 = vunpack.c.l.s4 1966171168
        %v2510 = vunpack.c.0.s8 %v2509
        %v2511 = vlaneseq
        %v2512 = vshrl.u32 %v2511, 7
        %v2513 = vsub.s32 %v2510, %v2512
        %v2514 = vrot.slane %v2500, %v2513
        %v2515 = vcombine.low %v2507, %v2514
        %v2517 = vunpack.c.l.s4 1966171168
        %v2518 = vunpack.c.0.s8 %v2517
        %v2519 = vlaneseq
        %v2520 = vshrl.u32 %v2519, 7
        %v2521 = vsub.s32 %v2518, %v2520
        %v2522 = vrot.slane %v2515, %v2521
        %2524 = vmatprep.subr.mxu0 %v2470
        %2525 = vmatpush1.msra.mxu0 %v2469
        %2526 = vmatprep.subr.mxu0 %v2466
        %2527 = vmatpush1.msra.mxu0 %v2465
        %2528 = vmatprep.subr.mxu0 %v2462
        %2529 = vmatpush1.msra.mxu0 %v2461
        %2530 = vmatprep.subr.mxu0 %v2458
        %2531 = vmatpush1.msra.mxu0 %v2457
        %2532 = vmatprep.subr.mxu0 %v2454
        %2533 = vmatpush1.msra.mxu0 %v2453
        %2534 = vmatprep.subr.mxu0 %v2450
        %2535 = vmatpush1.msra.mxu0 %v2449
        %2536 = vmatprep.subr.mxu0 %v2446
        %2537 = vmatpush1.msra.mxu0 %v2445
        %2538 = vmatprep.subr.mxu0 %v2442
        %2539 = vmatpush1.msra.mxu0 %v2441
        %2540 = vmatprep.subr.mxu0 %v2438
        %2541 = vmatpush1.msra.mxu0 %v2437
        %2542 = vmatprep.subr.mxu0 %v2434
        %2543 = vmatpush1.msra.mxu0 %v2433
        %2544 = vmatprep.subr.mxu0 %v2430
        %2545 = vmatpush1.msra.mxu0 %v2429
        %2546 = vmatprep.subr.mxu0 %v2426
        %2547 = vmatpush1.msra.mxu0 %v2425
        %2548 = vmatprep.subr.mxu0 %v2422
        %2549 = vmatpush1.msra.mxu0 %v2421
        %2550 = vmatprep.subr.mxu0 %v2418
        %2551 = vmatpush1.msra.mxu0 %v2417
        %2552 = vmatprep.subr.mxu0 %v2414
        %2553 = vmatpush1.msra.mxu0 %v2413
        %2554 = vmatprep.subr.mxu0 %v2410
        %2555 = vmatpush1.msra.mxu0 %v2409
        %2556 = vmatprep.subr.mxu0 0.0
        %2557 = vmatpush2.msra.mxu0 0.0
        %2558 = vmatprep.subr.mxu0 0.0
        %2559 = vmatpush2.msra.mxu0 0.0
        %2560 = vmatprep.subr.mxu0 0.0
        %2561 = vmatpush2.msra.mxu0 0.0
        %2562 = vmatprep.subr.mxu0 0.0
        %2563 = vmatpush2.msra.mxu0 0.0
        %2564 = vmatprep.subr.mxu0 0.0
        %2565 = vmatpush2.msra.mxu0 0.0
        %2566 = vmatprep.subr.mxu0 0.0
        %2567 = vmatpush2.msra.mxu0 0.0
        %2568 = vmatprep.subr.mxu0 0.0
        %2569 = vmatpush2.msra.mxu0 0.0
        %2570 = vmatprep.subr.mxu0 0.0
        %2571 = vmatpush2.msra.mxu0 0.0
        %2572 = vmatprep.subr.mxu0 0.0
        %2573 = vmatpush2.msra.mxu0 0.0
        %2574 = vmatprep.subr.mxu0 0.0
        %2575 = vmatpush2.msra.mxu0 0.0
        %2576 = vmatprep.subr.mxu0 0.0
        %2577 = vmatpush2.msra.mxu0 0.0
        %2578 = vmatprep.subr.mxu0 0.0
        %2579 = vmatpush2.msra.mxu0 0.0
        %2580 = vmatprep.subr.mxu0 0.0
        %2581 = vmatpush2.msra.mxu0 0.0
        %2582 = vmatprep.subr.mxu0 0.0
        %2583 = vmatpush2.msra.mxu0 0.0
        %2584 = vmatprep.subr.mxu0 0.0
        %2585 = vmatpush2.msra.mxu0 0.0
        %2586 = vmatprep.subr.mxu0 0.0
        %2587 = vmatpush2.msra.mxu0 0.0
        %2588 = vmatprep.mubr.f32.mxu0 0.0
        %2589 = vmatmul.mubr.f32.gmra.mxu0 %v2522
        %v2590 = vpop.f32.mrf.mxu0
        %v2591 = vadd.f32 %v2478, %v2590
        %v2592 = vpop.f32.mrf.mxu0
        %v2593 = vadd.f32 %v2482, %v2592
        %2594 = vdwg.mxu0
        %2595 = vmatprep.subr.mxu0 %v2472
        %2596 = vmatpush1.msra.mxu0 %v2471
        %2597 = vmatprep.subr.mxu0 %v2468
        %2598 = vmatpush1.msra.mxu0 %v2467
        %2599 = vmatprep.subr.mxu0 %v2464
        %2600 = vmatpush1.msra.mxu0 %v2463
        %2601 = vmatprep.subr.mxu0 %v2460
        %2602 = vmatpush1.msra.mxu0 %v2459
        %2603 = vmatprep.subr.mxu0 %v2456
        %2604 = vmatpush1.msra.mxu0 %v2455
        %2605 = vmatprep.subr.mxu0 %v2452
        %2606 = vmatpush1.msra.mxu0 %v2451
        %2607 = vmatprep.subr.mxu0 %v2448
        %2608 = vmatpush1.msra.mxu0 %v2447
        %2609 = vmatprep.subr.mxu0 %v2444
        %2610 = vmatpush1.msra.mxu0 %v2443
        %2611 = vmatprep.subr.mxu0 %v2440
        %2612 = vmatpush1.msra.mxu0 %v2439
        %2613 = vmatprep.subr.mxu0 %v2436
        %2614 = vmatpush1.msra.mxu0 %v2435
        %2615 = vmatprep.subr.mxu0 %v2432
        %2616 = vmatpush1.msra.mxu0 %v2431
        %2617 = vmatprep.subr.mxu0 %v2428
        %2618 = vmatpush1.msra.mxu0 %v2427
        %2619 = vmatprep.subr.mxu0 %v2424
        %2620 = vmatpush1.msra.mxu0 %v2423
        %2621 = vmatprep.subr.mxu0 %v2420
        %2622 = vmatpush1.msra.mxu0 %v2419
        %2623 = vmatprep.subr.mxu0 %v2416
        %2624 = vmatpush1.msra.mxu0 %v2415
        %2625 = vmatprep.subr.mxu0 %v2412
        %2626 = vmatpush1.msra.mxu0 %v2411
        %2627 = vmatprep.subr.mxu0 0.0
        %2628 = vmatpush2.msra.mxu0 0.0
        %2629 = vmatprep.subr.mxu0 0.0
        %2630 = vmatpush2.msra.mxu0 0.0
        %2631 = vmatprep.subr.mxu0 0.0
        %2632 = vmatpush2.msra.mxu0 0.0
        %2633 = vmatprep.subr.mxu0 0.0
        %2634 = vmatpush2.msra.mxu0 0.0
        %2635 = vmatprep.subr.mxu0 0.0
        %2636 = vmatpush2.msra.mxu0 0.0
        %2637 = vmatprep.subr.mxu0 0.0
        %2638 = vmatpush2.msra.mxu0 0.0
        %2639 = vmatprep.subr.mxu0 0.0
        %2640 = vmatpush2.msra.mxu0 0.0
        %2641 = vmatprep.subr.mxu0 0.0
        %2642 = vmatpush2.msra.mxu0 0.0
        %2643 = vmatprep.subr.mxu0 0.0
        %2644 = vmatpush2.msra.mxu0 0.0
        %2645 = vmatprep.subr.mxu0 0.0
        %2646 = vmatpush2.msra.mxu0 0.0
        %2647 = vmatprep.subr.mxu0 0.0
        %2648 = vmatpush2.msra.mxu0 0.0
        %2649 = vmatprep.subr.mxu0 0.0
        %2650 = vmatpush2.msra.mxu0 0.0
        %2651 = vmatprep.subr.mxu0 0.0
        %2652 = vmatpush2.msra.mxu0 0.0
        %2653 = vmatprep.subr.mxu0 0.0
        %2654 = vmatpush2.msra.mxu0 0.0
        %2655 = vmatprep.subr.mxu0 0.0
        %2656 = vmatpush2.msra.mxu0 0.0
        %2657 = vmatprep.subr.mxu0 0.0
        %2658 = vmatpush2.msra.mxu0 0.0
        %2659 = vmatprep.mubr.f32.mxu0 0.0
        %2660 = vmatmul.mubr.f32.gmra.mxu0 %v2522
        %v2661 = vpop.f32.mrf.mxu0
        %v2662 = vadd.f32 %v2486, %v2661
        %v2663 = vpop.f32.mrf.mxu0
        %v2664 = vadd.f32 %v2490, %v2663
        %2665 = vdwg.mxu0
        %v2666 = vmul.f32 %v2591, %v2591
        %v2667 = vmul.f32 %v2593, %v2593
        %v2668 = vmul.f32 %v2662, %v2662
        %v2669 = vmul.f32 %v2664, %v2664
        %v2670 = vmul.f32 %v2591, %v2666
        %v2671 = vmul.f32 %v2593, %v2667
        %v2672 = vmul.f32 %v2662, %v2668
        %v2673 = vmul.f32 %v2664, %v2669
        %v2674 = vmul.f32 %v2670, 0.044715
        %v2675 = vmul.f32 %v2671, 0.044715
        %v2676 = vmul.f32 %v2672, 0.044715
        %v2677 = vmul.f32 %v2673, 0.044715
        %v2678 = vadd.f32 %v2591, %v2674
        %v2679 = vadd.f32 %v2593, %v2675
        %v2680 = vadd.f32 %v2662, %v2676
        %v2681 = vadd.f32 %v2664, %v2677
        %v2682 = vmul.f32 %v2678, 0.7978846
        %v2683 = vmul.f32 %v2679, 0.7978846
        %v2684 = vmul.f32 %v2680, 0.7978846
        %v2685 = vmul.f32 %v2681, 0.7978846
        %v2686 = vtanh.pop %v2682
        %v2687 = vtanh.pop %v2683
        %v2688 = vtanh.pop %v2684
        %v2689 = vtanh.pop %v2685
        %v2690 = vadd.f32 %v2686, 1.0
        %v2691 = vadd.f32 %v2687, 1.0
        %v2692 = vadd.f32 %v2688, 1.0
        %v2693 = vadd.f32 %v2689, 1.0
        %v2694 = vmul.f32 %v2690, 0.5
        %v2695 = vmul.f32 %v2691, 0.5
        %v2696 = vmul.f32 %v2692, 0.5
        %v2697 = vmul.f32 %v2693, 0.5
        %v2698 = vmul.f32 %v2591, %v2694
        %v2699 = vmul.f32 %v2593, %v2695
        %v2700 = vmul.f32 %v2662, %v2696
        %v2701 = vmul.f32 %v2664, %v2697
        %v2702 = vld [vmem:[#allocation8] sm:$0xff]
        %v2703 = vld [vmem:[#allocation8 + $0x8] sm:$0xff]
        %v2704 = vld [vmem:[#allocation8 + $0x10] sm:$0xff]
        %v2705 = vld [vmem:[#allocation8 + $0x18] sm:$0xff]
        %v2706 = vld [vmem:[#allocation8 + $0x20] sm:$0xff]
        %v2707 = vld [vmem:[#allocation8 + $0x28] sm:$0xff]
        %v2708 = vld [vmem:[#allocation8 + $0x30] sm:$0xff]
        %v2709 = vld [vmem:[#allocation8 + $0x38] sm:$0xff]
        %v2710 = vld [vmem:[#allocation8 + $0x40] sm:$0xff]
        %v2711 = vld [vmem:[#allocation8 + $0x48] sm:$0xff]
        %v2712 = vld [vmem:[#allocation8 + $0x50] sm:$0xff]
        %v2713 = vld [vmem:[#allocation8 + $0x58] sm:$0xff]
        %v2714 = vld [vmem:[#allocation8 + $0x60] sm:$0xff]
        %v2715 = vld [vmem:[#allocation8 + $0x68] sm:$0xff]
        %v2716 = vld [vmem:[#allocation8 + $0x70] sm:$0xff]
        %v2717 = vld [vmem:[#allocation8 + $0x78] sm:$0xff]
        %v2718 = vld [vmem:[#allocation8 + $0x80] sm:$0xff]
        %v2719 = vld [vmem:[#allocation8 + $0x88] sm:$0xff]
        %v2720 = vld [vmem:[#allocation8 + $0x90] sm:$0xff]
        %v2721 = vld [vmem:[#allocation8 + $0x98] sm:$0xff]
        %v2722 = vld [vmem:[#allocation8 + $0xa0] sm:$0xff]
        %v2723 = vld [vmem:[#allocation8 + $0xa8] sm:$0xff]
        %v2724 = vld [vmem:[#allocation8 + $0xb0] sm:$0xff]
        %v2725 = vld [vmem:[#allocation8 + $0xb8] sm:$0xff]
        %v2726 = vld [vmem:[#allocation8 + $0xc0] sm:$0xff]
        %v2727 = vld [vmem:[#allocation8 + $0xc8] sm:$0xff]
        %v2728 = vld [vmem:[#allocation8 + $0xd0] sm:$0xff]
        %v2729 = vld [vmem:[#allocation8 + $0xd8] sm:$0xff]
        %v2730 = vld [vmem:[#allocation8 + $0xe0] sm:$0xff]
        %v2731 = vld [vmem:[#allocation8 + $0xe8] sm:$0xff]
        %v2732 = vld [vmem:[#allocation8 + $0xf0] sm:$0xff]
        %v2733 = vld [vmem:[#allocation8 + $0xf8] sm:$0xff]
        %v2734 = vld [vmem:[#allocation8 + $0x100] sm:$0xff]
        %v2735 = vld [vmem:[#allocation8 + $0x108] sm:$0xff]
        %v2736 = vld [vmem:[#allocation8 + $0x110] sm:$0xff]
        %v2737 = vld [vmem:[#allocation8 + $0x118] sm:$0xff]
        %v2738 = vld [vmem:[#allocation8 + $0x120] sm:$0xff]
        %v2739 = vld [vmem:[#allocation8 + $0x128] sm:$0xff]
        %v2740 = vld [vmem:[#allocation8 + $0x130] sm:$0xff]
        %v2741 = vld [vmem:[#allocation8 + $0x138] sm:$0xff]
        %v2742 = vld [vmem:[#allocation8 + $0x140] sm:$0xff]
        %v2743 = vld [vmem:[#allocation8 + $0x148] sm:$0xff]
        %v2744 = vld [vmem:[#allocation8 + $0x150] sm:$0xff]
        %v2745 = vld [vmem:[#allocation8 + $0x158] sm:$0xff]
        %v2746 = vld [vmem:[#allocation8 + $0x160] sm:$0xff]
        %v2747 = vld [vmem:[#allocation8 + $0x168] sm:$0xff]
        %v2748 = vld [vmem:[#allocation8 + $0x170] sm:$0xff]
        %v2749 = vld [vmem:[#allocation8 + $0x178] sm:$0xff]
        %v2750 = vld [vmem:[#allocation8 + $0x180] sm:$0xff]
        %v2751 = vld [vmem:[#allocation8 + $0x188] sm:$0xff]
        %v2752 = vld [vmem:[#allocation8 + $0x190] sm:$0xff]
        %v2753 = vld [vmem:[#allocation8 + $0x198] sm:$0xff]
        %v2754 = vld [vmem:[#allocation8 + $0x1a0] sm:$0xff]
        %v2755 = vld [vmem:[#allocation8 + $0x1a8] sm:$0xff]
        %v2756 = vld [vmem:[#allocation8 + $0x1b0] sm:$0xff]
        %v2757 = vld [vmem:[#allocation8 + $0x1b8] sm:$0xff]
        %v2758 = vld [vmem:[#allocation8 + $0x1c0] sm:$0xff]
        %v2759 = vld [vmem:[#allocation8 + $0x1c8] sm:$0xff]
        %v2760 = vld [vmem:[#allocation8 + $0x1d0] sm:$0xff]
        %v2761 = vld [vmem:[#allocation8 + $0x1d8] sm:$0xff]
        %v2762 = vld [vmem:[#allocation8 + $0x1e0] sm:$0xff]
        %v2763 = vld [vmem:[#allocation8 + $0x1e8] sm:$0xff]
        %v2764 = vld [vmem:[#allocation8 + $0x1f0] sm:$0xff]
        %v2765 = vld [vmem:[#allocation8 + $0x1f8] sm:$0xff]
        %v2766 = vld [vmem:[%s16] sm:$0x1]
        %v2768 = vlaneseq
        %v2769 = vshrl.u32 %v2768, 7
        %v2770 = vsub.s32 0, %v2769
        %v2771 = vrot.slane %v2766, %v2770
        %2773 = vmatprep.subr.mxu0 0.0
        %2774 = vmatpush1.msra.mxu0 %v2717
        %2775 = vmatprep.subr.mxu0 0.0
        %2776 = vmatpush1.msra.mxu0 %v2716
        %2777 = vmatprep.subr.mxu0 0.0
        %2778 = vmatpush1.msra.mxu0 %v2715
        %2779 = vmatprep.subr.mxu0 0.0
        %2780 = vmatpush1.msra.mxu0 %v2714
        %2781 = vmatprep.subr.mxu0 0.0
        %2782 = vmatpush1.msra.mxu0 %v2713
        %2783 = vmatprep.subr.mxu0 0.0
        %2784 = vmatpush1.msra.mxu0 %v2712
        %2785 = vmatprep.subr.mxu0 0.0
        %2786 = vmatpush1.msra.mxu0 %v2711
        %2787 = vmatprep.subr.mxu0 0.0
        %2788 = vmatpush1.msra.mxu0 %v2710
        %2789 = vmatprep.subr.mxu0 0.0
        %2790 = vmatpush1.msra.mxu0 %v2709
        %2791 = vmatprep.subr.mxu0 0.0
        %2792 = vmatpush1.msra.mxu0 %v2708
        %2793 = vmatprep.subr.mxu0 0.0
        %2794 = vmatpush1.msra.mxu0 %v2707
        %2795 = vmatprep.subr.mxu0 0.0
        %2796 = vmatpush1.msra.mxu0 %v2706
        %2797 = vmatprep.subr.mxu0 0.0
        %2798 = vmatpush1.msra.mxu0 %v2705
        %2799 = vmatprep.subr.mxu0 0.0
        %2800 = vmatpush1.msra.mxu0 %v2704
        %2801 = vmatprep.subr.mxu0 0.0
        %2802 = vmatpush1.msra.mxu0 %v2703
        %2803 = vmatprep.subr.mxu0 0.0
        %2804 = vmatpush1.msra.mxu0 %v2702
        %2805 = vmatprep.subr.mxu0 0.0
        %2806 = vmatpush2.msra.mxu0 %v2733
        %2807 = vmatprep.subr.mxu0 0.0
        %2808 = vmatpush2.msra.mxu0 %v2732
        %2809 = vmatprep.subr.mxu0 0.0
        %2810 = vmatpush2.msra.mxu0 %v2731
        %2811 = vmatprep.subr.mxu0 0.0
        %2812 = vmatpush2.msra.mxu0 %v2730
        %2813 = vmatprep.subr.mxu0 0.0
        %2814 = vmatpush2.msra.mxu0 %v2729
        %2815 = vmatprep.subr.mxu0 0.0
        %2816 = vmatpush2.msra.mxu0 %v2728
        %2817 = vmatprep.subr.mxu0 0.0
        %2818 = vmatpush2.msra.mxu0 %v2727
        %2819 = vmatprep.subr.mxu0 0.0
        %2820 = vmatpush2.msra.mxu0 %v2726
        %2821 = vmatprep.subr.mxu0 0.0
        %2822 = vmatpush2.msra.mxu0 %v2725
        %2823 = vmatprep.subr.mxu0 0.0
        %2824 = vmatpush2.msra.mxu0 %v2724
        %2825 = vmatprep.subr.mxu0 0.0
        %2826 = vmatpush2.msra.mxu0 %v2723
        %2827 = vmatprep.subr.mxu0 0.0
        %2828 = vmatpush2.msra.mxu0 %v2722
        %2829 = vmatprep.subr.mxu0 0.0
        %2830 = vmatpush2.msra.mxu0 %v2721
        %2831 = vmatprep.subr.mxu0 0.0
        %2832 = vmatpush2.msra.mxu0 %v2720
        %2833 = vmatprep.subr.mxu0 0.0
        %2834 = vmatpush2.msra.mxu0 %v2719
        %2835 = vmatprep.subr.mxu0 0.0
        %2836 = vmatpush2.msra.mxu0 %v2718
        %2837 = vmatprep.mubr.f32.mxu0 %v2699
        %2838 = vmatmul.mubr.f32.gmra.mxu0 %v2698
        %v2839 = vpop.f32.mrf.mxu0
        %v2840 = vadd.f32 %v2771, %v2839
        %v2841 = vpop.f32.mrf.mxu0
        %2842 = vdwg.mxu0
        %2843 = vmatprep.subr.mxu0 0.0
        %2844 = vmatpush1.msra.mxu0 %v2749
        %2845 = vmatprep.subr.mxu0 0.0
        %2846 = vmatpush1.msra.mxu0 %v2748
        %2847 = vmatprep.subr.mxu0 0.0
        %2848 = vmatpush1.msra.mxu0 %v2747
        %2849 = vmatprep.subr.mxu0 0.0
        %2850 = vmatpush1.msra.mxu0 %v2746
        %2851 = vmatprep.subr.mxu0 0.0
        %2852 = vmatpush1.msra.mxu0 %v2745
        %2853 = vmatprep.subr.mxu0 0.0
        %2854 = vmatpush1.msra.mxu0 %v2744
        %2855 = vmatprep.subr.mxu0 0.0
        %2856 = vmatpush1.msra.mxu0 %v2743
        %2857 = vmatprep.subr.mxu0 0.0
        %2858 = vmatpush1.msra.mxu0 %v2742
        %2859 = vmatprep.subr.mxu0 0.0
        %2860 = vmatpush1.msra.mxu0 %v2741
        %2861 = vmatprep.subr.mxu0 0.0
        %2862 = vmatpush1.msra.mxu0 %v2740
        %2863 = vmatprep.subr.mxu0 0.0
        %2864 = vmatpush1.msra.mxu0 %v2739
        %2865 = vmatprep.subr.mxu0 0.0
        %2866 = vmatpush1.msra.mxu0 %v2738
        %2867 = vmatprep.subr.mxu0 0.0
        %2868 = vmatpush1.msra.mxu0 %v2737
        %2869 = vmatprep.subr.mxu0 0.0
        %2870 = vmatpush1.msra.mxu0 %v2736
        %2871 = vmatprep.subr.mxu0 0.0
        %2872 = vmatpush1.msra.mxu0 %v2735
        %2873 = vmatprep.subr.mxu0 0.0
        %2874 = vmatpush1.msra.mxu0 %v2734
        %2875 = vmatprep.subr.mxu0 0.0
        %2876 = vmatpush2.msra.mxu0 %v2765
        %2877 = vmatprep.subr.mxu0 0.0
        %2878 = vmatpush2.msra.mxu0 %v2764
        %2879 = vmatprep.subr.mxu0 0.0
        %2880 = vmatpush2.msra.mxu0 %v2763
        %2881 = vmatprep.subr.mxu0 0.0
        %2882 = vmatpush2.msra.mxu0 %v2762
        %2883 = vmatprep.subr.mxu0 0.0
        %2884 = vmatpush2.msra.mxu0 %v2761
        %2885 = vmatprep.subr.mxu0 0.0
        %2886 = vmatpush2.msra.mxu0 %v2760
        %2887 = vmatprep.subr.mxu0 0.0
        %2888 = vmatpush2.msra.mxu0 %v2759
        %2889 = vmatprep.subr.mxu0 0.0
        %2890 = vmatpush2.msra.mxu0 %v2758
        %2891 = vmatprep.subr.mxu0 0.0
        %2892 = vmatpush2.msra.mxu0 %v2757
        %2893 = vmatprep.subr.mxu0 0.0
        %2894 = vmatpush2.msra.mxu0 %v2756
        %2895 = vmatprep.subr.mxu0 0.0
        %2896 = vmatpush2.msra.mxu0 %v2755
        %2897 = vmatprep.subr.mxu0 0.0
        %2898 = vmatpush2.msra.mxu0 %v2754
        %2899 = vmatprep.subr.mxu0 0.0
        %2900 = vmatpush2.msra.mxu0 %v2753
        %2901 = vmatprep.subr.mxu0 0.0
        %2902 = vmatpush2.msra.mxu0 %v2752
        %2903 = vmatprep.subr.mxu0 0.0
        %2904 = vmatpush2.msra.mxu0 %v2751
        %2905 = vmatprep.subr.mxu0 0.0
        %2906 = vmatpush2.msra.mxu0 %v2750
        %2907 = vmatprep.mubr.f32.mxu0 %v2701
        %2908 = vmatmul.mubr.f32.gmra.mxu0 %v2700
        %v2909 = vpop.f32.mrf.mxu0
        %v2910 = vadd.f32 %v2840, %v2909
        %v2911 = vpop.f32.mrf.mxu0
        %2912 = vdwg.mxu0
        %v2915 = vunpack.c.l.s4 1966171168
        %v2916 = vunpack.c.0.s8 %v2915
        %v2917 = vlaneseq
        %v2918 = vshrl.u32 %v2917, 7
        %v2919 = vsub.s32 %v2916, %v2918
        %v2920 = vrot.slane %v2910, %v2919
        %v2921 = vcombine.high %v2920, %v2920
        %v2923 = vunpack.c.l.s4 1966171168
        %v2924 = vunpack.c.0.s8 %v2923
        %v2925 = vlaneseq
        %v2926 = vshrl.u32 %v2925, 7
        %v2927 = vsub.s32 %v2924, %v2926
        %v2928 = vrot.slane %v2920, %v2927
        %v2930 = vunpack.c.l.s4 1966171168
        %v2931 = vunpack.c.0.s8 %v2930
        %v2932 = vlaneseq
        %v2933 = vshrl.u32 %v2932, 7
        %v2934 = vsub.s32 %v2931, %v2933
        %v2935 = vrot.slane %v2921, %v2934
        %v2936 = vcombine.high %v2928, %v2928
        %v2937 = vcombine.high %v2935, %v2935
        %v2942 = vadd.f32 %v2928, %v2207
        %v2943 = vadd.f32 %v2935, %v2208
        %v2944 = vadd.f32 %v2936, %v2209
        %v2945 = vadd.f32 %v2937, %v2210
        %2946 = vst [vmem:[%s611] sm:$0x1] %v2942
        %2947 = vst [vmem:[%s611 + $0x1] sm:$0x1] %v2943
        %2948 = vst [vmem:[%s611 + $0x2] sm:$0x1] %v2944
        %2949 = vst [vmem:[%s611 + $0x3] sm:$0x1] %v2945
        %s2950 = sand.u32 %s406, 1
        %s2951 = scalar_lea.sflag [#allocation4], %s2950
        %s2952 = sand.u32 %s406, 1
        %s2953 = smul.addr %s2952, 4
        %s2954 = scalar_lea.vmem [#allocation10], %s2953
        // Predicated region
        $region105: #{tpu_custom_call.1} parent=87 // pred_check
          %p2955 = pneg %p416
        $region106: #{tpu_custom_call.1} parent=87 // pred_check_branch
          %2957 = sbr.rel (%p2955) target = $region108
        $region107: #{tpu_custom_call.1} parent=87 // pred_region
          %s2958 = smul.u32 4, %s36
          %s2960 = ssub.s32 64, 64
          %2961 = vsyncadd %s2951, %s2960
          %s2962 = smul.addr %s2958, 16
          %s2963 = scalar_lea.hbm %s17, %s2962
          %s2964 = sshll.u32 %s2954, 4
          %s2965 = int_to_ptr.vmem [resolvable:$true] %s2964
          %2970 = dma.vmem_to_hbm [thread:$0]  %s2965, 64, %s2963, %s2951, 16, 16, 1
        $region108: #{tpu_custom_call.1} parent=87 // pred_fallthru
          _
      $region88: #{tpu_custom_call.1} parent=5 // pred_fallthru
        _
      %p2971 = scmp.le.s32.totalorder 2, %s31
      // Predicated region
      $region109: #{tpu_custom_call.1} parent=5 // pred_check
        %p2972 = pneg %p2971
      $region110: #{tpu_custom_call.1} parent=5 // pred_check_branch
        %2974 = sbr.rel (%p2972) target = $region112
      $region111: #{tpu_custom_call.1} parent=5 // pred_region
        %s2975 = ssub.s32 %s31, 2
        // Predicated region
        $region113: #{tpu_custom_call.1} parent=111 // pred_check
          %p2976 = pneg %p422
        $region114: #{tpu_custom_call.1} parent=111 // pred_check_branch
          %2978 = sbr.rel (%p2976) target = $region116
        $region115: #{tpu_custom_call.1} parent=111 // pred_region
          %s2979 = sand.u32 %s407, 1
          %s2980 = scalar_lea.sflag [#allocation4], %s2979
          %s2981 = sand.u32 %s407, 1
          %s2982 = smul.addr %s2981, 4
          %s2983 = scalar_lea.vmem [#allocation10], %s2982
          %2984 = dma.done %s2980, 64
        $region116: #{tpu_custom_call.1} parent=111 // pred_fallthru
          _
      $region112: #{tpu_custom_call.1} parent=5 // pred_fallthru
        _
    $region6: #{tpu_custom_call.1} parent=1 // loop_footer
      %s35 = sadd.s32 1, %s31
    $region7: #{tpu_custom_call.1} parent=1 // loop_footer_branch
      %30 = sbr.rel target = $region3
    $region8: #{tpu_custom_call.1} parent=1 // loop_exit
      _
    %2985 = vsyncpa [#allocation3], 1
    %s2986 = scalar_lea.sflag [#allocation3], 1
    %2987 = vsyncpa %s2986, 1
    %2988 = vsyncpa [#allocation6], 1
    %2989 = vsyncpa [#allocation9], 1
    %2990 = vsyncpa [#allocation4], 1
    %s2991 = scalar_lea.sflag [#allocation4], 1
    %2992 = vsyncpa %s2991, 1

// kernel: tpu_custom_call.1
$region0: #{tpu_custom_call.1}
  #allocation0 [shape = 'u32[]', space=smem, size = 0x4, offset = 0x4, fixed_abs, tag = 'smem constant byte address 0x4 - core index']
  #allocation1 [shape = 'u32[144,128]{1,0:T(1,128)}', space=vmem, size = 0x12000, scoped, tag = 'internal scratch']
  %s0 = inlined_call_operand.hbm [shape: f32[8,64,128], index: 0, kind: input, shape index: {}]
  %s1 = inlined_call_operand.vmem [shape: f32[1,128], index: 1, kind: input, shape index: {}]
  %s2 = inlined_call_operand.vmem [shape: f32[128,4], index: 2, kind: input, shape index: {}]
  %s3 = inlined_call_operand.vmem [shape: f32[1,4], index: 3, kind: input, shape index: {}]
  %s4 = inlined_call_operand.vmem [shape: f32[4,128], index: 4, kind: input, shape index: {}]
  %s5 = inlined_call_operand.vmem [shape: f32[1,128], index: 5, kind: input, shape index: {}]
  %s6 = inlined_call_operand.vmem [shape: f32[1,128], index: 6, kind: input, shape index: {}]
  %s7 = inlined_call_operand.vmem [shape: f32[128,128], index: 7, kind: input, shape index: {}]
  %s8 = inlined_call_operand.vmem [shape: f32[1,128], index: 8, kind: input, shape index: {}]
  %s9 = inlined_call_operand.hbm [shape: f32[128,128], index: 9, kind: input, shape index: {}]
  %s10 = inlined_call_operand.vmem [shape: f32[1,128], index: 10, kind: input, shape index: {}]
  %s11 = inlined_call_operand.vmem [shape: f32[1,128], index: 11, kind: input, shape index: {}]
  %s12 = inlined_call_operand.vmem [shape: f32[1,128], index: 12, kind: input, shape index: {}]
  %s13 = inlined_call_operand.hbm [shape: f32[128,512], index: 13, kind: input, shape index: {}]
  %s14 = inlined_call_operand.vmem [shape: f32[1,512], index: 14, kind: input, shape index: {}]
  %s15 = inlined_call_operand.hbm [shape: f32[512,128], index: 15, kind: input, shape index: {}]
  %s16 = inlined_call_operand.vmem [shape: f32[1,128], index: 16, kind: input, shape index: {}]
  %s17 = inlined_call_operand.hbm [shape: f32[8,1,128], index: 17, kind: output, shape index: {}]
  %s18 = sld [smem:[#allocation0]]
  $region117: #{tpu_custom_call.1} parent=0
    _
  %s20 = ssub.s32 1, %s18
  %s21 = scalar_select 0, %s20, %s18
  $region1: #{tpu_custom_call.1} parent=0
    #allocation2 [shape = 'u8[262144]{0}', space=vmem, size = 0x40000, scoped, tag = 'input window, operand 0']
    #allocation3 [shape = 's32[2]{0}', space=sflag, size = 0x8, scoped, tag = 'scoped memory for tpu_custom_call.1']
    #allocation4 [shape = 's32[2]{0}', space=sflag, size = 0x8, scoped, tag = 'scoped memory for tpu_custom_call.1']
    #allocation5 [shape = 'u8[65536]{0}', space=vmem, size = 0x10000, scoped, tag = 'input window, operand 9, single buffered']
    #allocation6 [shape = 's32[1]{0}', space=sflag, size = 0x4, scoped, tag = 'scoped memory for tpu_custom_call.1']
    #allocation7 [shape = 'u8[262144]{0}', space=vmem, size = 0x40000, scoped, tag = 'input window, operand 13, single buffered']
    #allocation8 [shape = 'u8[262144]{0}', space=vmem, size = 0x40000, scoped, tag = 'input window, operand 15, single buffered']
    #allocation9 [shape = 's32[1]{0}', space=sflag, size = 0x4, scoped, tag = 'scoped memory for tpu_custom_call.1']
    #allocation10 [shape = 'u8[4096]{0}', space=vmem, size = 0x1000, scoped, tag = 'output window, operand 0']
    %22 = vsyncpa [#allocation3], 0
    %s23 = scalar_lea.sflag [#allocation3], 1
    %24 = vsyncpa %s23, 0
    %25 = vsyncpa [#allocation6], 0
    %26 = vsyncpa [#allocation9], 0
    %27 = vsyncpa [#allocation4], 0
    %s28 = scalar_lea.sflag [#allocation4], 1
    %29 = vsyncpa %s28, 0
    loop: start=0, step=1, limit=4
    $region2: #{tpu_custom_call.1} parent=1 // loop_pre_header
      _
    $region3: #{tpu_custom_call.1} parent=1 // loop_header
      %s31 = sphi 0, %s35
      %p32 = scmp.ge.s32.totalorder %s31, 4
      %s41 = sphi 0, %s43
      %s44 = sphi 0, %s41
      %s45 = sphi 0, %s44
      %s61 = sphi 0, %s45
      %s65 = sphi 0, %s65
      %s67 = sphi 0, %s65
      %s68 = sphi 0, %s67
      %s82 = sphi 0, %s68
      %s86 = sphi 0, %s86
      %s88 = sphi 0, %s86
      %s89 = sphi 0, %s88
      %s103 = sphi 0, %s89
      %s107 = sphi 0, %s107
      %s109 = sphi 0, %s107
      %s110 = sphi 0, %s109
      %s124 = sphi 0, %s110
      %s128 = sphi 0, %s128
      %s130 = sphi 0, %s128
      %s131 = sphi 0, %s130
      %s145 = sphi 0, %s131
      %s149 = sphi 0, %s149
      %s151 = sphi 0, %s149
      %s152 = sphi 0, %s151
      %s166 = sphi 0, %s152
      %s170 = sphi 0, %s170
      %s172 = sphi 0, %s170
      %s173 = sphi 0, %s172
      %s187 = sphi 0, %s173
      %s191 = sphi 0, %s191
      %s193 = sphi 0, %s191
      %s194 = sphi 0, %s193
      %s208 = sphi 0, %s194
      %s212 = sphi 0, %s212
      %s214 = sphi 0, %s212
      %s215 = sphi 0, %s214
      %s229 = sphi 0, %s215
      %s233 = sphi 0, %s233
      %s235 = sphi 0, %s233
      %s236 = sphi 0, %s235
      %s250 = sphi 0, %s236
      %s254 = sphi 0, %s254
      %s256 = sphi 0, %s254
      %s257 = sphi 0, %s256
      %s271 = sphi 0, %s257
      %s275 = sphi 0, %s275
      %s277 = sphi 0, %s275
      %s278 = sphi 0, %s277
      %s292 = sphi 0, %s278
      %s296 = sphi 0, %s296
      %s298 = sphi 0, %s296
      %s299 = sphi 0, %s298
      %s313 = sphi 0, %s299
      %s317 = sphi 0, %s317
      %s319 = sphi 0, %s317
      %s320 = sphi 0, %s319
      %s334 = sphi 0, %s320
      %s338 = sphi 0, %s338
      %s340 = sphi 0, %s338
      %s341 = sphi 0, %s340
      %s355 = sphi 0, %s341
      %s359 = sphi 0, %s359
      %s361 = sphi 0, %s359
      %s362 = sphi 0, %s361
      %s376 = sphi 0, %s362
      %s380 = sphi 0, %s380
      %s382 = sphi 0, %s380
      %s383 = sphi 0, %s382
      %s397 = sphi 0, %s383
      %s403 = sphi 0, %s405
      %s406 = sphi 0, %s403
      %s407 = sphi 0, %s406
      %s423 = sphi 0, %s407
    $region4: #{tpu_custom_call.1} parent=1 // loop_header_branch
      %34 = sbr.rel (%p32) target = $region8
    $region5: #{tpu_custom_call.1} parent=1 // loop_body
      %s36 = ssub.s32 %s31, 1
      %s37 = ssub.s32 %s31, 2
      %s38 = sadd.s32 %s31, 1
      %s39 = ssub.s32 %s31, %s38
      %p40 = scmp.eq.s32.totalorder %s39, 0
      %s42 = sadd.s32 %s41, 1
      %s43 = scalar_select %p40, %s41, %s42
      %p46 = pneg %p40
      %p47 = scmp.eq.s32.totalorder %s31, 1
      %p48 = por %p46, %p47
      %p49 = scmp.ne.s32.totalorder %s41, %s44
      %p50 = scmp.eq.s32.totalorder %s31, 0
      %p51 = por %p49, %p50
      %p52 = scmp.ne.s32.totalorder %s41, %s44
      %p53 = scmp.eq.s32.totalorder %s36, 1
      %p54 = por %p52, %p53
      %p55 = scmp.ne.s32.totalorder %s44, %s45
      %p56 = scmp.eq.s32.totalorder %s36, 0
      %p57 = por %p55, %p56
      %p58 = scmp.ne.s32.totalorder %s44, %s45
      %p59 = scmp.eq.s32.totalorder %s37, 1
      %p60 = por %p58, %p59
      %p62 = scmp.ne.s32.totalorder %s45, %s61
      %p63 = scmp.eq.s32.totalorder %s37, 0
      %p64 = por %p62, %p63
      %s66 = sadd.s32 %s65, 1
      %p69 = scmp.eq.s32.totalorder %s31, 1
      %p70 = scmp.ne.s32.totalorder %s65, %s67
      %p71 = scmp.eq.s32.totalorder %s31, 0
      %p72 = por %p70, %p71
      %p73 = scmp.ne.s32.totalorder %s65, %s67
      %p74 = scmp.eq.s32.totalorder %s36, 1
      %p75 = por %p73, %p74
      %p76 = scmp.ne.s32.totalorder %s67, %s68
      %p77 = scmp.eq.s32.totalorder %s36, 0
      %p78 = por %p76, %p77
      %p79 = scmp.ne.s32.totalorder %s67, %s68
      %p80 = scmp.eq.s32.totalorder %s37, 1
      %p81 = por %p79, %p80
      %p83 = scmp.ne.s32.totalorder %s68, %s82
      %p84 = scmp.eq.s32.totalorder %s37, 0
      %p85 = por %p83, %p84
      %s87 = sadd.s32 %s86, 1
      %p90 = scmp.eq.s32.totalorder %s31, 1
      %p91 = scmp.ne.s32.totalorder %s86, %s88
      %p92 = scmp.eq.s32.totalorder %s31, 0
      %p93 = por %p91, %p92
      %p94 = scmp.ne.s32.totalorder %s86, %s88
      %p95 = scmp.eq.s32.totalorder %s36, 1
      %p96 = por %p94, %p95
      %p97 = scmp.ne.s32.totalorder %s88, %s89
      %p98 = scmp.eq.s32.totalorder %s36, 0
      %p99 = por %p97, %p98
      %p100 = scmp.ne.s32.totalorder %s88, %s89
      %p101 = scmp.eq.s32.totalorder %s37, 1
      %p102 = por %p100, %p101
      %p104 = scmp.ne.s32.totalorder %s89, %s103
      %p105 = scmp.eq.s32.totalorder %s37, 0
      %p106 = por %p104, %p105
      %s108 = sadd.s32 %s107, 1
      %p111 = scmp.eq.s32.totalorder %s31, 1
      %p112 = scmp.ne.s32.totalorder %s107, %s109
      %p113 = scmp.eq.s32.totalorder %s31, 0
      %p114 = por %p112, %p113
      %p115 = scmp.ne.s32.totalorder %s107, %s109
      %p116 = scmp.eq.s32.totalorder %s36, 1
      %p117 = por %p115, %p116
      %p118 = scmp.ne.s32.totalorder %s109, %s110
      %p119 = scmp.eq.s32.totalorder %s36, 0
      %p120 = por %p118, %p119
      %p121 = scmp.ne.s32.totalorder %s109, %s110
      %p122 = scmp.eq.s32.totalorder %s37, 1
      %p123 = por %p121, %p122
      %p125 = scmp.ne.s32.totalorder %s110, %s124
      %p126 = scmp.eq.s32.totalorder %s37, 0
      %p127 = por %p125, %p126
      %s129 = sadd.s32 %s128, 1
      %p132 = scmp.eq.s32.totalorder %s31, 1
      %p133 = scmp.ne.s32.totalorder %s128, %s130
      %p134 = scmp.eq.s32.totalorder %s31, 0
      %p135 = por %p133, %p134
      %p136 = scmp.ne.s32.totalorder %s128, %s130
      %p137 = scmp.eq.s32.totalorder %s36, 1
      %p138 = por %p136, %p137
      %p139 = scmp.ne.s32.totalorder %s130, %s131
      %p140 = scmp.eq.s32.totalorder %s36, 0
      %p141 = por %p139, %p140
      %p142 = scmp.ne.s32.totalorder %s130, %s131
      %p143 = scmp.eq.s32.totalorder %s37, 1
      %p144 = por %p142, %p143
      %p146 = scmp.ne.s32.totalorder %s131, %s145
      %p147 = scmp.eq.s32.totalorder %s37, 0
      %p148 = por %p146, %p147
      %s150 = sadd.s32 %s149, 1
      %p153 = scmp.eq.s32.totalorder %s31, 1
      %p154 = scmp.ne.s32.totalorder %s149, %s151
      %p155 = scmp.eq.s32.totalorder %s31, 0
      %p156 = por %p154, %p155
      %p157 = scmp.ne.s32.totalorder %s149, %s151
      %p158 = scmp.eq.s32.totalorder %s36, 1
      %p159 = por %p157, %p158
      %p160 = scmp.ne.s32.totalorder %s151, %s152
      %p161 = scmp.eq.s32.totalorder %s36, 0
      %p162 = por %p160, %p161
      %p163 = scmp.ne.s32.totalorder %s151, %s152
      %p164 = scmp.eq.s32.totalorder %s37, 1
      %p165 = por %p163, %p164
      %p167 = scmp.ne.s32.totalorder %s152, %s166
      %p168 = scmp.eq.s32.totalorder %s37, 0
      %p169 = por %p167, %p168
      %s171 = sadd.s32 %s170, 1
      %p174 = scmp.eq.s32.totalorder %s31, 1
      %p175 = scmp.ne.s32.totalorder %s170, %s172
      %p176 = scmp.eq.s32.totalorder %s31, 0
      %p177 = por %p175, %p176
      %p178 = scmp.ne.s32.totalorder %s170, %s172
      %p179 = scmp.eq.s32.totalorder %s36, 1
      %p180 = por %p178, %p179
      %p181 = scmp.ne.s32.totalorder %s172, %s173
      %p182 = scmp.eq.s32.totalorder %s36, 0
      %p183 = por %p181, %p182
      %p184 = scmp.ne.s32.totalorder %s172, %s173
      %p185 = scmp.eq.s32.totalorder %s37, 1
      %p186 = por %p184, %p185
      %p188 = scmp.ne.s32.totalorder %s173, %s187
      %p189 = scmp.eq.s32.totalorder %s37, 0
      %p190 = por %p188, %p189
      %s192 = sadd.s32 %s191, 1
      %p195 = scmp.eq.s32.totalorder %s31, 1
      %p196 = scmp.ne.s32.totalorder %s191, %s193
      %p197 = scmp.eq.s32.totalorder %s31, 0
      %p198 = por %p196, %p197
      %p199 = scmp.ne.s32.totalorder %s191, %s193
      %p200 = scmp.eq.s32.totalorder %s36, 1
      %p201 = por %p199, %p200
      %p202 = scmp.ne.s32.totalorder %s193, %s194
      %p203 = scmp.eq.s32.totalorder %s36, 0
      %p204 = por %p202, %p203
      %p205 = scmp.ne.s32.totalorder %s193, %s194
      %p206 = scmp.eq.s32.totalorder %s37, 1
      %p207 = por %p205, %p206
      %p209 = scmp.ne.s32.totalorder %s194, %s208
      %p210 = scmp.eq.s32.totalorder %s37, 0
      %p211 = por %p209, %p210
      %s213 = sadd.s32 %s212, 1
      %p216 = scmp.eq.s32.totalorder %s31, 1
      %p217 = scmp.ne.s32.totalorder %s212, %s214
      %p218 = scmp.eq.s32.totalorder %s31, 0
      %p219 = por %p217, %p218
      %p220 = scmp.ne.s32.totalorder %s212, %s214
      %p221 = scmp.eq.s32.totalorder %s36, 1
      %p222 = por %p220, %p221
      %p223 = scmp.ne.s32.totalorder %s214, %s215
      %p224 = scmp.eq.s32.totalorder %s36, 0
      %p225 = por %p223, %p224
      %p226 = scmp.ne.s32.totalorder %s214, %s215
      %p227 = scmp.eq.s32.totalorder %s37, 1
      %p228 = por %p226, %p227
      %p230 = scmp.ne.s32.totalorder %s215, %s229
      %p231 = scmp.eq.s32.totalorder %s37, 0
      %p232 = por %p230, %p231
      %s234 = sadd.s32 %s233, 1
      %p237 = scmp.eq.s32.totalorder %s31, 1
      %p238 = scmp.ne.s32.totalorder %s233, %s235
      %p239 = scmp.eq.s32.totalorder %s31, 0
      %p240 = por %p238, %p239
      %p241 = scmp.ne.s32.totalorder %s233, %s235
      %p242 = scmp.eq.s32.totalorder %s36, 1
      %p243 = por %p241, %p242
      %p244 = scmp.ne.s32.totalorder %s235, %s236
      %p245 = scmp.eq.s32.totalorder %s36, 0
      %p246 = por %p244, %p245
      %p247 = scmp.ne.s32.totalorder %s235, %s236
      %p248 = scmp.eq.s32.totalorder %s37, 1
      %p249 = por %p247, %p248
      %p251 = scmp.ne.s32.totalorder %s236, %s250
      %p252 = scmp.eq.s32.totalorder %s37, 0
      %p253 = por %p251, %p252
      %s255 = sadd.s32 %s254, 1
      %p258 = scmp.eq.s32.totalorder %s31, 1
      %p259 = scmp.ne.s32.totalorder %s254, %s256
      %p260 = scmp.eq.s32.totalorder %s31, 0
      %p261 = por %p259, %p260
      %p262 = scmp.ne.s32.totalorder %s254, %s256
      %p263 = scmp.eq.s32.totalorder %s36, 1
      %p264 = por %p262, %p263
      %p265 = scmp.ne.s32.totalorder %s256, %s257
      %p266 = scmp.eq.s32.totalorder %s36, 0
      %p267 = por %p265, %p266
      %p268 = scmp.ne.s32.totalorder %s256, %s257
      %p269 = scmp.eq.s32.totalorder %s37, 1
      %p270 = por %p268, %p269
      %p272 = scmp.ne.s32.totalorder %s257, %s271
      %p273 = scmp.eq.s32.totalorder %s37, 0
      %p274 = por %p272, %p273
      %s276 = sadd.s32 %s275, 1
      %p279 = scmp.eq.s32.totalorder %s31, 1
      %p280 = scmp.ne.s32.totalorder %s275, %s277
      %p281 = scmp.eq.s32.totalorder %s31, 0
      %p282 = por %p280, %p281
      %p283 = scmp.ne.s32.totalorder %s275, %s277
      %p284 = scmp.eq.s32.totalorder %s36, 1
      %p285 = por %p283, %p284
      %p286 = scmp.ne.s32.totalorder %s277, %s278
      %p287 = scmp.eq.s32.totalorder %s36, 0
      %p288 = por %p286, %p287
      %p289 = scmp.ne.s32.totalorder %s277, %s278
      %p290 = scmp.eq.s32.totalorder %s37, 1
      %p291 = por %p289, %p290
      %p293 = scmp.ne.s32.totalorder %s278, %s292
      %p294 = scmp.eq.s32.totalorder %s37, 0
      %p295 = por %p293, %p294
      %s297 = sadd.s32 %s296, 1
      %p300 = scmp.eq.s32.totalorder %s31, 1
      %p301 = scmp.ne.s32.totalorder %s296, %s298
      %p302 = scmp.eq.s32.totalorder %s31, 0
      %p303 = por %p301, %p302
      %p304 = scmp.ne.s32.totalorder %s296, %s298
      %p305 = scmp.eq.s32.totalorder %s36, 1
      %p306 = por %p304, %p305
      %p307 = scmp.ne.s32.totalorder %s298, %s299
      %p308 = scmp.eq.s32.totalorder %s36, 0
      %p309 = por %p307, %p308
      %p310 = scmp.ne.s32.totalorder %s298, %s299
      %p311 = scmp.eq.s32.totalorder %s37, 1
      %p312 = por %p310, %p311
      %p314 = scmp.ne.s32.totalorder %s299, %s313
      %p315 = scmp.eq.s32.totalorder %s37, 0
      %p316 = por %p314, %p315
      %s318 = sadd.s32 %s317, 1
      %p321 = scmp.eq.s32.totalorder %s31, 1
      %p322 = scmp.ne.s32.totalorder %s317, %s319
      %p323 = scmp.eq.s32.totalorder %s31, 0
      %p324 = por %p322, %p323
      %p325 = scmp.ne.s32.totalorder %s317, %s319
      %p326 = scmp.eq.s32.totalorder %s36, 1
      %p327 = por %p325, %p326
      %p328 = scmp.ne.s32.totalorder %s319, %s320
      %p329 = scmp.eq.s32.totalorder %s36, 0
      %p330 = por %p328, %p329
      %p331 = scmp.ne.s32.totalorder %s319, %s320
      %p332 = scmp.eq.s32.totalorder %s37, 1
      %p333 = por %p331, %p332
      %p335 = scmp.ne.s32.totalorder %s320, %s334
      %p336 = scmp.eq.s32.totalorder %s37, 0
      %p337 = por %p335, %p336
      %s339 = sadd.s32 %s338, 1
      %p342 = scmp.eq.s32.totalorder %s31, 1
      %p343 = scmp.ne.s32.totalorder %s338, %s340
      %p344 = scmp.eq.s32.totalorder %s31, 0
      %p345 = por %p343, %p344
      %p346 = scmp.ne.s32.totalorder %s338, %s340
      %p347 = scmp.eq.s32.totalorder %s36, 1
      %p348 = por %p346, %p347
      %p349 = scmp.ne.s32.totalorder %s340, %s341
      %p350 = scmp.eq.s32.totalorder %s36, 0
      %p351 = por %p349, %p350
      %p352 = scmp.ne.s32.totalorder %s340, %s341
      %p353 = scmp.eq.s32.totalorder %s37, 1
      %p354 = por %p352, %p353
      %p356 = scmp.ne.s32.totalorder %s341, %s355
      %p357 = scmp.eq.s32.totalorder %s37, 0
      %p358 = por %p356, %p357
      %s360 = sadd.s32 %s359, 1
      %p363 = scmp.eq.s32.totalorder %s31, 1
      %p364 = scmp.ne.s32.totalorder %s359, %s361
      %p365 = scmp.eq.s32.totalorder %s31, 0
      %p366 = por %p364, %p365
      %p367 = scmp.ne.s32.totalorder %s359, %s361
      %p368 = scmp.eq.s32.totalorder %s36, 1
      %p369 = por %p367, %p368
      %p370 = scmp.ne.s32.totalorder %s361, %s362
      %p371 = scmp.eq.s32.totalorder %s36, 0
      %p372 = por %p370, %p371
      %p373 = scmp.ne.s32.totalorder %s361, %s362
      %p374 = scmp.eq.s32.totalorder %s37, 1
      %p375 = por %p373, %p374
      %p377 = scmp.ne.s32.totalorder %s362, %s376
      %p378 = scmp.eq.s32.totalorder %s37, 0
      %p379 = por %p377, %p378
      %s381 = sadd.s32 %s380, 1
      %p384 = scmp.eq.s32.totalorder %s31, 1
      %p385 = scmp.ne.s32.totalorder %s380, %s382
      %p386 = scmp.eq.s32.totalorder %s31, 0
      %p387 = por %p385, %p386
      %p388 = scmp.ne.s32.totalorder %s380, %s382
      %p389 = scmp.eq.s32.totalorder %s36, 1
      %p390 = por %p388, %p389
      %p391 = scmp.ne.s32.totalorder %s382, %s383
      %p392 = scmp.eq.s32.totalorder %s36, 0
      %p393 = por %p391, %p392
      %p394 = scmp.ne.s32.totalorder %s382, %s383
      %p395 = scmp.eq.s32.totalorder %s37, 1
      %p396 = por %p394, %p395
      %p398 = scmp.ne.s32.totalorder %s383, %s397
      %p399 = scmp.eq.s32.totalorder %s37, 0
      %p400 = por %p398, %p399
      %s401 = ssub.s32 %s31, %s38
      %p402 = scmp.eq.s32.totalorder %s401, 0
      %s404 = sadd.s32 %s403, 1
      %s405 = scalar_select %p402, %s403, %s404
      %p408 = pneg %p402
      %p409 = scmp.eq.s32.totalorder %s31, 1
      %p410 = por %p408, %p409
      %p411 = scmp.ne.s32.totalorder %s403, %s406
      %p412 = scmp.eq.s32.totalorder %s31, 0
      %p413 = por %p411, %p412
      %p414 = scmp.ne.s32.totalorder %s403, %s406
      %p415 = scmp.eq.s32.totalorder %s36, 1
      %p416 = por %p414, %p415
      %p417 = scmp.ne.s32.totalorder %s406, %s407
      %p418 = scmp.eq.s32.totalorder %s36, 0
      %p419 = por %p417, %p418
      %p420 = scmp.ne.s32.totalorder %s406, %s407
      %p421 = scmp.eq.s32.totalorder %s37, 1
      %p422 = por %p420, %p421
      %p424 = scmp.ne.s32.totalorder %s407, %s423
      %p425 = scmp.eq.s32.totalorder %s37, 0
      %p426 = por %p424, %p425
      %p427 = scmp.le.s32.totalorder 1, %s31
      %p428 = scmp.lt.s32.totalorder %s31, 3
      %p429 = pnand %p427, %p428
      %p430 = pneg %p429
      // Predicated region
      $region9: #{tpu_custom_call.1} parent=5 // pred_check
        _
      $region10: #{tpu_custom_call.1} parent=5 // pred_check_branch
        %432 = sbr.rel (%p429) target = $region12
      $region11: #{tpu_custom_call.1} parent=5 // pred_region
        %s433 = ssub.s32 %s31, 1
        // Predicated region
        $region13: #{tpu_custom_call.1} parent=11 // pred_check
          %p434 = pneg %p78
        $region14: #{tpu_custom_call.1} parent=11 // pred_check_branch
          %436 = sbr.rel (%p434) target = $region16
        $region15: #{tpu_custom_call.1} parent=11 // pred_region
          _
        $region16: #{tpu_custom_call.1} parent=11 // pred_fallthru
          _
        // Predicated region
        $region17: #{tpu_custom_call.1} parent=11 // pred_check
          %p437 = pneg %p99
        $region18: #{tpu_custom_call.1} parent=11 // pred_check_branch
          %439 = sbr.rel (%p437) target = $region20
        $region19: #{tpu_custom_call.1} parent=11 // pred_region
          _
        $region20: #{tpu_custom_call.1} parent=11 // pred_fallthru
          _
        // Predicated region
        $region21: #{tpu_custom_call.1} parent=11 // pred_check
          %p440 = pneg %p120
        $region22: #{tpu_custom_call.1} parent=11 // pred_check_branch
          %442 = sbr.rel (%p440) target = $region24
        $region23: #{tpu_custom_call.1} parent=11 // pred_region
          _
        $region24: #{tpu_custom_call.1} parent=11 // pred_fallthru
          _
        // Predicated region
        $region25: #{tpu_custom_call.1} parent=11 // pred_check
          %p443 = pneg %p141
        $region26: #{tpu_custom_call.1} parent=11 // pred_check_branch
          %445 = sbr.rel (%p443) target = $region28
        $region27: #{tpu_custom_call.1} parent=11 // pred_region
          _
        $region28: #{tpu_custom_call.1} parent=11 // pred_fallthru
          _
        // Predicated region
        $region29: #{tpu_custom_call.1} parent=11 // pred_check
          %p446 = pneg %p162
        $region30: #{tpu_custom_call.1} parent=11 // pred_check_branch
          %448 = sbr.rel (%p446) target = $region32
        $region31: #{tpu_custom_call.1} parent=11 // pred_region
          _
        $region32: #{tpu_custom_call.1} parent=11 // pred_fallthru
          _
        // Predicated region
        $region33: #{tpu_custom_call.1} parent=11 // pred_check
          %p449 = pneg %p183
        $region34: #{tpu_custom_call.1} parent=11 // pred_check_branch
          %451 = sbr.rel (%p449) target = $region36
        $region35: #{tpu_custom_call.1} parent=11 // pred_region
          _
        $region36: #{tpu_custom_call.1} parent=11 // pred_fallthru
          _
        // Predicated region
        $region37: #{tpu_custom_call.1} parent=11 // pred_check
          %p452 = pneg %p204
        $region38: #{tpu_custom_call.1} parent=11 // pred_check_branch
          %454 = sbr.rel (%p452) target = $region40
        $region39: #{tpu_custom_call.1} parent=11 // pred_region
          _
        $region40: #{tpu_custom_call.1} parent=11 // pred_fallthru
          _
        // Predicated region
        $region41: #{tpu_custom_call.1} parent=11 // pred_check
          %p455 = pneg %p225
        $region42: #{tpu_custom_call.1} parent=11 // pred_check_branch
          %457 = sbr.rel (%p455) target = $region44
        $region43: #{tpu_custom_call.1} parent=11 // pred_region
          _
        $region44: #{tpu_custom_call.1} parent=11 // pred_fallthru
          _
        // Predicated region
        $region45: #{tpu_custom_call.1} parent=11 // pred_check
          %p458 = pneg %p246
        $region46: #{tpu_custom_call.1} parent=11 // pred_check_branch
          %460 = sbr.rel (%p458) target = $region48
        $region47: #{tpu_custom_call.1} parent=11 // pred_region
          %s462 = ssub.s32 2048, 2048
          %463 = vsyncadd [#allocation6], %s462
          %s464 = sshll.u32 [#allocation5], 4
          %s465 = int_to_ptr.vmem [resolvable:$true] %s464
          %470 = dma.hbm_to_vmem [thread:$0]  %s9, 2048, %s465, [#allocation6], 128, 128, 8
        $region48: #{tpu_custom_call.1} parent=11 // pred_fallthru
          _
        // Predicated region
        $region49: #{tpu_custom_call.1} parent=11 // pred_check
          %p471 = pneg %p267
        $region50: #{tpu_custom_call.1} parent=11 // pred_check_branch
          %473 = sbr.rel (%p471) target = $region52
        $region51: #{tpu_custom_call.1} parent=11 // pred_region
          _
        $region52: #{tpu_custom_call.1} parent=11 // pred_fallthru
          _
        // Predicated region
        $region53: #{tpu_custom_call.1} parent=11 // pred_check
          %p474 = pneg %p288
        $region54: #{tpu_custom_call.1} parent=11 // pred_check_branch
          %476 = sbr.rel (%p474) target = $region56
        $region55: #{tpu_custom_call.1} parent=11 // pred_region
          _
        $region56: #{tpu_custom_call.1} parent=11 // pred_fallthru
          _
        // Predicated region
        $region57: #{tpu_custom_call.1} parent=11 // pred_check
          %p477 = pneg %p309
        $region58: #{tpu_custom_call.1} parent=11 // pred_check_branch
          %479 = sbr.rel (%p477) target = $region60
        $region59: #{tpu_custom_call.1} parent=11 // pred_region
          _
        $region60: #{tpu_custom_call.1} parent=11 // pred_fallthru
          _
        // Predicated region
        $region61: #{tpu_custom_call.1} parent=11 // pred_check
          %p480 = pneg %p330
        $region62: #{tpu_custom_call.1} parent=11 // pred_check_branch
          %482 = sbr.rel (%p480) target = $region64
        $region63: #{tpu_custom_call.1} parent=11 // pred_region
          %s484 = ssub.s32 8192, 8192
          %485 = vsyncadd [#allocation6], %s484
          %s486 = sshll.u32 [#allocation7], 4
          %s487 = int_to_ptr.vmem [resolvable:$true] %s486
          %492 = dma.hbm_to_vmem [thread:$0]  %s13, 8192, %s487, [#allocation6], 512, 512, 32
        $region64: #{tpu_custom_call.1} parent=11 // pred_fallthru
          _
        // Predicated region
        $region65: #{tpu_custom_call.1} parent=11 // pred_check
          %p493 = pneg %p351
        $region66: #{tpu_custom_call.1} parent=11 // pred_check_branch
          %495 = sbr.rel (%p493) target = $region68
        $region67: #{tpu_custom_call.1} parent=11 // pred_region
          _
        $region68: #{tpu_custom_call.1} parent=11 // pred_fallthru
          _
        // Predicated region
        $region69: #{tpu_custom_call.1} parent=11 // pred_check
          %p496 = pneg %p372
        $region70: #{tpu_custom_call.1} parent=11 // pred_check_branch
          %498 = sbr.rel (%p496) target = $region72
        $region71: #{tpu_custom_call.1} parent=11 // pred_region
          %s500 = ssub.s32 8192, 8192
          %501 = vsyncadd [#allocation9], %s500
          %s502 = sshll.u32 [#allocation8], 4
          %s503 = int_to_ptr.vmem [resolvable:$true] %s502
          %508 = dma.hbm_to_vmem [thread:$0]  %s15, 8192, %s503, [#allocation9], 128, 128, 8
        $region72: #{tpu_custom_call.1} parent=11 // pred_fallthru
          _
        // Predicated region
        $region73: #{tpu_custom_call.1} parent=11 // pred_check
          %p509 = pneg %p393
        $region74: #{tpu_custom_call.1} parent=11 // pred_check_branch
          %511 = sbr.rel (%p509) target = $region76
        $region75: #{tpu_custom_call.1} parent=11 // pred_region
          _
        $region76: #{tpu_custom_call.1} parent=11 // pred_fallthru
          _
      $region12: #{tpu_custom_call.1} parent=5 // pred_fallthru
        _
      %p512 = scmp.lt.s32.totalorder %s31, 2
      // Predicated region
      $region77: #{tpu_custom_call.1} parent=5 // pred_check
        %p513 = pneg %p512
      $region78: #{tpu_custom_call.1} parent=5 // pred_check_branch
        %515 = sbr.rel (%p513) target = $region80
      $region79: #{tpu_custom_call.1} parent=5 // pred_region
        // Predicated region
        $region81: #{tpu_custom_call.1} parent=79 // pred_check
          %p516 = pneg %p51
        $region82: #{tpu_custom_call.1} parent=79 // pred_check_branch
          %518 = sbr.rel (%p516) target = $region84
        $region83: #{tpu_custom_call.1} parent=79 // pred_region
          %s519 = sand.u32 %s41, 1
          %s520 = scalar_lea.sflag [#allocation3], %s519
          %s521 = sand.u32 %s41, 1
          %s522 = smul.addr %s521, 256
          %s523 = scalar_lea.vmem [#allocation2], %s522
          %s524 = smul.u32 4, %s31
          %s526 = ssub.s32 4096, 4096
          %527 = vsyncadd %s520, %s526
          %s528 = smul.addr %s524, 8
          %s529 = smul.addr %s528, 128
          %s530 = scalar_lea.hbm %s0, %s529
          %s531 = sshll.u32 %s523, 4
          %s532 = int_to_ptr.vmem [resolvable:$true] %s531
          %537 = dma.hbm_to_vmem [thread:$0]  %s530, 4096, %s532, %s520, 128, 128, 8
        $region84: #{tpu_custom_call.1} parent=79 // pred_fallthru
          _
      $region80: #{tpu_custom_call.1} parent=5 // pred_fallthru
        _
      %p538 = scmp.le.s32.totalorder 1, %s31
      %p539 = scmp.lt.s32.totalorder %s31, 3
      %p540 = pnand %p538, %p539
      %p541 = pneg %p540
      // Predicated region
      $region85: #{tpu_custom_call.1} parent=5 // pred_check
        _
      $region86: #{tpu_custom_call.1} parent=5 // pred_check_branch
        %543 = sbr.rel (%p540) target = $region88
      $region87: #{tpu_custom_call.1} parent=5 // pred_region
        %s544 = ssub.s32 %s31, 1
        %s545 = sand.u32 %s44, 1
        %s546 = scalar_lea.sflag [#allocation3], %s545
        %s547 = sand.u32 %s44, 1
        %s548 = smul.addr %s547, 256
        %s549 = scalar_lea.vmem [#allocation2], %s548
        // Predicated region
        $region89: #{tpu_custom_call.1} parent=87 // pred_check
          %p550 = pneg %p57
        $region90: #{tpu_custom_call.1} parent=87 // pred_check_branch
          %552 = sbr.rel (%p550) target = $region92
        $region91: #{tpu_custom_call.1} parent=87 // pred_region
          %553 = dma.done %s546, 4096
        $region92: #{tpu_custom_call.1} parent=87 // pred_fallthru
          _
        // Predicated region
        $region93: #{tpu_custom_call.1} parent=87 // pred_check
          %p554 = pneg %p246
        $region94: #{tpu_custom_call.1} parent=87 // pred_check_branch
          %556 = sbr.rel (%p554) target = $region96
        $region95: #{tpu_custom_call.1} parent=87 // pred_region
          %557 = dma.done [#allocation6], 2048
        $region96: #{tpu_custom_call.1} parent=87 // pred_fallthru
          _
        // Predicated region
        $region97: #{tpu_custom_call.1} parent=87 // pred_check
          %p558 = pneg %p330
        $region98: #{tpu_custom_call.1} parent=87 // pred_check_branch
          %560 = sbr.rel (%p558) target = $region100
        $region99: #{tpu_custom_call.1} parent=87 // pred_region
          %561 = dma.done [#allocation6], 8192
        $region100: #{tpu_custom_call.1} parent=87 // pred_fallthru
          _
        // Predicated region
        $region101: #{tpu_custom_call.1} parent=87 // pred_check
          %p562 = pneg %p372
        $region102: #{tpu_custom_call.1} parent=87 // pred_check_branch
          %564 = sbr.rel (%p562) target = $region104
        $region103: #{tpu_custom_call.1} parent=87 // pred_region
          %565 = dma.done [#allocation9], 8192
        $region104: #{tpu_custom_call.1} parent=87 // pred_fallthru
          _
        %s566 = sand.u32 %s44, 1
        %s567 = scalar_lea.sflag [#allocation3], %s566
        %s568 = sand.u32 %s44, 1
        %s569 = smul.addr %s568, 256
        %s570 = scalar_lea.vmem [#allocation2], %s569
        %p571 = pneg %p57
        %p572 = pneg %p54
        %p573 = pneg %p78
        %p574 = pneg %p75
        %p575 = pneg %p99
        %p576 = pneg %p96
        %p577 = pneg %p120
        %p578 = pneg %p117
        %p579 = pneg %p141
        %p580 = pneg %p138
        %p581 = pneg %p162
        %p582 = pneg %p159
        %p583 = pneg %p183
        %p584 = pneg %p180
        %p585 = pneg %p204
        %p586 = pneg %p201
        %p587 = pneg %p225
        %p588 = pneg %p222
        %p589 = pneg %p246
        %p590 = pneg %p243
        %p591 = pneg %p267
        %p592 = pneg %p264
        %p593 = pneg %p288
        %p594 = pneg %p285
        %p595 = pneg %p309
        %p596 = pneg %p306
        %p597 = pneg %p330
        %p598 = pneg %p327
        %p599 = pneg %p351
        %p600 = pneg %p348
        %p601 = pneg %p372
        %p602 = pneg %p369
        %p603 = pneg %p393
        %p604 = pneg %p390
        %p605 = pneg %p419
        %p606 = pneg %p416
        %s607 = sand.u32 %s406, 1
        %s608 = scalar_lea.sflag [#allocation4], %s607
        %s609 = sand.u32 %s406, 1
        %s610 = smul.addr %s609, 4
        %s611 = scalar_lea.vmem [#allocation10], %s610
        %s612 = smul.u32 4, %s36
        %s613 = smul.u32 4, %s36
        %v614 = vld [vmem:[%s549] sm:$0xff]
        %v615 = vld [vmem:[%s549 + $0x8] sm:$0xff]
        %v616 = vld [vmem:[%s549 + $0x10] sm:$0xff]
        %v617 = vld [vmem:[%s549 + $0x18] sm:$0xff]
        %v618 = vld [vmem:[%s549 + $0x20] sm:$0xff]
        %v619 = vld [vmem:[%s549 + $0x28] sm:$0xff]
        %v620 = vld [vmem:[%s549 + $0x30] sm:$0xff]
        %v621 = vld [vmem:[%s549 + $0x38] sm:$0xff]
        %v622 = vld [vmem:[%s549 + $0x40] sm:$0xff]
        %v623 = vld [vmem:[%s549 + $0x48] sm:$0xff]
        %v624 = vld [vmem:[%s549 + $0x50] sm:$0xff]
        %v625 = vld [vmem:[%s549 + $0x58] sm:$0xff]
        %v626 = vld [vmem:[%s549 + $0x60] sm:$0xff]
        %v627 = vld [vmem:[%s549 + $0x68] sm:$0xff]
        %v628 = vld [vmem:[%s549 + $0x70] sm:$0xff]
        %v629 = vld [vmem:[%s549 + $0x78] sm:$0xff]
        %v630 = vld [vmem:[%s549 + $0x80] sm:$0xff]
        %v631 = vld [vmem:[%s549 + $0x88] sm:$0xff]
        %v632 = vld [vmem:[%s549 + $0x90] sm:$0xff]
        %v633 = vld [vmem:[%s549 + $0x98] sm:$0xff]
        %v634 = vld [vmem:[%s549 + $0xa0] sm:$0xff]
        %v635 = vld [vmem:[%s549 + $0xa8] sm:$0xff]
        %v636 = vld [vmem:[%s549 + $0xb0] sm:$0xff]
        %v637 = vld [vmem:[%s549 + $0xb8] sm:$0xff]
        %v638 = vld [vmem:[%s549 + $0xc0] sm:$0xff]
        %v639 = vld [vmem:[%s549 + $0xc8] sm:$0xff]
        %v640 = vld [vmem:[%s549 + $0xd0] sm:$0xff]
        %v641 = vld [vmem:[%s549 + $0xd8] sm:$0xff]
        %v642 = vld [vmem:[%s549 + $0xe0] sm:$0xff]
        %v643 = vld [vmem:[%s549 + $0xe8] sm:$0xff]
        %v644 = vld [vmem:[%s549 + $0xf0] sm:$0xff]
        %v645 = vld [vmem:[%s549 + $0xf8] sm:$0xff]
        %v646 = vld [vmem:[%s5] sm:$0x1]
        %v647 = vld [vmem:[%s6] sm:$0x1]
        %648 = vadd.xlane.f32.xlu0 %v614
        %v649 = vpop.xlane.xlu0 %648
        %650 = vadd.xlane.f32.xlu0 %v615
        %v651 = vpop.xlane.xlu0 %650
        %652 = vadd.xlane.f32.xlu0 %v616
        %v653 = vpop.xlane.xlu0 %652
        %654 = vadd.xlane.f32.xlu0 %v617
        %v655 = vpop.xlane.xlu0 %654
        %656 = vadd.xlane.f32.xlu0 %v618
        %v657 = vpop.xlane.xlu0 %656
        %658 = vadd.xlane.f32.xlu0 %v619
        %v659 = vpop.xlane.xlu0 %658
        %660 = vadd.xlane.f32.xlu0 %v620
        %v661 = vpop.xlane.xlu0 %660
        %662 = vadd.xlane.f32.xlu0 %v621
        %v663 = vpop.xlane.xlu0 %662
        %664 = vadd.xlane.f32.xlu0 %v622
        %v665 = vpop.xlane.xlu0 %664
        %666 = vadd.xlane.f32.xlu0 %v623
        %v667 = vpop.xlane.xlu0 %666
        %668 = vadd.xlane.f32.xlu0 %v624
        %v669 = vpop.xlane.xlu0 %668
        %670 = vadd.xlane.f32.xlu0 %v625
        %v671 = vpop.xlane.xlu0 %670
        %672 = vadd.xlane.f32.xlu0 %v626
        %v673 = vpop.xlane.xlu0 %672
        %674 = vadd.xlane.f32.xlu0 %v627
        %v675 = vpop.xlane.xlu0 %674
        %676 = vadd.xlane.f32.xlu0 %v628
        %v677 = vpop.xlane.xlu0 %676
        %678 = vadd.xlane.f32.xlu0 %v629
        %v679 = vpop.xlane.xlu0 %678
        %680 = vadd.xlane.f32.xlu0 %v630
        %v681 = vpop.xlane.xlu0 %680
        %682 = vadd.xlane.f32.xlu0 %v631
        %v683 = vpop.xlane.xlu0 %682
        %684 = vadd.xlane.f32.xlu0 %v632
        %v685 = vpop.xlane.xlu0 %684
        %686 = vadd.xlane.f32.xlu0 %v633
        %v687 = vpop.xlane.xlu0 %686
        %688 = vadd.xlane.f32.xlu0 %v634
        %v689 = vpop.xlane.xlu0 %688
        %690 = vadd.xlane.f32.xlu0 %v635
        %v691 = vpop.xlane.xlu0 %690
        %692 = vadd.xlane.f32.xlu0 %v636
        %v693 = vpop.xlane.xlu0 %692
        %694 = vadd.xlane.f32.xlu0 %v637
        %v695 = vpop.xlane.xlu0 %694
        %696 = vadd.xlane.f32.xlu0 %v638
        %v697 = vpop.xlane.xlu0 %696
        %698 = vadd.xlane.f32.xlu0 %v639
        %v699 = vpop.xlane.xlu0 %698
        %700 = vadd.xlane.f32.xlu0 %v640
        %v701 = vpop.xlane.xlu0 %700
        %702 = vadd.xlane.f32.xlu0 %v641
        %v703 = vpop.xlane.xlu0 %702
        %704 = vadd.xlane.f32.xlu0 %v642
        %v705 = vpop.xlane.xlu0 %704
        %706 = vadd.xlane.f32.xlu0 %v643
        %v707 = vpop.xlane.xlu0 %706
        %708 = vadd.xlane.f32.xlu0 %v644
        %v709 = vpop.xlane.xlu0 %708
        %710 = vadd.xlane.f32.xlu0 %v645
        %v711 = vpop.xlane.xlu0 %710
        %v712 = vrcp.pop 128.0
        %v713 = vmul.f32 %v649, %v712
        %v714 = vmul.f32 %v651, %v712
        %v715 = vmul.f32 %v653, %v712
        %v716 = vmul.f32 %v655, %v712
        %v717 = vmul.f32 %v657, %v712
        %v718 = vmul.f32 %v659, %v712
        %v719 = vmul.f32 %v661, %v712
        %v720 = vmul.f32 %v663, %v712
        %v721 = vmul.f32 %v665, %v712
        %v722 = vmul.f32 %v667, %v712
        %v723 = vmul.f32 %v669, %v712
        %v724 = vmul.f32 %v671, %v712
        %v725 = vmul.f32 %v673, %v712
        %v726 = vmul.f32 %v675, %v712
        %v727 = vmul.f32 %v677, %v712
        %v728 = vmul.f32 %v679, %v712
        %v729 = vmul.f32 %v681, %v712
        %v730 = vmul.f32 %v683, %v712
        %v731 = vmul.f32 %v685, %v712
        %v732 = vmul.f32 %v687, %v712
        %v733 = vmul.f32 %v689, %v712
        %v734 = vmul.f32 %v691, %v712
        %v735 = vmul.f32 %v693, %v712
        %v736 = vmul.f32 %v695, %v712
        %v737 = vmul.f32 %v697, %v712
        %v738 = vmul.f32 %v699, %v712
        %v739 = vmul.f32 %v701, %v712
        %v740 = vmul.f32 %v703, %v712
        %v741 = vmul.f32 %v705, %v712
        %v742 = vmul.f32 %v707, %v712
        %v743 = vmul.f32 %v709, %v712
        %v744 = vmul.f32 %v711, %v712
        %v745 = vsub.f32 %v614, %v713
        %v746 = vsub.f32 %v615, %v714
        %v747 = vsub.f32 %v616, %v715
        %v748 = vsub.f32 %v617, %v716
        %v749 = vsub.f32 %v618, %v717
        %v750 = vsub.f32 %v619, %v718
        %v751 = vsub.f32 %v620, %v719
        %v752 = vsub.f32 %v621, %v720
        %v753 = vsub.f32 %v622, %v721
        %v754 = vsub.f32 %v623, %v722
        %v755 = vsub.f32 %v624, %v723
        %v756 = vsub.f32 %v625, %v724
        %v757 = vsub.f32 %v626, %v725
        %v758 = vsub.f32 %v627, %v726
        %v759 = vsub.f32 %v628, %v727
        %v760 = vsub.f32 %v629, %v728
        %v761 = vsub.f32 %v630, %v729
        %v762 = vsub.f32 %v631, %v730
        %v763 = vsub.f32 %v632, %v731
        %v764 = vsub.f32 %v633, %v732
        %v765 = vsub.f32 %v634, %v733
        %v766 = vsub.f32 %v635, %v734
        %v767 = vsub.f32 %v636, %v735
        %v768 = vsub.f32 %v637, %v736
        %v769 = vsub.f32 %v638, %v737
        %v770 = vsub.f32 %v639, %v738
        %v771 = vsub.f32 %v640, %v739
        %v772 = vsub.f32 %v641, %v740
        %v773 = vsub.f32 %v642, %v741
        %v774 = vsub.f32 %v643, %v742
        %v775 = vsub.f32 %v644, %v743
        %v776 = vsub.f32 %v645, %v744
        %v777 = vmul.f32 %v745, %v745
        %v778 = vmul.f32 %v746, %v746
        %v779 = vmul.f32 %v747, %v747
        %v780 = vmul.f32 %v748, %v748
        %v781 = vmul.f32 %v749, %v749
        %v782 = vmul.f32 %v750, %v750
        %v783 = vmul.f32 %v751, %v751
        %v784 = vmul.f32 %v752, %v752
        %v785 = vmul.f32 %v753, %v753
        %v786 = vmul.f32 %v754, %v754
        %v787 = vmul.f32 %v755, %v755
        %v788 = vmul.f32 %v756, %v756
        %v789 = vmul.f32 %v757, %v757
        %v790 = vmul.f32 %v758, %v758
        %v791 = vmul.f32 %v759, %v759
        %v792 = vmul.f32 %v760, %v760
        %v793 = vmul.f32 %v761, %v761
        %v794 = vmul.f32 %v762, %v762
        %v795 = vmul.f32 %v763, %v763
        %v796 = vmul.f32 %v764, %v764
        %v797 = vmul.f32 %v765, %v765
        %v798 = vmul.f32 %v766, %v766
        %v799 = vmul.f32 %v767, %v767
        %v800 = vmul.f32 %v768, %v768
        %v801 = vmul.f32 %v769, %v769
        %v802 = vmul.f32 %v770, %v770
        %v803 = vmul.f32 %v771, %v771
        %v804 = vmul.f32 %v772, %v772
        %v805 = vmul.f32 %v773, %v773
        %v806 = vmul.f32 %v774, %v774
        %v807 = vmul.f32 %v775, %v775
        %v808 = vmul.f32 %v776, %v776
        %809 = vadd.xlane.f32.xlu0 %v777
        %v810 = vpop.xlane.xlu0 %809
        %811 = vadd.xlane.f32.xlu0 %v778
        %v812 = vpop.xlane.xlu0 %811
        %813 = vadd.xlane.f32.xlu0 %v779
        %v814 = vpop.xlane.xlu0 %813
        %815 = vadd.xlane.f32.xlu0 %v780
        %v816 = vpop.xlane.xlu0 %815
        %817 = vadd.xlane.f32.xlu0 %v781
        %v818 = vpop.xlane.xlu0 %817
        %819 = vadd.xlane.f32.xlu0 %v782
        %v820 = vpop.xlane.xlu0 %819
        %821 = vadd.xlane.f32.xlu0 %v783
        %v822 = vpop.xlane.xlu0 %821
        %823 = vadd.xlane.f32.xlu0 %v784
        %v824 = vpop.xlane.xlu0 %823
        %825 = vadd.xlane.f32.xlu0 %v785
        %v826 = vpop.xlane.xlu0 %825
        %827 = vadd.xlane.f32.xlu0 %v786
        %v828 = vpop.xlane.xlu0 %827
        %829 = vadd.xlane.f32.xlu0 %v787
        %v830 = vpop.xlane.xlu0 %829
        %831 = vadd.xlane.f32.xlu0 %v788
        %v832 = vpop.xlane.xlu0 %831
        %833 = vadd.xlane.f32.xlu0 %v789
        %v834 = vpop.xlane.xlu0 %833
        %835 = vadd.xlane.f32.xlu0 %v790
        %v836 = vpop.xlane.xlu0 %835
        %837 = vadd.xlane.f32.xlu0 %v791
        %v838 = vpop.xlane.xlu0 %837
        %839 = vadd.xlane.f32.xlu0 %v792
        %v840 = vpop.xlane.xlu0 %839
        %841 = vadd.xlane.f32.xlu0 %v793
        %v842 = vpop.xlane.xlu0 %841
        %843 = vadd.xlane.f32.xlu0 %v794
        %v844 = vpop.xlane.xlu0 %843
        %845 = vadd.xlane.f32.xlu0 %v795
        %v846 = vpop.xlane.xlu0 %845
        %847 = vadd.xlane.f32.xlu0 %v796
        %v848 = vpop.xlane.xlu0 %847
        %849 = vadd.xlane.f32.xlu0 %v797
        %v850 = vpop.xlane.xlu0 %849
        %851 = vadd.xlane.f32.xlu0 %v798
        %v852 = vpop.xlane.xlu0 %851
        %853 = vadd.xlane.f32.xlu0 %v799
        %v854 = vpop.xlane.xlu0 %853
        %855 = vadd.xlane.f32.xlu0 %v800
        %v856 = vpop.xlane.xlu0 %855
        %857 = vadd.xlane.f32.xlu0 %v801
        %v858 = vpop.xlane.xlu0 %857
        %859 = vadd.xlane.f32.xlu0 %v802
        %v860 = vpop.xlane.xlu0 %859
        %861 = vadd.xlane.f32.xlu0 %v803
        %v862 = vpop.xlane.xlu0 %861
        %863 = vadd.xlane.f32.xlu0 %v804
        %v864 = vpop.xlane.xlu0 %863
        %865 = vadd.xlane.f32.xlu0 %v805
        %v866 = vpop.xlane.xlu0 %865
        %867 = vadd.xlane.f32.xlu0 %v806
        %v868 = vpop.xlane.xlu0 %867
        %869 = vadd.xlane.f32.xlu0 %v807
        %v870 = vpop.xlane.xlu0 %869
        %871 = vadd.xlane.f32.xlu0 %v808
        %v872 = vpop.xlane.xlu0 %871
        %v873 = vmul.f32 %v810, %v712
        %v874 = vmul.f32 %v812, %v712
        %v875 = vmul.f32 %v814, %v712
        %v876 = vmul.f32 %v816, %v712
        %v877 = vmul.f32 %v818, %v712
        %v878 = vmul.f32 %v820, %v712
        %v879 = vmul.f32 %v822, %v712
        %v880 = vmul.f32 %v824, %v712
        %v881 = vmul.f32 %v826, %v712
        %v882 = vmul.f32 %v828, %v712
        %v883 = vmul.f32 %v830, %v712
        %v884 = vmul.f32 %v832, %v712
        %v885 = vmul.f32 %v834, %v712
        %v886 = vmul.f32 %v836, %v712
        %v887 = vmul.f32 %v838, %v712
        %v888 = vmul.f32 %v840, %v712
        %v889 = vmul.f32 %v842, %v712
        %v890 = vmul.f32 %v844, %v712
        %v891 = vmul.f32 %v846, %v712
        %v892 = vmul.f32 %v848, %v712
        %v893 = vmul.f32 %v850, %v712
        %v894 = vmul.f32 %v852, %v712
        %v895 = vmul.f32 %v854, %v712
        %v896 = vmul.f32 %v856, %v712
        %v897 = vmul.f32 %v858, %v712
        %v898 = vmul.f32 %v860, %v712
        %v899 = vmul.f32 %v862, %v712
        %v900 = vmul.f32 %v864, %v712
        %v901 = vmul.f32 %v866, %v712
        %v902 = vmul.f32 %v868, %v712
        %v903 = vmul.f32 %v870, %v712
        %v904 = vmul.f32 %v872, %v712
        %v905 = vadd.f32 %v873, 1e-06
        %v906 = vadd.f32 %v874, 1e-06
        %v907 = vadd.f32 %v875, 1e-06
        %v908 = vadd.f32 %v876, 1e-06
        %v909 = vadd.f32 %v877, 1e-06
        %v910 = vadd.f32 %v878, 1e-06
        %v911 = vadd.f32 %v879, 1e-06
        %v912 = vadd.f32 %v880, 1e-06
        %v913 = vadd.f32 %v881, 1e-06
        %v914 = vadd.f32 %v882, 1e-06
        %v915 = vadd.f32 %v883, 1e-06
        %v916 = vadd.f32 %v884, 1e-06
        %v917 = vadd.f32 %v885, 1e-06
        %v918 = vadd.f32 %v886, 1e-06
        %v919 = vadd.f32 %v887, 1e-06
        %v920 = vadd.f32 %v888, 1e-06
        %v921 = vadd.f32 %v889, 1e-06
        %v922 = vadd.f32 %v890, 1e-06
        %v923 = vadd.f32 %v891, 1e-06
        %v924 = vadd.f32 %v892, 1e-06
        %v925 = vadd.f32 %v893, 1e-06
        %v926 = vadd.f32 %v894, 1e-06
        %v927 = vadd.f32 %v895, 1e-06
        %v928 = vadd.f32 %v896, 1e-06
        %v929 = vadd.f32 %v897, 1e-06
        %v930 = vadd.f32 %v898, 1e-06
        %v931 = vadd.f32 %v899, 1e-06
        %v932 = vadd.f32 %v900, 1e-06
        %v933 = vadd.f32 %v901, 1e-06
        %v934 = vadd.f32 %v902, 1e-06
        %v935 = vadd.f32 %v903, 1e-06
        %v936 = vadd.f32 %v904, 1e-06
        %v937 = vrsqrt.pop %v905
        %v938 = vrsqrt.pop %v906
        %v939 = vrsqrt.pop %v907
        %v940 = vrsqrt.pop %v908
        %v941 = vrsqrt.pop %v909
        %v942 = vrsqrt.pop %v910
        %v943 = vrsqrt.pop %v911
        %v944 = vrsqrt.pop %v912
        %v945 = vrsqrt.pop %v913
        %v946 = vrsqrt.pop %v914
        %v947 = vrsqrt.pop %v915
        %v948 = vrsqrt.pop %v916
        %v949 = vrsqrt.pop %v917
        %v950 = vrsqrt.pop %v918
        %v951 = vrsqrt.pop %v919
        %v952 = vrsqrt.pop %v920
        %v953 = vrsqrt.pop %v921
        %v954 = vrsqrt.pop %v922
        %v955 = vrsqrt.pop %v923
        %v956 = vrsqrt.pop %v924
        %v957 = vrsqrt.pop %v925
        %v958 = vrsqrt.pop %v926
        %v959 = vrsqrt.pop %v927
        %v960 = vrsqrt.pop %v928
        %v961 = vrsqrt.pop %v929
        %v962 = vrsqrt.pop %v930
        %v963 = vrsqrt.pop %v931
        %v964 = vrsqrt.pop %v932
        %v965 = vrsqrt.pop %v933
        %v966 = vrsqrt.pop %v934
        %v967 = vrsqrt.pop %v935
        %v968 = vrsqrt.pop %v936
        %v969 = vmul.f32 %v745, %v937
        %v970 = vmul.f32 %v746, %v938
        %v971 = vmul.f32 %v747, %v939
        %v972 = vmul.f32 %v748, %v940
        %v973 = vmul.f32 %v749, %v941
        %v974 = vmul.f32 %v750, %v942
        %v975 = vmul.f32 %v751, %v943
        %v976 = vmul.f32 %v752, %v944
        %v977 = vmul.f32 %v753, %v945
        %v978 = vmul.f32 %v754, %v946
        %v979 = vmul.f32 %v755, %v947
        %v980 = vmul.f32 %v756, %v948
        %v981 = vmul.f32 %v757, %v949
        %v982 = vmul.f32 %v758, %v950
        %v983 = vmul.f32 %v759, %v951
        %v984 = vmul.f32 %v760, %v952
        %v985 = vmul.f32 %v761, %v953
        %v986 = vmul.f32 %v762, %v954
        %v987 = vmul.f32 %v763, %v955
        %v988 = vmul.f32 %v764, %v956
        %v989 = vmul.f32 %v765, %v957
        %v990 = vmul.f32 %v766, %v958
        %v991 = vmul.f32 %v767, %v959
        %v992 = vmul.f32 %v768, %v960
        %v993 = vmul.f32 %v769, %v961
        %v994 = vmul.f32 %v770, %v962
        %v995 = vmul.f32 %v771, %v963
        %v996 = vmul.f32 %v772, %v964
        %v997 = vmul.f32 %v773, %v965
        %v998 = vmul.f32 %v774, %v966
        %v999 = vmul.f32 %v775, %v967
        %v1000 = vmul.f32 %v776, %v968
        %v1002 = vlaneseq
        %v1003 = vshrl.u32 %v1002, 7
        %v1004 = vsub.s32 0, %v1003
        %v1005 = vrot.slane %v646, %v1004
        %v1007 = vmul.f32 %v969, %v1005
        %v1008 = vmul.f32 %v970, %v1005
        %v1009 = vmul.f32 %v971, %v1005
        %v1010 = vmul.f32 %v972, %v1005
        %v1011 = vmul.f32 %v973, %v1005
        %v1012 = vmul.f32 %v974, %v1005
        %v1013 = vmul.f32 %v975, %v1005
        %v1014 = vmul.f32 %v976, %v1005
        %v1015 = vmul.f32 %v977, %v1005
        %v1016 = vmul.f32 %v978, %v1005
        %v1017 = vmul.f32 %v979, %v1005
        %v1018 = vmul.f32 %v980, %v1005
        %v1019 = vmul.f32 %v981, %v1005
        %v1020 = vmul.f32 %v982, %v1005
        %v1021 = vmul.f32 %v983, %v1005
        %v1022 = vmul.f32 %v984, %v1005
        %v1023 = vmul.f32 %v985, %v1005
        %v1024 = vmul.f32 %v986, %v1005
        %v1025 = vmul.f32 %v987, %v1005
        %v1026 = vmul.f32 %v988, %v1005
        %v1027 = vmul.f32 %v989, %v1005
        %v1028 = vmul.f32 %v990, %v1005
        %v1029 = vmul.f32 %v991, %v1005
        %v1030 = vmul.f32 %v992, %v1005
        %v1031 = vmul.f32 %v993, %v1005
        %v1032 = vmul.f32 %v994, %v1005
        %v1033 = vmul.f32 %v995, %v1005
        %v1034 = vmul.f32 %v996, %v1005
        %v1035 = vmul.f32 %v997, %v1005
        %v1036 = vmul.f32 %v998, %v1005
        %v1037 = vmul.f32 %v999, %v1005
        %v1038 = vmul.f32 %v1000, %v1005
        %v1040 = vlaneseq
        %v1041 = vshrl.u32 %v1040, 7
        %v1042 = vsub.s32 0, %v1041
        %v1043 = vrot.slane %v647, %v1042
        %v1045 = vadd.f32 %v1007, %v1043
        %v1046 = vadd.f32 %v1008, %v1043
        %v1047 = vadd.f32 %v1009, %v1043
        %v1048 = vadd.f32 %v1010, %v1043
        %v1049 = vadd.f32 %v1011, %v1043
        %v1050 = vadd.f32 %v1012, %v1043
        %v1051 = vadd.f32 %v1013, %v1043
        %v1052 = vadd.f32 %v1014, %v1043
        %v1053 = vadd.f32 %v1015, %v1043
        %v1054 = vadd.f32 %v1016, %v1043
        %v1055 = vadd.f32 %v1017, %v1043
        %v1056 = vadd.f32 %v1018, %v1043
        %v1057 = vadd.f32 %v1019, %v1043
        %v1058 = vadd.f32 %v1020, %v1043
        %v1059 = vadd.f32 %v1021, %v1043
        %v1060 = vadd.f32 %v1022, %v1043
        %v1061 = vadd.f32 %v1023, %v1043
        %v1062 = vadd.f32 %v1024, %v1043
        %v1063 = vadd.f32 %v1025, %v1043
        %v1064 = vadd.f32 %v1026, %v1043
        %v1065 = vadd.f32 %v1027, %v1043
        %v1066 = vadd.f32 %v1028, %v1043
        %v1067 = vadd.f32 %v1029, %v1043
        %v1068 = vadd.f32 %v1030, %v1043
        %v1069 = vadd.f32 %v1031, %v1043
        %v1070 = vadd.f32 %v1032, %v1043
        %v1071 = vadd.f32 %v1033, %v1043
        %v1072 = vadd.f32 %v1034, %v1043
        %v1073 = vadd.f32 %v1035, %v1043
        %v1074 = vadd.f32 %v1036, %v1043
        %v1075 = vadd.f32 %v1037, %v1043
        %v1076 = vadd.f32 %v1038, %v1043
        %v1077 = vld [vmem:[%s2] sm:$0xff]
        %v1078 = vld [vmem:[%s2 + $0x8] sm:$0xff]
        %v1079 = vld [vmem:[%s2 + $0x10] sm:$0xff]
        %v1080 = vld [vmem:[%s2 + $0x18] sm:$0xff]
        %v1081 = vld [vmem:[%s2 + $0x20] sm:$0xff]
        %v1082 = vld [vmem:[%s2 + $0x28] sm:$0xff]
        %v1083 = vld [vmem:[%s2 + $0x30] sm:$0xff]
        %v1084 = vld [vmem:[%s2 + $0x38] sm:$0xff]
        %v1085 = vld [vmem:[%s2 + $0x40] sm:$0xff]
        %v1086 = vld [vmem:[%s2 + $0x48] sm:$0xff]
        %v1087 = vld [vmem:[%s2 + $0x50] sm:$0xff]
        %v1088 = vld [vmem:[%s2 + $0x58] sm:$0xff]
        %v1089 = vld [vmem:[%s2 + $0x60] sm:$0xff]
        %v1090 = vld [vmem:[%s2 + $0x68] sm:$0xff]
        %v1091 = vld [vmem:[%s2 + $0x70] sm:$0xff]
        %v1092 = vld [vmem:[%s2 + $0x78] sm:$0xff]
        %v1093 = vld [vmem:[%s3] sm:$0x1]
        %v1095 = vlaneseq
        %v1096 = vshrl.u32 %v1095, 7
        %v1097 = vsub.s32 0, %v1096
        %v1098 = vrot.slane %v1093, %v1097
        %1100 = vmatprep.subr.mxu0 0.0
        %1101 = vmatpush1.msra.mxu0 %v1092
        %1102 = vmatprep.subr.mxu0 0.0
        %1103 = vmatpush1.msra.mxu0 %v1091
        %1104 = vmatprep.subr.mxu0 0.0
        %1105 = vmatpush1.msra.mxu0 %v1090
        %1106 = vmatprep.subr.mxu0 0.0
        %1107 = vmatpush1.msra.mxu0 %v1089
        %1108 = vmatprep.subr.mxu0 0.0
        %1109 = vmatpush1.msra.mxu0 %v1088
        %1110 = vmatprep.subr.mxu0 0.0
        %1111 = vmatpush1.msra.mxu0 %v1087
        %1112 = vmatprep.subr.mxu0 0.0
        %1113 = vmatpush1.msra.mxu0 %v1086
        %1114 = vmatprep.subr.mxu0 0.0
        %1115 = vmatpush1.msra.mxu0 %v1085
        %1116 = vmatprep.subr.mxu0 0.0
        %1117 = vmatpush1.msra.mxu0 %v1084
        %1118 = vmatprep.subr.mxu0 0.0
        %1119 = vmatpush1.msra.mxu0 %v1083
        %1120 = vmatprep.subr.mxu0 0.0
        %1121 = vmatpush1.msra.mxu0 %v1082
        %1122 = vmatprep.subr.mxu0 0.0
        %1123 = vmatpush1.msra.mxu0 %v1081
        %1124 = vmatprep.subr.mxu0 0.0
        %1125 = vmatpush1.msra.mxu0 %v1080
        %1126 = vmatprep.subr.mxu0 0.0
        %1127 = vmatpush1.msra.mxu0 %v1079
        %1128 = vmatprep.subr.mxu0 0.0
        %1129 = vmatpush1.msra.mxu0 %v1078
        %1130 = vmatprep.subr.mxu0 0.0
        %1131 = vmatpush1.msra.mxu0 %v1077
        %1132 = vmatprep.subr.mxu0 0.0
        %1133 = vmatpush2.msra.mxu0 0.0
        %1134 = vmatprep.subr.mxu0 0.0
        %1135 = vmatpush2.msra.mxu0 0.0
        %1136 = vmatprep.subr.mxu0 0.0
        %1137 = vmatpush2.msra.mxu0 0.0
        %1138 = vmatprep.subr.mxu0 0.0
        %1139 = vmatpush2.msra.mxu0 0.0
        %1140 = vmatprep.subr.mxu0 0.0
        %1141 = vmatpush2.msra.mxu0 0.0
        %1142 = vmatprep.subr.mxu0 0.0
        %1143 = vmatpush2.msra.mxu0 0.0
        %1144 = vmatprep.subr.mxu0 0.0
        %1145 = vmatpush2.msra.mxu0 0.0
        %1146 = vmatprep.subr.mxu0 0.0
        %1147 = vmatpush2.msra.mxu0 0.0
        %1148 = vmatprep.subr.mxu0 0.0
        %1149 = vmatpush2.msra.mxu0 0.0
        %1150 = vmatprep.subr.mxu0 0.0
        %1151 = vmatpush2.msra.mxu0 0.0
        %1152 = vmatprep.subr.mxu0 0.0
        %1153 = vmatpush2.msra.mxu0 0.0
        %1154 = vmatprep.subr.mxu0 0.0
        %1155 = vmatpush2.msra.mxu0 0.0
        %1156 = vmatprep.subr.mxu0 0.0
        %1157 = vmatpush2.msra.mxu0 0.0
        %1158 = vmatprep.subr.mxu0 0.0
        %1159 = vmatpush2.msra.mxu0 0.0
        %1160 = vmatprep.subr.mxu0 0.0
        %1161 = vmatpush2.msra.mxu0 0.0
        %1162 = vmatprep.subr.mxu0 0.0
        %1163 = vmatpush2.msra.mxu0 0.0
        %1164 = vmatprep.mubr.f32.mxu0 0.0
        %1165 = vmatmul.mubr.f32.gmra.mxu0 %v1045
        %v1166 = vpop.f32.mrf.mxu0
        %v1167 = vadd.f32 %v1098, %v1166
        %v1168 = vpop.f32.mrf.mxu0
        %1169 = vmatprep.mubr.f32.mxu0 0.0
        %1170 = vmatmul.mubr.f32.gmra.mxu0 %v1046
        %v1171 = vpop.f32.mrf.mxu0
        %v1172 = vadd.f32 %v1098, %v1171
        %v1173 = vpop.f32.mrf.mxu0
        %1174 = vmatprep.mubr.f32.mxu0 0.0
        %1175 = vmatmul.mubr.f32.gmra.mxu0 %v1047
        %v1176 = vpop.f32.mrf.mxu0
        %v1177 = vadd.f32 %v1098, %v1176
        %v1178 = vpop.f32.mrf.mxu0
        %1179 = vmatprep.mubr.f32.mxu0 0.0
        %1180 = vmatmul.mubr.f32.gmra.mxu0 %v1048
        %v1181 = vpop.f32.mrf.mxu0
        %v1182 = vadd.f32 %v1098, %v1181
        %v1183 = vpop.f32.mrf.mxu0
        %1184 = vmatprep.mubr.f32.mxu0 0.0
        %1185 = vmatmul.mubr.f32.gmra.mxu0 %v1049
        %v1186 = vpop.f32.mrf.mxu0
        %v1187 = vadd.f32 %v1098, %v1186
        %v1188 = vpop.f32.mrf.mxu0
        %1189 = vmatprep.mubr.f32.mxu0 0.0
        %1190 = vmatmul.mubr.f32.gmra.mxu0 %v1050
        %v1191 = vpop.f32.mrf.mxu0
        %v1192 = vadd.f32 %v1098, %v1191
        %v1193 = vpop.f32.mrf.mxu0
        %1194 = vmatprep.mubr.f32.mxu0 0.0
        %1195 = vmatmul.mubr.f32.gmra.mxu0 %v1051
        %v1196 = vpop.f32.mrf.mxu0
        %v1197 = vadd.f32 %v1098, %v1196
        %v1198 = vpop.f32.mrf.mxu0
        %1199 = vmatprep.mubr.f32.mxu0 0.0
        %1200 = vmatmul.mubr.f32.gmra.mxu0 %v1052
        %v1201 = vpop.f32.mrf.mxu0
        %v1202 = vadd.f32 %v1098, %v1201
        %v1203 = vpop.f32.mrf.mxu0
        %1204 = vmatprep.mubr.f32.mxu0 0.0
        %1205 = vmatmul.mubr.f32.gmra.mxu0 %v1053
        %v1206 = vpop.f32.mrf.mxu0
        %v1207 = vadd.f32 %v1098, %v1206
        %v1208 = vpop.f32.mrf.mxu0
        %1209 = vmatprep.mubr.f32.mxu0 0.0
        %1210 = vmatmul.mubr.f32.gmra.mxu0 %v1054
        %v1211 = vpop.f32.mrf.mxu0
        %v1212 = vadd.f32 %v1098, %v1211
        %v1213 = vpop.f32.mrf.mxu0
        %1214 = vmatprep.mubr.f32.mxu0 0.0
        %1215 = vmatmul.mubr.f32.gmra.mxu0 %v1055
        %v1216 = vpop.f32.mrf.mxu0
        %v1217 = vadd.f32 %v1098, %v1216
        %v1218 = vpop.f32.mrf.mxu0
        %1219 = vmatprep.mubr.f32.mxu0 0.0
        %1220 = vmatmul.mubr.f32.gmra.mxu0 %v1056
        %v1221 = vpop.f32.mrf.mxu0
        %v1222 = vadd.f32 %v1098, %v1221
        %v1223 = vpop.f32.mrf.mxu0
        %1224 = vmatprep.mubr.f32.mxu0 0.0
        %1225 = vmatmul.mubr.f32.gmra.mxu0 %v1057
        %v1226 = vpop.f32.mrf.mxu0
        %v1227 = vadd.f32 %v1098, %v1226
        %v1228 = vpop.f32.mrf.mxu0
        %1229 = vmatprep.mubr.f32.mxu0 0.0
        %1230 = vmatmul.mubr.f32.gmra.mxu0 %v1058
        %v1231 = vpop.f32.mrf.mxu0
        %v1232 = vadd.f32 %v1098, %v1231
        %v1233 = vpop.f32.mrf.mxu0
        %1234 = vmatprep.mubr.f32.mxu0 0.0
        %1235 = vmatmul.mubr.f32.gmra.mxu0 %v1059
        %v1236 = vpop.f32.mrf.mxu0
        %v1237 = vadd.f32 %v1098, %v1236
        %v1238 = vpop.f32.mrf.mxu0
        %1239 = vmatprep.mubr.f32.mxu0 0.0
        %1240 = vmatmul.mubr.f32.gmra.mxu0 %v1060
        %v1241 = vpop.f32.mrf.mxu0
        %v1242 = vadd.f32 %v1098, %v1241
        %v1243 = vpop.f32.mrf.mxu0
        %1244 = vmatprep.mubr.f32.mxu0 0.0
        %1245 = vmatmul.mubr.f32.gmra.mxu0 %v1061
        %v1246 = vpop.f32.mrf.mxu0
        %v1247 = vadd.f32 %v1098, %v1246
        %v1248 = vpop.f32.mrf.mxu0
        %1249 = vmatprep.mubr.f32.mxu0 0.0
        %1250 = vmatmul.mubr.f32.gmra.mxu0 %v1062
        %v1251 = vpop.f32.mrf.mxu0
        %v1252 = vadd.f32 %v1098, %v1251
        %v1253 = vpop.f32.mrf.mxu0
        %1254 = vmatprep.mubr.f32.mxu0 0.0
        %1255 = vmatmul.mubr.f32.gmra.mxu0 %v1063
        %v1256 = vpop.f32.mrf.mxu0
        %v1257 = vadd.f32 %v1098, %v1256
        %v1258 = vpop.f32.mrf.mxu0
        %1259 = vmatprep.mubr.f32.mxu0 0.0
        %1260 = vmatmul.mubr.f32.gmra.mxu0 %v1064
        %v1261 = vpop.f32.mrf.mxu0
        %v1262 = vadd.f32 %v1098, %v1261
        %v1263 = vpop.f32.mrf.mxu0
        %1264 = vmatprep.mubr.f32.mxu0 0.0
        %1265 = vmatmul.mubr.f32.gmra.mxu0 %v1065
        %v1266 = vpop.f32.mrf.mxu0
        %v1267 = vadd.f32 %v1098, %v1266
        %v1268 = vpop.f32.mrf.mxu0
        %1269 = vmatprep.mubr.f32.mxu0 0.0
        %1270 = vmatmul.mubr.f32.gmra.mxu0 %v1066
        %v1271 = vpop.f32.mrf.mxu0
        %v1272 = vadd.f32 %v1098, %v1271
        %v1273 = vpop.f32.mrf.mxu0
        %1274 = vmatprep.mubr.f32.mxu0 0.0
        %1275 = vmatmul.mubr.f32.gmra.mxu0 %v1067
        %v1276 = vpop.f32.mrf.mxu0
        %v1277 = vadd.f32 %v1098, %v1276
        %v1278 = vpop.f32.mrf.mxu0
        %1279 = vmatprep.mubr.f32.mxu0 0.0
        %1280 = vmatmul.mubr.f32.gmra.mxu0 %v1068
        %v1281 = vpop.f32.mrf.mxu0
        %v1282 = vadd.f32 %v1098, %v1281
        %v1283 = vpop.f32.mrf.mxu0
        %1284 = vmatprep.mubr.f32.mxu0 0.0
        %1285 = vmatmul.mubr.f32.gmra.mxu0 %v1069
        %v1286 = vpop.f32.mrf.mxu0
        %v1287 = vadd.f32 %v1098, %v1286
        %v1288 = vpop.f32.mrf.mxu0
        %1289 = vmatprep.mubr.f32.mxu0 0.0
        %1290 = vmatmul.mubr.f32.gmra.mxu0 %v1070
        %v1291 = vpop.f32.mrf.mxu0
        %v1292 = vadd.f32 %v1098, %v1291
        %v1293 = vpop.f32.mrf.mxu0
        %1294 = vmatprep.mubr.f32.mxu0 0.0
        %1295 = vmatmul.mubr.f32.gmra.mxu0 %v1071
        %v1296 = vpop.f32.mrf.mxu0
        %v1297 = vadd.f32 %v1098, %v1296
        %v1298 = vpop.f32.mrf.mxu0
        %1299 = vmatprep.mubr.f32.mxu0 0.0
        %1300 = vmatmul.mubr.f32.gmra.mxu0 %v1072
        %v1301 = vpop.f32.mrf.mxu0
        %v1302 = vadd.f32 %v1098, %v1301
        %v1303 = vpop.f32.mrf.mxu0
        %1304 = vmatprep.mubr.f32.mxu0 0.0
        %1305 = vmatmul.mubr.f32.gmra.mxu0 %v1073
        %v1306 = vpop.f32.mrf.mxu0
        %v1307 = vadd.f32 %v1098, %v1306
        %v1308 = vpop.f32.mrf.mxu0
        %1309 = vmatprep.mubr.f32.mxu0 0.0
        %1310 = vmatmul.mubr.f32.gmra.mxu0 %v1074
        %v1311 = vpop.f32.mrf.mxu0
        %v1312 = vadd.f32 %v1098, %v1311
        %v1313 = vpop.f32.mrf.mxu0
        %1314 = vmatprep.mubr.f32.mxu0 0.0
        %1315 = vmatmul.mubr.f32.gmra.mxu0 %v1075
        %v1316 = vpop.f32.mrf.mxu0
        %v1317 = vadd.f32 %v1098, %v1316
        %v1318 = vpop.f32.mrf.mxu0
        %1319 = vmatprep.mubr.f32.mxu0 0.0
        %1320 = vmatmul.mubr.f32.gmra.mxu0 %v1076
        %v1321 = vpop.f32.mrf.mxu0
        %v1322 = vadd.f32 %v1098, %v1321
        %v1323 = vpop.f32.mrf.mxu0
        %1324 = vdwg.mxu0
        %1325 = vxpose.xlu0.b32.start [1/16] %v1167, 128
        %1326 = vxpose.xlu0.b32.cont [2/16] %v1172, 128
        %1327 = vxpose.xlu0.b32.cont [3/16] %v1177, 128
        %1328 = vxpose.xlu0.b32.cont [4/16] %v1182, 128
        %1329 = vxpose.xlu0.b32.cont [5/16] %v1187, 128
        %1330 = vxpose.xlu0.b32.cont [6/16] %v1192, 128
        %1331 = vxpose.xlu0.b32.cont [7/16] %v1197, 128
        %1332 = vxpose.xlu0.b32.cont [8/16] %v1202, 128
        %1333 = vxpose.xlu0.b32.cont [9/16] 0.0, 128
        %1334 = vxpose.xlu0.b32.cont [10/16] 0.0, 128
        %1335 = vxpose.xlu0.b32.cont [11/16] 0.0, 128
        %1336 = vxpose.xlu0.b32.cont [12/16] 0.0, 128
        %1337 = vxpose.xlu0.b32.cont [13/16] 0.0, 128
        %1338 = vxpose.xlu0.b32.cont [14/16] 0.0, 128
        %1339 = vxpose.xlu0.b32.cont [15/16] 0.0, 128
        %1340 = vxpose.xlu0.b32.end [16/16] 0.0, 128
        %v1341 = vpop.trf.xlu0
        %v1342 = vpop.trf.xlu0
        %v1343 = vpop.trf.xlu0
        %v1344 = vpop.trf.xlu0
        %v1345 = vpop.trf.xlu0
        %v1346 = vpop.trf.xlu0
        %v1347 = vpop.trf.xlu0
        %v1348 = vpop.trf.xlu0
        %v1349 = vpop.trf.xlu0
        %v1350 = vpop.trf.xlu0
        %v1351 = vpop.trf.xlu0
        %v1352 = vpop.trf.xlu0
        %v1353 = vpop.trf.xlu0
        %v1354 = vpop.trf.xlu0
        %v1355 = vpop.trf.xlu0
        %v1356 = vpop.trf.xlu0
        %1357 = vxpose.xlu0.b32.start [1/16] %v1207, 128
        %1358 = vxpose.xlu0.b32.cont [2/16] %v1212, 128
        %1359 = vxpose.xlu0.b32.cont [3/16] %v1217, 128
        %1360 = vxpose.xlu0.b32.cont [4/16] %v1222, 128
        %1361 = vxpose.xlu0.b32.cont [5/16] %v1227, 128
        %1362 = vxpose.xlu0.b32.cont [6/16] %v1232, 128
        %1363 = vxpose.xlu0.b32.cont [7/16] %v1237, 128
        %1364 = vxpose.xlu0.b32.cont [8/16] %v1242, 128
        %1365 = vxpose.xlu0.b32.cont [9/16] 0.0, 128
        %1366 = vxpose.xlu0.b32.cont [10/16] 0.0, 128
        %1367 = vxpose.xlu0.b32.cont [11/16] 0.0, 128
        %1368 = vxpose.xlu0.b32.cont [12/16] 0.0, 128
        %1369 = vxpose.xlu0.b32.cont [13/16] 0.0, 128
        %1370 = vxpose.xlu0.b32.cont [14/16] 0.0, 128
        %1371 = vxpose.xlu0.b32.cont [15/16] 0.0, 128
        %1372 = vxpose.xlu0.b32.end [16/16] 0.0, 128
        %v1373 = vpop.trf.xlu0
        %v1374 = vpop.trf.xlu0
        %v1375 = vpop.trf.xlu0
        %v1376 = vpop.trf.xlu0
        %v1377 = vpop.trf.xlu0
        %v1378 = vpop.trf.xlu0
        %v1379 = vpop.trf.xlu0
        %v1380 = vpop.trf.xlu0
        %v1381 = vpop.trf.xlu0
        %v1382 = vpop.trf.xlu0
        %v1383 = vpop.trf.xlu0
        %v1384 = vpop.trf.xlu0
        %v1385 = vpop.trf.xlu0
        %v1386 = vpop.trf.xlu0
        %v1387 = vpop.trf.xlu0
        %v1388 = vpop.trf.xlu0
        %1389 = vxpose.xlu0.b32.start [1/16] %v1247, 128
        %1390 = vxpose.xlu0.b32.cont [2/16] %v1252, 128
        %1391 = vxpose.xlu0.b32.cont [3/16] %v1257, 128
        %1392 = vxpose.xlu0.b32.cont [4/16] %v1262, 128
        %1393 = vxpose.xlu0.b32.cont [5/16] %v1267, 128
        %1394 = vxpose.xlu0.b32.cont [6/16] %v1272, 128
        %1395 = vxpose.xlu0.b32.cont [7/16] %v1277, 128
        %1396 = vxpose.xlu0.b32.cont [8/16] %v1282, 128
        %1397 = vxpose.xlu0.b32.cont [9/16] 0.0, 128
        %1398 = vxpose.xlu0.b32.cont [10/16] 0.0, 128
        %1399 = vxpose.xlu0.b32.cont [11/16] 0.0, 128
        %1400 = vxpose.xlu0.b32.cont [12/16] 0.0, 128
        %1401 = vxpose.xlu0.b32.cont [13/16] 0.0, 128
        %1402 = vxpose.xlu0.b32.cont [14/16] 0.0, 128
        %1403 = vxpose.xlu0.b32.cont [15/16] 0.0, 128
        %1404 = vxpose.xlu0.b32.end [16/16] 0.0, 128
        %v1405 = vpop.trf.xlu0
        %v1406 = vpop.trf.xlu0
        %v1407 = vpop.trf.xlu0
        %v1408 = vpop.trf.xlu0
        %v1409 = vpop.trf.xlu0
        %v1410 = vpop.trf.xlu0
        %v1411 = vpop.trf.xlu0
        %v1412 = vpop.trf.xlu0
        %v1413 = vpop.trf.xlu0
        %v1414 = vpop.trf.xlu0
        %v1415 = vpop.trf.xlu0
        %v1416 = vpop.trf.xlu0
        %v1417 = vpop.trf.xlu0
        %v1418 = vpop.trf.xlu0
        %v1419 = vpop.trf.xlu0
        %v1420 = vpop.trf.xlu0
        %1421 = vxpose.xlu0.b32.start [1/16] %v1287, 128
        %1422 = vxpose.xlu0.b32.cont [2/16] %v1292, 128
        %1423 = vxpose.xlu0.b32.cont [3/16] %v1297, 128
        %1424 = vxpose.xlu0.b32.cont [4/16] %v1302, 128
        %1425 = vxpose.xlu0.b32.cont [5/16] %v1307, 128
        %1426 = vxpose.xlu0.b32.cont [6/16] %v1312, 128
        %1427 = vxpose.xlu0.b32.cont [7/16] %v1317, 128
        %1428 = vxpose.xlu0.b32.cont [8/16] %v1322, 128
        %1429 = vxpose.xlu0.b32.cont [9/16] 0.0, 128
        %1430 = vxpose.xlu0.b32.cont [10/16] 0.0, 128
        %1431 = vxpose.xlu0.b32.cont [11/16] 0.0, 128
        %1432 = vxpose.xlu0.b32.cont [12/16] 0.0, 128
        %1433 = vxpose.xlu0.b32.cont [13/16] 0.0, 128
        %1434 = vxpose.xlu0.b32.cont [14/16] 0.0, 128
        %1435 = vxpose.xlu0.b32.cont [15/16] 0.0, 128
        %1436 = vxpose.xlu0.b32.end [16/16] 0.0, 128
        %v1437 = vpop.trf.xlu0
        %v1438 = vpop.trf.xlu0
        %v1439 = vpop.trf.xlu0
        %v1440 = vpop.trf.xlu0
        %v1441 = vpop.trf.xlu0
        %v1442 = vpop.trf.xlu0
        %v1443 = vpop.trf.xlu0
        %v1444 = vpop.trf.xlu0
        %v1445 = vpop.trf.xlu0
        %v1446 = vpop.trf.xlu0
        %v1447 = vpop.trf.xlu0
        %v1448 = vpop.trf.xlu0
        %v1449 = vpop.trf.xlu0
        %v1450 = vpop.trf.xlu0
        %v1451 = vpop.trf.xlu0
        %v1452 = vpop.trf.xlu0
        %vm1453 = vcmask 519168
        %v1454 = vsel %vm1453, %v1341, -inf
        %1455 = vmax.xlane.f32.xlu0 %v1454
        %v1456 = vpop.xlane.xlu0 %1455
        %v1457 = vsel %vm1453, %v1373, -inf
        %1458 = vmax.xlane.f32.xlu0 %v1457
        %v1459 = vpop.xlane.xlu0 %1458
        %v1460 = vsel %vm1453, %v1405, -inf
        %1461 = vmax.xlane.f32.xlu0 %v1460
        %v1462 = vpop.xlane.xlu0 %1461
        %v1463 = vsel %vm1453, %v1437, -inf
        %1464 = vmax.xlane.f32.xlu0 %v1463
        %v1465 = vpop.xlane.xlu0 %1464
        %v1466 = vsub.f32 %v1341, %v1456
        %v1467 = vsub.f32 %v1373, %v1459
        %v1468 = vsub.f32 %v1405, %v1462
        %v1469 = vsub.f32 %v1437, %v1465
        %v1470 = vmul.f32 %v1466, 1.442695
        %v1471 = vpow.pop %v1470
        %v1472 = vmul.f32 %v1467, 1.442695
        %v1473 = vpow.pop %v1472
        %v1474 = vmul.f32 %v1468, 1.442695
        %v1475 = vpow.pop %v1474
        %v1476 = vmul.f32 %v1469, 1.442695
        %v1477 = vpow.pop %v1476
        %v1478 = vsel %vm1453, %v1471, 0.0
        %1479 = vadd.xlane.f32.xlu0 %v1478
        %v1480 = vpop.xlane.xlu0 %1479
        %v1481 = vsel %vm1453, %v1473, 0.0
        %1482 = vadd.xlane.f32.xlu0 %v1481
        %v1483 = vpop.xlane.xlu0 %1482
        %v1484 = vsel %vm1453, %v1475, 0.0
        %1485 = vadd.xlane.f32.xlu0 %v1484
        %v1486 = vpop.xlane.xlu0 %1485
        %v1487 = vsel %vm1453, %v1477, 0.0
        %1488 = vadd.xlane.f32.xlu0 %v1487
        %v1489 = vpop.xlane.xlu0 %1488
        %v1490 = vrcp.pop %v1480
        %v1491 = vmul.f32 %v1471, %v1490
        %v1492 = vrcp.pop %v1483
        %v1493 = vmul.f32 %v1473, %v1492
        %v1494 = vrcp.pop %v1486
        %v1495 = vmul.f32 %v1475, %v1494
        %v1496 = vrcp.pop %v1489
        %v1497 = vmul.f32 %v1477, %v1496
        %v1498 = vld [vmem:[%s7] sm:$0xff]
        %v1499 = vld [vmem:[%s7 + $0x8] sm:$0xff]
        %v1500 = vld [vmem:[%s7 + $0x10] sm:$0xff]
        %v1501 = vld [vmem:[%s7 + $0x18] sm:$0xff]
        %v1502 = vld [vmem:[%s7 + $0x20] sm:$0xff]
        %v1503 = vld [vmem:[%s7 + $0x28] sm:$0xff]
        %v1504 = vld [vmem:[%s7 + $0x30] sm:$0xff]
        %v1505 = vld [vmem:[%s7 + $0x38] sm:$0xff]
        %v1506 = vld [vmem:[%s7 + $0x40] sm:$0xff]
        %v1507 = vld [vmem:[%s7 + $0x48] sm:$0xff]
        %v1508 = vld [vmem:[%s7 + $0x50] sm:$0xff]
        %v1509 = vld [vmem:[%s7 + $0x58] sm:$0xff]
        %v1510 = vld [vmem:[%s7 + $0x60] sm:$0xff]
        %v1511 = vld [vmem:[%s7 + $0x68] sm:$0xff]
        %v1512 = vld [vmem:[%s7 + $0x70] sm:$0xff]
        %v1513 = vld [vmem:[%s7 + $0x78] sm:$0xff]
        %v1514 = vld [vmem:[%s8] sm:$0x1]
        %v1516 = vlaneseq
        %v1517 = vshrl.u32 %v1516, 7
        %v1518 = vsub.s32 0, %v1517
        %v1519 = vrot.slane %v1514, %v1518
        %1521 = vmatprep.subr.mxu0 0.0
        %1522 = vmatpush1.msra.mxu0 %v1513
        %1523 = vmatprep.subr.mxu0 0.0
        %1524 = vmatpush1.msra.mxu0 %v1512
        %1525 = vmatprep.subr.mxu0 0.0
        %1526 = vmatpush1.msra.mxu0 %v1511
        %1527 = vmatprep.subr.mxu0 0.0
        %1528 = vmatpush1.msra.mxu0 %v1510
        %1529 = vmatprep.subr.mxu0 0.0
        %1530 = vmatpush1.msra.mxu0 %v1509
        %1531 = vmatprep.subr.mxu0 0.0
        %1532 = vmatpush1.msra.mxu0 %v1508
        %1533 = vmatprep.subr.mxu0 0.0
        %1534 = vmatpush1.msra.mxu0 %v1507
        %1535 = vmatprep.subr.mxu0 0.0
        %1536 = vmatpush1.msra.mxu0 %v1506
        %1537 = vmatprep.subr.mxu0 0.0
        %1538 = vmatpush1.msra.mxu0 %v1505
        %1539 = vmatprep.subr.mxu0 0.0
        %1540 = vmatpush1.msra.mxu0 %v1504
        %1541 = vmatprep.subr.mxu0 0.0
        %1542 = vmatpush1.msra.mxu0 %v1503
        %1543 = vmatprep.subr.mxu0 0.0
        %1544 = vmatpush1.msra.mxu0 %v1502
        %1545 = vmatprep.subr.mxu0 0.0
        %1546 = vmatpush1.msra.mxu0 %v1501
        %1547 = vmatprep.subr.mxu0 0.0
        %1548 = vmatpush1.msra.mxu0 %v1500
        %1549 = vmatprep.subr.mxu0 0.0
        %1550 = vmatpush1.msra.mxu0 %v1499
        %1551 = vmatprep.subr.mxu0 0.0
        %1552 = vmatpush1.msra.mxu0 %v1498
        %1553 = vmatprep.subr.mxu0 0.0
        %1554 = vmatpush2.msra.mxu0 0.0
        %1555 = vmatprep.subr.mxu0 0.0
        %1556 = vmatpush2.msra.mxu0 0.0
        %1557 = vmatprep.subr.mxu0 0.0
        %1558 = vmatpush2.msra.mxu0 0.0
        %1559 = vmatprep.subr.mxu0 0.0
        %1560 = vmatpush2.msra.mxu0 0.0
        %1561 = vmatprep.subr.mxu0 0.0
        %1562 = vmatpush2.msra.mxu0 0.0
        %1563 = vmatprep.subr.mxu0 0.0
        %1564 = vmatpush2.msra.mxu0 0.0
        %1565 = vmatprep.subr.mxu0 0.0
        %1566 = vmatpush2.msra.mxu0 0.0
        %1567 = vmatprep.subr.mxu0 0.0
        %1568 = vmatpush2.msra.mxu0 0.0
        %1569 = vmatprep.subr.mxu0 0.0
        %1570 = vmatpush2.msra.mxu0 0.0
        %1571 = vmatprep.subr.mxu0 0.0
        %1572 = vmatpush2.msra.mxu0 0.0
        %1573 = vmatprep.subr.mxu0 0.0
        %1574 = vmatpush2.msra.mxu0 0.0
        %1575 = vmatprep.subr.mxu0 0.0
        %1576 = vmatpush2.msra.mxu0 0.0
        %1577 = vmatprep.subr.mxu0 0.0
        %1578 = vmatpush2.msra.mxu0 0.0
        %1579 = vmatprep.subr.mxu0 0.0
        %1580 = vmatpush2.msra.mxu0 0.0
        %1581 = vmatprep.subr.mxu0 0.0
        %1582 = vmatpush2.msra.mxu0 0.0
        %1583 = vmatprep.subr.mxu0 0.0
        %1584 = vmatpush2.msra.mxu0 0.0
        %1585 = vmatprep.mubr.f32.mxu0 0.0
        %1586 = vmatmul.mubr.f32.gmra.mxu0 %v1045
        %v1587 = vpop.f32.mrf.mxu0
        %v1588 = vadd.f32 %v1519, %v1587
        %v1589 = vpop.f32.mrf.mxu0
        %1590 = vmatprep.mubr.f32.mxu0 0.0
        %1591 = vmatmul.mubr.f32.gmra.mxu0 %v1046
        %v1592 = vpop.f32.mrf.mxu0
        %v1593 = vadd.f32 %v1519, %v1592
        %v1594 = vpop.f32.mrf.mxu0
        %1595 = vmatprep.mubr.f32.mxu0 0.0
        %1596 = vmatmul.mubr.f32.gmra.mxu0 %v1047
        %v1597 = vpop.f32.mrf.mxu0
        %v1598 = vadd.f32 %v1519, %v1597
        %v1599 = vpop.f32.mrf.mxu0
        %1600 = vmatprep.mubr.f32.mxu0 0.0
        %1601 = vmatmul.mubr.f32.gmra.mxu0 %v1048
        %v1602 = vpop.f32.mrf.mxu0
        %v1603 = vadd.f32 %v1519, %v1602
        %v1604 = vpop.f32.mrf.mxu0
        %1605 = vmatprep.mubr.f32.mxu0 0.0
        %1606 = vmatmul.mubr.f32.gmra.mxu0 %v1049
        %v1607 = vpop.f32.mrf.mxu0
        %v1608 = vadd.f32 %v1519, %v1607
        %v1609 = vpop.f32.mrf.mxu0
        %1610 = vmatprep.mubr.f32.mxu0 0.0
        %1611 = vmatmul.mubr.f32.gmra.mxu0 %v1050
        %v1612 = vpop.f32.mrf.mxu0
        %v1613 = vadd.f32 %v1519, %v1612
        %v1614 = vpop.f32.mrf.mxu0
        %1615 = vmatprep.mubr.f32.mxu0 0.0
        %1616 = vmatmul.mubr.f32.gmra.mxu0 %v1051
        %v1617 = vpop.f32.mrf.mxu0
        %v1618 = vadd.f32 %v1519, %v1617
        %v1619 = vpop.f32.mrf.mxu0
        %1620 = vmatprep.mubr.f32.mxu0 0.0
        %1621 = vmatmul.mubr.f32.gmra.mxu0 %v1052
        %v1622 = vpop.f32.mrf.mxu0
        %v1623 = vadd.f32 %v1519, %v1622
        %v1624 = vpop.f32.mrf.mxu0
        %1625 = vmatprep.mubr.f32.mxu0 0.0
        %1626 = vmatmul.mubr.f32.gmra.mxu0 %v1053
        %v1627 = vpop.f32.mrf.mxu0
        %v1628 = vadd.f32 %v1519, %v1627
        %v1629 = vpop.f32.mrf.mxu0
        %1630 = vmatprep.mubr.f32.mxu0 0.0
        %1631 = vmatmul.mubr.f32.gmra.mxu0 %v1054
        %v1632 = vpop.f32.mrf.mxu0
        %v1633 = vadd.f32 %v1519, %v1632
        %v1634 = vpop.f32.mrf.mxu0
        %1635 = vmatprep.mubr.f32.mxu0 0.0
        %1636 = vmatmul.mubr.f32.gmra.mxu0 %v1055
        %v1637 = vpop.f32.mrf.mxu0
        %v1638 = vadd.f32 %v1519, %v1637
        %v1639 = vpop.f32.mrf.mxu0
        %1640 = vmatprep.mubr.f32.mxu0 0.0
        %1641 = vmatmul.mubr.f32.gmra.mxu0 %v1056
        %v1642 = vpop.f32.mrf.mxu0
        %v1643 = vadd.f32 %v1519, %v1642
        %v1644 = vpop.f32.mrf.mxu0
        %1645 = vmatprep.mubr.f32.mxu0 0.0
        %1646 = vmatmul.mubr.f32.gmra.mxu0 %v1057
        %v1647 = vpop.f32.mrf.mxu0
        %v1648 = vadd.f32 %v1519, %v1647
        %v1649 = vpop.f32.mrf.mxu0
        %1650 = vmatprep.mubr.f32.mxu0 0.0
        %1651 = vmatmul.mubr.f32.gmra.mxu0 %v1058
        %v1652 = vpop.f32.mrf.mxu0
        %v1653 = vadd.f32 %v1519, %v1652
        %v1654 = vpop.f32.mrf.mxu0
        %1655 = vmatprep.mubr.f32.mxu0 0.0
        %1656 = vmatmul.mubr.f32.gmra.mxu0 %v1059
        %v1657 = vpop.f32.mrf.mxu0
        %v1658 = vadd.f32 %v1519, %v1657
        %v1659 = vpop.f32.mrf.mxu0
        %1660 = vmatprep.mubr.f32.mxu0 0.0
        %1661 = vmatmul.mubr.f32.gmra.mxu0 %v1060
        %v1662 = vpop.f32.mrf.mxu0
        %v1663 = vadd.f32 %v1519, %v1662
        %v1664 = vpop.f32.mrf.mxu0
        %1665 = vmatprep.mubr.f32.mxu0 0.0
        %1666 = vmatmul.mubr.f32.gmra.mxu0 %v1061
        %v1667 = vpop.f32.mrf.mxu0
        %v1668 = vadd.f32 %v1519, %v1667
        %v1669 = vpop.f32.mrf.mxu0
        %1670 = vmatprep.mubr.f32.mxu0 0.0
        %1671 = vmatmul.mubr.f32.gmra.mxu0 %v1062
        %v1672 = vpop.f32.mrf.mxu0
        %v1673 = vadd.f32 %v1519, %v1672
        %v1674 = vpop.f32.mrf.mxu0
        %1675 = vmatprep.mubr.f32.mxu0 0.0
        %1676 = vmatmul.mubr.f32.gmra.mxu0 %v1063
        %v1677 = vpop.f32.mrf.mxu0
        %v1678 = vadd.f32 %v1519, %v1677
        %v1679 = vpop.f32.mrf.mxu0
        %1680 = vmatprep.mubr.f32.mxu0 0.0
        %1681 = vmatmul.mubr.f32.gmra.mxu0 %v1064
        %v1682 = vpop.f32.mrf.mxu0
        %v1683 = vadd.f32 %v1519, %v1682
        %v1684 = vpop.f32.mrf.mxu0
        %1685 = vmatprep.mubr.f32.mxu0 0.0
        %1686 = vmatmul.mubr.f32.gmra.mxu0 %v1065
        %v1687 = vpop.f32.mrf.mxu0
        %v1688 = vadd.f32 %v1519, %v1687
        %v1689 = vpop.f32.mrf.mxu0
        %1690 = vmatprep.mubr.f32.mxu0 0.0
        %1691 = vmatmul.mubr.f32.gmra.mxu0 %v1066
        %v1692 = vpop.f32.mrf.mxu0
        %v1693 = vadd.f32 %v1519, %v1692
        %v1694 = vpop.f32.mrf.mxu0
        %1695 = vmatprep.mubr.f32.mxu0 0.0
        %1696 = vmatmul.mubr.f32.gmra.mxu0 %v1067
        %v1697 = vpop.f32.mrf.mxu0
        %v1698 = vadd.f32 %v1519, %v1697
        %v1699 = vpop.f32.mrf.mxu0
        %1700 = vmatprep.mubr.f32.mxu0 0.0
        %1701 = vmatmul.mubr.f32.gmra.mxu0 %v1068
        %v1702 = vpop.f32.mrf.mxu0
        %v1703 = vadd.f32 %v1519, %v1702
        %v1704 = vpop.f32.mrf.mxu0
        %1705 = vmatprep.mubr.f32.mxu0 0.0
        %1706 = vmatmul.mubr.f32.gmra.mxu0 %v1069
        %v1707 = vpop.f32.mrf.mxu0
        %v1708 = vadd.f32 %v1519, %v1707
        %v1709 = vpop.f32.mrf.mxu0
        %1710 = vmatprep.mubr.f32.mxu0 0.0
        %1711 = vmatmul.mubr.f32.gmra.mxu0 %v1070
        %v1712 = vpop.f32.mrf.mxu0
        %v1713 = vadd.f32 %v1519, %v1712
        %v1714 = vpop.f32.mrf.mxu0
        %1715 = vmatprep.mubr.f32.mxu0 0.0
        %1716 = vmatmul.mubr.f32.gmra.mxu0 %v1071
        %v1717 = vpop.f32.mrf.mxu0
        %v1718 = vadd.f32 %v1519, %v1717
        %v1719 = vpop.f32.mrf.mxu0
        %1720 = vmatprep.mubr.f32.mxu0 0.0
        %1721 = vmatmul.mubr.f32.gmra.mxu0 %v1072
        %v1722 = vpop.f32.mrf.mxu0
        %v1723 = vadd.f32 %v1519, %v1722
        %v1724 = vpop.f32.mrf.mxu0
        %1725 = vmatprep.mubr.f32.mxu0 0.0
        %1726 = vmatmul.mubr.f32.gmra.mxu0 %v1073
        %v1727 = vpop.f32.mrf.mxu0
        %v1728 = vadd.f32 %v1519, %v1727
        %v1729 = vpop.f32.mrf.mxu0
        %1730 = vmatprep.mubr.f32.mxu0 0.0
        %1731 = vmatmul.mubr.f32.gmra.mxu0 %v1074
        %v1732 = vpop.f32.mrf.mxu0
        %v1733 = vadd.f32 %v1519, %v1732
        %v1734 = vpop.f32.mrf.mxu0
        %1735 = vmatprep.mubr.f32.mxu0 0.0
        %1736 = vmatmul.mubr.f32.gmra.mxu0 %v1075
        %v1737 = vpop.f32.mrf.mxu0
        %v1738 = vadd.f32 %v1519, %v1737
        %v1739 = vpop.f32.mrf.mxu0
        %1740 = vmatprep.mubr.f32.mxu0 0.0
        %1741 = vmatmul.mubr.f32.gmra.mxu0 %v1076
        %v1742 = vpop.f32.mrf.mxu0
        %v1743 = vadd.f32 %v1519, %v1742
        %v1744 = vpop.f32.mrf.mxu0
        %1745 = vdwg.mxu0
        %vm1746 = vcmask 523264
        %v1748 = vsel %vm1746, %v1491, 0
        %1750 = vmatprep.subr.mxu0 0.0
        %1751 = vmatpush1.msra.mxu0 0.0
        %1752 = vmatprep.subr.mxu0 0.0
        %1753 = vmatpush1.msra.mxu0 0.0
        %1754 = vmatprep.subr.mxu0 0.0
        %1755 = vmatpush1.msra.mxu0 0.0
        %1756 = vmatprep.subr.mxu0 0.0
        %1757 = vmatpush1.msra.mxu0 0.0
        %1758 = vmatprep.subr.mxu0 0.0
        %1759 = vmatpush1.msra.mxu0 0.0
        %1760 = vmatprep.subr.mxu0 0.0
        %1761 = vmatpush1.msra.mxu0 0.0
        %1762 = vmatprep.subr.mxu0 0.0
        %1763 = vmatpush1.msra.mxu0 0.0
        %1764 = vmatprep.subr.mxu0 0.0
        %1765 = vmatpush1.msra.mxu0 0.0
        %1766 = vmatprep.subr.mxu0 0.0
        %1767 = vmatpush1.msra.mxu0 %v1623
        %1768 = vmatprep.subr.mxu0 0.0
        %1769 = vmatpush1.msra.mxu0 %v1618
        %1770 = vmatprep.subr.mxu0 0.0
        %1771 = vmatpush1.msra.mxu0 %v1613
        %1772 = vmatprep.subr.mxu0 0.0
        %1773 = vmatpush1.msra.mxu0 %v1608
        %1774 = vmatprep.subr.mxu0 0.0
        %1775 = vmatpush1.msra.mxu0 %v1603
        %1776 = vmatprep.subr.mxu0 0.0
        %1777 = vmatpush1.msra.mxu0 %v1598
        %1778 = vmatprep.subr.mxu0 0.0
        %1779 = vmatpush1.msra.mxu0 %v1593
        %1780 = vmatprep.subr.mxu0 0.0
        %1781 = vmatpush1.msra.mxu0 %v1588
        %1782 = vmatprep.subr.mxu0 0.0
        %1783 = vmatpush2.msra.mxu0 0.0
        %1784 = vmatprep.subr.mxu0 0.0
        %1785 = vmatpush2.msra.mxu0 0.0
        %1786 = vmatprep.subr.mxu0 0.0
        %1787 = vmatpush2.msra.mxu0 0.0
        %1788 = vmatprep.subr.mxu0 0.0
        %1789 = vmatpush2.msra.mxu0 0.0
        %1790 = vmatprep.subr.mxu0 0.0
        %1791 = vmatpush2.msra.mxu0 0.0
        %1792 = vmatprep.subr.mxu0 0.0
        %1793 = vmatpush2.msra.mxu0 0.0
        %1794 = vmatprep.subr.mxu0 0.0
        %1795 = vmatpush2.msra.mxu0 0.0
        %1796 = vmatprep.subr.mxu0 0.0
        %1797 = vmatpush2.msra.mxu0 0.0
        %1798 = vmatprep.subr.mxu0 0.0
        %1799 = vmatpush2.msra.mxu0 0.0
        %1800 = vmatprep.subr.mxu0 0.0
        %1801 = vmatpush2.msra.mxu0 0.0
        %1802 = vmatprep.subr.mxu0 0.0
        %1803 = vmatpush2.msra.mxu0 0.0
        %1804 = vmatprep.subr.mxu0 0.0
        %1805 = vmatpush2.msra.mxu0 0.0
        %1806 = vmatprep.subr.mxu0 0.0
        %1807 = vmatpush2.msra.mxu0 0.0
        %1808 = vmatprep.subr.mxu0 0.0
        %1809 = vmatpush2.msra.mxu0 0.0
        %1810 = vmatprep.subr.mxu0 0.0
        %1811 = vmatpush2.msra.mxu0 0.0
        %1812 = vmatprep.subr.mxu0 0.0
        %1813 = vmatpush2.msra.mxu0 0.0
        %1814 = vmatprep.mubr.f32.mxu0 0.0
        %1815 = vmatmul.mubr.f32.gmra.mxu0 %v1748
        %v1816 = vpop.f32.mrf.mxu0
        %v1817 = vadd.f32 0.0, %v1816
        %v1818 = vpop.f32.mrf.mxu0
        %1819 = vdwg.mxu0
        %v1821 = vsel %vm1746, %v1493, 0
        %1823 = vmatprep.subr.mxu0 0.0
        %1824 = vmatpush1.msra.mxu0 0.0
        %1825 = vmatprep.subr.mxu0 0.0
        %1826 = vmatpush1.msra.mxu0 0.0
        %1827 = vmatprep.subr.mxu0 0.0
        %1828 = vmatpush1.msra.mxu0 0.0
        %1829 = vmatprep.subr.mxu0 0.0
        %1830 = vmatpush1.msra.mxu0 0.0
        %1831 = vmatprep.subr.mxu0 0.0
        %1832 = vmatpush1.msra.mxu0 0.0
        %1833 = vmatprep.subr.mxu0 0.0
        %1834 = vmatpush1.msra.mxu0 0.0
        %1835 = vmatprep.subr.mxu0 0.0
        %1836 = vmatpush1.msra.mxu0 0.0
        %1837 = vmatprep.subr.mxu0 0.0
        %1838 = vmatpush1.msra.mxu0 0.0
        %1839 = vmatprep.subr.mxu0 0.0
        %1840 = vmatpush1.msra.mxu0 %v1663
        %1841 = vmatprep.subr.mxu0 0.0
        %1842 = vmatpush1.msra.mxu0 %v1658
        %1843 = vmatprep.subr.mxu0 0.0
        %1844 = vmatpush1.msra.mxu0 %v1653
        %1845 = vmatprep.subr.mxu0 0.0
        %1846 = vmatpush1.msra.mxu0 %v1648
        %1847 = vmatprep.subr.mxu0 0.0
        %1848 = vmatpush1.msra.mxu0 %v1643
        %1849 = vmatprep.subr.mxu0 0.0
        %1850 = vmatpush1.msra.mxu0 %v1638
        %1851 = vmatprep.subr.mxu0 0.0
        %1852 = vmatpush1.msra.mxu0 %v1633
        %1853 = vmatprep.subr.mxu0 0.0
        %1854 = vmatpush1.msra.mxu0 %v1628
        %1855 = vmatprep.subr.mxu0 0.0
        %1856 = vmatpush2.msra.mxu0 0.0
        %1857 = vmatprep.subr.mxu0 0.0
        %1858 = vmatpush2.msra.mxu0 0.0
        %1859 = vmatprep.subr.mxu0 0.0
        %1860 = vmatpush2.msra.mxu0 0.0
        %1861 = vmatprep.subr.mxu0 0.0
        %1862 = vmatpush2.msra.mxu0 0.0
        %1863 = vmatprep.subr.mxu0 0.0
        %1864 = vmatpush2.msra.mxu0 0.0
        %1865 = vmatprep.subr.mxu0 0.0
        %1866 = vmatpush2.msra.mxu0 0.0
        %1867 = vmatprep.subr.mxu0 0.0
        %1868 = vmatpush2.msra.mxu0 0.0
        %1869 = vmatprep.subr.mxu0 0.0
        %1870 = vmatpush2.msra.mxu0 0.0
        %1871 = vmatprep.subr.mxu0 0.0
        %1872 = vmatpush2.msra.mxu0 0.0
        %1873 = vmatprep.subr.mxu0 0.0
        %1874 = vmatpush2.msra.mxu0 0.0
        %1875 = vmatprep.subr.mxu0 0.0
        %1876 = vmatpush2.msra.mxu0 0.0
        %1877 = vmatprep.subr.mxu0 0.0
        %1878 = vmatpush2.msra.mxu0 0.0
        %1879 = vmatprep.subr.mxu0 0.0
        %1880 = vmatpush2.msra.mxu0 0.0
        %1881 = vmatprep.subr.mxu0 0.0
        %1882 = vmatpush2.msra.mxu0 0.0
        %1883 = vmatprep.subr.mxu0 0.0
        %1884 = vmatpush2.msra.mxu0 0.0
        %1885 = vmatprep.subr.mxu0 0.0
        %1886 = vmatpush2.msra.mxu0 0.0
        %1887 = vmatprep.mubr.f32.mxu0 0.0
        %1888 = vmatmul.mubr.f32.gmra.mxu0 %v1821
        %v1889 = vpop.f32.mrf.mxu0
        %v1890 = vadd.f32 0.0, %v1889
        %v1891 = vpop.f32.mrf.mxu0
        %1892 = vdwg.mxu0
        %v1894 = vsel %vm1746, %v1495, 0
        %1896 = vmatprep.subr.mxu0 0.0
        %1897 = vmatpush1.msra.mxu0 0.0
        %1898 = vmatprep.subr.mxu0 0.0
        %1899 = vmatpush1.msra.mxu0 0.0
        %1900 = vmatprep.subr.mxu0 0.0
        %1901 = vmatpush1.msra.mxu0 0.0
        %1902 = vmatprep.subr.mxu0 0.0
        %1903 = vmatpush1.msra.mxu0 0.0
        %1904 = vmatprep.subr.mxu0 0.0
        %1905 = vmatpush1.msra.mxu0 0.0
        %1906 = vmatprep.subr.mxu0 0.0
        %1907 = vmatpush1.msra.mxu0 0.0
        %1908 = vmatprep.subr.mxu0 0.0
        %1909 = vmatpush1.msra.mxu0 0.0
        %1910 = vmatprep.subr.mxu0 0.0
        %1911 = vmatpush1.msra.mxu0 0.0
        %1912 = vmatprep.subr.mxu0 0.0
        %1913 = vmatpush1.msra.mxu0 %v1703
        %1914 = vmatprep.subr.mxu0 0.0
        %1915 = vmatpush1.msra.mxu0 %v1698
        %1916 = vmatprep.subr.mxu0 0.0
        %1917 = vmatpush1.msra.mxu0 %v1693
        %1918 = vmatprep.subr.mxu0 0.0
        %1919 = vmatpush1.msra.mxu0 %v1688
        %1920 = vmatprep.subr.mxu0 0.0
        %1921 = vmatpush1.msra.mxu0 %v1683
        %1922 = vmatprep.subr.mxu0 0.0
        %1923 = vmatpush1.msra.mxu0 %v1678
        %1924 = vmatprep.subr.mxu0 0.0
        %1925 = vmatpush1.msra.mxu0 %v1673
        %1926 = vmatprep.subr.mxu0 0.0
        %1927 = vmatpush1.msra.mxu0 %v1668
        %1928 = vmatprep.subr.mxu0 0.0
        %1929 = vmatpush2.msra.mxu0 0.0
        %1930 = vmatprep.subr.mxu0 0.0
        %1931 = vmatpush2.msra.mxu0 0.0
        %1932 = vmatprep.subr.mxu0 0.0
        %1933 = vmatpush2.msra.mxu0 0.0
        %1934 = vmatprep.subr.mxu0 0.0
        %1935 = vmatpush2.msra.mxu0 0.0
        %1936 = vmatprep.subr.mxu0 0.0
        %1937 = vmatpush2.msra.mxu0 0.0
        %1938 = vmatprep.subr.mxu0 0.0
        %1939 = vmatpush2.msra.mxu0 0.0
        %1940 = vmatprep.subr.mxu0 0.0
        %1941 = vmatpush2.msra.mxu0 0.0
        %1942 = vmatprep.subr.mxu0 0.0
        %1943 = vmatpush2.msra.mxu0 0.0
        %1944 = vmatprep.subr.mxu0 0.0
        %1945 = vmatpush2.msra.mxu0 0.0
        %1946 = vmatprep.subr.mxu0 0.0
        %1947 = vmatpush2.msra.mxu0 0.0
        %1948 = vmatprep.subr.mxu0 0.0
        %1949 = vmatpush2.msra.mxu0 0.0
        %1950 = vmatprep.subr.mxu0 0.0
        %1951 = vmatpush2.msra.mxu0 0.0
        %1952 = vmatprep.subr.mxu0 0.0
        %1953 = vmatpush2.msra.mxu0 0.0
        %1954 = vmatprep.subr.mxu0 0.0
        %1955 = vmatpush2.msra.mxu0 0.0
        %1956 = vmatprep.subr.mxu0 0.0
        %1957 = vmatpush2.msra.mxu0 0.0
        %1958 = vmatprep.subr.mxu0 0.0
        %1959 = vmatpush2.msra.mxu0 0.0
        %1960 = vmatprep.mubr.f32.mxu0 0.0
        %1961 = vmatmul.mubr.f32.gmra.mxu0 %v1894
        %v1962 = vpop.f32.mrf.mxu0
        %v1963 = vadd.f32 0.0, %v1962
        %v1964 = vpop.f32.mrf.mxu0
        %1965 = vdwg.mxu0
        %v1967 = vsel %vm1746, %v1497, 0
        %1969 = vmatprep.subr.mxu0 0.0
        %1970 = vmatpush1.msra.mxu0 0.0
        %1971 = vmatprep.subr.mxu0 0.0
        %1972 = vmatpush1.msra.mxu0 0.0
        %1973 = vmatprep.subr.mxu0 0.0
        %1974 = vmatpush1.msra.mxu0 0.0
        %1975 = vmatprep.subr.mxu0 0.0
        %1976 = vmatpush1.msra.mxu0 0.0
        %1977 = vmatprep.subr.mxu0 0.0
        %1978 = vmatpush1.msra.mxu0 0.0
        %1979 = vmatprep.subr.mxu0 0.0
        %1980 = vmatpush1.msra.mxu0 0.0
        %1981 = vmatprep.subr.mxu0 0.0
        %1982 = vmatpush1.msra.mxu0 0.0
        %1983 = vmatprep.subr.mxu0 0.0
        %1984 = vmatpush1.msra.mxu0 0.0
        %1985 = vmatprep.subr.mxu0 0.0
        %1986 = vmatpush1.msra.mxu0 %v1743
        %1987 = vmatprep.subr.mxu0 0.0
        %1988 = vmatpush1.msra.mxu0 %v1738
        %1989 = vmatprep.subr.mxu0 0.0
        %1990 = vmatpush1.msra.mxu0 %v1733
        %1991 = vmatprep.subr.mxu0 0.0
        %1992 = vmatpush1.msra.mxu0 %v1728
        %1993 = vmatprep.subr.mxu0 0.0
        %1994 = vmatpush1.msra.mxu0 %v1723
        %1995 = vmatprep.subr.mxu0 0.0
        %1996 = vmatpush1.msra.mxu0 %v1718
        %1997 = vmatprep.subr.mxu0 0.0
        %1998 = vmatpush1.msra.mxu0 %v1713
        %1999 = vmatprep.subr.mxu0 0.0
        %2000 = vmatpush1.msra.mxu0 %v1708
        %2001 = vmatprep.subr.mxu0 0.0
        %2002 = vmatpush2.msra.mxu0 0.0
        %2003 = vmatprep.subr.mxu0 0.0
        %2004 = vmatpush2.msra.mxu0 0.0
        %2005 = vmatprep.subr.mxu0 0.0
        %2006 = vmatpush2.msra.mxu0 0.0
        %2007 = vmatprep.subr.mxu0 0.0
        %2008 = vmatpush2.msra.mxu0 0.0
        %2009 = vmatprep.subr.mxu0 0.0
        %2010 = vmatpush2.msra.mxu0 0.0
        %2011 = vmatprep.subr.mxu0 0.0
        %2012 = vmatpush2.msra.mxu0 0.0
        %2013 = vmatprep.subr.mxu0 0.0
        %2014 = vmatpush2.msra.mxu0 0.0
        %2015 = vmatprep.subr.mxu0 0.0
        %2016 = vmatpush2.msra.mxu0 0.0
        %2017 = vmatprep.subr.mxu0 0.0
        %2018 = vmatpush2.msra.mxu0 0.0
        %2019 = vmatprep.subr.mxu0 0.0
        %2020 = vmatpush2.msra.mxu0 0.0
        %2021 = vmatprep.subr.mxu0 0.0
        %2022 = vmatpush2.msra.mxu0 0.0
        %2023 = vmatprep.subr.mxu0 0.0
        %2024 = vmatpush2.msra.mxu0 0.0
        %2025 = vmatprep.subr.mxu0 0.0
        %2026 = vmatpush2.msra.mxu0 0.0
        %2027 = vmatprep.subr.mxu0 0.0
        %2028 = vmatpush2.msra.mxu0 0.0
        %2029 = vmatprep.subr.mxu0 0.0
        %2030 = vmatpush2.msra.mxu0 0.0
        %2031 = vmatprep.subr.mxu0 0.0
        %2032 = vmatpush2.msra.mxu0 0.0
        %2033 = vmatprep.mubr.f32.mxu0 0.0
        %2034 = vmatmul.mubr.f32.gmra.mxu0 %v1967
        %v2035 = vpop.f32.mrf.mxu0
        %v2036 = vadd.f32 0.0, %v2035
        %v2037 = vpop.f32.mrf.mxu0
        %2038 = vdwg.mxu0
        %v2039 = vld [vmem:[%s4] sm:$0xf]
        %v2040 = vmul.f32 %v1817, %v2039
        %v2041 = vmul.f32 %v1890, %v2039
        %v2042 = vmul.f32 %v1963, %v2039
        %v2043 = vmul.f32 %v2036, %v2039
        %vm2044 = vcmask 1043456
        %v2045 = vsel %vm2044, %v2040, 0.0
        %v2046 = vrot.slane %v2045, 4
        %v2047 = vadd.f32 %v2045, %v2046
        %v2048 = vrot.slane %v2047, 2
        %v2049 = vadd.f32 %v2047, %v2048
        %v2050 = vrot.slane %v2049, 1
        %v2051 = vadd.f32 %v2049, %v2050
        %v2052 = vsel %vm2044, %v2041, 0.0
        %v2053 = vrot.slane %v2052, 4
        %v2054 = vadd.f32 %v2052, %v2053
        %v2055 = vrot.slane %v2054, 2
        %v2056 = vadd.f32 %v2054, %v2055
        %v2057 = vrot.slane %v2056, 1
        %v2058 = vadd.f32 %v2056, %v2057
        %v2059 = vsel %vm2044, %v2042, 0.0
        %v2060 = vrot.slane %v2059, 4
        %v2061 = vadd.f32 %v2059, %v2060
        %v2062 = vrot.slane %v2061, 2
        %v2063 = vadd.f32 %v2061, %v2062
        %v2064 = vrot.slane %v2063, 1
        %v2065 = vadd.f32 %v2063, %v2064
        %v2066 = vsel %vm2044, %v2043, 0.0
        %v2067 = vrot.slane %v2066, 4
        %v2068 = vadd.f32 %v2066, %v2067
        %v2069 = vrot.slane %v2068, 2
        %v2070 = vadd.f32 %v2068, %v2069
        %v2071 = vrot.slane %v2070, 1
        %v2072 = vadd.f32 %v2070, %v2071
        %v2073 = vld [vmem:[#allocation5] sm:$0xff]
        %v2074 = vld [vmem:[#allocation5 + $0x8] sm:$0xff]
        %v2075 = vld [vmem:[#allocation5 + $0x10] sm:$0xff]
        %v2076 = vld [vmem:[#allocation5 + $0x18] sm:$0xff]
        %v2077 = vld [vmem:[#allocation5 + $0x20] sm:$0xff]
        %v2078 = vld [vmem:[#allocation5 + $0x28] sm:$0xff]
        %v2079 = vld [vmem:[#allocation5 + $0x30] sm:$0xff]
        %v2080 = vld [vmem:[#allocation5 + $0x38] sm:$0xff]
        %v2081 = vld [vmem:[#allocation5 + $0x40] sm:$0xff]
        %v2082 = vld [vmem:[#allocation5 + $0x48] sm:$0xff]
        %v2083 = vld [vmem:[#allocation5 + $0x50] sm:$0xff]
        %v2084 = vld [vmem:[#allocation5 + $0x58] sm:$0xff]
        %v2085 = vld [vmem:[#allocation5 + $0x60] sm:$0xff]
        %v2086 = vld [vmem:[#allocation5 + $0x68] sm:$0xff]
        %v2087 = vld [vmem:[#allocation5 + $0x70] sm:$0xff]
        %v2088 = vld [vmem:[#allocation5 + $0x78] sm:$0xff]
        %v2089 = vld [vmem:[%s10] sm:$0x1]
        %v2091 = vlaneseq
        %v2092 = vshrl.u32 %v2091, 7
        %v2093 = vsub.s32 0, %v2092
        %v2094 = vrot.slane %v2089, %v2093
        %vm2100 = vcmask 1041409
        %v2101 = vsel %vm2100, %v2058, %v2051
        %vm2102 = vcmask 1042434
        %v2103 = vsel %vm2102, %v2065, %v2101
        %vm2104 = vcmask 1043459
        %v2105 = vsel %vm2104, %v2072, %v2103
        %2107 = vmatprep.subr.mxu0 0.0
        %2108 = vmatpush1.msra.mxu0 %v2088
        %2109 = vmatprep.subr.mxu0 0.0
        %2110 = vmatpush1.msra.mxu0 %v2087
        %2111 = vmatprep.subr.mxu0 0.0
        %2112 = vmatpush1.msra.mxu0 %v2086
        %2113 = vmatprep.subr.mxu0 0.0
        %2114 = vmatpush1.msra.mxu0 %v2085
        %2115 = vmatprep.subr.mxu0 0.0
        %2116 = vmatpush1.msra.mxu0 %v2084
        %2117 = vmatprep.subr.mxu0 0.0
        %2118 = vmatpush1.msra.mxu0 %v2083
        %2119 = vmatprep.subr.mxu0 0.0
        %2120 = vmatpush1.msra.mxu0 %v2082
        %2121 = vmatprep.subr.mxu0 0.0
        %2122 = vmatpush1.msra.mxu0 %v2081
        %2123 = vmatprep.subr.mxu0 0.0
        %2124 = vmatpush1.msra.mxu0 %v2080
        %2125 = vmatprep.subr.mxu0 0.0
        %2126 = vmatpush1.msra.mxu0 %v2079
        %2127 = vmatprep.subr.mxu0 0.0
        %2128 = vmatpush1.msra.mxu0 %v2078
        %2129 = vmatprep.subr.mxu0 0.0
        %2130 = vmatpush1.msra.mxu0 %v2077
        %2131 = vmatprep.subr.mxu0 0.0
        %2132 = vmatpush1.msra.mxu0 %v2076
        %2133 = vmatprep.subr.mxu0 0.0
        %2134 = vmatpush1.msra.mxu0 %v2075
        %2135 = vmatprep.subr.mxu0 0.0
        %2136 = vmatpush1.msra.mxu0 %v2074
        %2137 = vmatprep.subr.mxu0 0.0
        %2138 = vmatpush1.msra.mxu0 %v2073
        %2139 = vmatprep.subr.mxu0 0.0
        %2140 = vmatpush2.msra.mxu0 0.0
        %2141 = vmatprep.subr.mxu0 0.0
        %2142 = vmatpush2.msra.mxu0 0.0
        %2143 = vmatprep.subr.mxu0 0.0
        %2144 = vmatpush2.msra.mxu0 0.0
        %2145 = vmatprep.subr.mxu0 0.0
        %2146 = vmatpush2.msra.mxu0 0.0
        %2147 = vmatprep.subr.mxu0 0.0
        %2148 = vmatpush2.msra.mxu0 0.0
        %2149 = vmatprep.subr.mxu0 0.0
        %2150 = vmatpush2.msra.mxu0 0.0
        %2151 = vmatprep.subr.mxu0 0.0
        %2152 = vmatpush2.msra.mxu0 0.0
        %2153 = vmatprep.subr.mxu0 0.0
        %2154 = vmatpush2.msra.mxu0 0.0
        %2155 = vmatprep.subr.mxu0 0.0
        %2156 = vmatpush2.msra.mxu0 0.0
        %2157 = vmatprep.subr.mxu0 0.0
        %2158 = vmatpush2.msra.mxu0 0.0
        %2159 = vmatprep.subr.mxu0 0.0
        %2160 = vmatpush2.msra.mxu0 0.0
        %2161 = vmatprep.subr.mxu0 0.0
        %2162 = vmatpush2.msra.mxu0 0.0
        %2163 = vmatprep.subr.mxu0 0.0
        %2164 = vmatpush2.msra.mxu0 0.0
        %2165 = vmatprep.subr.mxu0 0.0
        %2166 = vmatpush2.msra.mxu0 0.0
        %2167 = vmatprep.subr.mxu0 0.0
        %2168 = vmatpush2.msra.mxu0 0.0
        %2169 = vmatprep.subr.mxu0 0.0
        %2170 = vmatpush2.msra.mxu0 0.0
        %2171 = vmatprep.mubr.f32.mxu0 0.0
        %2172 = vmatmul.mubr.f32.gmra.mxu0 %v2105
        %v2173 = vpop.f32.mrf.mxu0
        %v2174 = vadd.f32 %v2094, %v2173
        %v2175 = vpop.f32.mrf.mxu0
        %2176 = vdwg.mxu0
        %v2179 = vunpack.c.l.s4 1966171168
        %v2180 = vunpack.c.0.s8 %v2179
        %v2181 = vlaneseq
        %v2182 = vshrl.u32 %v2181, 7
        %v2183 = vsub.s32 %v2180, %v2182
        %v2184 = vrot.slane %v2174, %v2183
        %v2185 = vcombine.high %v2184, %v2184
        %v2187 = vunpack.c.l.s4 1966171168
        %v2188 = vunpack.c.0.s8 %v2187
        %v2189 = vlaneseq
        %v2190 = vshrl.u32 %v2189, 7
        %v2191 = vsub.s32 %v2188, %v2190
        %v2192 = vrot.slane %v2184, %v2191
        %v2194 = vunpack.c.l.s4 1966171168
        %v2195 = vunpack.c.0.s8 %v2194
        %v2196 = vlaneseq
        %v2197 = vshrl.u32 %v2196, 7
        %v2198 = vsub.s32 %v2195, %v2197
        %v2199 = vrot.slane %v2185, %v2198
        %v2200 = vcombine.high %v2192, %v2192
        %v2201 = vcombine.high %v2199, %v2199
        %v2206 = vld [vmem:[%s1] sm:$0x1]
        %v2207 = vadd.f32 %v2192, %v2206
        %v2208 = vadd.f32 %v2199, %v2206
        %v2209 = vadd.f32 %v2200, %v2206
        %v2210 = vadd.f32 %v2201, %v2206
        %v2211 = vld [vmem:[%s11] sm:$0x1]
        %v2212 = vld [vmem:[%s12] sm:$0x1]
        %v2217 = vcombine.low %v2207, %v2208
        %v2218 = vcombine.low %v2209, %v2210
        %v2220 = vunpack.c.l.s4 1966171168
        %v2221 = vunpack.c.0.s8 %v2220
        %v2222 = vlaneseq
        %v2223 = vshrl.u32 %v2222, 7
        %v2224 = vsub.s32 %v2221, %v2223
        %v2225 = vrot.slane %v2217, %v2224
        %v2227 = vunpack.c.l.s4 1966171168
        %v2228 = vunpack.c.0.s8 %v2227
        %v2229 = vlaneseq
        %v2230 = vshrl.u32 %v2229, 7
        %v2231 = vsub.s32 %v2228, %v2230
        %v2232 = vrot.slane %v2218, %v2231
        %v2233 = vcombine.low %v2225, %v2232
        %v2235 = vunpack.c.l.s4 1966171168
        %v2236 = vunpack.c.0.s8 %v2235
        %v2237 = vlaneseq
        %v2238 = vshrl.u32 %v2237, 7
        %v2239 = vsub.s32 %v2236, %v2238
        %v2240 = vrot.slane %v2233, %v2239
        %v2242 = vsel %vm2044, %v2240, 0.0
        %2243 = vadd.xlane.f32.xlu0 %v2242
        %v2244 = vpop.xlane.xlu0 %2243
        %v2245 = vmul.f32 %v2244, %v712
        %v2247 = vlaneseq
        %v2248 = vshrl.u32 %v2247, 7
        %v2249 = vsub.s32 0, %v2248
        %v2250 = vrot.slane %v2245, %v2249
        %v2251 = vlaneseq
        %v2252 = vshrl.u32 %v2251, 7
        %v2253 = vsub.s32 1, %v2252
        %v2254 = vrot.slane %v2245, %v2253
        %v2255 = vlaneseq
        %v2256 = vshrl.u32 %v2255, 7
        %v2257 = vsub.s32 2, %v2256
        %v2258 = vrot.slane %v2245, %v2257
        %v2259 = vlaneseq
        %v2260 = vshrl.u32 %v2259, 7
        %v2261 = vsub.s32 3, %v2260
        %v2262 = vrot.slane %v2245, %v2261
        %v2267 = vsub.f32 %v2207, %v2250
        %v2268 = vsub.f32 %v2208, %v2254
        %v2269 = vsub.f32 %v2209, %v2258
        %v2270 = vsub.f32 %v2210, %v2262
        %v2271 = vmul.f32 %v2267, %v2267
        %v2272 = vmul.f32 %v2268, %v2268
        %v2273 = vmul.f32 %v2269, %v2269
        %v2274 = vmul.f32 %v2270, %v2270
        %v2279 = vcombine.low %v2271, %v2272
        %v2280 = vcombine.low %v2273, %v2274
        %v2282 = vunpack.c.l.s4 1966171168
        %v2283 = vunpack.c.0.s8 %v2282
        %v2284 = vlaneseq
        %v2285 = vshrl.u32 %v2284, 7
        %v2286 = vsub.s32 %v2283, %v2285
        %v2287 = vrot.slane %v2279, %v2286
        %v2289 = vunpack.c.l.s4 1966171168
        %v2290 = vunpack.c.0.s8 %v2289
        %v2291 = vlaneseq
        %v2292 = vshrl.u32 %v2291, 7
        %v2293 = vsub.s32 %v2290, %v2292
        %v2294 = vrot.slane %v2280, %v2293
        %v2295 = vcombine.low %v2287, %v2294
        %v2297 = vunpack.c.l.s4 1966171168
        %v2298 = vunpack.c.0.s8 %v2297
        %v2299 = vlaneseq
        %v2300 = vshrl.u32 %v2299, 7
        %v2301 = vsub.s32 %v2298, %v2300
        %v2302 = vrot.slane %v2295, %v2301
        %v2304 = vsel %vm2044, %v2302, 0.0
        %2305 = vadd.xlane.f32.xlu0 %v2304
        %v2306 = vpop.xlane.xlu0 %2305
        %v2307 = vmul.f32 %v2306, %v712
        %v2308 = vadd.f32 %v2307, 1e-06
        %v2309 = vrsqrt.pop %v2308
        %v2311 = vlaneseq
        %v2312 = vshrl.u32 %v2311, 7
        %v2313 = vsub.s32 0, %v2312
        %v2314 = vrot.slane %v2309, %v2313
        %v2315 = vlaneseq
        %v2316 = vshrl.u32 %v2315, 7
        %v2317 = vsub.s32 1, %v2316
        %v2318 = vrot.slane %v2309, %v2317
        %v2319 = vlaneseq
        %v2320 = vshrl.u32 %v2319, 7
        %v2321 = vsub.s32 2, %v2320
        %v2322 = vrot.slane %v2309, %v2321
        %v2323 = vlaneseq
        %v2324 = vshrl.u32 %v2323, 7
        %v2325 = vsub.s32 3, %v2324
        %v2326 = vrot.slane %v2309, %v2325
        %v2331 = vmul.f32 %v2267, %v2314
        %v2332 = vmul.f32 %v2268, %v2318
        %v2333 = vmul.f32 %v2269, %v2322
        %v2334 = vmul.f32 %v2270, %v2326
        %v2336 = vlaneseq
        %v2337 = vshrl.u32 %v2336, 7
        %v2338 = vsub.s32 0, %v2337
        %v2339 = vrot.slane %v2211, %v2338
        %v2341 = vunpack.c.l.s4 1966171168
        %v2342 = vunpack.c.0.s8 %v2341
        %v2343 = vlaneseq
        %v2344 = vshrl.u32 %v2343, 7
        %v2345 = vsub.s32 %v2342, %v2344
        %v2346 = vrot.slane %v2339, %v2345
        %v2347 = vcombine.high %v2346, %v2346
        %v2349 = vunpack.c.l.s4 1966171168
        %v2350 = vunpack.c.0.s8 %v2349
        %v2351 = vlaneseq
        %v2352 = vshrl.u32 %v2351, 7
        %v2353 = vsub.s32 %v2350, %v2352
        %v2354 = vrot.slane %v2346, %v2353
        %v2356 = vunpack.c.l.s4 1966171168
        %v2357 = vunpack.c.0.s8 %v2356
        %v2358 = vlaneseq
        %v2359 = vshrl.u32 %v2358, 7
        %v2360 = vsub.s32 %v2357, %v2359
        %v2361 = vrot.slane %v2347, %v2360
        %v2362 = vcombine.high %v2354, %v2354
        %v2363 = vcombine.high %v2361, %v2361
        %v2368 = vmul.f32 %v2331, %v2354
        %v2369 = vmul.f32 %v2332, %v2361
        %v2370 = vmul.f32 %v2333, %v2362
        %v2371 = vmul.f32 %v2334, %v2363
        %v2373 = vlaneseq
        %v2374 = vshrl.u32 %v2373, 7
        %v2375 = vsub.s32 0, %v2374
        %v2376 = vrot.slane %v2212, %v2375
        %v2378 = vunpack.c.l.s4 1966171168
        %v2379 = vunpack.c.0.s8 %v2378
        %v2380 = vlaneseq
        %v2381 = vshrl.u32 %v2380, 7
        %v2382 = vsub.s32 %v2379, %v2381
        %v2383 = vrot.slane %v2376, %v2382
        %v2384 = vcombine.high %v2383, %v2383
        %v2386 = vunpack.c.l.s4 1966171168
        %v2387 = vunpack.c.0.s8 %v2386
        %v2388 = vlaneseq
        %v2389 = vshrl.u32 %v2388, 7
        %v2390 = vsub.s32 %v2387, %v2389
        %v2391 = vrot.slane %v2383, %v2390
        %v2393 = vunpack.c.l.s4 1966171168
        %v2394 = vunpack.c.0.s8 %v2393
        %v2395 = vlaneseq
        %v2396 = vshrl.u32 %v2395, 7
        %v2397 = vsub.s32 %v2394, %v2396
        %v2398 = vrot.slane %v2384, %v2397
        %v2399 = vcombine.high %v2391, %v2391
        %v2400 = vcombine.high %v2398, %v2398
        %v2405 = vadd.f32 %v2368, %v2391
        %v2406 = vadd.f32 %v2369, %v2398
        %v2407 = vadd.f32 %v2370, %v2399
        %v2408 = vadd.f32 %v2371, %v2400
        %v2409 = vld [vmem:[#allocation7] sm:$0xff]
        %v2410 = vld [vmem:[#allocation7 + $0x8] sm:$0xff]
        %v2411 = vld [vmem:[#allocation7 + $0x10] sm:$0xff]
        %v2412 = vld [vmem:[#allocation7 + $0x18] sm:$0xff]
        %v2413 = vld [vmem:[#allocation7 + $0x20] sm:$0xff]
        %v2414 = vld [vmem:[#allocation7 + $0x28] sm:$0xff]
        %v2415 = vld [vmem:[#allocation7 + $0x30] sm:$0xff]
        %v2416 = vld [vmem:[#allocation7 + $0x38] sm:$0xff]
        %v2417 = vld [vmem:[#allocation7 + $0x40] sm:$0xff]
        %v2418 = vld [vmem:[#allocation7 + $0x48] sm:$0xff]
        %v2419 = vld [vmem:[#allocation7 + $0x50] sm:$0xff]
        %v2420 = vld [vmem:[#allocation7 + $0x58] sm:$0xff]
        %v2421 = vld [vmem:[#allocation7 + $0x60] sm:$0xff]
        %v2422 = vld [vmem:[#allocation7 + $0x68] sm:$0xff]
        %v2423 = vld [vmem:[#allocation7 + $0x70] sm:$0xff]
        %v2424 = vld [vmem:[#allocation7 + $0x78] sm:$0xff]
        %v2425 = vld [vmem:[#allocation7 + $0x80] sm:$0xff]
        %v2426 = vld [vmem:[#allocation7 + $0x88] sm:$0xff]
        %v2427 = vld [vmem:[#allocation7 + $0x90] sm:$0xff]
        %v2428 = vld [vmem:[#allocation7 + $0x98] sm:$0xff]
        %v2429 = vld [vmem:[#allocation7 + $0xa0] sm:$0xff]
        %v2430 = vld [vmem:[#allocation7 + $0xa8] sm:$0xff]
        %v2431 = vld [vmem:[#allocation7 + $0xb0] sm:$0xff]
        %v2432 = vld [vmem:[#allocation7 + $0xb8] sm:$0xff]
        %v2433 = vld [vmem:[#allocation7 + $0xc0] sm:$0xff]
        %v2434 = vld [vmem:[#allocation7 + $0xc8] sm:$0xff]
        %v2435 = vld [vmem:[#allocation7 + $0xd0] sm:$0xff]
        %v2436 = vld [vmem:[#allocation7 + $0xd8] sm:$0xff]
        %v2437 = vld [vmem:[#allocation7 + $0xe0] sm:$0xff]
        %v2438 = vld [vmem:[#allocation7 + $0xe8] sm:$0xff]
        %v2439 = vld [vmem:[#allocation7 + $0xf0] sm:$0xff]
        %v2440 = vld [vmem:[#allocation7 + $0xf8] sm:$0xff]
        %v2441 = vld [vmem:[#allocation7 + $0x100] sm:$0xff]
        %v2442 = vld [vmem:[#allocation7 + $0x108] sm:$0xff]
        %v2443 = vld [vmem:[#allocation7 + $0x110] sm:$0xff]
        %v2444 = vld [vmem:[#allocation7 + $0x118] sm:$0xff]
        %v2445 = vld [vmem:[#allocation7 + $0x120] sm:$0xff]
        %v2446 = vld [vmem:[#allocation7 + $0x128] sm:$0xff]
        %v2447 = vld [vmem:[#allocation7 + $0x130] sm:$0xff]
        %v2448 = vld [vmem:[#allocation7 + $0x138] sm:$0xff]
        %v2449 = vld [vmem:[#allocation7 + $0x140] sm:$0xff]
        %v2450 = vld [vmem:[#allocation7 + $0x148] sm:$0xff]
        %v2451 = vld [vmem:[#allocation7 + $0x150] sm:$0xff]
        %v2452 = vld [vmem:[#allocation7 + $0x158] sm:$0xff]
        %v2453 = vld [vmem:[#allocation7 + $0x160] sm:$0xff]
        %v2454 = vld [vmem:[#allocation7 + $0x168] sm:$0xff]
        %v2455 = vld [vmem:[#allocation7 + $0x170] sm:$0xff]
        %v2456 = vld [vmem:[#allocation7 + $0x178] sm:$0xff]
        %v2457 = vld [vmem:[#allocation7 + $0x180] sm:$0xff]
        %v2458 = vld [vmem:[#allocation7 + $0x188] sm:$0xff]
        %v2459 = vld [vmem:[#allocation7 + $0x190] sm:$0xff]
        %v2460 = vld [vmem:[#allocation7 + $0x198] sm:$0xff]
        %v2461 = vld [vmem:[#allocation7 + $0x1a0] sm:$0xff]
        %v2462 = vld [vmem:[#allocation7 + $0x1a8] sm:$0xff]
        %v2463 = vld [vmem:[#allocation7 + $0x1b0] sm:$0xff]
        %v2464 = vld [vmem:[#allocation7 + $0x1b8] sm:$0xff]
        %v2465 = vld [vmem:[#allocation7 + $0x1c0] sm:$0xff]
        %v2466 = vld [vmem:[#allocation7 + $0x1c8] sm:$0xff]
        %v2467 = vld [vmem:[#allocation7 + $0x1d0] sm:$0xff]
        %v2468 = vld [vmem:[#allocation7 + $0x1d8] sm:$0xff]
        %v2469 = vld [vmem:[#allocation7 + $0x1e0] sm:$0xff]
        %v2470 = vld [vmem:[#allocation7 + $0x1e8] sm:$0xff]
        %v2471 = vld [vmem:[#allocation7 + $0x1f0] sm:$0xff]
        %v2472 = vld [vmem:[#allocation7 + $0x1f8] sm:$0xff]
        %v2473 = vld [vmem:[%s14] sm:$0xf]
        %v2475 = vlaneseq
        %v2476 = vshrl.u32 %v2475, 7
        %v2477 = vsub.s32 0, %v2476
        %v2478 = vrot.slane %v2473, %v2477
        %v2479 = vlaneseq
        %v2480 = vshrl.u32 %v2479, 7
        %v2481 = vsub.s32 1, %v2480
        %v2482 = vrot.slane %v2473, %v2481
        %v2483 = vlaneseq
        %v2484 = vshrl.u32 %v2483, 7
        %v2485 = vsub.s32 2, %v2484
        %v2486 = vrot.slane %v2473, %v2485
        %v2487 = vlaneseq
        %v2488 = vshrl.u32 %v2487, 7
        %v2489 = vsub.s32 3, %v2488
        %v2490 = vrot.slane %v2473, %v2489
        %v2499 = vcombine.low %v2405, %v2406
        %v2500 = vcombine.low %v2407, %v2408
        %v2502 = vunpack.c.l.s4 1966171168
        %v2503 = vunpack.c.0.s8 %v2502
        %v2504 = vlaneseq
        %v2505 = vshrl.u32 %v2504, 7
        %v2506 = vsub.s32 %v2503, %v2505
        %v2507 = vrot.slane %v2499, %v2506
        %v2509 = vunpack.c.l.s4 1966171168
        %v2510 = vunpack.c.0.s8 %v2509
        %v2511 = vlaneseq
        %v2512 = vshrl.u32 %v2511, 7
        %v2513 = vsub.s32 %v2510, %v2512
        %v2514 = vrot.slane %v2500, %v2513
        %v2515 = vcombine.low %v2507, %v2514
        %v2517 = vunpack.c.l.s4 1966171168
        %v2518 = vunpack.c.0.s8 %v2517
        %v2519 = vlaneseq
        %v2520 = vshrl.u32 %v2519, 7
        %v2521 = vsub.s32 %v2518, %v2520
        %v2522 = vrot.slane %v2515, %v2521
        %2524 = vmatprep.subr.mxu0 %v2470
        %2525 = vmatpush1.msra.mxu0 %v2469
        %2526 = vmatprep.subr.mxu0 %v2466
        %2527 = vmatpush1.msra.mxu0 %v2465
        %2528 = vmatprep.subr.mxu0 %v2462
        %2529 = vmatpush1.msra.mxu0 %v2461
        %2530 = vmatprep.subr.mxu0 %v2458
        %2531 = vmatpush1.msra.mxu0 %v2457
        %2532 = vmatprep.subr.mxu0 %v2454
        %2533 = vmatpush1.msra.mxu0 %v2453
        %2534 = vmatprep.subr.mxu0 %v2450
        %2535 = vmatpush1.msra.mxu0 %v2449
        %2536 = vmatprep.subr.mxu0 %v2446
        %2537 = vmatpush1.msra.mxu0 %v2445
        %2538 = vmatprep.subr.mxu0 %v2442
        %2539 = vmatpush1.msra.mxu0 %v2441
        %2540 = vmatprep.subr.mxu0 %v2438
        %2541 = vmatpush1.msra.mxu0 %v2437
        %2542 = vmatprep.subr.mxu0 %v2434
        %2543 = vmatpush1.msra.mxu0 %v2433
        %2544 = vmatprep.subr.mxu0 %v2430
        %2545 = vmatpush1.msra.mxu0 %v2429
        %2546 = vmatprep.subr.mxu0 %v2426
        %2547 = vmatpush1.msra.mxu0 %v2425
        %2548 = vmatprep.subr.mxu0 %v2422
        %2549 = vmatpush1.msra.mxu0 %v2421
        %2550 = vmatprep.subr.mxu0 %v2418
        %2551 = vmatpush1.msra.mxu0 %v2417
        %2552 = vmatprep.subr.mxu0 %v2414
        %2553 = vmatpush1.msra.mxu0 %v2413
        %2554 = vmatprep.subr.mxu0 %v2410
        %2555 = vmatpush1.msra.mxu0 %v2409
        %2556 = vmatprep.subr.mxu0 0.0
        %2557 = vmatpush2.msra.mxu0 0.0
        %2558 = vmatprep.subr.mxu0 0.0
        %2559 = vmatpush2.msra.mxu0 0.0
        %2560 = vmatprep.subr.mxu0 0.0
        %2561 = vmatpush2.msra.mxu0 0.0
        %2562 = vmatprep.subr.mxu0 0.0
        %2563 = vmatpush2.msra.mxu0 0.0
        %2564 = vmatprep.subr.mxu0 0.0
        %2565 = vmatpush2.msra.mxu0 0.0
        %2566 = vmatprep.subr.mxu0 0.0
        %2567 = vmatpush2.msra.mxu0 0.0
        %2568 = vmatprep.subr.mxu0 0.0
        %2569 = vmatpush2.msra.mxu0 0.0
        %2570 = vmatprep.subr.mxu0 0.0
        %2571 = vmatpush2.msra.mxu0 0.0
        %2572 = vmatprep.subr.mxu0 0.0
        %2573 = vmatpush2.msra.mxu0 0.0
        %2574 = vmatprep.subr.mxu0 0.0
        %2575 = vmatpush2.msra.mxu0 0.0
        %2576 = vmatprep.subr.mxu0 0.0
        %2577 = vmatpush2.msra.mxu0 0.0
        %2578 = vmatprep.subr.mxu0 0.0
        %2579 = vmatpush2.msra.mxu0 0.0
        %2580 = vmatprep.subr.mxu0 0.0
        %2581 = vmatpush2.msra.mxu0 0.0
        %2582 = vmatprep.subr.mxu0 0.0
        %2583 = vmatpush2.msra.mxu0 0.0
        %2584 = vmatprep.subr.mxu0 0.0
        %2585 = vmatpush2.msra.mxu0 0.0
        %2586 = vmatprep.subr.mxu0 0.0
        %2587 = vmatpush2.msra.mxu0 0.0
        %2588 = vmatprep.mubr.f32.mxu0 0.0
        %2589 = vmatmul.mubr.f32.gmra.mxu0 %v2522
        %v2590 = vpop.f32.mrf.mxu0
        %v2591 = vadd.f32 %v2478, %v2590
        %v2592 = vpop.f32.mrf.mxu0
        %v2593 = vadd.f32 %v2482, %v2592
        %2594 = vdwg.mxu0
        %2595 = vmatprep.subr.mxu0 %v2472
        %2596 = vmatpush1.msra.mxu0 %v2471
        %2597 = vmatprep.subr.mxu0 %v2468
        %2598 = vmatpush1.msra.mxu0 %v2467
        %2599 = vmatprep.subr.mxu0 %v2464
        %2600 = vmatpush1.msra.mxu0 %v2463
        %2601 = vmatprep.subr.mxu0 %v2460
        %2602 = vmatpush1.msra.mxu0 %v2459
        %2603 = vmatprep.subr.mxu0 %v2456
        %2604 = vmatpush1.msra.mxu0 %v2455
        %2605 = vmatprep.subr.mxu0 %v2452
        %2606 = vmatpush1.msra.mxu0 %v2451
        %2607 = vmatprep.subr.mxu0 %v2448
        %2608 = vmatpush1.msra.mxu0 %v2447
        %2609 = vmatprep.subr.mxu0 %v2444
        %2610 = vmatpush1.msra.mxu0 %v2443
        %2611 = vmatprep.subr.mxu0 %v2440
        %2612 = vmatpush1.msra.mxu0 %v2439
        %2613 = vmatprep.subr.mxu0 %v2436
        %2614 = vmatpush1.msra.mxu0 %v2435
        %2615 = vmatprep.subr.mxu0 %v2432
        %2616 = vmatpush1.msra.mxu0 %v2431
        %2617 = vmatprep.subr.mxu0 %v2428
        %2618 = vmatpush1.msra.mxu0 %v2427
        %2619 = vmatprep.subr.mxu0 %v2424
        %2620 = vmatpush1.msra.mxu0 %v2423
        %2621 = vmatprep.subr.mxu0 %v2420
        %2622 = vmatpush1.msra.mxu0 %v2419
        %2623 = vmatprep.subr.mxu0 %v2416
        %2624 = vmatpush1.msra.mxu0 %v2415
        %2625 = vmatprep.subr.mxu0 %v2412
        %2626 = vmatpush1.msra.mxu0 %v2411
        %2627 = vmatprep.subr.mxu0 0.0
        %2628 = vmatpush2.msra.mxu0 0.0
        %2629 = vmatprep.subr.mxu0 0.0
        %2630 = vmatpush2.msra.mxu0 0.0
        %2631 = vmatprep.subr.mxu0 0.0
        %2632 = vmatpush2.msra.mxu0 0.0
        %2633 = vmatprep.subr.mxu0 0.0
        %2634 = vmatpush2.msra.mxu0 0.0
        %2635 = vmatprep.subr.mxu0 0.0
        %2636 = vmatpush2.msra.mxu0 0.0
        %2637 = vmatprep.subr.mxu0 0.0
        %2638 = vmatpush2.msra.mxu0 0.0
        %2639 = vmatprep.subr.mxu0 0.0
        %2640 = vmatpush2.msra.mxu0 0.0
        %2641 = vmatprep.subr.mxu0 0.0
        %2642 = vmatpush2.msra.mxu0 0.0
        %2643 = vmatprep.subr.mxu0 0.0
        %2644 = vmatpush2.msra.mxu0 0.0
        %2645 = vmatprep.subr.mxu0 0.0
        %2646 = vmatpush2.msra.mxu0 0.0
        %2647 = vmatprep.subr.mxu0 0.0
        %2648 = vmatpush2.msra.mxu0 0.0
        %2649 = vmatprep.subr.mxu0 0.0
        %2650 = vmatpush2.msra.mxu0 0.0
        %2651 = vmatprep.subr.mxu0 0.0
        %2652 = vmatpush2.msra.mxu0 0.0
        %2653 = vmatprep.subr.mxu0 0.0
        %2654 = vmatpush2.msra.mxu0 0.0
        %2655 = vmatprep.subr.mxu0 0.0
        %2656 = vmatpush2.msra.mxu0 0.0
        %2657 = vmatprep.subr.mxu0 0.0
        %2658 = vmatpush2.msra.mxu0 0.0
        %2659 = vmatprep.mubr.f32.mxu0 0.0
        %2660 = vmatmul.mubr.f32.gmra.mxu0 %v2522
        %v2661 = vpop.f32.mrf.mxu0
        %v2662 = vadd.f32 %v2486, %v2661
        %v2663 = vpop.f32.mrf.mxu0
        %v2664 = vadd.f32 %v2490, %v2663
        %2665 = vdwg.mxu0
        %v2666 = vmul.f32 %v2591, %v2591
        %v2667 = vmul.f32 %v2593, %v2593
        %v2668 = vmul.f32 %v2662, %v2662
        %v2669 = vmul.f32 %v2664, %v2664
        %v2670 = vmul.f32 %v2591, %v2666
        %v2671 = vmul.f32 %v2593, %v2667
        %v2672 = vmul.f32 %v2662, %v2668
        %v2673 = vmul.f32 %v2664, %v2669
        %v2674 = vmul.f32 %v2670, 0.044715
        %v2675 = vmul.f32 %v2671, 0.044715
        %v2676 = vmul.f32 %v2672, 0.044715
        %v2677 = vmul.f32 %v2673, 0.044715
        %v2678 = vadd.f32 %v2591, %v2674
        %v2679 = vadd.f32 %v2593, %v2675
        %v2680 = vadd.f32 %v2662, %v2676
        %v2681 = vadd.f32 %v2664, %v2677
        %v2682 = vmul.f32 %v2678, 0.7978846
        %v2683 = vmul.f32 %v2679, 0.7978846
        %v2684 = vmul.f32 %v2680, 0.7978846
        %v2685 = vmul.f32 %v2681, 0.7978846
        %v2686 = vtanh.pop %v2682
        %v2687 = vtanh.pop %v2683
        %v2688 = vtanh.pop %v2684
        %v2689 = vtanh.pop %v2685
        %v2690 = vadd.f32 %v2686, 1.0
        %v2691 = vadd.f32 %v2687, 1.0
        %v2692 = vadd.f32 %v2688, 1.0
        %v2693 = vadd.f32 %v2689, 1.0
        %v2694 = vmul.f32 %v2690, 0.5
        %v2695 = vmul.f32 %v2691, 0.5
        %v2696 = vmul.f32 %v2692, 0.5
        %v2697 = vmul.f32 %v2693, 0.5
        %v2698 = vmul.f32 %v2591, %v2694
        %v2699 = vmul.f32 %v2593, %v2695
        %v2700 = vmul.f32 %v2662, %v2696
        %v2701 = vmul.f32 %v2664, %v2697
        %v2702 = vld [vmem:[#allocation8] sm:$0xff]
        %v2703 = vld [vmem:[#allocation8 + $0x8] sm:$0xff]
        %v2704 = vld [vmem:[#allocation8 + $0x10] sm:$0xff]
        %v2705 = vld [vmem:[#allocation8 + $0x18] sm:$0xff]
        %v2706 = vld [vmem:[#allocation8 + $0x20] sm:$0xff]
        %v2707 = vld [vmem:[#allocation8 + $0x28] sm:$0xff]
        %v2708 = vld [vmem:[#allocation8 + $0x30] sm:$0xff]
        %v2709 = vld [vmem:[#allocation8 + $0x38] sm:$0xff]
        %v2710 = vld [vmem:[#allocation8 + $0x40] sm:$0xff]
        %v2711 = vld [vmem:[#allocation8 + $0x48] sm:$0xff]
        %v2712 = vld [vmem:[#allocation8 + $0x50] sm:$0xff]
        %v2713 = vld [vmem:[#allocation8 + $0x58] sm:$0xff]
        %v2714 = vld [vmem:[#allocation8 + $0x60] sm:$0xff]
        %v2715 = vld [vmem:[#allocation8 + $0x68] sm:$0xff]
        %v2716 = vld [vmem:[#allocation8 + $0x70] sm:$0xff]
        %v2717 = vld [vmem:[#allocation8 + $0x78] sm:$0xff]
        %v2718 = vld [vmem:[#allocation8 + $0x80] sm:$0xff]
        %v2719 = vld [vmem:[#allocation8 + $0x88] sm:$0xff]
        %v2720 = vld [vmem:[#allocation8 + $0x90] sm:$0xff]
        %v2721 = vld [vmem:[#allocation8 + $0x98] sm:$0xff]
        %v2722 = vld [vmem:[#allocation8 + $0xa0] sm:$0xff]
        %v2723 = vld [vmem:[#allocation8 + $0xa8] sm:$0xff]
        %v2724 = vld [vmem:[#allocation8 + $0xb0] sm:$0xff]
        %v2725 = vld [vmem:[#allocation8 + $0xb8] sm:$0xff]
        %v2726 = vld [vmem:[#allocation8 + $0xc0] sm:$0xff]
        %v2727 = vld [vmem:[#allocation8 + $0xc8] sm:$0xff]
        %v2728 = vld [vmem:[#allocation8 + $0xd0] sm:$0xff]
        %v2729 = vld [vmem:[#allocation8 + $0xd8] sm:$0xff]
        %v2730 = vld [vmem:[#allocation8 + $0xe0] sm:$0xff]
        %v2731 = vld [vmem:[#allocation8 + $0xe8] sm:$0xff]
        %v2732 = vld [vmem:[#allocation8 + $0xf0] sm:$0xff]
        %v2733 = vld [vmem:[#allocation8 + $0xf8] sm:$0xff]
        %v2734 = vld [vmem:[#allocation8 + $0x100] sm:$0xff]
        %v2735 = vld [vmem:[#allocation8 + $0x108] sm:$0xff]
        %v2736 = vld [vmem:[#allocation8 + $0x110] sm:$0xff]
        %v2737 = vld [vmem:[#allocation8 + $0x118] sm:$0xff]
        %v2738 = vld [vmem:[#allocation8 + $0x120] sm:$0xff]
        %v2739 = vld [vmem:[#allocation8 + $0x128] sm:$0xff]
        %v2740 = vld [vmem:[#allocation8 + $0x130] sm:$0xff]
        %v2741 = vld [vmem:[#allocation8 + $0x138] sm:$0xff]
        %v2742 = vld [vmem:[#allocation8 + $0x140] sm:$0xff]
        %v2743 = vld [vmem:[#allocation8 + $0x148] sm:$0xff]
        %v2744 = vld [vmem:[#allocation8 + $0x150] sm:$0xff]
        %v2745 = vld [vmem:[#allocation8 + $0x158] sm:$0xff]
        %v2746 = vld [vmem:[#allocation8 + $0x160] sm:$0xff]
        %v2747 = vld [vmem:[#allocation8 + $0x168] sm:$0xff]
        %v2748 = vld [vmem:[#allocation8 + $0x170] sm:$0xff]
        %v2749 = vld [vmem:[#allocation8 + $0x178] sm:$0xff]
        %v2750 = vld [vmem:[#allocation8 + $0x180] sm:$0xff]
        %v2751 = vld [vmem:[#allocation8 + $0x188] sm:$0xff]
        %v2752 = vld [vmem:[#allocation8 + $0x190] sm:$0xff]
        %v2753 = vld [vmem:[#allocation8 + $0x198] sm:$0xff]
        %v2754 = vld [vmem:[#allocation8 + $0x1a0] sm:$0xff]
        %v2755 = vld [vmem:[#allocation8 + $0x1a8] sm:$0xff]
        %v2756 = vld [vmem:[#allocation8 + $0x1b0] sm:$0xff]
        %v2757 = vld [vmem:[#allocation8 + $0x1b8] sm:$0xff]
        %v2758 = vld [vmem:[#allocation8 + $0x1c0] sm:$0xff]
        %v2759 = vld [vmem:[#allocation8 + $0x1c8] sm:$0xff]
        %v2760 = vld [vmem:[#allocation8 + $0x1d0] sm:$0xff]
        %v2761 = vld [vmem:[#allocation8 + $0x1d8] sm:$0xff]
        %v2762 = vld [vmem:[#allocation8 + $0x1e0] sm:$0xff]
        %v2763 = vld [vmem:[#allocation8 + $0x1e8] sm:$0xff]
        %v2764 = vld [vmem:[#allocation8 + $0x1f0] sm:$0xff]
        %v2765 = vld [vmem:[#allocation8 + $0x1f8] sm:$0xff]
        %v2766 = vld [vmem:[%s16] sm:$0x1]
        %v2768 = vlaneseq
        %v2769 = vshrl.u32 %v2768, 7
        %v2770 = vsub.s32 0, %v2769
        %v2771 = vrot.slane %v2766, %v2770
        %2773 = vmatprep.subr.mxu0 0.0
        %2774 = vmatpush1.msra.mxu0 %v2717
        %2775 = vmatprep.subr.mxu0 0.0
        %2776 = vmatpush1.msra.mxu0 %v2716
        %2777 = vmatprep.subr.mxu0 0.0
        %2778 = vmatpush1.msra.mxu0 %v2715
        %2779 = vmatprep.subr.mxu0 0.0
        %2780 = vmatpush1.msra.mxu0 %v2714
        %2781 = vmatprep.subr.mxu0 0.0
        %2782 = vmatpush1.msra.mxu0 %v2713
        %2783 = vmatprep.subr.mxu0 0.0
        %2784 = vmatpush1.msra.mxu0 %v2712
        %2785 = vmatprep.subr.mxu0 0.0
        %2786 = vmatpush1.msra.mxu0 %v2711
        %2787 = vmatprep.subr.mxu0 0.0
        %2788 = vmatpush1.msra.mxu0 %v2710
        %2789 = vmatprep.subr.mxu0 0.0
        %2790 = vmatpush1.msra.mxu0 %v2709
        %2791 = vmatprep.subr.mxu0 0.0
        %2792 = vmatpush1.msra.mxu0 %v2708
        %2793 = vmatprep.subr.mxu0 0.0
        %2794 = vmatpush1.msra.mxu0 %v2707
        %2795 = vmatprep.subr.mxu0 0.0
        %2796 = vmatpush1.msra.mxu0 %v2706
        %2797 = vmatprep.subr.mxu0 0.0
        %2798 = vmatpush1.msra.mxu0 %v2705
        %2799 = vmatprep.subr.mxu0 0.0
        %2800 = vmatpush1.msra.mxu0 %v2704
        %2801 = vmatprep.subr.mxu0 0.0
        %2802 = vmatpush1.msra.mxu0 %v2703
        %2803 = vmatprep.subr.mxu0 0.0
        %2804 = vmatpush1.msra.mxu0 %v2702
        %2805 = vmatprep.subr.mxu0 0.0
        %2806 = vmatpush2.msra.mxu0 %v2733
        %2807 = vmatprep.subr.mxu0 0.0
        %2808 = vmatpush2.msra.mxu0 %v2732
        %2809 = vmatprep.subr.mxu0 0.0
        %2810 = vmatpush2.msra.mxu0 %v2731
        %2811 = vmatprep.subr.mxu0 0.0
        %2812 = vmatpush2.msra.mxu0 %v2730
        %2813 = vmatprep.subr.mxu0 0.0
        %2814 = vmatpush2.msra.mxu0 %v2729
        %2815 = vmatprep.subr.mxu0 0.0
        %2816 = vmatpush2.msra.mxu0 %v2728
        %2817 = vmatprep.subr.mxu0 0.0
        %2818 = vmatpush2.msra.mxu0 %v2727
        %2819 = vmatprep.subr.mxu0 0.0
        %2820 = vmatpush2.msra.mxu0 %v2726
        %2821 = vmatprep.subr.mxu0 0.0
        %2822 = vmatpush2.msra.mxu0 %v2725
        %2823 = vmatprep.subr.mxu0 0.0
        %2824 = vmatpush2.msra.mxu0 %v2724
        %2825 = vmatprep.subr.mxu0 0.0
        %2826 = vmatpush2.msra.mxu0 %v2723
        %2827 = vmatprep.subr.mxu0 0.0
        %2828 = vmatpush2.msra.mxu0 %v2722
        %2829 = vmatprep.subr.mxu0 0.0
        %2830 = vmatpush2.msra.mxu0 %v2721
        %2831 = vmatprep.subr.mxu0 0.0
        %2832 = vmatpush2.msra.mxu0 %v2720
        %2833 = vmatprep.subr.mxu0 0.0
        %2834 = vmatpush2.msra.mxu0 %v2719
        %2835 = vmatprep.subr.mxu0 0.0
        %2836 = vmatpush2.msra.mxu0 %v2718
        %2837 = vmatprep.mubr.f32.mxu0 %v2699
        %2838 = vmatmul.mubr.f32.gmra.mxu0 %v2698
        %v2839 = vpop.f32.mrf.mxu0
        %v2840 = vadd.f32 %v2771, %v2839
        %v2841 = vpop.f32.mrf.mxu0
        %2842 = vdwg.mxu0
        %2843 = vmatprep.subr.mxu0 0.0
        %2844 = vmatpush1.msra.mxu0 %v2749
        %2845 = vmatprep.subr.mxu0 0.0
        %2846 = vmatpush1.msra.mxu0 %v2748
        %2847 = vmatprep.subr.mxu0 0.0
        %2848 = vmatpush1.msra.mxu0 %v2747
        %2849 = vmatprep.subr.mxu0 0.0
        %2850 = vmatpush1.msra.mxu0 %v2746
        %2851 = vmatprep.subr.mxu0 0.0
        %2852 = vmatpush1.msra.mxu0 %v2745
        %2853 = vmatprep.subr.mxu0 0.0
        %2854 = vmatpush1.msra.mxu0 %v2744
        %2855 = vmatprep.subr.mxu0 0.0
        %2856 = vmatpush1.msra.mxu0 %v2743
        %2857 = vmatprep.subr.mxu0 0.0
        %2858 = vmatpush1.msra.mxu0 %v2742
        %2859 = vmatprep.subr.mxu0 0.0
        %2860 = vmatpush1.msra.mxu0 %v2741
        %2861 = vmatprep.subr.mxu0 0.0
        %2862 = vmatpush1.msra.mxu0 %v2740
        %2863 = vmatprep.subr.mxu0 0.0
        %2864 = vmatpush1.msra.mxu0 %v2739
        %2865 = vmatprep.subr.mxu0 0.0
        %2866 = vmatpush1.msra.mxu0 %v2738
        %2867 = vmatprep.subr.mxu0 0.0
        %2868 = vmatpush1.msra.mxu0 %v2737
        %2869 = vmatprep.subr.mxu0 0.0
        %2870 = vmatpush1.msra.mxu0 %v2736
        %2871 = vmatprep.subr.mxu0 0.0
        %2872 = vmatpush1.msra.mxu0 %v2735
        %2873 = vmatprep.subr.mxu0 0.0
        %2874 = vmatpush1.msra.mxu0 %v2734
        %2875 = vmatprep.subr.mxu0 0.0
        %2876 = vmatpush2.msra.mxu0 %v2765
        %2877 = vmatprep.subr.mxu0 0.0
        %2878 = vmatpush2.msra.mxu0 %v2764
        %2879 = vmatprep.subr.mxu0 0.0
        %2880 = vmatpush2.msra.mxu0 %v2763
        %2881 = vmatprep.subr.mxu0 0.0
        %2882 = vmatpush2.msra.mxu0 %v2762
        %2883 = vmatprep.subr.mxu0 0.0
        %2884 = vmatpush2.msra.mxu0 %v2761
        %2885 = vmatprep.subr.mxu0 0.0
        %2886 = vmatpush2.msra.mxu0 %v2760
        %2887 = vmatprep.subr.mxu0 0.0
        %2888 = vmatpush2.msra.mxu0 %v2759
        %2889 = vmatprep.subr.mxu0 0.0
        %2890 = vmatpush2.msra.mxu0 %v2758
        %2891 = vmatprep.subr.mxu0 0.0
        %2892 = vmatpush2.msra.mxu0 %v2757
        %2893 = vmatprep.subr.mxu0 0.0
        %2894 = vmatpush2.msra.mxu0 %v2756
        %2895 = vmatprep.subr.mxu0 0.0
        %2896 = vmatpush2.msra.mxu0 %v2755
        %2897 = vmatprep.subr.mxu0 0.0
        %2898 = vmatpush2.msra.mxu0 %v2754
        %2899 = vmatprep.subr.mxu0 0.0
        %2900 = vmatpush2.msra.mxu0 %v2753
        %2901 = vmatprep.subr.mxu0 0.0
        %2902 = vmatpush2.msra.mxu0 %v2752
        %2903 = vmatprep.subr.mxu0 0.0
        %2904 = vmatpush2.msra.mxu0 %v2751
        %2905 = vmatprep.subr.mxu0 0.0
        %2906 = vmatpush2.msra.mxu0 %v2750
        %2907 = vmatprep.mubr.f32.mxu0 %v2701
        %2908 = vmatmul.mubr.f32.gmra.mxu0 %v2700
        %v2909 = vpop.f32.mrf.mxu0
        %v2910 = vadd.f32 %v2840, %v2909
        %v2911 = vpop.f32.mrf.mxu0
        %2912 = vdwg.mxu0
        %v2915 = vunpack.c.l.s4 1966171168
        %v2916 = vunpack.c.0.s8 %v2915
        %v2917 = vlaneseq
        %v2918 = vshrl.u32 %v2917, 7
        %v2919 = vsub.s32 %v2916, %v2918
        %v2920 = vrot.slane %v2910, %v2919
        %v2921 = vcombine.high %v2920, %v2920
        %v2923 = vunpack.c.l.s4 1966171168
        %v2924 = vunpack.c.0.s8 %v2923
        %v2925 = vlaneseq
        %v2926 = vshrl.u32 %v2925, 7
        %v2927 = vsub.s32 %v2924, %v2926
        %v2928 = vrot.slane %v2920, %v2927
        %v2930 = vunpack.c.l.s4 1966171168
        %v2931 = vunpack.c.0.s8 %v2930
        %v2932 = vlaneseq
        %v2933 = vshrl.u32 %v2932, 7
        %v2934 = vsub.s32 %v2931, %v2933
        %v2935 = vrot.slane %v2921, %v2934
        %v2936 = vcombine.high %v2928, %v2928
        %v2937 = vcombine.high %v2935, %v2935
        %v2942 = vadd.f32 %v2928, %v2207
        %v2943 = vadd.f32 %v2935, %v2208
        %v2944 = vadd.f32 %v2936, %v2209
        %v2945 = vadd.f32 %v2937, %v2210
        %2946 = vst [vmem:[%s611] sm:$0x1] %v2942
        %2947 = vst [vmem:[%s611 + $0x1] sm:$0x1] %v2943
        %2948 = vst [vmem:[%s611 + $0x2] sm:$0x1] %v2944
        %2949 = vst [vmem:[%s611 + $0x3] sm:$0x1] %v2945
        %s2950 = sand.u32 %s406, 1
        %s2951 = scalar_lea.sflag [#allocation4], %s2950
        %s2952 = sand.u32 %s406, 1
        %s2953 = smul.addr %s2952, 4
        %s2954 = scalar_lea.vmem [#allocation10], %s2953
        // Predicated region
        $region105: #{tpu_custom_call.1} parent=87 // pred_check
          %p2955 = pneg %p416
        $region106: #{tpu_custom_call.1} parent=87 // pred_check_branch
          %2957 = sbr.rel (%p2955) target = $region108
        $region107: #{tpu_custom_call.1} parent=87 // pred_region
          %s2958 = smul.u32 4, %s36
          %s2960 = ssub.s32 64, 64
          %2961 = vsyncadd %s2951, %s2960
          %s2962 = smul.addr %s2958, 16
          %s2963 = scalar_lea.hbm %s17, %s2962
          %s2964 = sshll.u32 %s2954, 4
          %s2965 = int_to_ptr.vmem [resolvable:$true] %s2964
          %2970 = dma.vmem_to_hbm [thread:$0]  %s2965, 64, %s2963, %s2951, 16, 16, 1
        $region108: #{tpu_custom_call.1} parent=87 // pred_fallthru
          _
      $region88: #{tpu_custom_call.1} parent=5 // pred_fallthru
        _
      %p2971 = scmp.le.s32.totalorder 2, %s31
      // Predicated region
      $region109: #{tpu_custom_call.1} parent=5 // pred_check
        %p2972 = pneg %p2971
      $region110: #{tpu_custom_call.1} parent=5 // pred_check_branch
        %2974 = sbr.rel (%p2972) target = $region112
      $region111: #{tpu_custom_call.1} parent=5 // pred_region
        %s2975 = ssub.s32 %s31, 2
        // Predicated region
        $region113: #{tpu_custom_call.1} parent=111 // pred_check
          %p2976 = pneg %p422
        $region114: #{tpu_custom_call.1} parent=111 // pred_check_branch
          %2978 = sbr.rel (%p2976) target = $region116
        $region115: #{tpu_custom_call.1} parent=111 // pred_region
          %s2979 = sand.u32 %s407, 1
          %s2980 = scalar_lea.sflag [#allocation4], %s2979
          %s2981 = sand.u32 %s407, 1
          %s2982 = smul.addr %s2981, 4
          %s2983 = scalar_lea.vmem [#allocation10], %s2982
          %2984 = dma.done %s2980, 64
        $region116: #{tpu_custom_call.1} parent=111 // pred_fallthru
          _
      $region112: #{tpu_custom_call.1} parent=5 // pred_fallthru
        _
    $region6: #{tpu_custom_call.1} parent=1 // loop_footer
      %s35 = sadd.s32 1, %s31
    $region7: #{tpu_custom_call.1} parent=1 // loop_footer_branch
      %30 = sbr.rel target = $region3
    $region8: #{tpu_custom_call.1} parent=1 // loop_exit
      _
    %2985 = vsyncpa [#allocation3], 1
    %s2986 = scalar_lea.sflag [#allocation3], 1
    %2987 = vsyncpa %s2986, 1
    %2988 = vsyncpa [#allocation6], 1
    %2989 = vsyncpa [#allocation9], 1
    %2990 = vsyncpa [#allocation4], 1
    %s2991 = scalar_lea.sflag [#allocation4], 1
    %2992 = vsyncpa %s2991, 1

</llo_original>
